<compile_context>
chip_gen: v5e
topology: v5e:2x2
jax: 0.10.0
libtpu: 0.0.40
codegen_flags: <defaults>
</compile_context>

<pallas_src>
import math

import jax
import jax.numpy as jnp
from jax.experimental import pallas as pl
from jax.experimental.pallas import tpu as pltpu

# ---------------- configuration (small synthetic shapes) ----------------
BATCH = 2
IN_CHANNELS = 16          # != HIDDEN -> 1x1 input_proj conv is active
HIDDEN = 32               # d_model
NUM_QUERIES = 8
NUM_HEADS = 4
HEAD_DIM = HIDDEN // NUM_HEADS
DIM_FF = 64
MASK_DIM = 32
DEC_LAYERS = 3
NUM_LEVELS = 3
LEVEL_SIZES = [(8, 8), (4, 4), (4, 4)]   # (H, W) of the 3 multi-scale features
MASK_HW = (8, 8)                         # mask_features spatial size
LN_EPS = 1e-5

LEVEL_HW = tuple(h * w for (h, w) in LEVEL_SIZES)
LEVEL_OFF = tuple(int(sum(LEVEL_HW[:i])) for i in range(NUM_LEVELS))
TOTAL_HW = int(sum(LEVEL_HW))
HWM = MASK_HW[0] * MASK_HW[1]

# attn-mask target for decoder layer i is size_list[i % num_levels]
TARGET_SIZES = tuple(LEVEL_SIZES[i % NUM_LEVELS] for i in range(DEC_LAYERS))
RS_KEYS = tuple(None if ts == MASK_HW else ('rs_%dx%d' % ts) for ts in TARGET_SIZES)
RS_UNIQUE = tuple(sorted({k for k in RS_KEYS if k is not None}))
RS_TARGET = {('rs_%dx%d' % ts): ts for ts in TARGET_SIZES if ts != MASK_HW}


# ---------------- offline helpers ----------------


def position_embedding_sine(H, W, num_pos_feats, temperature=10000.0):
    """PositionEmbeddingSine(normalize=True); batch-independent -> (H*W, 2*npf)."""
    scale = 2.0 * math.pi
    eps = 1e-6
    y_embed = jnp.broadcast_to(jnp.arange(1, H + 1, dtype=jnp.float32)[:, None], (H, W))
    x_embed = jnp.broadcast_to(jnp.arange(1, W + 1, dtype=jnp.float32)[None, :], (H, W))
    y_embed = y_embed / (float(H) + eps) * scale
    x_embed = x_embed / (float(W) + eps) * scale
    dim_t = jnp.arange(num_pos_feats, dtype=jnp.float32)
    dim_t = temperature ** (2.0 * jnp.floor(dim_t / 2.0) / num_pos_feats)
    pos_x = x_embed[:, :, None] / dim_t
    pos_y = y_embed[:, :, None] / dim_t
    pos_x = jnp.stack((jnp.sin(pos_x[:, :, 0::2]), jnp.cos(pos_x[:, :, 1::2])),
                      axis=3).reshape(H, W, -1)
    pos_y = jnp.stack((jnp.sin(pos_y[:, :, 0::2]), jnp.cos(pos_y[:, :, 1::2])),
                      axis=3).reshape(H, W, -1)
    pos = jnp.concatenate((pos_y, pos_x), axis=2)          # (H, W, 2*npf)
    return pos.reshape(H * W, 2 * num_pos_feats)


def _bilinear_resize_matrix(src_hw, dst_hw):
    """Exact matrix for F.interpolate(bilinear, align_corners=False): (sh*sw, dh*dw)."""
    sh, sw = src_hw
    dh, dw = dst_hw
    basis = jnp.eye(sh * sw, dtype=jnp.float32).reshape(sh * sw, sh, sw)
    out = jax.image.resize(basis, (sh * sw, dh, dw), method='bilinear', antialias=False)
    return out.reshape(sh * sw, dh * dw)


class _SlabPacker:
    """Row-wise packer of 2-D f32 arrays into one (rows, width) slab.
    Every item starts at a sublane-aligned (multiple-of-8) row offset."""

    def __init__(self, width):
        self.width = width
        self.parts = []
        self.offsets = {}
        self.nrows = 0

    def add(self, name, arr):
        r, c = arr.shape
        assert c <= self.width, (name, arr.shape, self.width)
        pad_r = (-r) % 8
        self.parts.append(jnp.pad(arr, ((0, pad_r), (0, self.width - c))))
        self.offsets[name] = (self.nrows, r, c)
        self.nrows += r + pad_r

    def finalize(self):
        return jnp.concatenate(self.parts, axis=0)


# ---------------- parameter init (deterministic, synthetic) ----------------


def init_params(key):
    it = iter(jax.random.split(key, 256))

    def nrm(shape, s=0.1):
        return (s * jax.random.normal(next(it), shape)).astype(jnp.float32)

    def attn_params():
        return {
            'wq': nrm((HIDDEN, HIDDEN)), 'wk': nrm((HIDDEN, HIDDEN)),
            'wv': nrm((HIDDEN, HIDDEN)), 'wo': nrm((HIDDEN, HIDDEN)),
            'bq': nrm((HIDDEN,), 0.02), 'bk': nrm((HIDDEN,), 0.02),
            'bv': nrm((HIDDEN,), 0.02), 'bo': nrm((HIDDEN,), 0.02),
            'ln_w': jnp.ones((HIDDEN,), jnp.float32),
            'ln_b': jnp.zeros((HIDDEN,), jnp.float32),
        }

    p = {
        'query_feat': nrm((NUM_QUERIES, HIDDEN)),
        'query_embed': nrm((NUM_QUERIES, HIDDEN)),
        'level_embed': nrm((NUM_LEVELS, HIDDEN)),
        'proj_w': [nrm((IN_CHANNELS, HIDDEN)) for _ in range(NUM_LEVELS)],  # 1x1 conv
        'proj_b': [nrm((HIDDEN,), 0.02) for _ in range(NUM_LEVELS)],
        'dec_ln_w': jnp.ones((HIDDEN,), jnp.float32),
        'dec_ln_b': jnp.zeros((HIDDEN,), jnp.float32),
        'me_w1': nrm((HIDDEN, HIDDEN)), 'me_b1': nrm((HIDDEN,), 0.02),
        'me_w2': nrm((HIDDEN, HIDDEN)), 'me_b2': nrm((HIDDEN,), 0.02),
        'me_w3': nrm((HIDDEN, MASK_DIM)), 'me_b3': nrm((MASK_DIM,), 0.02),
        'layers': [],
    }
    for _ in range(DEC_LAYERS):
        p['layers'].append({
            'cross': attn_params(),
            'self': attn_params(),
            'ffn': {
                'w1': nrm((HIDDEN, DIM_FF)), 'b1': nrm((DIM_FF,), 0.02),
                'w2': nrm((DIM_FF, HIDDEN)), 'b2': nrm((HIDDEN,), 0.02),
                'ln_w': jnp.ones((HIDDEN,), jnp.float32),
                'ln_b': jnp.zeros((HIDDEN,), jnp.float32),
            },
        })
    return p


# ---------------- offline weight rewrite + slab packing ----------------


def pack_params(p):
    """Fold 1/sqrt(hd), query/pos embeddings, level embedding and the 1x1 input
    projection into the per-layer weights; fuse QKV; pre-transpose the cross
    K/V weights; pack everything into two flat slabs (width 32 / width 96)."""
    scale = 1.0 / math.sqrt(HEAD_DIM)
    qe = p['query_embed']
    pos = [position_embedding_sine(h, w, HIDDEN // 2) for (h, w) in LEVEL_SIZES]

    packers = (_SlabPacker(32), _SlabPacker(96))
    index = {}

    def add(name, arr):
        arr = jnp.asarray(arr, jnp.float32)
        if arr.ndim == 1:
            arr = arr[None, :]
        sid = 0 if arr.shape[1] <= 32 else 1
        packers[sid].add(name, arr)
        index[name] = (sid,) + packers[sid].offsets[name]

    # query features + prediction head
    add('qf', p['query_feat'])
    add('ph_w1', p['me_w1'])
    add('ph_w2', p['me_w2'])
    add('ph_w3', p['me_w3'])
    add('ph_vec', jnp.stack([p['dec_ln_w'], p['dec_ln_b'], p['me_b1'], p['me_b2']]))
    add('ph_b3', p['me_b3'])
    # deduplicated bilinear resize matrices (one per distinct target size)
    for key in RS_UNIQUE:
        add(key, _bilinear_resize_matrix(MASK_HW, RS_TARGET[key]))

    for i, lyr in enumerate(p['layers']):
        li = i % NUM_LEVELS
        ca, sa, ff = lyr['cross'], lyr['self'], lyr['ffn']
        base = p['proj_b'][li] + p['level_embed'][li]          # conv bias + level embed

        # ---- masked cross-attention ----
        wq_s = ca['wq'] * scale
        add('c_wq_%d' % i, wq_s)
        add('c_qc_%d' % i, qe @ wq_s + ca['bq'] * scale)       # (Q, D) query-pos const
        wpk = p['proj_w'][li] @ ca['wk']                       # 1x1 proj folded: (Cin, D)
        wpv = p['proj_w'][li] @ ca['wv']
        add('c_wkvT_%d' % i, jnp.concatenate([wpk.T, wpv.T], axis=0))        # (2D, Cin)
        kconst = pos[li] @ ca['wk'] + base @ ca['wk'] + ca['bk']             # (S, D)
        vconst = jnp.broadcast_to(base @ ca['wv'] + ca['bv'],
                                  (LEVEL_HW[li], HIDDEN))                    # (S, D)
        add('c_kcT_%d' % i, jnp.concatenate([kconst, vconst], axis=1).T)     # (2D, S)
        add('c_%d_wo' % i, ca['wo'])
        add('c_%d_vec' % i, jnp.stack([ca['bo'], ca['ln_w'], ca['ln_b']]))

        # ---- self-attention (fused QKV) ----
        wq_s2 = sa['wq'] * scale
        add('s_wqkv_%d' % i, jnp.concatenate([wq_s2, sa['wk'], sa['wv']], axis=1))
        add('s_qkvc_%d' % i, jnp.concatenate(
            [qe @ wq_s2 + sa['bq'] * scale,
             qe @ sa['wk'] + sa['bk'],
             jnp.broadcast_to(sa['bv'], (NUM_QUERIES, HIDDEN))], axis=1))    # (Q, 3D)
        add('s_%d_wo' % i, sa['wo'])
        add('s_%d_vec' % i, jnp.stack([sa['bo'], sa['ln_w'], sa['ln_b']]))

        # ---- FFN ----
        add('f_w1_%d' % i, ff['w1'])
        add('f_b1_%d' % i, ff['b1'])
        add('f_w2_%d' % i, ff['w2'])
        add('f_vec_%d' % i, jnp.stack([ff['b2'], ff['ln_w'], ff['ln_b']]))

    return packers[0].finalize(), packers[1].finalize(), index


# ---------------- fused decoder (single pallas_call) ----------------


def make_forward(index):
    Hm, Wm = MASK_HW

    def kernel(x_ref, mf_ref, slab_a_ref, slab_b_ref, out_ref):
        slabs = (slab_a_ref, slab_b_ref)
        Wv = {}
        for name, (sid, off, r, c) in index.items():
            Wv[name] = slabs[sid][off:off + r, 0:c]            # static VMEM slices

        def layernorm(v, w, b):
            mu = jnp.mean(v, axis=-1, keepdims=True)
            vc = v - mu
            var = jnp.mean(vc * vc, axis=-1, keepdims=True)
            return vc * jax.lax.rsqrt(var + LN_EPS) * w + b

        def attend(q, k, v, bias, kv_t):
            # q: (Q, D).  kv_t=True: k, v are (D, S) (pre-transposed); else (S, D).
            # Scores of all heads are stacked to (nh*Q, S) so the softmax runs once.
            s_parts = []
            for h in range(NUM_HEADS):
                sl = slice(h * HEAD_DIM, (h + 1) * HEAD_DIM)
                if kv_t:
                    s_parts.append(jnp.dot(q[:, sl], k[sl, :],
                                           preferred_element_type=jnp.float32))
                else:
                    s_parts.append(jax.lax.dot_general(
                        q[:, sl], k[:, sl], (((1,), (1,)), ((), ())),
                        preferred_element_type=jnp.float32))
            s = jnp.concatenate(s_parts, axis=0)               # (nh*Q, S)
            if bias is not None:
                s = s + jnp.concatenate([bias] * NUM_HEADS, axis=0)
            s = s - jnp.max(s, axis=-1, keepdims=True)
            p = jnp.exp(s)
            p = p / jnp.sum(p, axis=-1, keepdims=True)         # exact divide (parity)
            o_parts = []
            for h in range(NUM_HEADS):
                sl = slice(h * HEAD_DIM, (h + 1) * HEAD_DIM)
                ph = p[h * NUM_QUERIES:(h + 1) * NUM_QUERIES, :]
                if kv_t:
                    o_parts.append(jax.lax.dot_general(
                        ph, v[sl, :], (((1,), (1,)), ((), ())),
                        preferred_element_type=jnp.float32))
                else:
                    o_parts.append(jnp.dot(ph, v[:, sl],
                                           preferred_element_type=jnp.float32))
            return jnp.concatenate(o_parts, axis=1)            # (Q, D)

        def attn_out(tgt, o, key):
            vec = Wv[key + '_vec']                             # [bo; ln_w; ln_b]
            y = tgt + jnp.dot(o, Wv[key + '_wo'],
                              preferred_element_type=jnp.float32) + vec[0:1]
            return layernorm(y, vec[1:2], vec[2:3])

        def mask_embed(tgt):
            pv = Wv['ph_vec']                                  # [dec_lnw; dec_lnb; b1; b2]
            dec = layernorm(tgt, pv[0:1], pv[1:2])
            h1 = jnp.maximum(jnp.dot(dec, Wv['ph_w1'],
                                     preferred_element_type=jnp.float32) + pv[2:3], 0.0)
            h2 = jnp.maximum(jnp.dot(h1, Wv['ph_w2'],
                                     preferred_element_type=jnp.float32) + pv[3:4], 0.0)
            return jnp.dot(h2, Wv['ph_w3'],
                           preferred_element_type=jnp.float32) + Wv['ph_b3']

        def mask_bias(z):
            # sigmoid(z) < 0.5 <=> z < 0 ; fully-masked rows are un-masked (fixup)
            row_max = jnp.max(z, axis=-1, keepdims=True)
            masked = jnp.logical_and(z < 0.0, row_max >= 0.0)
            return jnp.where(masked, jnp.float32(-1e9), jnp.float32(0.0))

        def run_batch(b):
            x = x_ref[b]                                       # (Cin, T), lane-dense
            mf = mf_ref[b]                                     # (MASK_DIM, HWm)
            # fold the bilinear resize into mask_features once (exact, linear)
            mf_rs = {k: jnp.dot(mf, Wv[k], preferred_element_type=jnp.float32)
                     for k in RS_UNIQUE}

            def bias_for(tgt, key):
                mfk = mf if key is None else mf_rs[key]
                return mask_bias(jnp.dot(mask_embed(tgt), mfk,
                                         preferred_element_type=jnp.float32))

            tgt = Wv['qf']                                     # (Q, D)
            bias = bias_for(tgt, RS_KEYS[0])
            logits = None
            for i in range(DEC_LAYERS):
                li = i % NUM_LEVELS
                off, hw = LEVEL_OFF[li], LEVEL_HW[li]
                # ---- masked cross-attention (proj/level-embed/pos folded) ----
                q = jnp.dot(tgt, Wv['c_wq_%d' % i],
                            preferred_element_type=jnp.float32) + Wv['c_qc_%d' % i]
                kvT = jnp.dot(Wv['c_wkvT_%d' % i], x[:, off:off + hw],
                              preferred_element_type=jnp.float32) + Wv['c_kcT_%d' % i]
                o = attend(q, kvT[0:HIDDEN, :], kvT[HIDDEN:2 * HIDDEN, :],
                           bias, kv_t=True)
                tgt = attn_out(tgt, o, 'c_%d' % i)
                # ---- self-attention (fused QKV, no mask) ----
                qkv = jnp.dot(tgt, Wv['s_wqkv_%d' % i],
                              preferred_element_type=jnp.float32) + Wv['s_qkvc_%d' % i]
                o = attend(qkv[:, 0:HIDDEN], qkv[:, HIDDEN:2 * HIDDEN],
                           qkv[:, 2 * HIDDEN:3 * HIDDEN], None, kv_t=False)
                tgt = attn_out(tgt, o, 's_%d' % i)
                # ---- FFN (post-norm) ----
                fv = Wv['f_vec_%d' % i]                        # [b2; ln_w; ln_b]
                h1 = jnp.maximum(
                    jnp.dot(tgt, Wv['f_w1_%d' % i],
                            preferred_element_type=jnp.float32) + Wv['f_b1_%d' % i], 0.0)
                y = jnp.dot(h1, Wv['f_w2_%d' % i],
                            preferred_element_type=jnp.float32) + fv[0:1]
                tgt = layernorm(tgt + y, fv[1:2], fv[2:3])
                # ---- prediction head: next-layer bias / final logits ----
                if i + 1 < DEC_LAYERS:
                    bias = bias_for(tgt, RS_KEYS[i + 1])
                else:
                    logits = jnp.dot(mask_embed(tgt), mf,
                                     preferred_element_type=jnp.float32)   # (Q, HWm)
            return logits

        # lane-dense (Q, B*HWm) = (8, 128) store
        out_ref[...] = jnp.concatenate([run_batch(b) for b in range(BATCH)], axis=1)

    @jax.jit
    def forward(slab_a, slab_b, x_list, mask_features):
        xs = [xl.reshape(BATCH, IN_CHANNELS, -1) for xl in x_list]   # views only
        x_all = jnp.concatenate(xs, axis=2)                          # (B, Cin, T)
        mf_flat = mask_features.reshape(BATCH, MASK_DIM, HWM)        # (B, C, HWm)
        out = pl.pallas_call(
            kernel,
            out_shape=jax.ShapeDtypeStruct((NUM_QUERIES, BATCH * HWM), jnp.float32),
            in_specs=[pl.BlockSpec(memory_space=pltpu.MemorySpace.VMEM)] * 4,
            out_specs=pl.BlockSpec(memory_space=pltpu.MemorySpace.VMEM),
        )(x_all, mf_flat, slab_a, slab_b)
        pred = out.reshape(NUM_QUERIES, BATCH, Hm, Wm).transpose(1, 0, 2, 3)
        return {'pred_masks': pred}

    return forward


# ---------------- main ----------------

if __name__ == "__main__":
    root = jax.random.PRNGKey(0)
    k_params, k_x0, k_x1, k_x2, k_mf = jax.random.split(root, 5)
    params = init_params(k_params)
    slab_a, slab_b, index = pack_params(params)
    fwd = make_forward(index)

    x_list = tuple(
        jax.random.normal(k, (BATCH, IN_CHANNELS, h, w), jnp.float32)
        for k, (h, w) in zip((k_x0, k_x1, k_x2), LEVEL_SIZES)
    )
    mask_features = jax.random.normal(
        k_mf, (BATCH, MASK_DIM, MASK_HW[0], MASK_HW[1]), jnp.float32)

    out = fwd(slab_a, slab_b, x_list, mask_features)
    pred = jax.block_until_ready(out['pred_masks'])

    assert pred.shape == (BATCH, NUM_QUERIES, MASK_HW[0], MASK_HW[1]), pred.shape
    assert bool(jnp.all(jnp.isfinite(pred)))
    print("KERNEL_OK")
</pallas_src>

<mosaic_0001>
module attributes {stable_mosaic.version = 11 : i64} {
  func.func @kernel(%arg0: memref<2x16x96xf32, #tpu.memory_space<vmem>>, %arg1: memref<2x32x64xf32, #tpu.memory_space<vmem>>, %arg2: memref<1080x32xf32, #tpu.memory_space<vmem>>, %arg3: memref<304x96xf32, #tpu.memory_space<vmem>>, %arg4: memref<8x128xf32, #tpu.memory_space<vmem>>) attributes {dimension_semantics = [], scalar_prefetch = 0 : i64, scratch_operands = 0 : i64, tpu.core_type = #tpu.core_type<tc>} {
    %c0 = arith.constant 0 : index
    %c0_0 = arith.constant 0 : index
    %0 = vector.load %arg2[%c0, %c0_0] : memref<1080x32xf32, #tpu.memory_space<vmem>>, vector<8x32xf32>
    %c8 = arith.constant 8 : index
    %c0_1 = arith.constant 0 : index
    %1 = vector.load %arg2[%c8, %c0_1] : memref<1080x32xf32, #tpu.memory_space<vmem>>, vector<32x32xf32>
    %c40 = arith.constant 40 : index
    %c0_2 = arith.constant 0 : index
    %2 = vector.load %arg2[%c40, %c0_2] : memref<1080x32xf32, #tpu.memory_space<vmem>>, vector<32x32xf32>
    %c72 = arith.constant 72 : index
    %c0_3 = arith.constant 0 : index
    %3 = vector.load %arg2[%c72, %c0_3] : memref<1080x32xf32, #tpu.memory_space<vmem>>, vector<32x32xf32>
    %c104 = arith.constant 104 : index
    %c0_4 = arith.constant 0 : index
    %4 = vector.load %arg2[%c104, %c0_4] : memref<1080x32xf32, #tpu.memory_space<vmem>>, vector<4x32xf32>
    %c112 = arith.constant 112 : index
    %c0_5 = arith.constant 0 : index
    %5 = vector.load %arg2[%c112, %c0_5] : memref<1080x32xf32, #tpu.memory_space<vmem>>, vector<1x32xf32>
    %c120 = arith.constant 120 : index
    %c0_6 = arith.constant 0 : index
    %6 = vector.load %arg2[%c120, %c0_6] : memref<1080x32xf32, #tpu.memory_space<vmem>>, vector<64x16xf32>
    %c184 = arith.constant 184 : index
    %c0_7 = arith.constant 0 : index
    %7 = vector.load %arg2[%c184, %c0_7] : memref<1080x32xf32, #tpu.memory_space<vmem>>, vector<32x32xf32>
    %c216 = arith.constant 216 : index
    %c0_8 = arith.constant 0 : index
    %8 = vector.load %arg2[%c216, %c0_8] : memref<1080x32xf32, #tpu.memory_space<vmem>>, vector<8x32xf32>
    %c224 = arith.constant 224 : index
    %c0_9 = arith.constant 0 : index
    %9 = vector.load %arg2[%c224, %c0_9] : memref<1080x32xf32, #tpu.memory_space<vmem>>, vector<64x16xf32>
    %c0_10 = arith.constant 0 : index
    %c0_11 = arith.constant 0 : index
    %10 = vector.load %arg3[%c0_10, %c0_11] : memref<304x96xf32, #tpu.memory_space<vmem>>, vector<64x64xf32>
    %c288 = arith.constant 288 : index
    %c0_12 = arith.constant 0 : index
    %11 = vector.load %arg2[%c288, %c0_12] : memref<1080x32xf32, #tpu.memory_space<vmem>>, vector<32x32xf32>
    %c320 = arith.constant 320 : index
    %c0_13 = arith.constant 0 : index
    %12 = vector.load %arg2[%c320, %c0_13] : memref<1080x32xf32, #tpu.memory_space<vmem>>, vector<3x32xf32>
    %c64 = arith.constant 64 : index
    %c0_14 = arith.constant 0 : index
    %13 = vector.load %arg3[%c64, %c0_14] : memref<304x96xf32, #tpu.memory_space<vmem>>, vector<32x96xf32>
    %c96 = arith.constant 96 : index
    %c0_15 = arith.constant 0 : index
    %14 = vector.load %arg3[%c96, %c0_15] : memref<304x96xf32, #tpu.memory_space<vmem>>, vector<8x96xf32>
    %c328 = arith.constant 328 : index
    %c0_16 = arith.constant 0 : index
    %15 = vector.load %arg2[%c328, %c0_16] : memref<1080x32xf32, #tpu.memory_space<vmem>>, vector<32x32xf32>
    %c360 = arith.constant 360 : index
    %c0_17 = arith.constant 0 : index
    %16 = vector.load %arg2[%c360, %c0_17] : memref<1080x32xf32, #tpu.memory_space<vmem>>, vector<3x32xf32>
    %c104_18 = arith.constant 104 : index
    %c0_19 = arith.constant 0 : index
    %17 = vector.load %arg3[%c104_18, %c0_19] : memref<304x96xf32, #tpu.memory_space<vmem>>, vector<32x64xf32>
    %c136 = arith.constant 136 : index
    %c0_20 = arith.constant 0 : index
    %18 = vector.load %arg3[%c136, %c0_20] : memref<304x96xf32, #tpu.memory_space<vmem>>, vector<1x64xf32>
    %c368 = arith.constant 368 : index
    %c0_21 = arith.constant 0 : index
    %19 = vector.load %arg2[%c368, %c0_21] : memref<1080x32xf32, #tpu.memory_space<vmem>>, vector<64x32xf32>
    %c432 = arith.constant 432 : index
    %c0_22 = arith.constant 0 : index
    %20 = vector.load %arg2[%c432, %c0_22] : memref<1080x32xf32, #tpu.memory_space<vmem>>, vector<3x32xf32>
    %c440 = arith.constant 440 : index
    %c0_23 = arith.constant 0 : index
    %21 = vector.load %arg2[%c440, %c0_23] : memref<1080x32xf32, #tpu.memory_space<vmem>>, vector<32x32xf32>
    %c472 = arith.constant 472 : index
    %c0_24 = arith.constant 0 : index
    %22 = vector.load %arg2[%c472, %c0_24] : memref<1080x32xf32, #tpu.memory_space<vmem>>, vector<8x32xf32>
    %c480 = arith.constant 480 : index
    %c0_25 = arith.constant 0 : index
    %23 = vector.load %arg2[%c480, %c0_25] : memref<1080x32xf32, #tpu.memory_space<vmem>>, vector<64x16xf32>
    %c544 = arith.constant 544 : index
    %c0_26 = arith.constant 0 : index
    %24 = vector.load %arg2[%c544, %c0_26] : memref<1080x32xf32, #tpu.memory_space<vmem>>, vector<64x16xf32>
    %c608 = arith.constant 608 : index
    %c0_27 = arith.constant 0 : index
    %25 = vector.load %arg2[%c608, %c0_27] : memref<1080x32xf32, #tpu.memory_space<vmem>>, vector<32x32xf32>
    %c640 = arith.constant 640 : index
    %c0_28 = arith.constant 0 : index
    %26 = vector.load %arg2[%c640, %c0_28] : memref<1080x32xf32, #tpu.memory_space<vmem>>, vector<3x32xf32>
    %c144 = arith.constant 144 : index
    %c0_29 = arith.constant 0 : index
    %27 = vector.load %arg3[%c144, %c0_29] : memref<304x96xf32, #tpu.memory_space<vmem>>, vector<32x96xf32>
    %c176 = arith.constant 176 : index
    %c0_30 = arith.constant 0 : index
    %28 = vector.load %arg3[%c176, %c0_30] : memref<304x96xf32, #tpu.memory_space<vmem>>, vector<8x96xf32>
    %c648 = arith.constant 648 : index
    %c0_31 = arith.constant 0 : index
    %29 = vector.load %arg2[%c648, %c0_31] : memref<1080x32xf32, #tpu.memory_space<vmem>>, vector<32x32xf32>
    %c680 = arith.constant 680 : index
    %c0_32 = arith.constant 0 : index
    %30 = vector.load %arg2[%c680, %c0_32] : memref<1080x32xf32, #tpu.memory_space<vmem>>, vector<3x32xf32>
    %c184_33 = arith.constant 184 : index
    %c0_34 = arith.constant 0 : index
    %31 = vector.load %arg3[%c184_33, %c0_34] : memref<304x96xf32, #tpu.memory_space<vmem>>, vector<32x64xf32>
    %c216_35 = arith.constant 216 : index
    %c0_36 = arith.constant 0 : index
    %32 = vector.load %arg3[%c216_35, %c0_36] : memref<304x96xf32, #tpu.memory_space<vmem>>, vector<1x64xf32>
    %c688 = arith.constant 688 : index
    %c0_37 = arith.constant 0 : index
    %33 = vector.load %arg2[%c688, %c0_37] : memref<1080x32xf32, #tpu.memory_space<vmem>>, vector<64x32xf32>
    %c752 = arith.constant 752 : index
    %c0_38 = arith.constant 0 : index
    %34 = vector.load %arg2[%c752, %c0_38] : memref<1080x32xf32, #tpu.memory_space<vmem>>, vector<3x32xf32>
    %c760 = arith.constant 760 : index
    %c0_39 = arith.constant 0 : index
    %35 = vector.load %arg2[%c760, %c0_39] : memref<1080x32xf32, #tpu.memory_space<vmem>>, vector<32x32xf32>
    %c792 = arith.constant 792 : index
    %c0_40 = arith.constant 0 : index
    %36 = vector.load %arg2[%c792, %c0_40] : memref<1080x32xf32, #tpu.memory_space<vmem>>, vector<8x32xf32>
    %c800 = arith.constant 800 : index
    %c0_41 = arith.constant 0 : index
    %37 = vector.load %arg2[%c800, %c0_41] : memref<1080x32xf32, #tpu.memory_space<vmem>>, vector<64x16xf32>
    %c864 = arith.constant 864 : index
    %c0_42 = arith.constant 0 : index
    %38 = vector.load %arg2[%c864, %c0_42] : memref<1080x32xf32, #tpu.memory_space<vmem>>, vector<64x16xf32>
    %c928 = arith.constant 928 : index
    %c0_43 = arith.constant 0 : index
    %39 = vector.load %arg2[%c928, %c0_43] : memref<1080x32xf32, #tpu.memory_space<vmem>>, vector<32x32xf32>
    %c960 = arith.constant 960 : index
    %c0_44 = arith.constant 0 : index
    %40 = vector.load %arg2[%c960, %c0_44] : memref<1080x32xf32, #tpu.memory_space<vmem>>, vector<3x32xf32>
    %c224_45 = arith.constant 224 : index
    %c0_46 = arith.constant 0 : index
    %41 = vector.load %arg3[%c224_45, %c0_46] : memref<304x96xf32, #tpu.memory_space<vmem>>, vector<32x96xf32>
    %c256 = arith.constant 256 : index
    %c0_47 = arith.constant 0 : index
    %42 = vector.load %arg3[%c256, %c0_47] : memref<304x96xf32, #tpu.memory_space<vmem>>, vector<8x96xf32>
    %c968 = arith.constant 968 : index
    %c0_48 = arith.constant 0 : index
    %43 = vector.load %arg2[%c968, %c0_48] : memref<1080x32xf32, #tpu.memory_space<vmem>>, vector<32x32xf32>
    %c1000 = arith.constant 1000 : index
    %c0_49 = arith.constant 0 : index
    %44 = vector.load %arg2[%c1000, %c0_49] : memref<1080x32xf32, #tpu.memory_space<vmem>>, vector<3x32xf32>
    %c264 = arith.constant 264 : index
    %c0_50 = arith.constant 0 : index
    %45 = vector.load %arg3[%c264, %c0_50] : memref<304x96xf32, #tpu.memory_space<vmem>>, vector<32x64xf32>
    %c296 = arith.constant 296 : index
    %c0_51 = arith.constant 0 : index
    %46 = vector.load %arg3[%c296, %c0_51] : memref<304x96xf32, #tpu.memory_space<vmem>>, vector<1x64xf32>
    %c1008 = arith.constant 1008 : index
    %c0_52 = arith.constant 0 : index
    %47 = vector.load %arg2[%c1008, %c0_52] : memref<1080x32xf32, #tpu.memory_space<vmem>>, vector<64x32xf32>
    %c1072 = arith.constant 1072 : index
    %c0_53 = arith.constant 0 : index
    %48 = vector.load %arg2[%c1072, %c0_53] : memref<1080x32xf32, #tpu.memory_space<vmem>>, vector<3x32xf32>
    %c0_54 = arith.constant 0 : index
    %c0_55 = arith.constant 0 : index
    %c0_56 = arith.constant 0 : index
    %49 = vector.load %arg0[%c0_54, %c0_55, %c0_56] : memref<2x16x96xf32, #tpu.memory_space<vmem>>, vector<1x16x96xf32>
    %50 = vector.shape_cast %49 : vector<1x16x96xf32> to vector<16x96xf32>
    %c0_57 = arith.constant 0 : index
    %c0_58 = arith.constant 0 : index
    %c0_59 = arith.constant 0 : index
    %51 = vector.load %arg1[%c0_57, %c0_58, %c0_59] : memref<2x32x64xf32, #tpu.memory_space<vmem>>, vector<1x32x64xf32>
    %52 = vector.shape_cast %51 : vector<1x32x64xf32> to vector<32x64xf32>
    %cst = arith.constant dense<0.000000e+00> : vector<32x16xf32>
    %53 = tpu.matmul %52, %6, %cst {dimension_numbers = #tpu.dot_dimension_numbers<[1], [0], [0], [1], [0, 0, 1, 1], [], []>} : vector<32x64xf32>, vector<64x16xf32>, vector<32x16xf32> -> vector<32x16xf32>
    %54 = vector.extract_strided_slice %4 {offsets = [0, 0], sizes = [1, 32], strides = [1, 1]} : vector<4x32xf32> to vector<1x32xf32>
    %55 = vector.extract_strided_slice %4 {offsets = [1, 0], sizes = [1, 32], strides = [1, 1]} : vector<4x32xf32> to vector<1x32xf32>
    %cst_60 = arith.constant dense<0.000000e+00> : vector<8xf32>
    %56 = vector.multi_reduction <add>, %0, %cst_60 [1] : vector<8x32xf32> to vector<8xf32>
    %57 = vector.shape_cast %56 : vector<8xf32> to vector<8x1xf32>
    %cst_61 = arith.constant 3.200000e+01 : f32
    %58 = vector.broadcast %cst_61 : f32 to vector<8x1xf32>
    %59 = arith.divf %57, %58 : vector<8x1xf32>
    %60 = vector.broadcast %59 : vector<8x1xf32> to vector<8x32xf32>
    %61 = arith.subf %0, %60 : vector<8x32xf32>
    %62 = arith.mulf %61, %61 : vector<8x32xf32>
    %cst_62 = arith.constant dense<0.000000e+00> : vector<8xf32>
    %63 = vector.multi_reduction <add>, %62, %cst_62 [1] : vector<8x32xf32> to vector<8xf32>
    %64 = vector.shape_cast %63 : vector<8xf32> to vector<8x1xf32>
    %cst_63 = arith.constant 3.200000e+01 : f32
    %65 = vector.broadcast %cst_63 : f32 to vector<8x1xf32>
    %66 = arith.divf %64, %65 : vector<8x1xf32>
    %cst_64 = arith.constant 9.99999974E-6 : f32
    %67 = vector.broadcast %cst_64 : f32 to vector<8x1xf32>
    %68 = arith.addf %66, %67 : vector<8x1xf32>
    %69 = math.rsqrt %68 : vector<8x1xf32>
    %70 = vector.broadcast %69 : vector<8x1xf32> to vector<8x32xf32>
    %71 = arith.mulf %61, %70 : vector<8x32xf32>
    %72 = vector.broadcast %54 : vector<1x32xf32> to vector<8x32xf32>
    %73 = arith.mulf %71, %72 : vector<8x32xf32>
    %74 = vector.broadcast %55 : vector<1x32xf32> to vector<8x32xf32>
    %75 = arith.addf %73, %74 : vector<8x32xf32>
    %cst_65 = arith.constant dense<0.000000e+00> : vector<8x32xf32>
    %76 = tpu.matmul %75, %1, %cst_65 {dimension_numbers = #tpu.dot_dimension_numbers<[1], [0], [0], [1], [0, 0, 1, 1], [], []>} : vector<8x32xf32>, vector<32x32xf32>, vector<8x32xf32> -> vector<8x32xf32>
    %77 = vector.extract_strided_slice %4 {offsets = [2, 0], sizes = [1, 32], strides = [1, 1]} : vector<4x32xf32> to vector<1x32xf32>
    %78 = vector.broadcast %77 : vector<1x32xf32> to vector<8x32xf32>
    %79 = arith.addf %76, %78 : vector<8x32xf32>
    %cst_66 = arith.constant 0.000000e+00 : f32
    %80 = vector.broadcast %cst_66 : f32 to vector<8x32xf32>
    %81 = arith.maximumf %79, %80 : vector<8x32xf32>
    %cst_67 = arith.constant dense<0.000000e+00> : vector<8x32xf32>
    %82 = tpu.matmul %81, %2, %cst_67 {dimension_numbers = #tpu.dot_dimension_numbers<[1], [0], [0], [1], [0, 0, 1, 1], [], []>} : vector<8x32xf32>, vector<32x32xf32>, vector<8x32xf32> -> vector<8x32xf32>
    %83 = vector.extract_strided_slice %4 {offsets = [3, 0], sizes = [1, 32], strides = [1, 1]} : vector<4x32xf32> to vector<1x32xf32>
    %84 = vector.broadcast %83 : vector<1x32xf32> to vector<8x32xf32>
    %85 = arith.addf %82, %84 : vector<8x32xf32>
    %cst_68 = arith.constant 0.000000e+00 : f32
    %86 = vector.broadcast %cst_68 : f32 to vector<8x32xf32>
    %87 = arith.maximumf %85, %86 : vector<8x32xf32>
    %cst_69 = arith.constant dense<0.000000e+00> : vector<8x32xf32>
    %88 = tpu.matmul %87, %3, %cst_69 {dimension_numbers = #tpu.dot_dimension_numbers<[1], [0], [0], [1], [0, 0, 1, 1], [], []>} : vector<8x32xf32>, vector<32x32xf32>, vector<8x32xf32> -> vector<8x32xf32>
    %89 = vector.broadcast %5 : vector<1x32xf32> to vector<8x32xf32>
    %90 = arith.addf %88, %89 : vector<8x32xf32>
    %cst_70 = arith.constant dense<0.000000e+00> : vector<8x64xf32>
    %91 = tpu.matmul %90, %52, %cst_70 {dimension_numbers = #tpu.dot_dimension_numbers<[1], [0], [0], [1], [0, 0, 1, 1], [], []>} : vector<8x32xf32>, vector<32x64xf32>, vector<8x64xf32> -> vector<8x64xf32>
    %cst_71 = arith.constant dense<0xFF800000> : vector<8xf32>
    %92 = vector.multi_reduction <maximumf>, %91, %cst_71 [1] : vector<8x64xf32> to vector<8xf32>
    %93 = vector.shape_cast %92 : vector<8xf32> to vector<8x1xf32>
    %cst_72 = arith.constant 0.000000e+00 : f32
    %94 = vector.broadcast %cst_72 : f32 to vector<8x64xf32>
    %95 = arith.cmpf olt, %91, %94 : vector<8x64xf32>
    %cst_73 = arith.constant 0.000000e+00 : f32
    %96 = vector.broadcast %cst_73 : f32 to vector<8x1xf32>
    %97 = arith.cmpf oge, %93, %96 : vector<8x1xf32>
    %98 = vector.broadcast %97 : vector<8x1xi1> to vector<8x64xi1>
    %99 = arith.andi %95, %98 : vector<8x64xi1>
    %cst_74 = arith.constant -1.000000e+09 : f32
    %cst_75 = arith.constant 0.000000e+00 : f32
    %100 = vector.broadcast %cst_74 : f32 to vector<8x64xf32>
    %101 = vector.broadcast %cst_75 : f32 to vector<8x64xf32>
    %102 = arith.select %99, %100, %101 : vector<8x64xi1>, vector<8x64xf32>
    %cst_76 = arith.constant dense<0.000000e+00> : vector<8x32xf32>
    %103 = tpu.matmul %0, %7, %cst_76 {dimension_numbers = #tpu.dot_dimension_numbers<[1], [0], [0], [1], [0, 0, 1, 1], [], []>} : vector<8x32xf32>, vector<32x32xf32>, vector<8x32xf32> -> vector<8x32xf32>
    %104 = arith.addf %103, %8 : vector<8x32xf32>
    %105 = vector.extract_strided_slice %50 {offsets = [0, 0], sizes = [16, 64], strides = [1, 1]} : vector<16x96xf32> to vector<16x64xf32>
    %cst_77 = arith.constant dense<0.000000e+00> : vector<64x64xf32>
    %106 = tpu.matmul %9, %105, %cst_77 {dimension_numbers = #tpu.dot_dimension_numbers<[1], [0], [0], [1], [0, 0, 1, 1], [], []>} : vector<64x16xf32>, vector<16x64xf32>, vector<64x64xf32> -> vector<64x64xf32>
    %107 = arith.addf %106, %10 : vector<64x64xf32>
    %108 = vector.extract_strided_slice %107 {offsets = [0, 0], sizes = [32, 64], strides = [1, 1]} : vector<64x64xf32> to vector<32x64xf32>
    %109 = vector.extract_strided_slice %107 {offsets = [32, 0], sizes = [32, 64], strides = [1, 1]} : vector<64x64xf32> to vector<32x64xf32>
    %110 = vector.extract_strided_slice %104 {offsets = [0, 0], sizes = [8, 8], strides = [1, 1]} : vector<8x32xf32> to vector<8x8xf32>
    %111 = vector.extract_strided_slice %108 {offsets = [0, 0], sizes = [8, 64], strides = [1, 1]} : vector<32x64xf32> to vector<8x64xf32>
    %cst_78 = arith.constant dense<0.000000e+00> : vector<8x64xf32>
    %112 = tpu.matmul %110, %111, %cst_78 {dimension_numbers = #tpu.dot_dimension_numbers<[1], [0], [0], [1], [0, 0, 1, 1], [], []>} : vector<8x8xf32>, vector<8x64xf32>, vector<8x64xf32> -> vector<8x64xf32>
    %113 = vector.extract_strided_slice %104 {offsets = [0, 8], sizes = [8, 8], strides = [1, 1]} : vector<8x32xf32> to vector<8x8xf32>
    %114 = vector.extract_strided_slice %108 {offsets = [8, 0], sizes = [8, 64], strides = [1, 1]} : vector<32x64xf32> to vector<8x64xf32>
    %cst_79 = arith.constant dense<0.000000e+00> : vector<8x64xf32>
    %115 = tpu.matmul %113, %114, %cst_79 {dimension_numbers = #tpu.dot_dimension_numbers<[1], [0], [0], [1], [0, 0, 1, 1], [], []>} : vector<8x8xf32>, vector<8x64xf32>, vector<8x64xf32> -> vector<8x64xf32>
    %116 = vector.extract_strided_slice %104 {offsets = [0, 16], sizes = [8, 8], strides = [1, 1]} : vector<8x32xf32> to vector<8x8xf32>
    %117 = vector.extract_strided_slice %108 {offsets = [16, 0], sizes = [8, 64], strides = [1, 1]} : vector<32x64xf32> to vector<8x64xf32>
    %cst_80 = arith.constant dense<0.000000e+00> : vector<8x64xf32>
    %118 = tpu.matmul %116, %117, %cst_80 {dimension_numbers = #tpu.dot_dimension_numbers<[1], [0], [0], [1], [0, 0, 1, 1], [], []>} : vector<8x8xf32>, vector<8x64xf32>, vector<8x64xf32> -> vector<8x64xf32>
    %119 = vector.extract_strided_slice %104 {offsets = [0, 24], sizes = [8, 8], strides = [1, 1]} : vector<8x32xf32> to vector<8x8xf32>
    %120 = vector.extract_strided_slice %108 {offsets = [24, 0], sizes = [8, 64], strides = [1, 1]} : vector<32x64xf32> to vector<8x64xf32>
    %cst_81 = arith.constant dense<0.000000e+00> : vector<8x64xf32>
    %121 = tpu.matmul %119, %120, %cst_81 {dimension_numbers = #tpu.dot_dimension_numbers<[1], [0], [0], [1], [0, 0, 1, 1], [], []>} : vector<8x8xf32>, vector<8x64xf32>, vector<8x64xf32> -> vector<8x64xf32>
    %122 = tpu.concatenate %112, %115, %118, %121 in 0 : vector<8x64xf32>, vector<8x64xf32>, vector<8x64xf32>, vector<8x64xf32> -> vector<32x64xf32>
    %123 = tpu.concatenate %102, %102, %102, %102 in 0 : vector<8x64xf32>, vector<8x64xf32>, vector<8x64xf32>, vector<8x64xf32> -> vector<32x64xf32>
    %124 = arith.addf %122, %123 : vector<32x64xf32>
    %cst_82 = arith.constant dense<0xFF800000> : vector<32xf32>
    %125 = vector.multi_reduction <maximumf>, %124, %cst_82 [1] : vector<32x64xf32> to vector<32xf32>
    %126 = vector.shape_cast %125 : vector<32xf32> to vector<32x1xf32>
    %127 = vector.broadcast %126 : vector<32x1xf32> to vector<32x64xf32>
    %128 = arith.subf %124, %127 : vector<32x64xf32>
    %129 = math.exp %128 : vector<32x64xf32>
    %cst_83 = arith.constant dense<0.000000e+00> : vector<32xf32>
    %130 = vector.multi_reduction <add>, %129, %cst_83 [1] : vector<32x64xf32> to vector<32xf32>
    %131 = vector.shape_cast %130 : vector<32xf32> to vector<32x1xf32>
    %132 = vector.broadcast %131 : vector<32x1xf32> to vector<32x64xf32>
    %133 = arith.divf %129, %132 : vector<32x64xf32>
    %134 = vector.extract_strided_slice %133 {offsets = [0, 0], sizes = [8, 64], strides = [1, 1]} : vector<32x64xf32> to vector<8x64xf32>
    %135 = vector.extract_strided_slice %109 {offsets = [0, 0], sizes = [8, 64], strides = [1, 1]} : vector<32x64xf32> to vector<8x64xf32>
    %cst_84 = arith.constant dense<0.000000e+00> : vector<8x8xf32>
    %136 = tpu.matmul %134, %135, %cst_84 {dimension_numbers = #tpu.dot_dimension_numbers<[1], [1], [0], [0], [0, 0, 1, 0], [], []>} : vector<8x64xf32>, vector<8x64xf32>, vector<8x8xf32> -> vector<8x8xf32>
    %137 = vector.extract_strided_slice %133 {offsets = [8, 0], sizes = [8, 64], strides = [1, 1]} : vector<32x64xf32> to vector<8x64xf32>
    %138 = vector.extract_strided_slice %109 {offsets = [8, 0], sizes = [8, 64], strides = [1, 1]} : vector<32x64xf32> to vector<8x64xf32>
    %cst_85 = arith.constant dense<0.000000e+00> : vector<8x8xf32>
    %139 = tpu.matmul %137, %138, %cst_85 {dimension_numbers = #tpu.dot_dimension_numbers<[1], [1], [0], [0], [0, 0, 1, 0], [], []>} : vector<8x64xf32>, vector<8x64xf32>, vector<8x8xf32> -> vector<8x8xf32>
    %140 = vector.extract_strided_slice %133 {offsets = [16, 0], sizes = [8, 64], strides = [1, 1]} : vector<32x64xf32> to vector<8x64xf32>
    %141 = vector.extract_strided_slice %109 {offsets = [16, 0], sizes = [8, 64], strides = [1, 1]} : vector<32x64xf32> to vector<8x64xf32>
    %cst_86 = arith.constant dense<0.000000e+00> : vector<8x8xf32>
    %142 = tpu.matmul %140, %141, %cst_86 {dimension_numbers = #tpu.dot_dimension_numbers<[1], [1], [0], [0], [0, 0, 1, 0], [], []>} : vector<8x64xf32>, vector<8x64xf32>, vector<8x8xf32> -> vector<8x8xf32>
    %143 = vector.extract_strided_slice %133 {offsets = [24, 0], sizes = [8, 64], strides = [1, 1]} : vector<32x64xf32> to vector<8x64xf32>
    %144 = vector.extract_strided_slice %109 {offsets = [24, 0], sizes = [8, 64], strides = [1, 1]} : vector<32x64xf32> to vector<8x64xf32>
    %cst_87 = arith.constant dense<0.000000e+00> : vector<8x8xf32>
    %145 = tpu.matmul %143, %144, %cst_87 {dimension_numbers = #tpu.dot_dimension_numbers<[1], [1], [0], [0], [0, 0, 1, 0], [], []>} : vector<8x64xf32>, vector<8x64xf32>, vector<8x8xf32> -> vector<8x8xf32>
    %146 = tpu.concatenate %136, %139, %142, %145 in 1 : vector<8x8xf32>, vector<8x8xf32>, vector<8x8xf32>, vector<8x8xf32> -> vector<8x32xf32>
    %cst_88 = arith.constant dense<0.000000e+00> : vector<8x32xf32>
    %147 = tpu.matmul %146, %11, %cst_88 {dimension_numbers = #tpu.dot_dimension_numbers<[1], [0], [0], [1], [0, 0, 1, 1], [], []>} : vector<8x32xf32>, vector<32x32xf32>, vector<8x32xf32> -> vector<8x32xf32>
    %148 = arith.addf %0, %147 : vector<8x32xf32>
    %149 = vector.extract_strided_slice %12 {offsets = [0, 0], sizes = [1, 32], strides = [1, 1]} : vector<3x32xf32> to vector<1x32xf32>
    %150 = vector.broadcast %149 : vector<1x32xf32> to vector<8x32xf32>
    %151 = arith.addf %148, %150 : vector<8x32xf32>
    %152 = vector.extract_strided_slice %12 {offsets = [1, 0], sizes = [1, 32], strides = [1, 1]} : vector<3x32xf32> to vector<1x32xf32>
    %153 = vector.extract_strided_slice %12 {offsets = [2, 0], sizes = [1, 32], strides = [1, 1]} : vector<3x32xf32> to vector<1x32xf32>
    %cst_89 = arith.constant dense<0.000000e+00> : vector<8xf32>
    %154 = vector.multi_reduction <add>, %151, %cst_89 [1] : vector<8x32xf32> to vector<8xf32>
    %155 = vector.shape_cast %154 : vector<8xf32> to vector<8x1xf32>
    %cst_90 = arith.constant 3.200000e+01 : f32
    %156 = vector.broadcast %cst_90 : f32 to vector<8x1xf32>
    %157 = arith.divf %155, %156 : vector<8x1xf32>
    %158 = vector.broadcast %157 : vector<8x1xf32> to vector<8x32xf32>
    %159 = arith.subf %151, %158 : vector<8x32xf32>
    %160 = arith.mulf %159, %159 : vector<8x32xf32>
    %cst_91 = arith.constant dense<0.000000e+00> : vector<8xf32>
    %161 = vector.multi_reduction <add>, %160, %cst_91 [1] : vector<8x32xf32> to vector<8xf32>
    %162 = vector.shape_cast %161 : vector<8xf32> to vector<8x1xf32>
    %cst_92 = arith.constant 3.200000e+01 : f32
    %163 = vector.broadcast %cst_92 : f32 to vector<8x1xf32>
    %164 = arith.divf %162, %163 : vector<8x1xf32>
    %cst_93 = arith.constant 9.99999974E-6 : f32
    %165 = vector.broadcast %cst_93 : f32 to vector<8x1xf32>
    %166 = arith.addf %164, %165 : vector<8x1xf32>
    %167 = math.rsqrt %166 : vector<8x1xf32>
    %168 = vector.broadcast %167 : vector<8x1xf32> to vector<8x32xf32>
    %169 = arith.mulf %159, %168 : vector<8x32xf32>
    %170 = vector.broadcast %152 : vector<1x32xf32> to vector<8x32xf32>
    %171 = arith.mulf %169, %170 : vector<8x32xf32>
    %172 = vector.broadcast %153 : vector<1x32xf32> to vector<8x32xf32>
    %173 = arith.addf %171, %172 : vector<8x32xf32>
    %cst_94 = arith.constant dense<0.000000e+00> : vector<8x96xf32>
    %174 = tpu.matmul %173, %13, %cst_94 {dimension_numbers = #tpu.dot_dimension_numbers<[1], [0], [0], [1], [0, 0, 1, 1], [], []>} : vector<8x32xf32>, vector<32x96xf32>, vector<8x96xf32> -> vector<8x96xf32>
    %175 = arith.addf %174, %14 : vector<8x96xf32>
    %176 = vector.extract_strided_slice %175 {offsets = [0, 0], sizes = [8, 32], strides = [1, 1]} : vector<8x96xf32> to vector<8x32xf32>
    %177 = vector.extract_strided_slice %175 {offsets = [0, 32], sizes = [8, 32], strides = [1, 1]} : vector<8x96xf32> to vector<8x32xf32>
    %178 = vector.extract_strided_slice %175 {offsets = [0, 64], sizes = [8, 32], strides = [1, 1]} : vector<8x96xf32> to vector<8x32xf32>
    %179 = vector.extract_strided_slice %176 {offsets = [0, 0], sizes = [8, 8], strides = [1, 1]} : vector<8x32xf32> to vector<8x8xf32>
    %180 = vector.extract_strided_slice %177 {offsets = [0, 0], sizes = [8, 8], strides = [1, 1]} : vector<8x32xf32> to vector<8x8xf32>
    %cst_95 = arith.constant dense<0.000000e+00> : vector<8x8xf32>
    %181 = tpu.matmul %179, %180, %cst_95 {dimension_numbers = #tpu.dot_dimension_numbers<[1], [1], [0], [0], [0, 0, 1, 0], [], []>} : vector<8x8xf32>, vector<8x8xf32>, vector<8x8xf32> -> vector<8x8xf32>
    %182 = vector.extract_strided_slice %176 {offsets = [0, 8], sizes = [8, 8], strides = [1, 1]} : vector<8x32xf32> to vector<8x8xf32>
    %183 = vector.extract_strided_slice %177 {offsets = [0, 8], sizes = [8, 8], strides = [1, 1]} : vector<8x32xf32> to vector<8x8xf32>
    %cst_96 = arith.constant dense<0.000000e+00> : vector<8x8xf32>
    %184 = tpu.matmul %182, %183, %cst_96 {dimension_numbers = #tpu.dot_dimension_numbers<[1], [1], [0], [0], [0, 0, 1, 0], [], []>} : vector<8x8xf32>, vector<8x8xf32>, vector<8x8xf32> -> vector<8x8xf32>
    %185 = vector.extract_strided_slice %176 {offsets = [0, 16], sizes = [8, 8], strides = [1, 1]} : vector<8x32xf32> to vector<8x8xf32>
    %186 = vector.extract_strided_slice %177 {offsets = [0, 16], sizes = [8, 8], strides = [1, 1]} : vector<8x32xf32> to vector<8x8xf32>
    %cst_97 = arith.constant dense<0.000000e+00> : vector<8x8xf32>
    %187 = tpu.matmul %185, %186, %cst_97 {dimension_numbers = #tpu.dot_dimension_numbers<[1], [1], [0], [0], [0, 0, 1, 0], [], []>} : vector<8x8xf32>, vector<8x8xf32>, vector<8x8xf32> -> vector<8x8xf32>
    %188 = vector.extract_strided_slice %176 {offsets = [0, 24], sizes = [8, 8], strides = [1, 1]} : vector<8x32xf32> to vector<8x8xf32>
    %189 = vector.extract_strided_slice %177 {offsets = [0, 24], sizes = [8, 8], strides = [1, 1]} : vector<8x32xf32> to vector<8x8xf32>
    %cst_98 = arith.constant dense<0.000000e+00> : vector<8x8xf32>
    %190 = tpu.matmul %188, %189, %cst_98 {dimension_numbers = #tpu.dot_dimension_numbers<[1], [1], [0], [0], [0, 0, 1, 0], [], []>} : vector<8x8xf32>, vector<8x8xf32>, vector<8x8xf32> -> vector<8x8xf32>
    %191 = tpu.concatenate %181, %184, %187, %190 in 0 : vector<8x8xf32>, vector<8x8xf32>, vector<8x8xf32>, vector<8x8xf32> -> vector<32x8xf32>
    %cst_99 = arith.constant dense<0xFF800000> : vector<32xf32>
    %192 = vector.multi_reduction <maximumf>, %191, %cst_99 [1] : vector<32x8xf32> to vector<32xf32>
    %193 = vector.shape_cast %192 : vector<32xf32> to vector<32x1xf32>
    %194 = vector.broadcast %193 : vector<32x1xf32> to vector<32x8xf32>
    %195 = arith.subf %191, %194 : vector<32x8xf32>
    %196 = math.exp %195 : vector<32x8xf32>
    %cst_100 = arith.constant dense<0.000000e+00> : vector<32xf32>
    %197 = vector.multi_reduction <add>, %196, %cst_100 [1] : vector<32x8xf32> to vector<32xf32>
    %198 = vector.shape_cast %197 : vector<32xf32> to vector<32x1xf32>
    %199 = vector.broadcast %198 : vector<32x1xf32> to vector<32x8xf32>
    %200 = arith.divf %196, %199 : vector<32x8xf32>
    %201 = vector.extract_strided_slice %200 {offsets = [0, 0], sizes = [8, 8], strides = [1, 1]} : vector<32x8xf32> to vector<8x8xf32>
    %202 = vector.extract_strided_slice %178 {offsets = [0, 0], sizes = [8, 8], strides = [1, 1]} : vector<8x32xf32> to vector<8x8xf32>
    %cst_101 = arith.constant dense<0.000000e+00> : vector<8x8xf32>
    %203 = tpu.matmul %201, %202, %cst_101 {dimension_numbers = #tpu.dot_dimension_numbers<[1], [0], [0], [1], [0, 0, 1, 1], [], []>} : vector<8x8xf32>, vector<8x8xf32>, vector<8x8xf32> -> vector<8x8xf32>
    %204 = vector.extract_strided_slice %200 {offsets = [8, 0], sizes = [8, 8], strides = [1, 1]} : vector<32x8xf32> to vector<8x8xf32>
    %205 = vector.extract_strided_slice %178 {offsets = [0, 8], sizes = [8, 8], strides = [1, 1]} : vector<8x32xf32> to vector<8x8xf32>
    %cst_102 = arith.constant dense<0.000000e+00> : vector<8x8xf32>
    %206 = tpu.matmul %204, %205, %cst_102 {dimension_numbers = #tpu.dot_dimension_numbers<[1], [0], [0], [1], [0, 0, 1, 1], [], []>} : vector<8x8xf32>, vector<8x8xf32>, vector<8x8xf32> -> vector<8x8xf32>
    %207 = vector.extract_strided_slice %200 {offsets = [16, 0], sizes = [8, 8], strides = [1, 1]} : vector<32x8xf32> to vector<8x8xf32>
    %208 = vector.extract_strided_slice %178 {offsets = [0, 16], sizes = [8, 8], strides = [1, 1]} : vector<8x32xf32> to vector<8x8xf32>
    %cst_103 = arith.constant dense<0.000000e+00> : vector<8x8xf32>
    %209 = tpu.matmul %207, %208, %cst_103 {dimension_numbers = #tpu.dot_dimension_numbers<[1], [0], [0], [1], [0, 0, 1, 1], [], []>} : vector<8x8xf32>, vector<8x8xf32>, vector<8x8xf32> -> vector<8x8xf32>
    %210 = vector.extract_strided_slice %200 {offsets = [24, 0], sizes = [8, 8], strides = [1, 1]} : vector<32x8xf32> to vector<8x8xf32>
    %211 = vector.extract_strided_slice %178 {offsets = [0, 24], sizes = [8, 8], strides = [1, 1]} : vector<8x32xf32> to vector<8x8xf32>
    %cst_104 = arith.constant dense<0.000000e+00> : vector<8x8xf32>
    %212 = tpu.matmul %210, %211, %cst_104 {dimension_numbers = #tpu.dot_dimension_numbers<[1], [0], [0], [1], [0, 0, 1, 1], [], []>} : vector<8x8xf32>, vector<8x8xf32>, vector<8x8xf32> -> vector<8x8xf32>
    %213 = tpu.concatenate %203, %206, %209, %212 in 1 : vector<8x8xf32>, vector<8x8xf32>, vector<8x8xf32>, vector<8x8xf32> -> vector<8x32xf32>
    %cst_105 = arith.constant dense<0.000000e+00> : vector<8x32xf32>
    %214 = tpu.matmul %213, %15, %cst_105 {dimension_numbers = #tpu.dot_dimension_numbers<[1], [0], [0], [1], [0, 0, 1, 1], [], []>} : vector<8x32xf32>, vector<32x32xf32>, vector<8x32xf32> -> vector<8x32xf32>
    %215 = arith.addf %173, %214 : vector<8x32xf32>
    %216 = vector.extract_strided_slice %16 {offsets = [0, 0], sizes = [1, 32], strides = [1, 1]} : vector<3x32xf32> to vector<1x32xf32>
    %217 = vector.broadcast %216 : vector<1x32xf32> to vector<8x32xf32>
    %218 = arith.addf %215, %217 : vector<8x32xf32>
    %219 = vector.extract_strided_slice %16 {offsets = [1, 0], sizes = [1, 32], strides = [1, 1]} : vector<3x32xf32> to vector<1x32xf32>
    %220 = vector.extract_strided_slice %16 {offsets = [2, 0], sizes = [1, 32], strides = [1, 1]} : vector<3x32xf32> to vector<1x32xf32>
    %cst_106 = arith.constant dense<0.000000e+00> : vector<8xf32>
    %221 = vector.multi_reduction <add>, %218, %cst_106 [1] : vector<8x32xf32> to vector<8xf32>
    %222 = vector.shape_cast %221 : vector<8xf32> to vector<8x1xf32>
    %cst_107 = arith.constant 3.200000e+01 : f32
    %223 = vector.broadcast %cst_107 : f32 to vector<8x1xf32>
    %224 = arith.divf %222, %223 : vector<8x1xf32>
    %225 = vector.broadcast %224 : vector<8x1xf32> to vector<8x32xf32>
    %226 = arith.subf %218, %225 : vector<8x32xf32>
    %227 = arith.mulf %226, %226 : vector<8x32xf32>
    %cst_108 = arith.constant dense<0.000000e+00> : vector<8xf32>
    %228 = vector.multi_reduction <add>, %227, %cst_108 [1] : vector<8x32xf32> to vector<8xf32>
    %229 = vector.shape_cast %228 : vector<8xf32> to vector<8x1xf32>
    %cst_109 = arith.constant 3.200000e+01 : f32
    %230 = vector.broadcast %cst_109 : f32 to vector<8x1xf32>
    %231 = arith.divf %229, %230 : vector<8x1xf32>
    %cst_110 = arith.constant 9.99999974E-6 : f32
    %232 = vector.broadcast %cst_110 : f32 to vector<8x1xf32>
    %233 = arith.addf %231, %232 : vector<8x1xf32>
    %234 = math.rsqrt %233 : vector<8x1xf32>
    %235 = vector.broadcast %234 : vector<8x1xf32> to vector<8x32xf32>
    %236 = arith.mulf %226, %235 : vector<8x32xf32>
    %237 = vector.broadcast %219 : vector<1x32xf32> to vector<8x32xf32>
    %238 = arith.mulf %236, %237 : vector<8x32xf32>
    %239 = vector.broadcast %220 : vector<1x32xf32> to vector<8x32xf32>
    %240 = arith.addf %238, %239 : vector<8x32xf32>
    %cst_111 = arith.constant dense<0.000000e+00> : vector<8x64xf32>
    %241 = tpu.matmul %240, %17, %cst_111 {dimension_numbers = #tpu.dot_dimension_numbers<[1], [0], [0], [1], [0, 0, 1, 1], [], []>} : vector<8x32xf32>, vector<32x64xf32>, vector<8x64xf32> -> vector<8x64xf32>
    %242 = vector.broadcast %18 : vector<1x64xf32> to vector<8x64xf32>
    %243 = arith.addf %241, %242 : vector<8x64xf32>
    %cst_112 = arith.constant 0.000000e+00 : f32
    %244 = vector.broadcast %cst_112 : f32 to vector<8x64xf32>
    %245 = arith.maximumf %243, %244 : vector<8x64xf32>
    %cst_113 = arith.constant dense<0.000000e+00> : vector<8x32xf32>
    %246 = tpu.matmul %245, %19, %cst_113 {dimension_numbers = #tpu.dot_dimension_numbers<[1], [0], [0], [1], [0, 0, 1, 1], [], []>} : vector<8x64xf32>, vector<64x32xf32>, vector<8x32xf32> -> vector<8x32xf32>
    %247 = vector.extract_strided_slice %20 {offsets = [0, 0], sizes = [1, 32], strides = [1, 1]} : vector<3x32xf32> to vector<1x32xf32>
    %248 = vector.broadcast %247 : vector<1x32xf32> to vector<8x32xf32>
    %249 = arith.addf %246, %248 : vector<8x32xf32>
    %250 = arith.addf %240, %249 : vector<8x32xf32>
    %251 = vector.extract_strided_slice %20 {offsets = [1, 0], sizes = [1, 32], strides = [1, 1]} : vector<3x32xf32> to vector<1x32xf32>
    %252 = vector.extract_strided_slice %20 {offsets = [2, 0], sizes = [1, 32], strides = [1, 1]} : vector<3x32xf32> to vector<1x32xf32>
    %cst_114 = arith.constant dense<0.000000e+00> : vector<8xf32>
    %253 = vector.multi_reduction <add>, %250, %cst_114 [1] : vector<8x32xf32> to vector<8xf32>
    %254 = vector.shape_cast %253 : vector<8xf32> to vector<8x1xf32>
    %cst_115 = arith.constant 3.200000e+01 : f32
    %255 = vector.broadcast %cst_115 : f32 to vector<8x1xf32>
    %256 = arith.divf %254, %255 : vector<8x1xf32>
    %257 = vector.broadcast %256 : vector<8x1xf32> to vector<8x32xf32>
    %258 = arith.subf %250, %257 : vector<8x32xf32>
    %259 = arith.mulf %258, %258 : vector<8x32xf32>
    %cst_116 = arith.constant dense<0.000000e+00> : vector<8xf32>
    %260 = vector.multi_reduction <add>, %259, %cst_116 [1] : vector<8x32xf32> to vector<8xf32>
    %261 = vector.shape_cast %260 : vector<8xf32> to vector<8x1xf32>
    %cst_117 = arith.constant 3.200000e+01 : f32
    %262 = vector.broadcast %cst_117 : f32 to vector<8x1xf32>
    %263 = arith.divf %261, %262 : vector<8x1xf32>
    %cst_118 = arith.constant 9.99999974E-6 : f32
    %264 = vector.broadcast %cst_118 : f32 to vector<8x1xf32>
    %265 = arith.addf %263, %264 : vector<8x1xf32>
    %266 = math.rsqrt %265 : vector<8x1xf32>
    %267 = vector.broadcast %266 : vector<8x1xf32> to vector<8x32xf32>
    %268 = arith.mulf %258, %267 : vector<8x32xf32>
    %269 = vector.broadcast %251 : vector<1x32xf32> to vector<8x32xf32>
    %270 = arith.mulf %268, %269 : vector<8x32xf32>
    %271 = vector.broadcast %252 : vector<1x32xf32> to vector<8x32xf32>
    %272 = arith.addf %270, %271 : vector<8x32xf32>
    %273 = vector.extract_strided_slice %4 {offsets = [0, 0], sizes = [1, 32], strides = [1, 1]} : vector<4x32xf32> to vector<1x32xf32>
    %274 = vector.extract_strided_slice %4 {offsets = [1, 0], sizes = [1, 32], strides = [1, 1]} : vector<4x32xf32> to vector<1x32xf32>
    %cst_119 = arith.constant dense<0.000000e+00> : vector<8xf32>
    %275 = vector.multi_reduction <add>, %272, %cst_119 [1] : vector<8x32xf32> to vector<8xf32>
    %276 = vector.shape_cast %275 : vector<8xf32> to vector<8x1xf32>
    %cst_120 = arith.constant 3.200000e+01 : f32
    %277 = vector.broadcast %cst_120 : f32 to vector<8x1xf32>
    %278 = arith.divf %276, %277 : vector<8x1xf32>
    %279 = vector.broadcast %278 : vector<8x1xf32> to vector<8x32xf32>
    %280 = arith.subf %272, %279 : vector<8x32xf32>
    %281 = arith.mulf %280, %280 : vector<8x32xf32>
    %cst_121 = arith.constant dense<0.000000e+00> : vector<8xf32>
    %282 = vector.multi_reduction <add>, %281, %cst_121 [1] : vector<8x32xf32> to vector<8xf32>
    %283 = vector.shape_cast %282 : vector<8xf32> to vector<8x1xf32>
    %cst_122 = arith.constant 3.200000e+01 : f32
    %284 = vector.broadcast %cst_122 : f32 to vector<8x1xf32>
    %285 = arith.divf %283, %284 : vector<8x1xf32>
    %cst_123 = arith.constant 9.99999974E-6 : f32
    %286 = vector.broadcast %cst_123 : f32 to vector<8x1xf32>
    %287 = arith.addf %285, %286 : vector<8x1xf32>
    %288 = math.rsqrt %287 : vector<8x1xf32>
    %289 = vector.broadcast %288 : vector<8x1xf32> to vector<8x32xf32>
    %290 = arith.mulf %280, %289 : vector<8x32xf32>
    %291 = vector.broadcast %273 : vector<1x32xf32> to vector<8x32xf32>
    %292 = arith.mulf %290, %291 : vector<8x32xf32>
    %293 = vector.broadcast %274 : vector<1x32xf32> to vector<8x32xf32>
    %294 = arith.addf %292, %293 : vector<8x32xf32>
    %cst_124 = arith.constant dense<0.000000e+00> : vector<8x32xf32>
    %295 = tpu.matmul %294, %1, %cst_124 {dimension_numbers = #tpu.dot_dimension_numbers<[1], [0], [0], [1], [0, 0, 1, 1], [], []>} : vector<8x32xf32>, vector<32x32xf32>, vector<8x32xf32> -> vector<8x32xf32>
    %296 = vector.extract_strided_slice %4 {offsets = [2, 0], sizes = [1, 32], strides = [1, 1]} : vector<4x32xf32> to vector<1x32xf32>
    %297 = vector.broadcast %296 : vector<1x32xf32> to vector<8x32xf32>
    %298 = arith.addf %295, %297 : vector<8x32xf32>
    %cst_125 = arith.constant 0.000000e+00 : f32
    %299 = vector.broadcast %cst_125 : f32 to vector<8x32xf32>
    %300 = arith.maximumf %298, %299 : vector<8x32xf32>
    %cst_126 = arith.constant dense<0.000000e+00> : vector<8x32xf32>
    %301 = tpu.matmul %300, %2, %cst_126 {dimension_numbers = #tpu.dot_dimension_numbers<[1], [0], [0], [1], [0, 0, 1, 1], [], []>} : vector<8x32xf32>, vector<32x32xf32>, vector<8x32xf32> -> vector<8x32xf32>
    %302 = vector.extract_strided_slice %4 {offsets = [3, 0], sizes = [1, 32], strides = [1, 1]} : vector<4x32xf32> to vector<1x32xf32>
    %303 = vector.broadcast %302 : vector<1x32xf32> to vector<8x32xf32>
    %304 = arith.addf %301, %303 : vector<8x32xf32>
    %cst_127 = arith.constant 0.000000e+00 : f32
    %305 = vector.broadcast %cst_127 : f32 to vector<8x32xf32>
    %306 = arith.maximumf %304, %305 : vector<8x32xf32>
    %cst_128 = arith.constant dense<0.000000e+00> : vector<8x32xf32>
    %307 = tpu.matmul %306, %3, %cst_128 {dimension_numbers = #tpu.dot_dimension_numbers<[1], [0], [0], [1], [0, 0, 1, 1], [], []>} : vector<8x32xf32>, vector<32x32xf32>, vector<8x32xf32> -> vector<8x32xf32>
    %308 = vector.broadcast %5 : vector<1x32xf32> to vector<8x32xf32>
    %309 = arith.addf %307, %308 : vector<8x32xf32>
    %cst_129 = arith.constant dense<0.000000e+00> : vector<8x16xf32>
    %310 = tpu.matmul %309, %53, %cst_129 {dimension_numbers = #tpu.dot_dimension_numbers<[1], [0], [0], [1], [0, 0, 1, 1], [], []>} : vector<8x32xf32>, vector<32x16xf32>, vector<8x16xf32> -> vector<8x16xf32>
    %cst_130 = arith.constant dense<0xFF800000> : vector<8xf32>
    %311 = vector.multi_reduction <maximumf>, %310, %cst_130 [1] : vector<8x16xf32> to vector<8xf32>
    %312 = vector.shape_cast %311 : vector<8xf32> to vector<8x1xf32>
    %cst_131 = arith.constant 0.000000e+00 : f32
    %313 = vector.broadcast %cst_131 : f32 to vector<8x16xf32>
    %314 = arith.cmpf olt, %310, %313 : vector<8x16xf32>
    %cst_132 = arith.constant 0.000000e+00 : f32
    %315 = vector.broadcast %cst_132 : f32 to vector<8x1xf32>
    %316 = arith.cmpf oge, %312, %315 : vector<8x1xf32>
    %317 = vector.broadcast %316 : vector<8x1xi1> to vector<8x16xi1>
    %318 = arith.andi %314, %317 : vector<8x16xi1>
    %cst_133 = arith.constant -1.000000e+09 : f32
    %cst_134 = arith.constant 0.000000e+00 : f32
    %319 = vector.broadcast %cst_133 : f32 to vector<8x16xf32>
    %320 = vector.broadcast %cst_134 : f32 to vector<8x16xf32>
    %321 = arith.select %318, %319, %320 : vector<8x16xi1>, vector<8x16xf32>
    %cst_135 = arith.constant dense<0.000000e+00> : vector<8x32xf32>
    %322 = tpu.matmul %272, %21, %cst_135 {dimension_numbers = #tpu.dot_dimension_numbers<[1], [0], [0], [1], [0, 0, 1, 1], [], []>} : vector<8x32xf32>, vector<32x32xf32>, vector<8x32xf32> -> vector<8x32xf32>
    %323 = arith.addf %322, %22 : vector<8x32xf32>
    %324 = vector.extract_strided_slice %50 {offsets = [0, 64], sizes = [16, 16], strides = [1, 1]} : vector<16x96xf32> to vector<16x16xf32>
    %cst_136 = arith.constant dense<0.000000e+00> : vector<64x16xf32>
    %325 = tpu.matmul %23, %324, %cst_136 {dimension_numbers = #tpu.dot_dimension_numbers<[1], [0], [0], [1], [0, 0, 1, 1], [], []>} : vector<64x16xf32>, vector<16x16xf32>, vector<64x16xf32> -> vector<64x16xf32>
    %326 = arith.addf %325, %24 : vector<64x16xf32>
    %327 = vector.extract_strided_slice %326 {offsets = [0, 0], sizes = [32, 16], strides = [1, 1]} : vector<64x16xf32> to vector<32x16xf32>
    %328 = vector.extract_strided_slice %326 {offsets = [32, 0], sizes = [32, 16], strides = [1, 1]} : vector<64x16xf32> to vector<32x16xf32>
    %329 = vector.extract_strided_slice %323 {offsets = [0, 0], sizes = [8, 8], strides = [1, 1]} : vector<8x32xf32> to vector<8x8xf32>
    %330 = vector.extract_strided_slice %327 {offsets = [0, 0], sizes = [8, 16], strides = [1, 1]} : vector<32x16xf32> to vector<8x16xf32>
    %cst_137 = arith.constant dense<0.000000e+00> : vector<8x16xf32>
    %331 = tpu.matmul %329, %330, %cst_137 {dimension_numbers = #tpu.dot_dimension_numbers<[1], [0], [0], [1], [0, 0, 1, 1], [], []>} : vector<8x8xf32>, vector<8x16xf32>, vector<8x16xf32> -> vector<8x16xf32>
    %332 = vector.extract_strided_slice %323 {offsets = [0, 8], sizes = [8, 8], strides = [1, 1]} : vector<8x32xf32> to vector<8x8xf32>
    %333 = vector.extract_strided_slice %327 {offsets = [8, 0], sizes = [8, 16], strides = [1, 1]} : vector<32x16xf32> to vector<8x16xf32>
    %cst_138 = arith.constant dense<0.000000e+00> : vector<8x16xf32>
    %334 = tpu.matmul %332, %333, %cst_138 {dimension_numbers = #tpu.dot_dimension_numbers<[1], [0], [0], [1], [0, 0, 1, 1], [], []>} : vector<8x8xf32>, vector<8x16xf32>, vector<8x16xf32> -> vector<8x16xf32>
    %335 = vector.extract_strided_slice %323 {offsets = [0, 16], sizes = [8, 8], strides = [1, 1]} : vector<8x32xf32> to vector<8x8xf32>
    %336 = vector.extract_strided_slice %327 {offsets = [16, 0], sizes = [8, 16], strides = [1, 1]} : vector<32x16xf32> to vector<8x16xf32>
    %cst_139 = arith.constant dense<0.000000e+00> : vector<8x16xf32>
    %337 = tpu.matmul %335, %336, %cst_139 {dimension_numbers = #tpu.dot_dimension_numbers<[1], [0], [0], [1], [0, 0, 1, 1], [], []>} : vector<8x8xf32>, vector<8x16xf32>, vector<8x16xf32> -> vector<8x16xf32>
    %338 = vector.extract_strided_slice %323 {offsets = [0, 24], sizes = [8, 8], strides = [1, 1]} : vector<8x32xf32> to vector<8x8xf32>
    %339 = vector.extract_strided_slice %327 {offsets = [24, 0], sizes = [8, 16], strides = [1, 1]} : vector<32x16xf32> to vector<8x16xf32>
    %cst_140 = arith.constant dense<0.000000e+00> : vector<8x16xf32>
    %340 = tpu.matmul %338, %339, %cst_140 {dimension_numbers = #tpu.dot_dimension_numbers<[1], [0], [0], [1], [0, 0, 1, 1], [], []>} : vector<8x8xf32>, vector<8x16xf32>, vector<8x16xf32> -> vector<8x16xf32>
    %341 = tpu.concatenate %331, %334, %337, %340 in 0 : vector<8x16xf32>, vector<8x16xf32>, vector<8x16xf32>, vector<8x16xf32> -> vector<32x16xf32>
    %342 = tpu.concatenate %321, %321, %321, %321 in 0 : vector<8x16xf32>, vector<8x16xf32>, vector<8x16xf32>, vector<8x16xf32> -> vector<32x16xf32>
    %343 = arith.addf %341, %342 : vector<32x16xf32>
    %cst_141 = arith.constant dense<0xFF800000> : vector<32xf32>
    %344 = vector.multi_reduction <maximumf>, %343, %cst_141 [1] : vector<32x16xf32> to vector<32xf32>
    %345 = vector.shape_cast %344 : vector<32xf32> to vector<32x1xf32>
    %346 = vector.broadcast %345 : vector<32x1xf32> to vector<32x16xf32>
    %347 = arith.subf %343, %346 : vector<32x16xf32>
    %348 = math.exp %347 : vector<32x16xf32>
    %cst_142 = arith.constant dense<0.000000e+00> : vector<32xf32>
    %349 = vector.multi_reduction <add>, %348, %cst_142 [1] : vector<32x16xf32> to vector<32xf32>
    %350 = vector.shape_cast %349 : vector<32xf32> to vector<32x1xf32>
    %351 = vector.broadcast %350 : vector<32x1xf32> to vector<32x16xf32>
    %352 = arith.divf %348, %351 : vector<32x16xf32>
    %353 = vector.extract_strided_slice %352 {offsets = [0, 0], sizes = [8, 16], strides = [1, 1]} : vector<32x16xf32> to vector<8x16xf32>
    %354 = vector.extract_strided_slice %328 {offsets = [0, 0], sizes = [8, 16], strides = [1, 1]} : vector<32x16xf32> to vector<8x16xf32>
    %cst_143 = arith.constant dense<0.000000e+00> : vector<8x8xf32>
    %355 = tpu.matmul %353, %354, %cst_143 {dimension_numbers = #tpu.dot_dimension_numbers<[1], [1], [0], [0], [0, 0, 1, 0], [], []>} : vector<8x16xf32>, vector<8x16xf32>, vector<8x8xf32> -> vector<8x8xf32>
    %356 = vector.extract_strided_slice %352 {offsets = [8, 0], sizes = [8, 16], strides = [1, 1]} : vector<32x16xf32> to vector<8x16xf32>
    %357 = vector.extract_strided_slice %328 {offsets = [8, 0], sizes = [8, 16], strides = [1, 1]} : vector<32x16xf32> to vector<8x16xf32>
    %cst_144 = arith.constant dense<0.000000e+00> : vector<8x8xf32>
    %358 = tpu.matmul %356, %357, %cst_144 {dimension_numbers = #tpu.dot_dimension_numbers<[1], [1], [0], [0], [0, 0, 1, 0], [], []>} : vector<8x16xf32>, vector<8x16xf32>, vector<8x8xf32> -> vector<8x8xf32>
    %359 = vector.extract_strided_slice %352 {offsets = [16, 0], sizes = [8, 16], strides = [1, 1]} : vector<32x16xf32> to vector<8x16xf32>
    %360 = vector.extract_strided_slice %328 {offsets = [16, 0], sizes = [8, 16], strides = [1, 1]} : vector<32x16xf32> to vector<8x16xf32>
    %cst_145 = arith.constant dense<0.000000e+00> : vector<8x8xf32>
    %361 = tpu.matmul %359, %360, %cst_145 {dimension_numbers = #tpu.dot_dimension_numbers<[1], [1], [0], [0], [0, 0, 1, 0], [], []>} : vector<8x16xf32>, vector<8x16xf32>, vector<8x8xf32> -> vector<8x8xf32>
    %362 = vector.extract_strided_slice %352 {offsets = [24, 0], sizes = [8, 16], strides = [1, 1]} : vector<32x16xf32> to vector<8x16xf32>
    %363 = vector.extract_strided_slice %328 {offsets = [24, 0], sizes = [8, 16], strides = [1, 1]} : vector<32x16xf32> to vector<8x16xf32>
    %cst_146 = arith.constant dense<0.000000e+00> : vector<8x8xf32>
    %364 = tpu.matmul %362, %363, %cst_146 {dimension_numbers = #tpu.dot_dimension_numbers<[1], [1], [0], [0], [0, 0, 1, 0], [], []>} : vector<8x16xf32>, vector<8x16xf32>, vector<8x8xf32> -> vector<8x8xf32>
    %365 = tpu.concatenate %355, %358, %361, %364 in 1 : vector<8x8xf32>, vector<8x8xf32>, vector<8x8xf32>, vector<8x8xf32> -> vector<8x32xf32>
    %cst_147 = arith.constant dense<0.000000e+00> : vector<8x32xf32>
    %366 = tpu.matmul %365, %25, %cst_147 {dimension_numbers = #tpu.dot_dimension_numbers<[1], [0], [0], [1], [0, 0, 1, 1], [], []>} : vector<8x32xf32>, vector<32x32xf32>, vector<8x32xf32> -> vector<8x32xf32>
    %367 = arith.addf %272, %366 : vector<8x32xf32>
    %368 = vector.extract_strided_slice %26 {offsets = [0, 0], sizes = [1, 32], strides = [1, 1]} : vector<3x32xf32> to vector<1x32xf32>
    %369 = vector.broadcast %368 : vector<1x32xf32> to vector<8x32xf32>
    %370 = arith.addf %367, %369 : vector<8x32xf32>
    %371 = vector.extract_strided_slice %26 {offsets = [1, 0], sizes = [1, 32], strides = [1, 1]} : vector<3x32xf32> to vector<1x32xf32>
    %372 = vector.extract_strided_slice %26 {offsets = [2, 0], sizes = [1, 32], strides = [1, 1]} : vector<3x32xf32> to vector<1x32xf32>
    %cst_148 = arith.constant dense<0.000000e+00> : vector<8xf32>
    %373 = vector.multi_reduction <add>, %370, %cst_148 [1] : vector<8x32xf32> to vector<8xf32>
    %374 = vector.shape_cast %373 : vector<8xf32> to vector<8x1xf32>
    %cst_149 = arith.constant 3.200000e+01 : f32
    %375 = vector.broadcast %cst_149 : f32 to vector<8x1xf32>
    %376 = arith.divf %374, %375 : vector<8x1xf32>
    %377 = vector.broadcast %376 : vector<8x1xf32> to vector<8x32xf32>
    %378 = arith.subf %370, %377 : vector<8x32xf32>
    %379 = arith.mulf %378, %378 : vector<8x32xf32>
    %cst_150 = arith.constant dense<0.000000e+00> : vector<8xf32>
    %380 = vector.multi_reduction <add>, %379, %cst_150 [1] : vector<8x32xf32> to vector<8xf32>
    %381 = vector.shape_cast %380 : vector<8xf32> to vector<8x1xf32>
    %cst_151 = arith.constant 3.200000e+01 : f32
    %382 = vector.broadcast %cst_151 : f32 to vector<8x1xf32>
    %383 = arith.divf %381, %382 : vector<8x1xf32>
    %cst_152 = arith.constant 9.99999974E-6 : f32
    %384 = vector.broadcast %cst_152 : f32 to vector<8x1xf32>
    %385 = arith.addf %383, %384 : vector<8x1xf32>
    %386 = math.rsqrt %385 : vector<8x1xf32>
    %387 = vector.broadcast %386 : vector<8x1xf32> to vector<8x32xf32>
    %388 = arith.mulf %378, %387 : vector<8x32xf32>
    %389 = vector.broadcast %371 : vector<1x32xf32> to vector<8x32xf32>
    %390 = arith.mulf %388, %389 : vector<8x32xf32>
    %391 = vector.broadcast %372 : vector<1x32xf32> to vector<8x32xf32>
    %392 = arith.addf %390, %391 : vector<8x32xf32>
    %cst_153 = arith.constant dense<0.000000e+00> : vector<8x96xf32>
    %393 = tpu.matmul %392, %27, %cst_153 {dimension_numbers = #tpu.dot_dimension_numbers<[1], [0], [0], [1], [0, 0, 1, 1], [], []>} : vector<8x32xf32>, vector<32x96xf32>, vector<8x96xf32> -> vector<8x96xf32>
    %394 = arith.addf %393, %28 : vector<8x96xf32>
    %395 = vector.extract_strided_slice %394 {offsets = [0, 0], sizes = [8, 32], strides = [1, 1]} : vector<8x96xf32> to vector<8x32xf32>
    %396 = vector.extract_strided_slice %394 {offsets = [0, 32], sizes = [8, 32], strides = [1, 1]} : vector<8x96xf32> to vector<8x32xf32>
    %397 = vector.extract_strided_slice %394 {offsets = [0, 64], sizes = [8, 32], strides = [1, 1]} : vector<8x96xf32> to vector<8x32xf32>
    %398 = vector.extract_strided_slice %395 {offsets = [0, 0], sizes = [8, 8], strides = [1, 1]} : vector<8x32xf32> to vector<8x8xf32>
    %399 = vector.extract_strided_slice %396 {offsets = [0, 0], sizes = [8, 8], strides = [1, 1]} : vector<8x32xf32> to vector<8x8xf32>
    %cst_154 = arith.constant dense<0.000000e+00> : vector<8x8xf32>
    %400 = tpu.matmul %398, %399, %cst_154 {dimension_numbers = #tpu.dot_dimension_numbers<[1], [1], [0], [0], [0, 0, 1, 0], [], []>} : vector<8x8xf32>, vector<8x8xf32>, vector<8x8xf32> -> vector<8x8xf32>
    %401 = vector.extract_strided_slice %395 {offsets = [0, 8], sizes = [8, 8], strides = [1, 1]} : vector<8x32xf32> to vector<8x8xf32>
    %402 = vector.extract_strided_slice %396 {offsets = [0, 8], sizes = [8, 8], strides = [1, 1]} : vector<8x32xf32> to vector<8x8xf32>
    %cst_155 = arith.constant dense<0.000000e+00> : vector<8x8xf32>
    %403 = tpu.matmul %401, %402, %cst_155 {dimension_numbers = #tpu.dot_dimension_numbers<[1], [1], [0], [0], [0, 0, 1, 0], [], []>} : vector<8x8xf32>, vector<8x8xf32>, vector<8x8xf32> -> vector<8x8xf32>
    %404 = vector.extract_strided_slice %395 {offsets = [0, 16], sizes = [8, 8], strides = [1, 1]} : vector<8x32xf32> to vector<8x8xf32>
    %405 = vector.extract_strided_slice %396 {offsets = [0, 16], sizes = [8, 8], strides = [1, 1]} : vector<8x32xf32> to vector<8x8xf32>
    %cst_156 = arith.constant dense<0.000000e+00> : vector<8x8xf32>
    %406 = tpu.matmul %404, %405, %cst_156 {dimension_numbers = #tpu.dot_dimension_numbers<[1], [1], [0], [0], [0, 0, 1, 0], [], []>} : vector<8x8xf32>, vector<8x8xf32>, vector<8x8xf32> -> vector<8x8xf32>
    %407 = vector.extract_strided_slice %395 {offsets = [0, 24], sizes = [8, 8], strides = [1, 1]} : vector<8x32xf32> to vector<8x8xf32>
    %408 = vector.extract_strided_slice %396 {offsets = [0, 24], sizes = [8, 8], strides = [1, 1]} : vector<8x32xf32> to vector<8x8xf32>
    %cst_157 = arith.constant dense<0.000000e+00> : vector<8x8xf32>
    %409 = tpu.matmul %407, %408, %cst_157 {dimension_numbers = #tpu.dot_dimension_numbers<[1], [1], [0], [0], [0, 0, 1, 0], [], []>} : vector<8x8xf32>, vector<8x8xf32>, vector<8x8xf32> -> vector<8x8xf32>
    %410 = tpu.concatenate %400, %403, %406, %409 in 0 : vector<8x8xf32>, vector<8x8xf32>, vector<8x8xf32>, vector<8x8xf32> -> vector<32x8xf32>
    %cst_158 = arith.constant dense<0xFF800000> : vector<32xf32>
    %411 = vector.multi_reduction <maximumf>, %410, %cst_158 [1] : vector<32x8xf32> to vector<32xf32>
    %412 = vector.shape_cast %411 : vector<32xf32> to vector<32x1xf32>
    %413 = vector.broadcast %412 : vector<32x1xf32> to vector<32x8xf32>
    %414 = arith.subf %410, %413 : vector<32x8xf32>
    %415 = math.exp %414 : vector<32x8xf32>
    %cst_159 = arith.constant dense<0.000000e+00> : vector<32xf32>
    %416 = vector.multi_reduction <add>, %415, %cst_159 [1] : vector<32x8xf32> to vector<32xf32>
    %417 = vector.shape_cast %416 : vector<32xf32> to vector<32x1xf32>
    %418 = vector.broadcast %417 : vector<32x1xf32> to vector<32x8xf32>
    %419 = arith.divf %415, %418 : vector<32x8xf32>
    %420 = vector.extract_strided_slice %419 {offsets = [0, 0], sizes = [8, 8], strides = [1, 1]} : vector<32x8xf32> to vector<8x8xf32>
    %421 = vector.extract_strided_slice %397 {offsets = [0, 0], sizes = [8, 8], strides = [1, 1]} : vector<8x32xf32> to vector<8x8xf32>
    %cst_160 = arith.constant dense<0.000000e+00> : vector<8x8xf32>
    %422 = tpu.matmul %420, %421, %cst_160 {dimension_numbers = #tpu.dot_dimension_numbers<[1], [0], [0], [1], [0, 0, 1, 1], [], []>} : vector<8x8xf32>, vector<8x8xf32>, vector<8x8xf32> -> vector<8x8xf32>
    %423 = vector.extract_strided_slice %419 {offsets = [8, 0], sizes = [8, 8], strides = [1, 1]} : vector<32x8xf32> to vector<8x8xf32>
    %424 = vector.extract_strided_slice %397 {offsets = [0, 8], sizes = [8, 8], strides = [1, 1]} : vector<8x32xf32> to vector<8x8xf32>
    %cst_161 = arith.constant dense<0.000000e+00> : vector<8x8xf32>
    %425 = tpu.matmul %423, %424, %cst_161 {dimension_numbers = #tpu.dot_dimension_numbers<[1], [0], [0], [1], [0, 0, 1, 1], [], []>} : vector<8x8xf32>, vector<8x8xf32>, vector<8x8xf32> -> vector<8x8xf32>
    %426 = vector.extract_strided_slice %419 {offsets = [16, 0], sizes = [8, 8], strides = [1, 1]} : vector<32x8xf32> to vector<8x8xf32>
    %427 = vector.extract_strided_slice %397 {offsets = [0, 16], sizes = [8, 8], strides = [1, 1]} : vector<8x32xf32> to vector<8x8xf32>
    %cst_162 = arith.constant dense<0.000000e+00> : vector<8x8xf32>
    %428 = tpu.matmul %426, %427, %cst_162 {dimension_numbers = #tpu.dot_dimension_numbers<[1], [0], [0], [1], [0, 0, 1, 1], [], []>} : vector<8x8xf32>, vector<8x8xf32>, vector<8x8xf32> -> vector<8x8xf32>
    %429 = vector.extract_strided_slice %419 {offsets = [24, 0], sizes = [8, 8], strides = [1, 1]} : vector<32x8xf32> to vector<8x8xf32>
    %430 = vector.extract_strided_slice %397 {offsets = [0, 24], sizes = [8, 8], strides = [1, 1]} : vector<8x32xf32> to vector<8x8xf32>
    %cst_163 = arith.constant dense<0.000000e+00> : vector<8x8xf32>
    %431 = tpu.matmul %429, %430, %cst_163 {dimension_numbers = #tpu.dot_dimension_numbers<[1], [0], [0], [1], [0, 0, 1, 1], [], []>} : vector<8x8xf32>, vector<8x8xf32>, vector<8x8xf32> -> vector<8x8xf32>
    %432 = tpu.concatenate %422, %425, %428, %431 in 1 : vector<8x8xf32>, vector<8x8xf32>, vector<8x8xf32>, vector<8x8xf32> -> vector<8x32xf32>
    %cst_164 = arith.constant dense<0.000000e+00> : vector<8x32xf32>
    %433 = tpu.matmul %432, %29, %cst_164 {dimension_numbers = #tpu.dot_dimension_numbers<[1], [0], [0], [1], [0, 0, 1, 1], [], []>} : vector<8x32xf32>, vector<32x32xf32>, vector<8x32xf32> -> vector<8x32xf32>
    %434 = arith.addf %392, %433 : vector<8x32xf32>
    %435 = vector.extract_strided_slice %30 {offsets = [0, 0], sizes = [1, 32], strides = [1, 1]} : vector<3x32xf32> to vector<1x32xf32>
    %436 = vector.broadcast %435 : vector<1x32xf32> to vector<8x32xf32>
    %437 = arith.addf %434, %436 : vector<8x32xf32>
    %438 = vector.extract_strided_slice %30 {offsets = [1, 0], sizes = [1, 32], strides = [1, 1]} : vector<3x32xf32> to vector<1x32xf32>
    %439 = vector.extract_strided_slice %30 {offsets = [2, 0], sizes = [1, 32], strides = [1, 1]} : vector<3x32xf32> to vector<1x32xf32>
    %cst_165 = arith.constant dense<0.000000e+00> : vector<8xf32>
    %440 = vector.multi_reduction <add>, %437, %cst_165 [1] : vector<8x32xf32> to vector<8xf32>
    %441 = vector.shape_cast %440 : vector<8xf32> to vector<8x1xf32>
    %cst_166 = arith.constant 3.200000e+01 : f32
    %442 = vector.broadcast %cst_166 : f32 to vector<8x1xf32>
    %443 = arith.divf %441, %442 : vector<8x1xf32>
    %444 = vector.broadcast %443 : vector<8x1xf32> to vector<8x32xf32>
    %445 = arith.subf %437, %444 : vector<8x32xf32>
    %446 = arith.mulf %445, %445 : vector<8x32xf32>
    %cst_167 = arith.constant dense<0.000000e+00> : vector<8xf32>
    %447 = vector.multi_reduction <add>, %446, %cst_167 [1] : vector<8x32xf32> to vector<8xf32>
    %448 = vector.shape_cast %447 : vector<8xf32> to vector<8x1xf32>
    %cst_168 = arith.constant 3.200000e+01 : f32
    %449 = vector.broadcast %cst_168 : f32 to vector<8x1xf32>
    %450 = arith.divf %448, %449 : vector<8x1xf32>
    %cst_169 = arith.constant 9.99999974E-6 : f32
    %451 = vector.broadcast %cst_169 : f32 to vector<8x1xf32>
    %452 = arith.addf %450, %451 : vector<8x1xf32>
    %453 = math.rsqrt %452 : vector<8x1xf32>
    %454 = vector.broadcast %453 : vector<8x1xf32> to vector<8x32xf32>
    %455 = arith.mulf %445, %454 : vector<8x32xf32>
    %456 = vector.broadcast %438 : vector<1x32xf32> to vector<8x32xf32>
    %457 = arith.mulf %455, %456 : vector<8x32xf32>
    %458 = vector.broadcast %439 : vector<1x32xf32> to vector<8x32xf32>
    %459 = arith.addf %457, %458 : vector<8x32xf32>
    %cst_170 = arith.constant dense<0.000000e+00> : vector<8x64xf32>
    %460 = tpu.matmul %459, %31, %cst_170 {dimension_numbers = #tpu.dot_dimension_numbers<[1], [0], [0], [1], [0, 0, 1, 1], [], []>} : vector<8x32xf32>, vector<32x64xf32>, vector<8x64xf32> -> vector<8x64xf32>
    %461 = vector.broadcast %32 : vector<1x64xf32> to vector<8x64xf32>
    %462 = arith.addf %460, %461 : vector<8x64xf32>
    %cst_171 = arith.constant 0.000000e+00 : f32
    %463 = vector.broadcast %cst_171 : f32 to vector<8x64xf32>
    %464 = arith.maximumf %462, %463 : vector<8x64xf32>
    %cst_172 = arith.constant dense<0.000000e+00> : vector<8x32xf32>
    %465 = tpu.matmul %464, %33, %cst_172 {dimension_numbers = #tpu.dot_dimension_numbers<[1], [0], [0], [1], [0, 0, 1, 1], [], []>} : vector<8x64xf32>, vector<64x32xf32>, vector<8x32xf32> -> vector<8x32xf32>
    %466 = vector.extract_strided_slice %34 {offsets = [0, 0], sizes = [1, 32], strides = [1, 1]} : vector<3x32xf32> to vector<1x32xf32>
    %467 = vector.broadcast %466 : vector<1x32xf32> to vector<8x32xf32>
    %468 = arith.addf %465, %467 : vector<8x32xf32>
    %469 = arith.addf %459, %468 : vector<8x32xf32>
    %470 = vector.extract_strided_slice %34 {offsets = [1, 0], sizes = [1, 32], strides = [1, 1]} : vector<3x32xf32> to vector<1x32xf32>
    %471 = vector.extract_strided_slice %34 {offsets = [2, 0], sizes = [1, 32], strides = [1, 1]} : vector<3x32xf32> to vector<1x32xf32>
    %cst_173 = arith.constant dense<0.000000e+00> : vector<8xf32>
    %472 = vector.multi_reduction <add>, %469, %cst_173 [1] : vector<8x32xf32> to vector<8xf32>
    %473 = vector.shape_cast %472 : vector<8xf32> to vector<8x1xf32>
    %cst_174 = arith.constant 3.200000e+01 : f32
    %474 = vector.broadcast %cst_174 : f32 to vector<8x1xf32>
    %475 = arith.divf %473, %474 : vector<8x1xf32>
    %476 = vector.broadcast %475 : vector<8x1xf32> to vector<8x32xf32>
    %477 = arith.subf %469, %476 : vector<8x32xf32>
    %478 = arith.mulf %477, %477 : vector<8x32xf32>
    %cst_175 = arith.constant dense<0.000000e+00> : vector<8xf32>
    %479 = vector.multi_reduction <add>, %478, %cst_175 [1] : vector<8x32xf32> to vector<8xf32>
    %480 = vector.shape_cast %479 : vector<8xf32> to vector<8x1xf32>
    %cst_176 = arith.constant 3.200000e+01 : f32
    %481 = vector.broadcast %cst_176 : f32 to vector<8x1xf32>
    %482 = arith.divf %480, %481 : vector<8x1xf32>
    %cst_177 = arith.constant 9.99999974E-6 : f32
    %483 = vector.broadcast %cst_177 : f32 to vector<8x1xf32>
    %484 = arith.addf %482, %483 : vector<8x1xf32>
    %485 = math.rsqrt %484 : vector<8x1xf32>
    %486 = vector.broadcast %485 : vector<8x1xf32> to vector<8x32xf32>
    %487 = arith.mulf %477, %486 : vector<8x32xf32>
    %488 = vector.broadcast %470 : vector<1x32xf32> to vector<8x32xf32>
    %489 = arith.mulf %487, %488 : vector<8x32xf32>
    %490 = vector.broadcast %471 : vector<1x32xf32> to vector<8x32xf32>
    %491 = arith.addf %489, %490 : vector<8x32xf32>
    %492 = vector.extract_strided_slice %4 {offsets = [0, 0], sizes = [1, 32], strides = [1, 1]} : vector<4x32xf32> to vector<1x32xf32>
    %493 = vector.extract_strided_slice %4 {offsets = [1, 0], sizes = [1, 32], strides = [1, 1]} : vector<4x32xf32> to vector<1x32xf32>
    %cst_178 = arith.constant dense<0.000000e+00> : vector<8xf32>
    %494 = vector.multi_reduction <add>, %491, %cst_178 [1] : vector<8x32xf32> to vector<8xf32>
    %495 = vector.shape_cast %494 : vector<8xf32> to vector<8x1xf32>
    %cst_179 = arith.constant 3.200000e+01 : f32
    %496 = vector.broadcast %cst_179 : f32 to vector<8x1xf32>
    %497 = arith.divf %495, %496 : vector<8x1xf32>
    %498 = vector.broadcast %497 : vector<8x1xf32> to vector<8x32xf32>
    %499 = arith.subf %491, %498 : vector<8x32xf32>
    %500 = arith.mulf %499, %499 : vector<8x32xf32>
    %cst_180 = arith.constant dense<0.000000e+00> : vector<8xf32>
    %501 = vector.multi_reduction <add>, %500, %cst_180 [1] : vector<8x32xf32> to vector<8xf32>
    %502 = vector.shape_cast %501 : vector<8xf32> to vector<8x1xf32>
    %cst_181 = arith.constant 3.200000e+01 : f32
    %503 = vector.broadcast %cst_181 : f32 to vector<8x1xf32>
    %504 = arith.divf %502, %503 : vector<8x1xf32>
    %cst_182 = arith.constant 9.99999974E-6 : f32
    %505 = vector.broadcast %cst_182 : f32 to vector<8x1xf32>
    %506 = arith.addf %504, %505 : vector<8x1xf32>
    %507 = math.rsqrt %506 : vector<8x1xf32>
    %508 = vector.broadcast %507 : vector<8x1xf32> to vector<8x32xf32>
    %509 = arith.mulf %499, %508 : vector<8x32xf32>
    %510 = vector.broadcast %492 : vector<1x32xf32> to vector<8x32xf32>
    %511 = arith.mulf %509, %510 : vector<8x32xf32>
    %512 = vector.broadcast %493 : vector<1x32xf32> to vector<8x32xf32>
    %513 = arith.addf %511, %512 : vector<8x32xf32>
    %cst_183 = arith.constant dense<0.000000e+00> : vector<8x32xf32>
    %514 = tpu.matmul %513, %1, %cst_183 {dimension_numbers = #tpu.dot_dimension_numbers<[1], [0], [0], [1], [0, 0, 1, 1], [], []>} : vector<8x32xf32>, vector<32x32xf32>, vector<8x32xf32> -> vector<8x32xf32>
    %515 = vector.extract_strided_slice %4 {offsets = [2, 0], sizes = [1, 32], strides = [1, 1]} : vector<4x32xf32> to vector<1x32xf32>
    %516 = vector.broadcast %515 : vector<1x32xf32> to vector<8x32xf32>
    %517 = arith.addf %514, %516 : vector<8x32xf32>
    %cst_184 = arith.constant 0.000000e+00 : f32
    %518 = vector.broadcast %cst_184 : f32 to vector<8x32xf32>
    %519 = arith.maximumf %517, %518 : vector<8x32xf32>
    %cst_185 = arith.constant dense<0.000000e+00> : vector<8x32xf32>
    %520 = tpu.matmul %519, %2, %cst_185 {dimension_numbers = #tpu.dot_dimension_numbers<[1], [0], [0], [1], [0, 0, 1, 1], [], []>} : vector<8x32xf32>, vector<32x32xf32>, vector<8x32xf32> -> vector<8x32xf32>
    %521 = vector.extract_strided_slice %4 {offsets = [3, 0], sizes = [1, 32], strides = [1, 1]} : vector<4x32xf32> to vector<1x32xf32>
    %522 = vector.broadcast %521 : vector<1x32xf32> to vector<8x32xf32>
    %523 = arith.addf %520, %522 : vector<8x32xf32>
    %cst_186 = arith.constant 0.000000e+00 : f32
    %524 = vector.broadcast %cst_186 : f32 to vector<8x32xf32>
    %525 = arith.maximumf %523, %524 : vector<8x32xf32>
    %cst_187 = arith.constant dense<0.000000e+00> : vector<8x32xf32>
    %526 = tpu.matmul %525, %3, %cst_187 {dimension_numbers = #tpu.dot_dimension_numbers<[1], [0], [0], [1], [0, 0, 1, 1], [], []>} : vector<8x32xf32>, vector<32x32xf32>, vector<8x32xf32> -> vector<8x32xf32>
    %527 = vector.broadcast %5 : vector<1x32xf32> to vector<8x32xf32>
    %528 = arith.addf %526, %527 : vector<8x32xf32>
    %cst_188 = arith.constant dense<0.000000e+00> : vector<8x16xf32>
    %529 = tpu.matmul %528, %53, %cst_188 {dimension_numbers = #tpu.dot_dimension_numbers<[1], [0], [0], [1], [0, 0, 1, 1], [], []>} : vector<8x32xf32>, vector<32x16xf32>, vector<8x16xf32> -> vector<8x16xf32>
    %cst_189 = arith.constant dense<0xFF800000> : vector<8xf32>
    %530 = vector.multi_reduction <maximumf>, %529, %cst_189 [1] : vector<8x16xf32> to vector<8xf32>
    %531 = vector.shape_cast %530 : vector<8xf32> to vector<8x1xf32>
    %cst_190 = arith.constant 0.000000e+00 : f32
    %532 = vector.broadcast %cst_190 : f32 to vector<8x16xf32>
    %533 = arith.cmpf olt, %529, %532 : vector<8x16xf32>
    %cst_191 = arith.constant 0.000000e+00 : f32
    %534 = vector.broadcast %cst_191 : f32 to vector<8x1xf32>
    %535 = arith.cmpf oge, %531, %534 : vector<8x1xf32>
    %536 = vector.broadcast %535 : vector<8x1xi1> to vector<8x16xi1>
    %537 = arith.andi %533, %536 : vector<8x16xi1>
    %cst_192 = arith.constant -1.000000e+09 : f32
    %cst_193 = arith.constant 0.000000e+00 : f32
    %538 = vector.broadcast %cst_192 : f32 to vector<8x16xf32>
    %539 = vector.broadcast %cst_193 : f32 to vector<8x16xf32>
    %540 = arith.select %537, %538, %539 : vector<8x16xi1>, vector<8x16xf32>
    %cst_194 = arith.constant dense<0.000000e+00> : vector<8x32xf32>
    %541 = tpu.matmul %491, %35, %cst_194 {dimension_numbers = #tpu.dot_dimension_numbers<[1], [0], [0], [1], [0, 0, 1, 1], [], []>} : vector<8x32xf32>, vector<32x32xf32>, vector<8x32xf32> -> vector<8x32xf32>
    %542 = arith.addf %541, %36 : vector<8x32xf32>
    %543 = vector.extract_strided_slice %50 {offsets = [0, 80], sizes = [16, 16], strides = [1, 1]} : vector<16x96xf32> to vector<16x16xf32>
    %cst_195 = arith.constant dense<0.000000e+00> : vector<64x16xf32>
    %544 = tpu.matmul %37, %543, %cst_195 {dimension_numbers = #tpu.dot_dimension_numbers<[1], [0], [0], [1], [0, 0, 1, 1], [], []>} : vector<64x16xf32>, vector<16x16xf32>, vector<64x16xf32> -> vector<64x16xf32>
    %545 = arith.addf %544, %38 : vector<64x16xf32>
    %546 = vector.extract_strided_slice %545 {offsets = [0, 0], sizes = [32, 16], strides = [1, 1]} : vector<64x16xf32> to vector<32x16xf32>
    %547 = vector.extract_strided_slice %545 {offsets = [32, 0], sizes = [32, 16], strides = [1, 1]} : vector<64x16xf32> to vector<32x16xf32>
    %548 = vector.extract_strided_slice %542 {offsets = [0, 0], sizes = [8, 8], strides = [1, 1]} : vector<8x32xf32> to vector<8x8xf32>
    %549 = vector.extract_strided_slice %546 {offsets = [0, 0], sizes = [8, 16], strides = [1, 1]} : vector<32x16xf32> to vector<8x16xf32>
    %cst_196 = arith.constant dense<0.000000e+00> : vector<8x16xf32>
    %550 = tpu.matmul %548, %549, %cst_196 {dimension_numbers = #tpu.dot_dimension_numbers<[1], [0], [0], [1], [0, 0, 1, 1], [], []>} : vector<8x8xf32>, vector<8x16xf32>, vector<8x16xf32> -> vector<8x16xf32>
    %551 = vector.extract_strided_slice %542 {offsets = [0, 8], sizes = [8, 8], strides = [1, 1]} : vector<8x32xf32> to vector<8x8xf32>
    %552 = vector.extract_strided_slice %546 {offsets = [8, 0], sizes = [8, 16], strides = [1, 1]} : vector<32x16xf32> to vector<8x16xf32>
    %cst_197 = arith.constant dense<0.000000e+00> : vector<8x16xf32>
    %553 = tpu.matmul %551, %552, %cst_197 {dimension_numbers = #tpu.dot_dimension_numbers<[1], [0], [0], [1], [0, 0, 1, 1], [], []>} : vector<8x8xf32>, vector<8x16xf32>, vector<8x16xf32> -> vector<8x16xf32>
    %554 = vector.extract_strided_slice %542 {offsets = [0, 16], sizes = [8, 8], strides = [1, 1]} : vector<8x32xf32> to vector<8x8xf32>
    %555 = vector.extract_strided_slice %546 {offsets = [16, 0], sizes = [8, 16], strides = [1, 1]} : vector<32x16xf32> to vector<8x16xf32>
    %cst_198 = arith.constant dense<0.000000e+00> : vector<8x16xf32>
    %556 = tpu.matmul %554, %555, %cst_198 {dimension_numbers = #tpu.dot_dimension_numbers<[1], [0], [0], [1], [0, 0, 1, 1], [], []>} : vector<8x8xf32>, vector<8x16xf32>, vector<8x16xf32> -> vector<8x16xf32>
    %557 = vector.extract_strided_slice %542 {offsets = [0, 24], sizes = [8, 8], strides = [1, 1]} : vector<8x32xf32> to vector<8x8xf32>
    %558 = vector.extract_strided_slice %546 {offsets = [24, 0], sizes = [8, 16], strides = [1, 1]} : vector<32x16xf32> to vector<8x16xf32>
    %cst_199 = arith.constant dense<0.000000e+00> : vector<8x16xf32>
    %559 = tpu.matmul %557, %558, %cst_199 {dimension_numbers = #tpu.dot_dimension_numbers<[1], [0], [0], [1], [0, 0, 1, 1], [], []>} : vector<8x8xf32>, vector<8x16xf32>, vector<8x16xf32> -> vector<8x16xf32>
    %560 = tpu.concatenate %550, %553, %556, %559 in 0 : vector<8x16xf32>, vector<8x16xf32>, vector<8x16xf32>, vector<8x16xf32> -> vector<32x16xf32>
    %561 = tpu.concatenate %540, %540, %540, %540 in 0 : vector<8x16xf32>, vector<8x16xf32>, vector<8x16xf32>, vector<8x16xf32> -> vector<32x16xf32>
    %562 = arith.addf %560, %561 : vector<32x16xf32>
    %cst_200 = arith.constant dense<0xFF800000> : vector<32xf32>
    %563 = vector.multi_reduction <maximumf>, %562, %cst_200 [1] : vector<32x16xf32> to vector<32xf32>
    %564 = vector.shape_cast %563 : vector<32xf32> to vector<32x1xf32>
    %565 = vector.broadcast %564 : vector<32x1xf32> to vector<32x16xf32>
    %566 = arith.subf %562, %565 : vector<32x16xf32>
    %567 = math.exp %566 : vector<32x16xf32>
    %cst_201 = arith.constant dense<0.000000e+00> : vector<32xf32>
    %568 = vector.multi_reduction <add>, %567, %cst_201 [1] : vector<32x16xf32> to vector<32xf32>
    %569 = vector.shape_cast %568 : vector<32xf32> to vector<32x1xf32>
    %570 = vector.broadcast %569 : vector<32x1xf32> to vector<32x16xf32>
    %571 = arith.divf %567, %570 : vector<32x16xf32>
    %572 = vector.extract_strided_slice %571 {offsets = [0, 0], sizes = [8, 16], strides = [1, 1]} : vector<32x16xf32> to vector<8x16xf32>
    %573 = vector.extract_strided_slice %547 {offsets = [0, 0], sizes = [8, 16], strides = [1, 1]} : vector<32x16xf32> to vector<8x16xf32>
    %cst_202 = arith.constant dense<0.000000e+00> : vector<8x8xf32>
    %574 = tpu.matmul %572, %573, %cst_202 {dimension_numbers = #tpu.dot_dimension_numbers<[1], [1], [0], [0], [0, 0, 1, 0], [], []>} : vector<8x16xf32>, vector<8x16xf32>, vector<8x8xf32> -> vector<8x8xf32>
    %575 = vector.extract_strided_slice %571 {offsets = [8, 0], sizes = [8, 16], strides = [1, 1]} : vector<32x16xf32> to vector<8x16xf32>
    %576 = vector.extract_strided_slice %547 {offsets = [8, 0], sizes = [8, 16], strides = [1, 1]} : vector<32x16xf32> to vector<8x16xf32>
    %cst_203 = arith.constant dense<0.000000e+00> : vector<8x8xf32>
    %577 = tpu.matmul %575, %576, %cst_203 {dimension_numbers = #tpu.dot_dimension_numbers<[1], [1], [0], [0], [0, 0, 1, 0], [], []>} : vector<8x16xf32>, vector<8x16xf32>, vector<8x8xf32> -> vector<8x8xf32>
    %578 = vector.extract_strided_slice %571 {offsets = [16, 0], sizes = [8, 16], strides = [1, 1]} : vector<32x16xf32> to vector<8x16xf32>
    %579 = vector.extract_strided_slice %547 {offsets = [16, 0], sizes = [8, 16], strides = [1, 1]} : vector<32x16xf32> to vector<8x16xf32>
    %cst_204 = arith.constant dense<0.000000e+00> : vector<8x8xf32>
    %580 = tpu.matmul %578, %579, %cst_204 {dimension_numbers = #tpu.dot_dimension_numbers<[1], [1], [0], [0], [0, 0, 1, 0], [], []>} : vector<8x16xf32>, vector<8x16xf32>, vector<8x8xf32> -> vector<8x8xf32>
    %581 = vector.extract_strided_slice %571 {offsets = [24, 0], sizes = [8, 16], strides = [1, 1]} : vector<32x16xf32> to vector<8x16xf32>
    %582 = vector.extract_strided_slice %547 {offsets = [24, 0], sizes = [8, 16], strides = [1, 1]} : vector<32x16xf32> to vector<8x16xf32>
    %cst_205 = arith.constant dense<0.000000e+00> : vector<8x8xf32>
    %583 = tpu.matmul %581, %582, %cst_205 {dimension_numbers = #tpu.dot_dimension_numbers<[1], [1], [0], [0], [0, 0, 1, 0], [], []>} : vector<8x16xf32>, vector<8x16xf32>, vector<8x8xf32> -> vector<8x8xf32>
    %584 = tpu.concatenate %574, %577, %580, %583 in 1 : vector<8x8xf32>, vector<8x8xf32>, vector<8x8xf32>, vector<8x8xf32> -> vector<8x32xf32>
    %cst_206 = arith.constant dense<0.000000e+00> : vector<8x32xf32>
    %585 = tpu.matmul %584, %39, %cst_206 {dimension_numbers = #tpu.dot_dimension_numbers<[1], [0], [0], [1], [0, 0, 1, 1], [], []>} : vector<8x32xf32>, vector<32x32xf32>, vector<8x32xf32> -> vector<8x32xf32>
    %586 = arith.addf %491, %585 : vector<8x32xf32>
    %587 = vector.extract_strided_slice %40 {offsets = [0, 0], sizes = [1, 32], strides = [1, 1]} : vector<3x32xf32> to vector<1x32xf32>
    %588 = vector.broadcast %587 : vector<1x32xf32> to vector<8x32xf32>
    %589 = arith.addf %586, %588 : vector<8x32xf32>
    %590 = vector.extract_strided_slice %40 {offsets = [1, 0], sizes = [1, 32], strides = [1, 1]} : vector<3x32xf32> to vector<1x32xf32>
    %591 = vector.extract_strided_slice %40 {offsets = [2, 0], sizes = [1, 32], strides = [1, 1]} : vector<3x32xf32> to vector<1x32xf32>
    %cst_207 = arith.constant dense<0.000000e+00> : vector<8xf32>
    %592 = vector.multi_reduction <add>, %589, %cst_207 [1] : vector<8x32xf32> to vector<8xf32>
    %593 = vector.shape_cast %592 : vector<8xf32> to vector<8x1xf32>
    %cst_208 = arith.constant 3.200000e+01 : f32
    %594 = vector.broadcast %cst_208 : f32 to vector<8x1xf32>
    %595 = arith.divf %593, %594 : vector<8x1xf32>
    %596 = vector.broadcast %595 : vector<8x1xf32> to vector<8x32xf32>
    %597 = arith.subf %589, %596 : vector<8x32xf32>
    %598 = arith.mulf %597, %597 : vector<8x32xf32>
    %cst_209 = arith.constant dense<0.000000e+00> : vector<8xf32>
    %599 = vector.multi_reduction <add>, %598, %cst_209 [1] : vector<8x32xf32> to vector<8xf32>
    %600 = vector.shape_cast %599 : vector<8xf32> to vector<8x1xf32>
    %cst_210 = arith.constant 3.200000e+01 : f32
    %601 = vector.broadcast %cst_210 : f32 to vector<8x1xf32>
    %602 = arith.divf %600, %601 : vector<8x1xf32>
    %cst_211 = arith.constant 9.99999974E-6 : f32
    %603 = vector.broadcast %cst_211 : f32 to vector<8x1xf32>
    %604 = arith.addf %602, %603 : vector<8x1xf32>
    %605 = math.rsqrt %604 : vector<8x1xf32>
    %606 = vector.broadcast %605 : vector<8x1xf32> to vector<8x32xf32>
    %607 = arith.mulf %597, %606 : vector<8x32xf32>
    %608 = vector.broadcast %590 : vector<1x32xf32> to vector<8x32xf32>
    %609 = arith.mulf %607, %608 : vector<8x32xf32>
    %610 = vector.broadcast %591 : vector<1x32xf32> to vector<8x32xf32>
    %611 = arith.addf %609, %610 : vector<8x32xf32>
    %cst_212 = arith.constant dense<0.000000e+00> : vector<8x96xf32>
    %612 = tpu.matmul %611, %41, %cst_212 {dimension_numbers = #tpu.dot_dimension_numbers<[1], [0], [0], [1], [0, 0, 1, 1], [], []>} : vector<8x32xf32>, vector<32x96xf32>, vector<8x96xf32> -> vector<8x96xf32>
    %613 = arith.addf %612, %42 : vector<8x96xf32>
    %614 = vector.extract_strided_slice %613 {offsets = [0, 0], sizes = [8, 32], strides = [1, 1]} : vector<8x96xf32> to vector<8x32xf32>
    %615 = vector.extract_strided_slice %613 {offsets = [0, 32], sizes = [8, 32], strides = [1, 1]} : vector<8x96xf32> to vector<8x32xf32>
    %616 = vector.extract_strided_slice %613 {offsets = [0, 64], sizes = [8, 32], strides = [1, 1]} : vector<8x96xf32> to vector<8x32xf32>
    %617 = vector.extract_strided_slice %614 {offsets = [0, 0], sizes = [8, 8], strides = [1, 1]} : vector<8x32xf32> to vector<8x8xf32>
    %618 = vector.extract_strided_slice %615 {offsets = [0, 0], sizes = [8, 8], strides = [1, 1]} : vector<8x32xf32> to vector<8x8xf32>
    %cst_213 = arith.constant dense<0.000000e+00> : vector<8x8xf32>
    %619 = tpu.matmul %617, %618, %cst_213 {dimension_numbers = #tpu.dot_dimension_numbers<[1], [1], [0], [0], [0, 0, 1, 0], [], []>} : vector<8x8xf32>, vector<8x8xf32>, vector<8x8xf32> -> vector<8x8xf32>
    %620 = vector.extract_strided_slice %614 {offsets = [0, 8], sizes = [8, 8], strides = [1, 1]} : vector<8x32xf32> to vector<8x8xf32>
    %621 = vector.extract_strided_slice %615 {offsets = [0, 8], sizes = [8, 8], strides = [1, 1]} : vector<8x32xf32> to vector<8x8xf32>
    %cst_214 = arith.constant dense<0.000000e+00> : vector<8x8xf32>
    %622 = tpu.matmul %620, %621, %cst_214 {dimension_numbers = #tpu.dot_dimension_numbers<[1], [1], [0], [0], [0, 0, 1, 0], [], []>} : vector<8x8xf32>, vector<8x8xf32>, vector<8x8xf32> -> vector<8x8xf32>
    %623 = vector.extract_strided_slice %614 {offsets = [0, 16], sizes = [8, 8], strides = [1, 1]} : vector<8x32xf32> to vector<8x8xf32>
    %624 = vector.extract_strided_slice %615 {offsets = [0, 16], sizes = [8, 8], strides = [1, 1]} : vector<8x32xf32> to vector<8x8xf32>
    %cst_215 = arith.constant dense<0.000000e+00> : vector<8x8xf32>
    %625 = tpu.matmul %623, %624, %cst_215 {dimension_numbers = #tpu.dot_dimension_numbers<[1], [1], [0], [0], [0, 0, 1, 0], [], []>} : vector<8x8xf32>, vector<8x8xf32>, vector<8x8xf32> -> vector<8x8xf32>
    %626 = vector.extract_strided_slice %614 {offsets = [0, 24], sizes = [8, 8], strides = [1, 1]} : vector<8x32xf32> to vector<8x8xf32>
    %627 = vector.extract_strided_slice %615 {offsets = [0, 24], sizes = [8, 8], strides = [1, 1]} : vector<8x32xf32> to vector<8x8xf32>
    %cst_216 = arith.constant dense<0.000000e+00> : vector<8x8xf32>
    %628 = tpu.matmul %626, %627, %cst_216 {dimension_numbers = #tpu.dot_dimension_numbers<[1], [1], [0], [0], [0, 0, 1, 0], [], []>} : vector<8x8xf32>, vector<8x8xf32>, vector<8x8xf32> -> vector<8x8xf32>
    %629 = tpu.concatenate %619, %622, %625, %628 in 0 : vector<8x8xf32>, vector<8x8xf32>, vector<8x8xf32>, vector<8x8xf32> -> vector<32x8xf32>
    %cst_217 = arith.constant dense<0xFF800000> : vector<32xf32>
    %630 = vector.multi_reduction <maximumf>, %629, %cst_217 [1] : vector<32x8xf32> to vector<32xf32>
    %631 = vector.shape_cast %630 : vector<32xf32> to vector<32x1xf32>
    %632 = vector.broadcast %631 : vector<32x1xf32> to vector<32x8xf32>
    %633 = arith.subf %629, %632 : vector<32x8xf32>
    %634 = math.exp %633 : vector<32x8xf32>
    %cst_218 = arith.constant dense<0.000000e+00> : vector<32xf32>
    %635 = vector.multi_reduction <add>, %634, %cst_218 [1] : vector<32x8xf32> to vector<32xf32>
    %636 = vector.shape_cast %635 : vector<32xf32> to vector<32x1xf32>
    %637 = vector.broadcast %636 : vector<32x1xf32> to vector<32x8xf32>
    %638 = arith.divf %634, %637 : vector<32x8xf32>
    %639 = vector.extract_strided_slice %638 {offsets = [0, 0], sizes = [8, 8], strides = [1, 1]} : vector<32x8xf32> to vector<8x8xf32>
    %640 = vector.extract_strided_slice %616 {offsets = [0, 0], sizes = [8, 8], strides = [1, 1]} : vector<8x32xf32> to vector<8x8xf32>
    %cst_219 = arith.constant dense<0.000000e+00> : vector<8x8xf32>
    %641 = tpu.matmul %639, %640, %cst_219 {dimension_numbers = #tpu.dot_dimension_numbers<[1], [0], [0], [1], [0, 0, 1, 1], [], []>} : vector<8x8xf32>, vector<8x8xf32>, vector<8x8xf32> -> vector<8x8xf32>
    %642 = vector.extract_strided_slice %638 {offsets = [8, 0], sizes = [8, 8], strides = [1, 1]} : vector<32x8xf32> to vector<8x8xf32>
    %643 = vector.extract_strided_slice %616 {offsets = [0, 8], sizes = [8, 8], strides = [1, 1]} : vector<8x32xf32> to vector<8x8xf32>
    %cst_220 = arith.constant dense<0.000000e+00> : vector<8x8xf32>
    %644 = tpu.matmul %642, %643, %cst_220 {dimension_numbers = #tpu.dot_dimension_numbers<[1], [0], [0], [1], [0, 0, 1, 1], [], []>} : vector<8x8xf32>, vector<8x8xf32>, vector<8x8xf32> -> vector<8x8xf32>
    %645 = vector.extract_strided_slice %638 {offsets = [16, 0], sizes = [8, 8], strides = [1, 1]} : vector<32x8xf32> to vector<8x8xf32>
    %646 = vector.extract_strided_slice %616 {offsets = [0, 16], sizes = [8, 8], strides = [1, 1]} : vector<8x32xf32> to vector<8x8xf32>
    %cst_221 = arith.constant dense<0.000000e+00> : vector<8x8xf32>
    %647 = tpu.matmul %645, %646, %cst_221 {dimension_numbers = #tpu.dot_dimension_numbers<[1], [0], [0], [1], [0, 0, 1, 1], [], []>} : vector<8x8xf32>, vector<8x8xf32>, vector<8x8xf32> -> vector<8x8xf32>
    %648 = vector.extract_strided_slice %638 {offsets = [24, 0], sizes = [8, 8], strides = [1, 1]} : vector<32x8xf32> to vector<8x8xf32>
    %649 = vector.extract_strided_slice %616 {offsets = [0, 24], sizes = [8, 8], strides = [1, 1]} : vector<8x32xf32> to vector<8x8xf32>
    %cst_222 = arith.constant dense<0.000000e+00> : vector<8x8xf32>
    %650 = tpu.matmul %648, %649, %cst_222 {dimension_numbers = #tpu.dot_dimension_numbers<[1], [0], [0], [1], [0, 0, 1, 1], [], []>} : vector<8x8xf32>, vector<8x8xf32>, vector<8x8xf32> -> vector<8x8xf32>
    %651 = tpu.concatenate %641, %644, %647, %650 in 1 : vector<8x8xf32>, vector<8x8xf32>, vector<8x8xf32>, vector<8x8xf32> -> vector<8x32xf32>
    %cst_223 = arith.constant dense<0.000000e+00> : vector<8x32xf32>
    %652 = tpu.matmul %651, %43, %cst_223 {dimension_numbers = #tpu.dot_dimension_numbers<[1], [0], [0], [1], [0, 0, 1, 1], [], []>} : vector<8x32xf32>, vector<32x32xf32>, vector<8x32xf32> -> vector<8x32xf32>
    %653 = arith.addf %611, %652 : vector<8x32xf32>
    %654 = vector.extract_strided_slice %44 {offsets = [0, 0], sizes = [1, 32], strides = [1, 1]} : vector<3x32xf32> to vector<1x32xf32>
    %655 = vector.broadcast %654 : vector<1x32xf32> to vector<8x32xf32>
    %656 = arith.addf %653, %655 : vector<8x32xf32>
    %657 = vector.extract_strided_slice %44 {offsets = [1, 0], sizes = [1, 32], strides = [1, 1]} : vector<3x32xf32> to vector<1x32xf32>
    %658 = vector.extract_strided_slice %44 {offsets = [2, 0], sizes = [1, 32], strides = [1, 1]} : vector<3x32xf32> to vector<1x32xf32>
    %cst_224 = arith.constant dense<0.000000e+00> : vector<8xf32>
    %659 = vector.multi_reduction <add>, %656, %cst_224 [1] : vector<8x32xf32> to vector<8xf32>
    %660 = vector.shape_cast %659 : vector<8xf32> to vector<8x1xf32>
    %cst_225 = arith.constant 3.200000e+01 : f32
    %661 = vector.broadcast %cst_225 : f32 to vector<8x1xf32>
    %662 = arith.divf %660, %661 : vector<8x1xf32>
    %663 = vector.broadcast %662 : vector<8x1xf32> to vector<8x32xf32>
    %664 = arith.subf %656, %663 : vector<8x32xf32>
    %665 = arith.mulf %664, %664 : vector<8x32xf32>
    %cst_226 = arith.constant dense<0.000000e+00> : vector<8xf32>
    %666 = vector.multi_reduction <add>, %665, %cst_226 [1] : vector<8x32xf32> to vector<8xf32>
    %667 = vector.shape_cast %666 : vector<8xf32> to vector<8x1xf32>
    %cst_227 = arith.constant 3.200000e+01 : f32
    %668 = vector.broadcast %cst_227 : f32 to vector<8x1xf32>
    %669 = arith.divf %667, %668 : vector<8x1xf32>
    %cst_228 = arith.constant 9.99999974E-6 : f32
    %670 = vector.broadcast %cst_228 : f32 to vector<8x1xf32>
    %671 = arith.addf %669, %670 : vector<8x1xf32>
    %672 = math.rsqrt %671 : vector<8x1xf32>
    %673 = vector.broadcast %672 : vector<8x1xf32> to vector<8x32xf32>
    %674 = arith.mulf %664, %673 : vector<8x32xf32>
    %675 = vector.broadcast %657 : vector<1x32xf32> to vector<8x32xf32>
    %676 = arith.mulf %674, %675 : vector<8x32xf32>
    %677 = vector.broadcast %658 : vector<1x32xf32> to vector<8x32xf32>
    %678 = arith.addf %676, %677 : vector<8x32xf32>
    %cst_229 = arith.constant dense<0.000000e+00> : vector<8x64xf32>
    %679 = tpu.matmul %678, %45, %cst_229 {dimension_numbers = #tpu.dot_dimension_numbers<[1], [0], [0], [1], [0, 0, 1, 1], [], []>} : vector<8x32xf32>, vector<32x64xf32>, vector<8x64xf32> -> vector<8x64xf32>
    %680 = vector.broadcast %46 : vector<1x64xf32> to vector<8x64xf32>
    %681 = arith.addf %679, %680 : vector<8x64xf32>
    %cst_230 = arith.constant 0.000000e+00 : f32
    %682 = vector.broadcast %cst_230 : f32 to vector<8x64xf32>
    %683 = arith.maximumf %681, %682 : vector<8x64xf32>
    %cst_231 = arith.constant dense<0.000000e+00> : vector<8x32xf32>
    %684 = tpu.matmul %683, %47, %cst_231 {dimension_numbers = #tpu.dot_dimension_numbers<[1], [0], [0], [1], [0, 0, 1, 1], [], []>} : vector<8x64xf32>, vector<64x32xf32>, vector<8x32xf32> -> vector<8x32xf32>
    %685 = vector.extract_strided_slice %48 {offsets = [0, 0], sizes = [1, 32], strides = [1, 1]} : vector<3x32xf32> to vector<1x32xf32>
    %686 = vector.broadcast %685 : vector<1x32xf32> to vector<8x32xf32>
    %687 = arith.addf %684, %686 : vector<8x32xf32>
    %688 = arith.addf %678, %687 : vector<8x32xf32>
    %689 = vector.extract_strided_slice %48 {offsets = [1, 0], sizes = [1, 32], strides = [1, 1]} : vector<3x32xf32> to vector<1x32xf32>
    %690 = vector.extract_strided_slice %48 {offsets = [2, 0], sizes = [1, 32], strides = [1, 1]} : vector<3x32xf32> to vector<1x32xf32>
    %cst_232 = arith.constant dense<0.000000e+00> : vector<8xf32>
    %691 = vector.multi_reduction <add>, %688, %cst_232 [1] : vector<8x32xf32> to vector<8xf32>
    %692 = vector.shape_cast %691 : vector<8xf32> to vector<8x1xf32>
    %cst_233 = arith.constant 3.200000e+01 : f32
    %693 = vector.broadcast %cst_233 : f32 to vector<8x1xf32>
    %694 = arith.divf %692, %693 : vector<8x1xf32>
    %695 = vector.broadcast %694 : vector<8x1xf32> to vector<8x32xf32>
    %696 = arith.subf %688, %695 : vector<8x32xf32>
    %697 = arith.mulf %696, %696 : vector<8x32xf32>
    %cst_234 = arith.constant dense<0.000000e+00> : vector<8xf32>
    %698 = vector.multi_reduction <add>, %697, %cst_234 [1] : vector<8x32xf32> to vector<8xf32>
    %699 = vector.shape_cast %698 : vector<8xf32> to vector<8x1xf32>
    %cst_235 = arith.constant 3.200000e+01 : f32
    %700 = vector.broadcast %cst_235 : f32 to vector<8x1xf32>
    %701 = arith.divf %699, %700 : vector<8x1xf32>
    %cst_236 = arith.constant 9.99999974E-6 : f32
    %702 = vector.broadcast %cst_236 : f32 to vector<8x1xf32>
    %703 = arith.addf %701, %702 : vector<8x1xf32>
    %704 = math.rsqrt %703 : vector<8x1xf32>
    %705 = vector.broadcast %704 : vector<8x1xf32> to vector<8x32xf32>
    %706 = arith.mulf %696, %705 : vector<8x32xf32>
    %707 = vector.broadcast %689 : vector<1x32xf32> to vector<8x32xf32>
    %708 = arith.mulf %706, %707 : vector<8x32xf32>
    %709 = vector.broadcast %690 : vector<1x32xf32> to vector<8x32xf32>
    %710 = arith.addf %708, %709 : vector<8x32xf32>
    %711 = vector.extract_strided_slice %4 {offsets = [0, 0], sizes = [1, 32], strides = [1, 1]} : vector<4x32xf32> to vector<1x32xf32>
    %712 = vector.extract_strided_slice %4 {offsets = [1, 0], sizes = [1, 32], strides = [1, 1]} : vector<4x32xf32> to vector<1x32xf32>
    %cst_237 = arith.constant dense<0.000000e+00> : vector<8xf32>
    %713 = vector.multi_reduction <add>, %710, %cst_237 [1] : vector<8x32xf32> to vector<8xf32>
    %714 = vector.shape_cast %713 : vector<8xf32> to vector<8x1xf32>
    %cst_238 = arith.constant 3.200000e+01 : f32
    %715 = vector.broadcast %cst_238 : f32 to vector<8x1xf32>
    %716 = arith.divf %714, %715 : vector<8x1xf32>
    %717 = vector.broadcast %716 : vector<8x1xf32> to vector<8x32xf32>
    %718 = arith.subf %710, %717 : vector<8x32xf32>
    %719 = arith.mulf %718, %718 : vector<8x32xf32>
    %cst_239 = arith.constant dense<0.000000e+00> : vector<8xf32>
    %720 = vector.multi_reduction <add>, %719, %cst_239 [1] : vector<8x32xf32> to vector<8xf32>
    %721 = vector.shape_cast %720 : vector<8xf32> to vector<8x1xf32>
    %cst_240 = arith.constant 3.200000e+01 : f32
    %722 = vector.broadcast %cst_240 : f32 to vector<8x1xf32>
    %723 = arith.divf %721, %722 : vector<8x1xf32>
    %cst_241 = arith.constant 9.99999974E-6 : f32
    %724 = vector.broadcast %cst_241 : f32 to vector<8x1xf32>
    %725 = arith.addf %723, %724 : vector<8x1xf32>
    %726 = math.rsqrt %725 : vector<8x1xf32>
    %727 = vector.broadcast %726 : vector<8x1xf32> to vector<8x32xf32>
    %728 = arith.mulf %718, %727 : vector<8x32xf32>
    %729 = vector.broadcast %711 : vector<1x32xf32> to vector<8x32xf32>
    %730 = arith.mulf %728, %729 : vector<8x32xf32>
    %731 = vector.broadcast %712 : vector<1x32xf32> to vector<8x32xf32>
    %732 = arith.addf %730, %731 : vector<8x32xf32>
    %cst_242 = arith.constant dense<0.000000e+00> : vector<8x32xf32>
    %733 = tpu.matmul %732, %1, %cst_242 {dimension_numbers = #tpu.dot_dimension_numbers<[1], [0], [0], [1], [0, 0, 1, 1], [], []>} : vector<8x32xf32>, vector<32x32xf32>, vector<8x32xf32> -> vector<8x32xf32>
    %734 = vector.extract_strided_slice %4 {offsets = [2, 0], sizes = [1, 32], strides = [1, 1]} : vector<4x32xf32> to vector<1x32xf32>
    %735 = vector.broadcast %734 : vector<1x32xf32> to vector<8x32xf32>
    %736 = arith.addf %733, %735 : vector<8x32xf32>
    %cst_243 = arith.constant 0.000000e+00 : f32
    %737 = vector.broadcast %cst_243 : f32 to vector<8x32xf32>
    %738 = arith.maximumf %736, %737 : vector<8x32xf32>
    %cst_244 = arith.constant dense<0.000000e+00> : vector<8x32xf32>
    %739 = tpu.matmul %738, %2, %cst_244 {dimension_numbers = #tpu.dot_dimension_numbers<[1], [0], [0], [1], [0, 0, 1, 1], [], []>} : vector<8x32xf32>, vector<32x32xf32>, vector<8x32xf32> -> vector<8x32xf32>
    %740 = vector.extract_strided_slice %4 {offsets = [3, 0], sizes = [1, 32], strides = [1, 1]} : vector<4x32xf32> to vector<1x32xf32>
    %741 = vector.broadcast %740 : vector<1x32xf32> to vector<8x32xf32>
    %742 = arith.addf %739, %741 : vector<8x32xf32>
    %cst_245 = arith.constant 0.000000e+00 : f32
    %743 = vector.broadcast %cst_245 : f32 to vector<8x32xf32>
    %744 = arith.maximumf %742, %743 : vector<8x32xf32>
    %cst_246 = arith.constant dense<0.000000e+00> : vector<8x32xf32>
    %745 = tpu.matmul %744, %3, %cst_246 {dimension_numbers = #tpu.dot_dimension_numbers<[1], [0], [0], [1], [0, 0, 1, 1], [], []>} : vector<8x32xf32>, vector<32x32xf32>, vector<8x32xf32> -> vector<8x32xf32>
    %746 = vector.broadcast %5 : vector<1x32xf32> to vector<8x32xf32>
    %747 = arith.addf %745, %746 : vector<8x32xf32>
    %cst_247 = arith.constant dense<0.000000e+00> : vector<8x64xf32>
    %748 = tpu.matmul %747, %52, %cst_247 {dimension_numbers = #tpu.dot_dimension_numbers<[1], [0], [0], [1], [0, 0, 1, 1], [], []>} : vector<8x32xf32>, vector<32x64xf32>, vector<8x64xf32> -> vector<8x64xf32>
    %c1 = arith.constant 1 : index
    %c0_248 = arith.constant 0 : index
    %c0_249 = arith.constant 0 : index
    %749 = vector.load %arg0[%c1, %c0_248, %c0_249] : memref<2x16x96xf32, #tpu.memory_space<vmem>>, vector<1x16x96xf32>
    %750 = vector.shape_cast %749 : vector<1x16x96xf32> to vector<16x96xf32>
    %c1_250 = arith.constant 1 : index
    %c0_251 = arith.constant 0 : index
    %c0_252 = arith.constant 0 : index
    %751 = vector.load %arg1[%c1_250, %c0_251, %c0_252] : memref<2x32x64xf32, #tpu.memory_space<vmem>>, vector<1x32x64xf32>
    %752 = vector.shape_cast %751 : vector<1x32x64xf32> to vector<32x64xf32>
    %cst_253 = arith.constant dense<0.000000e+00> : vector<32x16xf32>
    %753 = tpu.matmul %752, %6, %cst_253 {dimension_numbers = #tpu.dot_dimension_numbers<[1], [0], [0], [1], [0, 0, 1, 1], [], []>} : vector<32x64xf32>, vector<64x16xf32>, vector<32x16xf32> -> vector<32x16xf32>
    %754 = vector.extract_strided_slice %4 {offsets = [0, 0], sizes = [1, 32], strides = [1, 1]} : vector<4x32xf32> to vector<1x32xf32>
    %755 = vector.extract_strided_slice %4 {offsets = [1, 0], sizes = [1, 32], strides = [1, 1]} : vector<4x32xf32> to vector<1x32xf32>
    %cst_254 = arith.constant dense<0.000000e+00> : vector<8xf32>
    %756 = vector.multi_reduction <add>, %0, %cst_254 [1] : vector<8x32xf32> to vector<8xf32>
    %757 = vector.shape_cast %756 : vector<8xf32> to vector<8x1xf32>
    %cst_255 = arith.constant 3.200000e+01 : f32
    %758 = vector.broadcast %cst_255 : f32 to vector<8x1xf32>
    %759 = arith.divf %757, %758 : vector<8x1xf32>
    %760 = vector.broadcast %759 : vector<8x1xf32> to vector<8x32xf32>
    %761 = arith.subf %0, %760 : vector<8x32xf32>
    %762 = arith.mulf %761, %761 : vector<8x32xf32>
    %cst_256 = arith.constant dense<0.000000e+00> : vector<8xf32>
    %763 = vector.multi_reduction <add>, %762, %cst_256 [1] : vector<8x32xf32> to vector<8xf32>
    %764 = vector.shape_cast %763 : vector<8xf32> to vector<8x1xf32>
    %cst_257 = arith.constant 3.200000e+01 : f32
    %765 = vector.broadcast %cst_257 : f32 to vector<8x1xf32>
    %766 = arith.divf %764, %765 : vector<8x1xf32>
    %cst_258 = arith.constant 9.99999974E-6 : f32
    %767 = vector.broadcast %cst_258 : f32 to vector<8x1xf32>
    %768 = arith.addf %766, %767 : vector<8x1xf32>
    %769 = math.rsqrt %768 : vector<8x1xf32>
    %770 = vector.broadcast %769 : vector<8x1xf32> to vector<8x32xf32>
    %771 = arith.mulf %761, %770 : vector<8x32xf32>
    %772 = vector.broadcast %754 : vector<1x32xf32> to vector<8x32xf32>
    %773 = arith.mulf %771, %772 : vector<8x32xf32>
    %774 = vector.broadcast %755 : vector<1x32xf32> to vector<8x32xf32>
    %775 = arith.addf %773, %774 : vector<8x32xf32>
    %cst_259 = arith.constant dense<0.000000e+00> : vector<8x32xf32>
    %776 = tpu.matmul %775, %1, %cst_259 {dimension_numbers = #tpu.dot_dimension_numbers<[1], [0], [0], [1], [0, 0, 1, 1], [], []>} : vector<8x32xf32>, vector<32x32xf32>, vector<8x32xf32> -> vector<8x32xf32>
    %777 = vector.extract_strided_slice %4 {offsets = [2, 0], sizes = [1, 32], strides = [1, 1]} : vector<4x32xf32> to vector<1x32xf32>
    %778 = vector.broadcast %777 : vector<1x32xf32> to vector<8x32xf32>
    %779 = arith.addf %776, %778 : vector<8x32xf32>
    %cst_260 = arith.constant 0.000000e+00 : f32
    %780 = vector.broadcast %cst_260 : f32 to vector<8x32xf32>
    %781 = arith.maximumf %779, %780 : vector<8x32xf32>
    %cst_261 = arith.constant dense<0.000000e+00> : vector<8x32xf32>
    %782 = tpu.matmul %781, %2, %cst_261 {dimension_numbers = #tpu.dot_dimension_numbers<[1], [0], [0], [1], [0, 0, 1, 1], [], []>} : vector<8x32xf32>, vector<32x32xf32>, vector<8x32xf32> -> vector<8x32xf32>
    %783 = vector.extract_strided_slice %4 {offsets = [3, 0], sizes = [1, 32], strides = [1, 1]} : vector<4x32xf32> to vector<1x32xf32>
    %784 = vector.broadcast %783 : vector<1x32xf32> to vector<8x32xf32>
    %785 = arith.addf %782, %784 : vector<8x32xf32>
    %cst_262 = arith.constant 0.000000e+00 : f32
    %786 = vector.broadcast %cst_262 : f32 to vector<8x32xf32>
    %787 = arith.maximumf %785, %786 : vector<8x32xf32>
    %cst_263 = arith.constant dense<0.000000e+00> : vector<8x32xf32>
    %788 = tpu.matmul %787, %3, %cst_263 {dimension_numbers = #tpu.dot_dimension_numbers<[1], [0], [0], [1], [0, 0, 1, 1], [], []>} : vector<8x32xf32>, vector<32x32xf32>, vector<8x32xf32> -> vector<8x32xf32>
    %789 = vector.broadcast %5 : vector<1x32xf32> to vector<8x32xf32>
    %790 = arith.addf %788, %789 : vector<8x32xf32>
    %cst_264 = arith.constant dense<0.000000e+00> : vector<8x64xf32>
    %791 = tpu.matmul %790, %752, %cst_264 {dimension_numbers = #tpu.dot_dimension_numbers<[1], [0], [0], [1], [0, 0, 1, 1], [], []>} : vector<8x32xf32>, vector<32x64xf32>, vector<8x64xf32> -> vector<8x64xf32>
    %cst_265 = arith.constant dense<0xFF800000> : vector<8xf32>
    %792 = vector.multi_reduction <maximumf>, %791, %cst_265 [1] : vector<8x64xf32> to vector<8xf32>
    %793 = vector.shape_cast %792 : vector<8xf32> to vector<8x1xf32>
    %cst_266 = arith.constant 0.000000e+00 : f32
    %794 = vector.broadcast %cst_266 : f32 to vector<8x64xf32>
    %795 = arith.cmpf olt, %791, %794 : vector<8x64xf32>
    %cst_267 = arith.constant 0.000000e+00 : f32
    %796 = vector.broadcast %cst_267 : f32 to vector<8x1xf32>
    %797 = arith.cmpf oge, %793, %796 : vector<8x1xf32>
    %798 = vector.broadcast %797 : vector<8x1xi1> to vector<8x64xi1>
    %799 = arith.andi %795, %798 : vector<8x64xi1>
    %cst_268 = arith.constant -1.000000e+09 : f32
    %cst_269 = arith.constant 0.000000e+00 : f32
    %800 = vector.broadcast %cst_268 : f32 to vector<8x64xf32>
    %801 = vector.broadcast %cst_269 : f32 to vector<8x64xf32>
    %802 = arith.select %799, %800, %801 : vector<8x64xi1>, vector<8x64xf32>
    %cst_270 = arith.constant dense<0.000000e+00> : vector<8x32xf32>
    %803 = tpu.matmul %0, %7, %cst_270 {dimension_numbers = #tpu.dot_dimension_numbers<[1], [0], [0], [1], [0, 0, 1, 1], [], []>} : vector<8x32xf32>, vector<32x32xf32>, vector<8x32xf32> -> vector<8x32xf32>
    %804 = arith.addf %803, %8 : vector<8x32xf32>
    %805 = vector.extract_strided_slice %750 {offsets = [0, 0], sizes = [16, 64], strides = [1, 1]} : vector<16x96xf32> to vector<16x64xf32>
    %cst_271 = arith.constant dense<0.000000e+00> : vector<64x64xf32>
    %806 = tpu.matmul %9, %805, %cst_271 {dimension_numbers = #tpu.dot_dimension_numbers<[1], [0], [0], [1], [0, 0, 1, 1], [], []>} : vector<64x16xf32>, vector<16x64xf32>, vector<64x64xf32> -> vector<64x64xf32>
    %807 = arith.addf %806, %10 : vector<64x64xf32>
    %808 = vector.extract_strided_slice %807 {offsets = [0, 0], sizes = [32, 64], strides = [1, 1]} : vector<64x64xf32> to vector<32x64xf32>
    %809 = vector.extract_strided_slice %807 {offsets = [32, 0], sizes = [32, 64], strides = [1, 1]} : vector<64x64xf32> to vector<32x64xf32>
    %810 = vector.extract_strided_slice %804 {offsets = [0, 0], sizes = [8, 8], strides = [1, 1]} : vector<8x32xf32> to vector<8x8xf32>
    %811 = vector.extract_strided_slice %808 {offsets = [0, 0], sizes = [8, 64], strides = [1, 1]} : vector<32x64xf32> to vector<8x64xf32>
    %cst_272 = arith.constant dense<0.000000e+00> : vector<8x64xf32>
    %812 = tpu.matmul %810, %811, %cst_272 {dimension_numbers = #tpu.dot_dimension_numbers<[1], [0], [0], [1], [0, 0, 1, 1], [], []>} : vector<8x8xf32>, vector<8x64xf32>, vector<8x64xf32> -> vector<8x64xf32>
    %813 = vector.extract_strided_slice %804 {offsets = [0, 8], sizes = [8, 8], strides = [1, 1]} : vector<8x32xf32> to vector<8x8xf32>
    %814 = vector.extract_strided_slice %808 {offsets = [8, 0], sizes = [8, 64], strides = [1, 1]} : vector<32x64xf32> to vector<8x64xf32>
    %cst_273 = arith.constant dense<0.000000e+00> : vector<8x64xf32>
    %815 = tpu.matmul %813, %814, %cst_273 {dimension_numbers = #tpu.dot_dimension_numbers<[1], [0], [0], [1], [0, 0, 1, 1], [], []>} : vector<8x8xf32>, vector<8x64xf32>, vector<8x64xf32> -> vector<8x64xf32>
    %816 = vector.extract_strided_slice %804 {offsets = [0, 16], sizes = [8, 8], strides = [1, 1]} : vector<8x32xf32> to vector<8x8xf32>
    %817 = vector.extract_strided_slice %808 {offsets = [16, 0], sizes = [8, 64], strides = [1, 1]} : vector<32x64xf32> to vector<8x64xf32>
    %cst_274 = arith.constant dense<0.000000e+00> : vector<8x64xf32>
    %818 = tpu.matmul %816, %817, %cst_274 {dimension_numbers = #tpu.dot_dimension_numbers<[1], [0], [0], [1], [0, 0, 1, 1], [], []>} : vector<8x8xf32>, vector<8x64xf32>, vector<8x64xf32> -> vector<8x64xf32>
    %819 = vector.extract_strided_slice %804 {offsets = [0, 24], sizes = [8, 8], strides = [1, 1]} : vector<8x32xf32> to vector<8x8xf32>
    %820 = vector.extract_strided_slice %808 {offsets = [24, 0], sizes = [8, 64], strides = [1, 1]} : vector<32x64xf32> to vector<8x64xf32>
    %cst_275 = arith.constant dense<0.000000e+00> : vector<8x64xf32>
    %821 = tpu.matmul %819, %820, %cst_275 {dimension_numbers = #tpu.dot_dimension_numbers<[1], [0], [0], [1], [0, 0, 1, 1], [], []>} : vector<8x8xf32>, vector<8x64xf32>, vector<8x64xf32> -> vector<8x64xf32>
    %822 = tpu.concatenate %812, %815, %818, %821 in 0 : vector<8x64xf32>, vector<8x64xf32>, vector<8x64xf32>, vector<8x64xf32> -> vector<32x64xf32>
    %823 = tpu.concatenate %802, %802, %802, %802 in 0 : vector<8x64xf32>, vector<8x64xf32>, vector<8x64xf32>, vector<8x64xf32> -> vector<32x64xf32>
    %824 = arith.addf %822, %823 : vector<32x64xf32>
    %cst_276 = arith.constant dense<0xFF800000> : vector<32xf32>
    %825 = vector.multi_reduction <maximumf>, %824, %cst_276 [1] : vector<32x64xf32> to vector<32xf32>
    %826 = vector.shape_cast %825 : vector<32xf32> to vector<32x1xf32>
    %827 = vector.broadcast %826 : vector<32x1xf32> to vector<32x64xf32>
    %828 = arith.subf %824, %827 : vector<32x64xf32>
    %829 = math.exp %828 : vector<32x64xf32>
    %cst_277 = arith.constant dense<0.000000e+00> : vector<32xf32>
    %830 = vector.multi_reduction <add>, %829, %cst_277 [1] : vector<32x64xf32> to vector<32xf32>
    %831 = vector.shape_cast %830 : vector<32xf32> to vector<32x1xf32>
    %832 = vector.broadcast %831 : vector<32x1xf32> to vector<32x64xf32>
    %833 = arith.divf %829, %832 : vector<32x64xf32>
    %834 = vector.extract_strided_slice %833 {offsets = [0, 0], sizes = [8, 64], strides = [1, 1]} : vector<32x64xf32> to vector<8x64xf32>
    %835 = vector.extract_strided_slice %809 {offsets = [0, 0], sizes = [8, 64], strides = [1, 1]} : vector<32x64xf32> to vector<8x64xf32>
    %cst_278 = arith.constant dense<0.000000e+00> : vector<8x8xf32>
    %836 = tpu.matmul %834, %835, %cst_278 {dimension_numbers = #tpu.dot_dimension_numbers<[1], [1], [0], [0], [0, 0, 1, 0], [], []>} : vector<8x64xf32>, vector<8x64xf32>, vector<8x8xf32> -> vector<8x8xf32>
    %837 = vector.extract_strided_slice %833 {offsets = [8, 0], sizes = [8, 64], strides = [1, 1]} : vector<32x64xf32> to vector<8x64xf32>
    %838 = vector.extract_strided_slice %809 {offsets = [8, 0], sizes = [8, 64], strides = [1, 1]} : vector<32x64xf32> to vector<8x64xf32>
    %cst_279 = arith.constant dense<0.000000e+00> : vector<8x8xf32>
    %839 = tpu.matmul %837, %838, %cst_279 {dimension_numbers = #tpu.dot_dimension_numbers<[1], [1], [0], [0], [0, 0, 1, 0], [], []>} : vector<8x64xf32>, vector<8x64xf32>, vector<8x8xf32> -> vector<8x8xf32>
    %840 = vector.extract_strided_slice %833 {offsets = [16, 0], sizes = [8, 64], strides = [1, 1]} : vector<32x64xf32> to vector<8x64xf32>
    %841 = vector.extract_strided_slice %809 {offsets = [16, 0], sizes = [8, 64], strides = [1, 1]} : vector<32x64xf32> to vector<8x64xf32>
    %cst_280 = arith.constant dense<0.000000e+00> : vector<8x8xf32>
    %842 = tpu.matmul %840, %841, %cst_280 {dimension_numbers = #tpu.dot_dimension_numbers<[1], [1], [0], [0], [0, 0, 1, 0], [], []>} : vector<8x64xf32>, vector<8x64xf32>, vector<8x8xf32> -> vector<8x8xf32>
    %843 = vector.extract_strided_slice %833 {offsets = [24, 0], sizes = [8, 64], strides = [1, 1]} : vector<32x64xf32> to vector<8x64xf32>
    %844 = vector.extract_strided_slice %809 {offsets = [24, 0], sizes = [8, 64], strides = [1, 1]} : vector<32x64xf32> to vector<8x64xf32>
    %cst_281 = arith.constant dense<0.000000e+00> : vector<8x8xf32>
    %845 = tpu.matmul %843, %844, %cst_281 {dimension_numbers = #tpu.dot_dimension_numbers<[1], [1], [0], [0], [0, 0, 1, 0], [], []>} : vector<8x64xf32>, vector<8x64xf32>, vector<8x8xf32> -> vector<8x8xf32>
    %846 = tpu.concatenate %836, %839, %842, %845 in 1 : vector<8x8xf32>, vector<8x8xf32>, vector<8x8xf32>, vector<8x8xf32> -> vector<8x32xf32>
    %cst_282 = arith.constant dense<0.000000e+00> : vector<8x32xf32>
    %847 = tpu.matmul %846, %11, %cst_282 {dimension_numbers = #tpu.dot_dimension_numbers<[1], [0], [0], [1], [0, 0, 1, 1], [], []>} : vector<8x32xf32>, vector<32x32xf32>, vector<8x32xf32> -> vector<8x32xf32>
    %848 = arith.addf %0, %847 : vector<8x32xf32>
    %849 = vector.extract_strided_slice %12 {offsets = [0, 0], sizes = [1, 32], strides = [1, 1]} : vector<3x32xf32> to vector<1x32xf32>
    %850 = vector.broadcast %849 : vector<1x32xf32> to vector<8x32xf32>
    %851 = arith.addf %848, %850 : vector<8x32xf32>
    %852 = vector.extract_strided_slice %12 {offsets = [1, 0], sizes = [1, 32], strides = [1, 1]} : vector<3x32xf32> to vector<1x32xf32>
    %853 = vector.extract_strided_slice %12 {offsets = [2, 0], sizes = [1, 32], strides = [1, 1]} : vector<3x32xf32> to vector<1x32xf32>
    %cst_283 = arith.constant dense<0.000000e+00> : vector<8xf32>
    %854 = vector.multi_reduction <add>, %851, %cst_283 [1] : vector<8x32xf32> to vector<8xf32>
    %855 = vector.shape_cast %854 : vector<8xf32> to vector<8x1xf32>
    %cst_284 = arith.constant 3.200000e+01 : f32
    %856 = vector.broadcast %cst_284 : f32 to vector<8x1xf32>
    %857 = arith.divf %855, %856 : vector<8x1xf32>
    %858 = vector.broadcast %857 : vector<8x1xf32> to vector<8x32xf32>
    %859 = arith.subf %851, %858 : vector<8x32xf32>
    %860 = arith.mulf %859, %859 : vector<8x32xf32>
    %cst_285 = arith.constant dense<0.000000e+00> : vector<8xf32>
    %861 = vector.multi_reduction <add>, %860, %cst_285 [1] : vector<8x32xf32> to vector<8xf32>
    %862 = vector.shape_cast %861 : vector<8xf32> to vector<8x1xf32>
    %cst_286 = arith.constant 3.200000e+01 : f32
    %863 = vector.broadcast %cst_286 : f32 to vector<8x1xf32>
    %864 = arith.divf %862, %863 : vector<8x1xf32>
    %cst_287 = arith.constant 9.99999974E-6 : f32
    %865 = vector.broadcast %cst_287 : f32 to vector<8x1xf32>
    %866 = arith.addf %864, %865 : vector<8x1xf32>
    %867 = math.rsqrt %866 : vector<8x1xf32>
    %868 = vector.broadcast %867 : vector<8x1xf32> to vector<8x32xf32>
    %869 = arith.mulf %859, %868 : vector<8x32xf32>
    %870 = vector.broadcast %852 : vector<1x32xf32> to vector<8x32xf32>
    %871 = arith.mulf %869, %870 : vector<8x32xf32>
    %872 = vector.broadcast %853 : vector<1x32xf32> to vector<8x32xf32>
    %873 = arith.addf %871, %872 : vector<8x32xf32>
    %cst_288 = arith.constant dense<0.000000e+00> : vector<8x96xf32>
    %874 = tpu.matmul %873, %13, %cst_288 {dimension_numbers = #tpu.dot_dimension_numbers<[1], [0], [0], [1], [0, 0, 1, 1], [], []>} : vector<8x32xf32>, vector<32x96xf32>, vector<8x96xf32> -> vector<8x96xf32>
    %875 = arith.addf %874, %14 : vector<8x96xf32>
    %876 = vector.extract_strided_slice %875 {offsets = [0, 0], sizes = [8, 32], strides = [1, 1]} : vector<8x96xf32> to vector<8x32xf32>
    %877 = vector.extract_strided_slice %875 {offsets = [0, 32], sizes = [8, 32], strides = [1, 1]} : vector<8x96xf32> to vector<8x32xf32>
    %878 = vector.extract_strided_slice %875 {offsets = [0, 64], sizes = [8, 32], strides = [1, 1]} : vector<8x96xf32> to vector<8x32xf32>
    %879 = vector.extract_strided_slice %876 {offsets = [0, 0], sizes = [8, 8], strides = [1, 1]} : vector<8x32xf32> to vector<8x8xf32>
    %880 = vector.extract_strided_slice %877 {offsets = [0, 0], sizes = [8, 8], strides = [1, 1]} : vector<8x32xf32> to vector<8x8xf32>
    %cst_289 = arith.constant dense<0.000000e+00> : vector<8x8xf32>
    %881 = tpu.matmul %879, %880, %cst_289 {dimension_numbers = #tpu.dot_dimension_numbers<[1], [1], [0], [0], [0, 0, 1, 0], [], []>} : vector<8x8xf32>, vector<8x8xf32>, vector<8x8xf32> -> vector<8x8xf32>
    %882 = vector.extract_strided_slice %876 {offsets = [0, 8], sizes = [8, 8], strides = [1, 1]} : vector<8x32xf32> to vector<8x8xf32>
    %883 = vector.extract_strided_slice %877 {offsets = [0, 8], sizes = [8, 8], strides = [1, 1]} : vector<8x32xf32> to vector<8x8xf32>
    %cst_290 = arith.constant dense<0.000000e+00> : vector<8x8xf32>
    %884 = tpu.matmul %882, %883, %cst_290 {dimension_numbers = #tpu.dot_dimension_numbers<[1], [1], [0], [0], [0, 0, 1, 0], [], []>} : vector<8x8xf32>, vector<8x8xf32>, vector<8x8xf32> -> vector<8x8xf32>
    %885 = vector.extract_strided_slice %876 {offsets = [0, 16], sizes = [8, 8], strides = [1, 1]} : vector<8x32xf32> to vector<8x8xf32>
    %886 = vector.extract_strided_slice %877 {offsets = [0, 16], sizes = [8, 8], strides = [1, 1]} : vector<8x32xf32> to vector<8x8xf32>
    %cst_291 = arith.constant dense<0.000000e+00> : vector<8x8xf32>
    %887 = tpu.matmul %885, %886, %cst_291 {dimension_numbers = #tpu.dot_dimension_numbers<[1], [1], [0], [0], [0, 0, 1, 0], [], []>} : vector<8x8xf32>, vector<8x8xf32>, vector<8x8xf32> -> vector<8x8xf32>
    %888 = vector.extract_strided_slice %876 {offsets = [0, 24], sizes = [8, 8], strides = [1, 1]} : vector<8x32xf32> to vector<8x8xf32>
    %889 = vector.extract_strided_slice %877 {offsets = [0, 24], sizes = [8, 8], strides = [1, 1]} : vector<8x32xf32> to vector<8x8xf32>
    %cst_292 = arith.constant dense<0.000000e+00> : vector<8x8xf32>
    %890 = tpu.matmul %888, %889, %cst_292 {dimension_numbers = #tpu.dot_dimension_numbers<[1], [1], [0], [0], [0, 0, 1, 0], [], []>} : vector<8x8xf32>, vector<8x8xf32>, vector<8x8xf32> -> vector<8x8xf32>
    %891 = tpu.concatenate %881, %884, %887, %890 in 0 : vector<8x8xf32>, vector<8x8xf32>, vector<8x8xf32>, vector<8x8xf32> -> vector<32x8xf32>
    %cst_293 = arith.constant dense<0xFF800000> : vector<32xf32>
    %892 = vector.multi_reduction <maximumf>, %891, %cst_293 [1] : vector<32x8xf32> to vector<32xf32>
    %893 = vector.shape_cast %892 : vector<32xf32> to vector<32x1xf32>
    %894 = vector.broadcast %893 : vector<32x1xf32> to vector<32x8xf32>
    %895 = arith.subf %891, %894 : vector<32x8xf32>
    %896 = math.exp %895 : vector<32x8xf32>
    %cst_294 = arith.constant dense<0.000000e+00> : vector<32xf32>
    %897 = vector.multi_reduction <add>, %896, %cst_294 [1] : vector<32x8xf32> to vector<32xf32>
    %898 = vector.shape_cast %897 : vector<32xf32> to vector<32x1xf32>
    %899 = vector.broadcast %898 : vector<32x1xf32> to vector<32x8xf32>
    %900 = arith.divf %896, %899 : vector<32x8xf32>
    %901 = vector.extract_strided_slice %900 {offsets = [0, 0], sizes = [8, 8], strides = [1, 1]} : vector<32x8xf32> to vector<8x8xf32>
    %902 = vector.extract_strided_slice %878 {offsets = [0, 0], sizes = [8, 8], strides = [1, 1]} : vector<8x32xf32> to vector<8x8xf32>
    %cst_295 = arith.constant dense<0.000000e+00> : vector<8x8xf32>
    %903 = tpu.matmul %901, %902, %cst_295 {dimension_numbers = #tpu.dot_dimension_numbers<[1], [0], [0], [1], [0, 0, 1, 1], [], []>} : vector<8x8xf32>, vector<8x8xf32>, vector<8x8xf32> -> vector<8x8xf32>
    %904 = vector.extract_strided_slice %900 {offsets = [8, 0], sizes = [8, 8], strides = [1, 1]} : vector<32x8xf32> to vector<8x8xf32>
    %905 = vector.extract_strided_slice %878 {offsets = [0, 8], sizes = [8, 8], strides = [1, 1]} : vector<8x32xf32> to vector<8x8xf32>
    %cst_296 = arith.constant dense<0.000000e+00> : vector<8x8xf32>
    %906 = tpu.matmul %904, %905, %cst_296 {dimension_numbers = #tpu.dot_dimension_numbers<[1], [0], [0], [1], [0, 0, 1, 1], [], []>} : vector<8x8xf32>, vector<8x8xf32>, vector<8x8xf32> -> vector<8x8xf32>
    %907 = vector.extract_strided_slice %900 {offsets = [16, 0], sizes = [8, 8], strides = [1, 1]} : vector<32x8xf32> to vector<8x8xf32>
    %908 = vector.extract_strided_slice %878 {offsets = [0, 16], sizes = [8, 8], strides = [1, 1]} : vector<8x32xf32> to vector<8x8xf32>
    %cst_297 = arith.constant dense<0.000000e+00> : vector<8x8xf32>
    %909 = tpu.matmul %907, %908, %cst_297 {dimension_numbers = #tpu.dot_dimension_numbers<[1], [0], [0], [1], [0, 0, 1, 1], [], []>} : vector<8x8xf32>, vector<8x8xf32>, vector<8x8xf32> -> vector<8x8xf32>
    %910 = vector.extract_strided_slice %900 {offsets = [24, 0], sizes = [8, 8], strides = [1, 1]} : vector<32x8xf32> to vector<8x8xf32>
    %911 = vector.extract_strided_slice %878 {offsets = [0, 24], sizes = [8, 8], strides = [1, 1]} : vector<8x32xf32> to vector<8x8xf32>
    %cst_298 = arith.constant dense<0.000000e+00> : vector<8x8xf32>
    %912 = tpu.matmul %910, %911, %cst_298 {dimension_numbers = #tpu.dot_dimension_numbers<[1], [0], [0], [1], [0, 0, 1, 1], [], []>} : vector<8x8xf32>, vector<8x8xf32>, vector<8x8xf32> -> vector<8x8xf32>
    %913 = tpu.concatenate %903, %906, %909, %912 in 1 : vector<8x8xf32>, vector<8x8xf32>, vector<8x8xf32>, vector<8x8xf32> -> vector<8x32xf32>
    %cst_299 = arith.constant dense<0.000000e+00> : vector<8x32xf32>
    %914 = tpu.matmul %913, %15, %cst_299 {dimension_numbers = #tpu.dot_dimension_numbers<[1], [0], [0], [1], [0, 0, 1, 1], [], []>} : vector<8x32xf32>, vector<32x32xf32>, vector<8x32xf32> -> vector<8x32xf32>
    %915 = arith.addf %873, %914 : vector<8x32xf32>
    %916 = vector.extract_strided_slice %16 {offsets = [0, 0], sizes = [1, 32], strides = [1, 1]} : vector<3x32xf32> to vector<1x32xf32>
    %917 = vector.broadcast %916 : vector<1x32xf32> to vector<8x32xf32>
    %918 = arith.addf %915, %917 : vector<8x32xf32>
    %919 = vector.extract_strided_slice %16 {offsets = [1, 0], sizes = [1, 32], strides = [1, 1]} : vector<3x32xf32> to vector<1x32xf32>
    %920 = vector.extract_strided_slice %16 {offsets = [2, 0], sizes = [1, 32], strides = [1, 1]} : vector<3x32xf32> to vector<1x32xf32>
    %cst_300 = arith.constant dense<0.000000e+00> : vector<8xf32>
    %921 = vector.multi_reduction <add>, %918, %cst_300 [1] : vector<8x32xf32> to vector<8xf32>
    %922 = vector.shape_cast %921 : vector<8xf32> to vector<8x1xf32>
    %cst_301 = arith.constant 3.200000e+01 : f32
    %923 = vector.broadcast %cst_301 : f32 to vector<8x1xf32>
    %924 = arith.divf %922, %923 : vector<8x1xf32>
    %925 = vector.broadcast %924 : vector<8x1xf32> to vector<8x32xf32>
    %926 = arith.subf %918, %925 : vector<8x32xf32>
    %927 = arith.mulf %926, %926 : vector<8x32xf32>
    %cst_302 = arith.constant dense<0.000000e+00> : vector<8xf32>
    %928 = vector.multi_reduction <add>, %927, %cst_302 [1] : vector<8x32xf32> to vector<8xf32>
    %929 = vector.shape_cast %928 : vector<8xf32> to vector<8x1xf32>
    %cst_303 = arith.constant 3.200000e+01 : f32
    %930 = vector.broadcast %cst_303 : f32 to vector<8x1xf32>
    %931 = arith.divf %929, %930 : vector<8x1xf32>
    %cst_304 = arith.constant 9.99999974E-6 : f32
    %932 = vector.broadcast %cst_304 : f32 to vector<8x1xf32>
    %933 = arith.addf %931, %932 : vector<8x1xf32>
    %934 = math.rsqrt %933 : vector<8x1xf32>
    %935 = vector.broadcast %934 : vector<8x1xf32> to vector<8x32xf32>
    %936 = arith.mulf %926, %935 : vector<8x32xf32>
    %937 = vector.broadcast %919 : vector<1x32xf32> to vector<8x32xf32>
    %938 = arith.mulf %936, %937 : vector<8x32xf32>
    %939 = vector.broadcast %920 : vector<1x32xf32> to vector<8x32xf32>
    %940 = arith.addf %938, %939 : vector<8x32xf32>
    %cst_305 = arith.constant dense<0.000000e+00> : vector<8x64xf32>
    %941 = tpu.matmul %940, %17, %cst_305 {dimension_numbers = #tpu.dot_dimension_numbers<[1], [0], [0], [1], [0, 0, 1, 1], [], []>} : vector<8x32xf32>, vector<32x64xf32>, vector<8x64xf32> -> vector<8x64xf32>
    %942 = vector.broadcast %18 : vector<1x64xf32> to vector<8x64xf32>
    %943 = arith.addf %941, %942 : vector<8x64xf32>
    %cst_306 = arith.constant 0.000000e+00 : f32
    %944 = vector.broadcast %cst_306 : f32 to vector<8x64xf32>
    %945 = arith.maximumf %943, %944 : vector<8x64xf32>
    %cst_307 = arith.constant dense<0.000000e+00> : vector<8x32xf32>
    %946 = tpu.matmul %945, %19, %cst_307 {dimension_numbers = #tpu.dot_dimension_numbers<[1], [0], [0], [1], [0, 0, 1, 1], [], []>} : vector<8x64xf32>, vector<64x32xf32>, vector<8x32xf32> -> vector<8x32xf32>
    %947 = vector.extract_strided_slice %20 {offsets = [0, 0], sizes = [1, 32], strides = [1, 1]} : vector<3x32xf32> to vector<1x32xf32>
    %948 = vector.broadcast %947 : vector<1x32xf32> to vector<8x32xf32>
    %949 = arith.addf %946, %948 : vector<8x32xf32>
    %950 = arith.addf %940, %949 : vector<8x32xf32>
    %951 = vector.extract_strided_slice %20 {offsets = [1, 0], sizes = [1, 32], strides = [1, 1]} : vector<3x32xf32> to vector<1x32xf32>
    %952 = vector.extract_strided_slice %20 {offsets = [2, 0], sizes = [1, 32], strides = [1, 1]} : vector<3x32xf32> to vector<1x32xf32>
    %cst_308 = arith.constant dense<0.000000e+00> : vector<8xf32>
    %953 = vector.multi_reduction <add>, %950, %cst_308 [1] : vector<8x32xf32> to vector<8xf32>
    %954 = vector.shape_cast %953 : vector<8xf32> to vector<8x1xf32>
    %cst_309 = arith.constant 3.200000e+01 : f32
    %955 = vector.broadcast %cst_309 : f32 to vector<8x1xf32>
    %956 = arith.divf %954, %955 : vector<8x1xf32>
    %957 = vector.broadcast %956 : vector<8x1xf32> to vector<8x32xf32>
    %958 = arith.subf %950, %957 : vector<8x32xf32>
    %959 = arith.mulf %958, %958 : vector<8x32xf32>
    %cst_310 = arith.constant dense<0.000000e+00> : vector<8xf32>
    %960 = vector.multi_reduction <add>, %959, %cst_310 [1] : vector<8x32xf32> to vector<8xf32>
    %961 = vector.shape_cast %960 : vector<8xf32> to vector<8x1xf32>
    %cst_311 = arith.constant 3.200000e+01 : f32
    %962 = vector.broadcast %cst_311 : f32 to vector<8x1xf32>
    %963 = arith.divf %961, %962 : vector<8x1xf32>
    %cst_312 = arith.constant 9.99999974E-6 : f32
    %964 = vector.broadcast %cst_312 : f32 to vector<8x1xf32>
    %965 = arith.addf %963, %964 : vector<8x1xf32>
    %966 = math.rsqrt %965 : vector<8x1xf32>
    %967 = vector.broadcast %966 : vector<8x1xf32> to vector<8x32xf32>
    %968 = arith.mulf %958, %967 : vector<8x32xf32>
    %969 = vector.broadcast %951 : vector<1x32xf32> to vector<8x32xf32>
    %970 = arith.mulf %968, %969 : vector<8x32xf32>
    %971 = vector.broadcast %952 : vector<1x32xf32> to vector<8x32xf32>
    %972 = arith.addf %970, %971 : vector<8x32xf32>
    %973 = vector.extract_strided_slice %4 {offsets = [0, 0], sizes = [1, 32], strides = [1, 1]} : vector<4x32xf32> to vector<1x32xf32>
    %974 = vector.extract_strided_slice %4 {offsets = [1, 0], sizes = [1, 32], strides = [1, 1]} : vector<4x32xf32> to vector<1x32xf32>
    %cst_313 = arith.constant dense<0.000000e+00> : vector<8xf32>
    %975 = vector.multi_reduction <add>, %972, %cst_313 [1] : vector<8x32xf32> to vector<8xf32>
    %976 = vector.shape_cast %975 : vector<8xf32> to vector<8x1xf32>
    %cst_314 = arith.constant 3.200000e+01 : f32
    %977 = vector.broadcast %cst_314 : f32 to vector<8x1xf32>
    %978 = arith.divf %976, %977 : vector<8x1xf32>
    %979 = vector.broadcast %978 : vector<8x1xf32> to vector<8x32xf32>
    %980 = arith.subf %972, %979 : vector<8x32xf32>
    %981 = arith.mulf %980, %980 : vector<8x32xf32>
    %cst_315 = arith.constant dense<0.000000e+00> : vector<8xf32>
    %982 = vector.multi_reduction <add>, %981, %cst_315 [1] : vector<8x32xf32> to vector<8xf32>
    %983 = vector.shape_cast %982 : vector<8xf32> to vector<8x1xf32>
    %cst_316 = arith.constant 3.200000e+01 : f32
    %984 = vector.broadcast %cst_316 : f32 to vector<8x1xf32>
    %985 = arith.divf %983, %984 : vector<8x1xf32>
    %cst_317 = arith.constant 9.99999974E-6 : f32
    %986 = vector.broadcast %cst_317 : f32 to vector<8x1xf32>
    %987 = arith.addf %985, %986 : vector<8x1xf32>
    %988 = math.rsqrt %987 : vector<8x1xf32>
    %989 = vector.broadcast %988 : vector<8x1xf32> to vector<8x32xf32>
    %990 = arith.mulf %980, %989 : vector<8x32xf32>
    %991 = vector.broadcast %973 : vector<1x32xf32> to vector<8x32xf32>
    %992 = arith.mulf %990, %991 : vector<8x32xf32>
    %993 = vector.broadcast %974 : vector<1x32xf32> to vector<8x32xf32>
    %994 = arith.addf %992, %993 : vector<8x32xf32>
    %cst_318 = arith.constant dense<0.000000e+00> : vector<8x32xf32>
    %995 = tpu.matmul %994, %1, %cst_318 {dimension_numbers = #tpu.dot_dimension_numbers<[1], [0], [0], [1], [0, 0, 1, 1], [], []>} : vector<8x32xf32>, vector<32x32xf32>, vector<8x32xf32> -> vector<8x32xf32>
    %996 = vector.extract_strided_slice %4 {offsets = [2, 0], sizes = [1, 32], strides = [1, 1]} : vector<4x32xf32> to vector<1x32xf32>
    %997 = vector.broadcast %996 : vector<1x32xf32> to vector<8x32xf32>
    %998 = arith.addf %995, %997 : vector<8x32xf32>
    %cst_319 = arith.constant 0.000000e+00 : f32
    %999 = vector.broadcast %cst_319 : f32 to vector<8x32xf32>
    %1000 = arith.maximumf %998, %999 : vector<8x32xf32>
    %cst_320 = arith.constant dense<0.000000e+00> : vector<8x32xf32>
    %1001 = tpu.matmul %1000, %2, %cst_320 {dimension_numbers = #tpu.dot_dimension_numbers<[1], [0], [0], [1], [0, 0, 1, 1], [], []>} : vector<8x32xf32>, vector<32x32xf32>, vector<8x32xf32> -> vector<8x32xf32>
    %1002 = vector.extract_strided_slice %4 {offsets = [3, 0], sizes = [1, 32], strides = [1, 1]} : vector<4x32xf32> to vector<1x32xf32>
    %1003 = vector.broadcast %1002 : vector<1x32xf32> to vector<8x32xf32>
    %1004 = arith.addf %1001, %1003 : vector<8x32xf32>
    %cst_321 = arith.constant 0.000000e+00 : f32
    %1005 = vector.broadcast %cst_321 : f32 to vector<8x32xf32>
    %1006 = arith.maximumf %1004, %1005 : vector<8x32xf32>
    %cst_322 = arith.constant dense<0.000000e+00> : vector<8x32xf32>
    %1007 = tpu.matmul %1006, %3, %cst_322 {dimension_numbers = #tpu.dot_dimension_numbers<[1], [0], [0], [1], [0, 0, 1, 1], [], []>} : vector<8x32xf32>, vector<32x32xf32>, vector<8x32xf32> -> vector<8x32xf32>
    %1008 = vector.broadcast %5 : vector<1x32xf32> to vector<8x32xf32>
    %1009 = arith.addf %1007, %1008 : vector<8x32xf32>
    %cst_323 = arith.constant dense<0.000000e+00> : vector<8x16xf32>
    %1010 = tpu.matmul %1009, %753, %cst_323 {dimension_numbers = #tpu.dot_dimension_numbers<[1], [0], [0], [1], [0, 0, 1, 1], [], []>} : vector<8x32xf32>, vector<32x16xf32>, vector<8x16xf32> -> vector<8x16xf32>
    %cst_324 = arith.constant dense<0xFF800000> : vector<8xf32>
    %1011 = vector.multi_reduction <maximumf>, %1010, %cst_324 [1] : vector<8x16xf32> to vector<8xf32>
    %1012 = vector.shape_cast %1011 : vector<8xf32> to vector<8x1xf32>
    %cst_325 = arith.constant 0.000000e+00 : f32
    %1013 = vector.broadcast %cst_325 : f32 to vector<8x16xf32>
    %1014 = arith.cmpf olt, %1010, %1013 : vector<8x16xf32>
    %cst_326 = arith.constant 0.000000e+00 : f32
    %1015 = vector.broadcast %cst_326 : f32 to vector<8x1xf32>
    %1016 = arith.cmpf oge, %1012, %1015 : vector<8x1xf32>
    %1017 = vector.broadcast %1016 : vector<8x1xi1> to vector<8x16xi1>
    %1018 = arith.andi %1014, %1017 : vector<8x16xi1>
    %cst_327 = arith.constant -1.000000e+09 : f32
    %cst_328 = arith.constant 0.000000e+00 : f32
    %1019 = vector.broadcast %cst_327 : f32 to vector<8x16xf32>
    %1020 = vector.broadcast %cst_328 : f32 to vector<8x16xf32>
    %1021 = arith.select %1018, %1019, %1020 : vector<8x16xi1>, vector<8x16xf32>
    %cst_329 = arith.constant dense<0.000000e+00> : vector<8x32xf32>
    %1022 = tpu.matmul %972, %21, %cst_329 {dimension_numbers = #tpu.dot_dimension_numbers<[1], [0], [0], [1], [0, 0, 1, 1], [], []>} : vector<8x32xf32>, vector<32x32xf32>, vector<8x32xf32> -> vector<8x32xf32>
    %1023 = arith.addf %1022, %22 : vector<8x32xf32>
    %1024 = vector.extract_strided_slice %750 {offsets = [0, 64], sizes = [16, 16], strides = [1, 1]} : vector<16x96xf32> to vector<16x16xf32>
    %cst_330 = arith.constant dense<0.000000e+00> : vector<64x16xf32>
    %1025 = tpu.matmul %23, %1024, %cst_330 {dimension_numbers = #tpu.dot_dimension_numbers<[1], [0], [0], [1], [0, 0, 1, 1], [], []>} : vector<64x16xf32>, vector<16x16xf32>, vector<64x16xf32> -> vector<64x16xf32>
    %1026 = arith.addf %1025, %24 : vector<64x16xf32>
    %1027 = vector.extract_strided_slice %1026 {offsets = [0, 0], sizes = [32, 16], strides = [1, 1]} : vector<64x16xf32> to vector<32x16xf32>
    %1028 = vector.extract_strided_slice %1026 {offsets = [32, 0], sizes = [32, 16], strides = [1, 1]} : vector<64x16xf32> to vector<32x16xf32>
    %1029 = vector.extract_strided_slice %1023 {offsets = [0, 0], sizes = [8, 8], strides = [1, 1]} : vector<8x32xf32> to vector<8x8xf32>
    %1030 = vector.extract_strided_slice %1027 {offsets = [0, 0], sizes = [8, 16], strides = [1, 1]} : vector<32x16xf32> to vector<8x16xf32>
    %cst_331 = arith.constant dense<0.000000e+00> : vector<8x16xf32>
    %1031 = tpu.matmul %1029, %1030, %cst_331 {dimension_numbers = #tpu.dot_dimension_numbers<[1], [0], [0], [1], [0, 0, 1, 1], [], []>} : vector<8x8xf32>, vector<8x16xf32>, vector<8x16xf32> -> vector<8x16xf32>
    %1032 = vector.extract_strided_slice %1023 {offsets = [0, 8], sizes = [8, 8], strides = [1, 1]} : vector<8x32xf32> to vector<8x8xf32>
    %1033 = vector.extract_strided_slice %1027 {offsets = [8, 0], sizes = [8, 16], strides = [1, 1]} : vector<32x16xf32> to vector<8x16xf32>
    %cst_332 = arith.constant dense<0.000000e+00> : vector<8x16xf32>
    %1034 = tpu.matmul %1032, %1033, %cst_332 {dimension_numbers = #tpu.dot_dimension_numbers<[1], [0], [0], [1], [0, 0, 1, 1], [], []>} : vector<8x8xf32>, vector<8x16xf32>, vector<8x16xf32> -> vector<8x16xf32>
    %1035 = vector.extract_strided_slice %1023 {offsets = [0, 16], sizes = [8, 8], strides = [1, 1]} : vector<8x32xf32> to vector<8x8xf32>
    %1036 = vector.extract_strided_slice %1027 {offsets = [16, 0], sizes = [8, 16], strides = [1, 1]} : vector<32x16xf32> to vector<8x16xf32>
    %cst_333 = arith.constant dense<0.000000e+00> : vector<8x16xf32>
    %1037 = tpu.matmul %1035, %1036, %cst_333 {dimension_numbers = #tpu.dot_dimension_numbers<[1], [0], [0], [1], [0, 0, 1, 1], [], []>} : vector<8x8xf32>, vector<8x16xf32>, vector<8x16xf32> -> vector<8x16xf32>
    %1038 = vector.extract_strided_slice %1023 {offsets = [0, 24], sizes = [8, 8], strides = [1, 1]} : vector<8x32xf32> to vector<8x8xf32>
    %1039 = vector.extract_strided_slice %1027 {offsets = [24, 0], sizes = [8, 16], strides = [1, 1]} : vector<32x16xf32> to vector<8x16xf32>
    %cst_334 = arith.constant dense<0.000000e+00> : vector<8x16xf32>
    %1040 = tpu.matmul %1038, %1039, %cst_334 {dimension_numbers = #tpu.dot_dimension_numbers<[1], [0], [0], [1], [0, 0, 1, 1], [], []>} : vector<8x8xf32>, vector<8x16xf32>, vector<8x16xf32> -> vector<8x16xf32>
    %1041 = tpu.concatenate %1031, %1034, %1037, %1040 in 0 : vector<8x16xf32>, vector<8x16xf32>, vector<8x16xf32>, vector<8x16xf32> -> vector<32x16xf32>
    %1042 = tpu.concatenate %1021, %1021, %1021, %1021 in 0 : vector<8x16xf32>, vector<8x16xf32>, vector<8x16xf32>, vector<8x16xf32> -> vector<32x16xf32>
    %1043 = arith.addf %1041, %1042 : vector<32x16xf32>
    %cst_335 = arith.constant dense<0xFF800000> : vector<32xf32>
    %1044 = vector.multi_reduction <maximumf>, %1043, %cst_335 [1] : vector<32x16xf32> to vector<32xf32>
    %1045 = vector.shape_cast %1044 : vector<32xf32> to vector<32x1xf32>
    %1046 = vector.broadcast %1045 : vector<32x1xf32> to vector<32x16xf32>
    %1047 = arith.subf %1043, %1046 : vector<32x16xf32>
    %1048 = math.exp %1047 : vector<32x16xf32>
    %cst_336 = arith.constant dense<0.000000e+00> : vector<32xf32>
    %1049 = vector.multi_reduction <add>, %1048, %cst_336 [1] : vector<32x16xf32> to vector<32xf32>
    %1050 = vector.shape_cast %1049 : vector<32xf32> to vector<32x1xf32>
    %1051 = vector.broadcast %1050 : vector<32x1xf32> to vector<32x16xf32>
    %1052 = arith.divf %1048, %1051 : vector<32x16xf32>
    %1053 = vector.extract_strided_slice %1052 {offsets = [0, 0], sizes = [8, 16], strides = [1, 1]} : vector<32x16xf32> to vector<8x16xf32>
    %1054 = vector.extract_strided_slice %1028 {offsets = [0, 0], sizes = [8, 16], strides = [1, 1]} : vector<32x16xf32> to vector<8x16xf32>
    %cst_337 = arith.constant dense<0.000000e+00> : vector<8x8xf32>
    %1055 = tpu.matmul %1053, %1054, %cst_337 {dimension_numbers = #tpu.dot_dimension_numbers<[1], [1], [0], [0], [0, 0, 1, 0], [], []>} : vector<8x16xf32>, vector<8x16xf32>, vector<8x8xf32> -> vector<8x8xf32>
    %1056 = vector.extract_strided_slice %1052 {offsets = [8, 0], sizes = [8, 16], strides = [1, 1]} : vector<32x16xf32> to vector<8x16xf32>
    %1057 = vector.extract_strided_slice %1028 {offsets = [8, 0], sizes = [8, 16], strides = [1, 1]} : vector<32x16xf32> to vector<8x16xf32>
    %cst_338 = arith.constant dense<0.000000e+00> : vector<8x8xf32>
    %1058 = tpu.matmul %1056, %1057, %cst_338 {dimension_numbers = #tpu.dot_dimension_numbers<[1], [1], [0], [0], [0, 0, 1, 0], [], []>} : vector<8x16xf32>, vector<8x16xf32>, vector<8x8xf32> -> vector<8x8xf32>
    %1059 = vector.extract_strided_slice %1052 {offsets = [16, 0], sizes = [8, 16], strides = [1, 1]} : vector<32x16xf32> to vector<8x16xf32>
    %1060 = vector.extract_strided_slice %1028 {offsets = [16, 0], sizes = [8, 16], strides = [1, 1]} : vector<32x16xf32> to vector<8x16xf32>
    %cst_339 = arith.constant dense<0.000000e+00> : vector<8x8xf32>
    %1061 = tpu.matmul %1059, %1060, %cst_339 {dimension_numbers = #tpu.dot_dimension_numbers<[1], [1], [0], [0], [0, 0, 1, 0], [], []>} : vector<8x16xf32>, vector<8x16xf32>, vector<8x8xf32> -> vector<8x8xf32>
    %1062 = vector.extract_strided_slice %1052 {offsets = [24, 0], sizes = [8, 16], strides = [1, 1]} : vector<32x16xf32> to vector<8x16xf32>
    %1063 = vector.extract_strided_slice %1028 {offsets = [24, 0], sizes = [8, 16], strides = [1, 1]} : vector<32x16xf32> to vector<8x16xf32>
    %cst_340 = arith.constant dense<0.000000e+00> : vector<8x8xf32>
    %1064 = tpu.matmul %1062, %1063, %cst_340 {dimension_numbers = #tpu.dot_dimension_numbers<[1], [1], [0], [0], [0, 0, 1, 0], [], []>} : vector<8x16xf32>, vector<8x16xf32>, vector<8x8xf32> -> vector<8x8xf32>
    %1065 = tpu.concatenate %1055, %1058, %1061, %1064 in 1 : vector<8x8xf32>, vector<8x8xf32>, vector<8x8xf32>, vector<8x8xf32> -> vector<8x32xf32>
    %cst_341 = arith.constant dense<0.000000e+00> : vector<8x32xf32>
    %1066 = tpu.matmul %1065, %25, %cst_341 {dimension_numbers = #tpu.dot_dimension_numbers<[1], [0], [0], [1], [0, 0, 1, 1], [], []>} : vector<8x32xf32>, vector<32x32xf32>, vector<8x32xf32> -> vector<8x32xf32>
    %1067 = arith.addf %972, %1066 : vector<8x32xf32>
    %1068 = vector.extract_strided_slice %26 {offsets = [0, 0], sizes = [1, 32], strides = [1, 1]} : vector<3x32xf32> to vector<1x32xf32>
    %1069 = vector.broadcast %1068 : vector<1x32xf32> to vector<8x32xf32>
    %1070 = arith.addf %1067, %1069 : vector<8x32xf32>
    %1071 = vector.extract_strided_slice %26 {offsets = [1, 0], sizes = [1, 32], strides = [1, 1]} : vector<3x32xf32> to vector<1x32xf32>
    %1072 = vector.extract_strided_slice %26 {offsets = [2, 0], sizes = [1, 32], strides = [1, 1]} : vector<3x32xf32> to vector<1x32xf32>
    %cst_342 = arith.constant dense<0.000000e+00> : vector<8xf32>
    %1073 = vector.multi_reduction <add>, %1070, %cst_342 [1] : vector<8x32xf32> to vector<8xf32>
    %1074 = vector.shape_cast %1073 : vector<8xf32> to vector<8x1xf32>
    %cst_343 = arith.constant 3.200000e+01 : f32
    %1075 = vector.broadcast %cst_343 : f32 to vector<8x1xf32>
    %1076 = arith.divf %1074, %1075 : vector<8x1xf32>
    %1077 = vector.broadcast %1076 : vector<8x1xf32> to vector<8x32xf32>
    %1078 = arith.subf %1070, %1077 : vector<8x32xf32>
    %1079 = arith.mulf %1078, %1078 : vector<8x32xf32>
    %cst_344 = arith.constant dense<0.000000e+00> : vector<8xf32>
    %1080 = vector.multi_reduction <add>, %1079, %cst_344 [1] : vector<8x32xf32> to vector<8xf32>
    %1081 = vector.shape_cast %1080 : vector<8xf32> to vector<8x1xf32>
    %cst_345 = arith.constant 3.200000e+01 : f32
    %1082 = vector.broadcast %cst_345 : f32 to vector<8x1xf32>
    %1083 = arith.divf %1081, %1082 : vector<8x1xf32>
    %cst_346 = arith.constant 9.99999974E-6 : f32
    %1084 = vector.broadcast %cst_346 : f32 to vector<8x1xf32>
    %1085 = arith.addf %1083, %1084 : vector<8x1xf32>
    %1086 = math.rsqrt %1085 : vector<8x1xf32>
    %1087 = vector.broadcast %1086 : vector<8x1xf32> to vector<8x32xf32>
    %1088 = arith.mulf %1078, %1087 : vector<8x32xf32>
    %1089 = vector.broadcast %1071 : vector<1x32xf32> to vector<8x32xf32>
    %1090 = arith.mulf %1088, %1089 : vector<8x32xf32>
    %1091 = vector.broadcast %1072 : vector<1x32xf32> to vector<8x32xf32>
    %1092 = arith.addf %1090, %1091 : vector<8x32xf32>
    %cst_347 = arith.constant dense<0.000000e+00> : vector<8x96xf32>
    %1093 = tpu.matmul %1092, %27, %cst_347 {dimension_numbers = #tpu.dot_dimension_numbers<[1], [0], [0], [1], [0, 0, 1, 1], [], []>} : vector<8x32xf32>, vector<32x96xf32>, vector<8x96xf32> -> vector<8x96xf32>
    %1094 = arith.addf %1093, %28 : vector<8x96xf32>
    %1095 = vector.extract_strided_slice %1094 {offsets = [0, 0], sizes = [8, 32], strides = [1, 1]} : vector<8x96xf32> to vector<8x32xf32>
    %1096 = vector.extract_strided_slice %1094 {offsets = [0, 32], sizes = [8, 32], strides = [1, 1]} : vector<8x96xf32> to vector<8x32xf32>
    %1097 = vector.extract_strided_slice %1094 {offsets = [0, 64], sizes = [8, 32], strides = [1, 1]} : vector<8x96xf32> to vector<8x32xf32>
    %1098 = vector.extract_strided_slice %1095 {offsets = [0, 0], sizes = [8, 8], strides = [1, 1]} : vector<8x32xf32> to vector<8x8xf32>
    %1099 = vector.extract_strided_slice %1096 {offsets = [0, 0], sizes = [8, 8], strides = [1, 1]} : vector<8x32xf32> to vector<8x8xf32>
    %cst_348 = arith.constant dense<0.000000e+00> : vector<8x8xf32>
    %1100 = tpu.matmul %1098, %1099, %cst_348 {dimension_numbers = #tpu.dot_dimension_numbers<[1], [1], [0], [0], [0, 0, 1, 0], [], []>} : vector<8x8xf32>, vector<8x8xf32>, vector<8x8xf32> -> vector<8x8xf32>
    %1101 = vector.extract_strided_slice %1095 {offsets = [0, 8], sizes = [8, 8], strides = [1, 1]} : vector<8x32xf32> to vector<8x8xf32>
    %1102 = vector.extract_strided_slice %1096 {offsets = [0, 8], sizes = [8, 8], strides = [1, 1]} : vector<8x32xf32> to vector<8x8xf32>
    %cst_349 = arith.constant dense<0.000000e+00> : vector<8x8xf32>
    %1103 = tpu.matmul %1101, %1102, %cst_349 {dimension_numbers = #tpu.dot_dimension_numbers<[1], [1], [0], [0], [0, 0, 1, 0], [], []>} : vector<8x8xf32>, vector<8x8xf32>, vector<8x8xf32> -> vector<8x8xf32>
    %1104 = vector.extract_strided_slice %1095 {offsets = [0, 16], sizes = [8, 8], strides = [1, 1]} : vector<8x32xf32> to vector<8x8xf32>
    %1105 = vector.extract_strided_slice %1096 {offsets = [0, 16], sizes = [8, 8], strides = [1, 1]} : vector<8x32xf32> to vector<8x8xf32>
    %cst_350 = arith.constant dense<0.000000e+00> : vector<8x8xf32>
    %1106 = tpu.matmul %1104, %1105, %cst_350 {dimension_numbers = #tpu.dot_dimension_numbers<[1], [1], [0], [0], [0, 0, 1, 0], [], []>} : vector<8x8xf32>, vector<8x8xf32>, vector<8x8xf32> -> vector<8x8xf32>
    %1107 = vector.extract_strided_slice %1095 {offsets = [0, 24], sizes = [8, 8], strides = [1, 1]} : vector<8x32xf32> to vector<8x8xf32>
    %1108 = vector.extract_strided_slice %1096 {offsets = [0, 24], sizes = [8, 8], strides = [1, 1]} : vector<8x32xf32> to vector<8x8xf32>
    %cst_351 = arith.constant dense<0.000000e+00> : vector<8x8xf32>
    %1109 = tpu.matmul %1107, %1108, %cst_351 {dimension_numbers = #tpu.dot_dimension_numbers<[1], [1], [0], [0], [0, 0, 1, 0], [], []>} : vector<8x8xf32>, vector<8x8xf32>, vector<8x8xf32> -> vector<8x8xf32>
    %1110 = tpu.concatenate %1100, %1103, %1106, %1109 in 0 : vector<8x8xf32>, vector<8x8xf32>, vector<8x8xf32>, vector<8x8xf32> -> vector<32x8xf32>
    %cst_352 = arith.constant dense<0xFF800000> : vector<32xf32>
    %1111 = vector.multi_reduction <maximumf>, %1110, %cst_352 [1] : vector<32x8xf32> to vector<32xf32>
    %1112 = vector.shape_cast %1111 : vector<32xf32> to vector<32x1xf32>
    %1113 = vector.broadcast %1112 : vector<32x1xf32> to vector<32x8xf32>
    %1114 = arith.subf %1110, %1113 : vector<32x8xf32>
    %1115 = math.exp %1114 : vector<32x8xf32>
    %cst_353 = arith.constant dense<0.000000e+00> : vector<32xf32>
    %1116 = vector.multi_reduction <add>, %1115, %cst_353 [1] : vector<32x8xf32> to vector<32xf32>
    %1117 = vector.shape_cast %1116 : vector<32xf32> to vector<32x1xf32>
    %1118 = vector.broadcast %1117 : vector<32x1xf32> to vector<32x8xf32>
    %1119 = arith.divf %1115, %1118 : vector<32x8xf32>
    %1120 = vector.extract_strided_slice %1119 {offsets = [0, 0], sizes = [8, 8], strides = [1, 1]} : vector<32x8xf32> to vector<8x8xf32>
    %1121 = vector.extract_strided_slice %1097 {offsets = [0, 0], sizes = [8, 8], strides = [1, 1]} : vector<8x32xf32> to vector<8x8xf32>
    %cst_354 = arith.constant dense<0.000000e+00> : vector<8x8xf32>
    %1122 = tpu.matmul %1120, %1121, %cst_354 {dimension_numbers = #tpu.dot_dimension_numbers<[1], [0], [0], [1], [0, 0, 1, 1], [], []>} : vector<8x8xf32>, vector<8x8xf32>, vector<8x8xf32> -> vector<8x8xf32>
    %1123 = vector.extract_strided_slice %1119 {offsets = [8, 0], sizes = [8, 8], strides = [1, 1]} : vector<32x8xf32> to vector<8x8xf32>
    %1124 = vector.extract_strided_slice %1097 {offsets = [0, 8], sizes = [8, 8], strides = [1, 1]} : vector<8x32xf32> to vector<8x8xf32>
    %cst_355 = arith.constant dense<0.000000e+00> : vector<8x8xf32>
    %1125 = tpu.matmul %1123, %1124, %cst_355 {dimension_numbers = #tpu.dot_dimension_numbers<[1], [0], [0], [1], [0, 0, 1, 1], [], []>} : vector<8x8xf32>, vector<8x8xf32>, vector<8x8xf32> -> vector<8x8xf32>
    %1126 = vector.extract_strided_slice %1119 {offsets = [16, 0], sizes = [8, 8], strides = [1, 1]} : vector<32x8xf32> to vector<8x8xf32>
    %1127 = vector.extract_strided_slice %1097 {offsets = [0, 16], sizes = [8, 8], strides = [1, 1]} : vector<8x32xf32> to vector<8x8xf32>
    %cst_356 = arith.constant dense<0.000000e+00> : vector<8x8xf32>
    %1128 = tpu.matmul %1126, %1127, %cst_356 {dimension_numbers = #tpu.dot_dimension_numbers<[1], [0], [0], [1], [0, 0, 1, 1], [], []>} : vector<8x8xf32>, vector<8x8xf32>, vector<8x8xf32> -> vector<8x8xf32>
    %1129 = vector.extract_strided_slice %1119 {offsets = [24, 0], sizes = [8, 8], strides = [1, 1]} : vector<32x8xf32> to vector<8x8xf32>
    %1130 = vector.extract_strided_slice %1097 {offsets = [0, 24], sizes = [8, 8], strides = [1, 1]} : vector<8x32xf32> to vector<8x8xf32>
    %cst_357 = arith.constant dense<0.000000e+00> : vector<8x8xf32>
    %1131 = tpu.matmul %1129, %1130, %cst_357 {dimension_numbers = #tpu.dot_dimension_numbers<[1], [0], [0], [1], [0, 0, 1, 1], [], []>} : vector<8x8xf32>, vector<8x8xf32>, vector<8x8xf32> -> vector<8x8xf32>
    %1132 = tpu.concatenate %1122, %1125, %1128, %1131 in 1 : vector<8x8xf32>, vector<8x8xf32>, vector<8x8xf32>, vector<8x8xf32> -> vector<8x32xf32>
    %cst_358 = arith.constant dense<0.000000e+00> : vector<8x32xf32>
    %1133 = tpu.matmul %1132, %29, %cst_358 {dimension_numbers = #tpu.dot_dimension_numbers<[1], [0], [0], [1], [0, 0, 1, 1], [], []>} : vector<8x32xf32>, vector<32x32xf32>, vector<8x32xf32> -> vector<8x32xf32>
    %1134 = arith.addf %1092, %1133 : vector<8x32xf32>
    %1135 = vector.extract_strided_slice %30 {offsets = [0, 0], sizes = [1, 32], strides = [1, 1]} : vector<3x32xf32> to vector<1x32xf32>
    %1136 = vector.broadcast %1135 : vector<1x32xf32> to vector<8x32xf32>
    %1137 = arith.addf %1134, %1136 : vector<8x32xf32>
    %1138 = vector.extract_strided_slice %30 {offsets = [1, 0], sizes = [1, 32], strides = [1, 1]} : vector<3x32xf32> to vector<1x32xf32>
    %1139 = vector.extract_strided_slice %30 {offsets = [2, 0], sizes = [1, 32], strides = [1, 1]} : vector<3x32xf32> to vector<1x32xf32>
    %cst_359 = arith.constant dense<0.000000e+00> : vector<8xf32>
    %1140 = vector.multi_reduction <add>, %1137, %cst_359 [1] : vector<8x32xf32> to vector<8xf32>
    %1141 = vector.shape_cast %1140 : vector<8xf32> to vector<8x1xf32>
    %cst_360 = arith.constant 3.200000e+01 : f32
    %1142 = vector.broadcast %cst_360 : f32 to vector<8x1xf32>
    %1143 = arith.divf %1141, %1142 : vector<8x1xf32>
    %1144 = vector.broadcast %1143 : vector<8x1xf32> to vector<8x32xf32>
    %1145 = arith.subf %1137, %1144 : vector<8x32xf32>
    %1146 = arith.mulf %1145, %1145 : vector<8x32xf32>
    %cst_361 = arith.constant dense<0.000000e+00> : vector<8xf32>
    %1147 = vector.multi_reduction <add>, %1146, %cst_361 [1] : vector<8x32xf32> to vector<8xf32>
    %1148 = vector.shape_cast %1147 : vector<8xf32> to vector<8x1xf32>
    %cst_362 = arith.constant 3.200000e+01 : f32
    %1149 = vector.broadcast %cst_362 : f32 to vector<8x1xf32>
    %1150 = arith.divf %1148, %1149 : vector<8x1xf32>
    %cst_363 = arith.constant 9.99999974E-6 : f32
    %1151 = vector.broadcast %cst_363 : f32 to vector<8x1xf32>
    %1152 = arith.addf %1150, %1151 : vector<8x1xf32>
    %1153 = math.rsqrt %1152 : vector<8x1xf32>
    %1154 = vector.broadcast %1153 : vector<8x1xf32> to vector<8x32xf32>
    %1155 = arith.mulf %1145, %1154 : vector<8x32xf32>
    %1156 = vector.broadcast %1138 : vector<1x32xf32> to vector<8x32xf32>
    %1157 = arith.mulf %1155, %1156 : vector<8x32xf32>
    %1158 = vector.broadcast %1139 : vector<1x32xf32> to vector<8x32xf32>
    %1159 = arith.addf %1157, %1158 : vector<8x32xf32>
    %cst_364 = arith.constant dense<0.000000e+00> : vector<8x64xf32>
    %1160 = tpu.matmul %1159, %31, %cst_364 {dimension_numbers = #tpu.dot_dimension_numbers<[1], [0], [0], [1], [0, 0, 1, 1], [], []>} : vector<8x32xf32>, vector<32x64xf32>, vector<8x64xf32> -> vector<8x64xf32>
    %1161 = vector.broadcast %32 : vector<1x64xf32> to vector<8x64xf32>
    %1162 = arith.addf %1160, %1161 : vector<8x64xf32>
    %cst_365 = arith.constant 0.000000e+00 : f32
    %1163 = vector.broadcast %cst_365 : f32 to vector<8x64xf32>
    %1164 = arith.maximumf %1162, %1163 : vector<8x64xf32>
    %cst_366 = arith.constant dense<0.000000e+00> : vector<8x32xf32>
    %1165 = tpu.matmul %1164, %33, %cst_366 {dimension_numbers = #tpu.dot_dimension_numbers<[1], [0], [0], [1], [0, 0, 1, 1], [], []>} : vector<8x64xf32>, vector<64x32xf32>, vector<8x32xf32> -> vector<8x32xf32>
    %1166 = vector.extract_strided_slice %34 {offsets = [0, 0], sizes = [1, 32], strides = [1, 1]} : vector<3x32xf32> to vector<1x32xf32>
    %1167 = vector.broadcast %1166 : vector<1x32xf32> to vector<8x32xf32>
    %1168 = arith.addf %1165, %1167 : vector<8x32xf32>
    %1169 = arith.addf %1159, %1168 : vector<8x32xf32>
    %1170 = vector.extract_strided_slice %34 {offsets = [1, 0], sizes = [1, 32], strides = [1, 1]} : vector<3x32xf32> to vector<1x32xf32>
    %1171 = vector.extract_strided_slice %34 {offsets = [2, 0], sizes = [1, 32], strides = [1, 1]} : vector<3x32xf32> to vector<1x32xf32>
    %cst_367 = arith.constant dense<0.000000e+00> : vector<8xf32>
    %1172 = vector.multi_reduction <add>, %1169, %cst_367 [1] : vector<8x32xf32> to vector<8xf32>
    %1173 = vector.shape_cast %1172 : vector<8xf32> to vector<8x1xf32>
    %cst_368 = arith.constant 3.200000e+01 : f32
    %1174 = vector.broadcast %cst_368 : f32 to vector<8x1xf32>
    %1175 = arith.divf %1173, %1174 : vector<8x1xf32>
    %1176 = vector.broadcast %1175 : vector<8x1xf32> to vector<8x32xf32>
    %1177 = arith.subf %1169, %1176 : vector<8x32xf32>
    %1178 = arith.mulf %1177, %1177 : vector<8x32xf32>
    %cst_369 = arith.constant dense<0.000000e+00> : vector<8xf32>
    %1179 = vector.multi_reduction <add>, %1178, %cst_369 [1] : vector<8x32xf32> to vector<8xf32>
    %1180 = vector.shape_cast %1179 : vector<8xf32> to vector<8x1xf32>
    %cst_370 = arith.constant 3.200000e+01 : f32
    %1181 = vector.broadcast %cst_370 : f32 to vector<8x1xf32>
    %1182 = arith.divf %1180, %1181 : vector<8x1xf32>
    %cst_371 = arith.constant 9.99999974E-6 : f32
    %1183 = vector.broadcast %cst_371 : f32 to vector<8x1xf32>
    %1184 = arith.addf %1182, %1183 : vector<8x1xf32>
    %1185 = math.rsqrt %1184 : vector<8x1xf32>
    %1186 = vector.broadcast %1185 : vector<8x1xf32> to vector<8x32xf32>
    %1187 = arith.mulf %1177, %1186 : vector<8x32xf32>
    %1188 = vector.broadcast %1170 : vector<1x32xf32> to vector<8x32xf32>
    %1189 = arith.mulf %1187, %1188 : vector<8x32xf32>
    %1190 = vector.broadcast %1171 : vector<1x32xf32> to vector<8x32xf32>
    %1191 = arith.addf %1189, %1190 : vector<8x32xf32>
    %1192 = vector.extract_strided_slice %4 {offsets = [0, 0], sizes = [1, 32], strides = [1, 1]} : vector<4x32xf32> to vector<1x32xf32>
    %1193 = vector.extract_strided_slice %4 {offsets = [1, 0], sizes = [1, 32], strides = [1, 1]} : vector<4x32xf32> to vector<1x32xf32>
    %cst_372 = arith.constant dense<0.000000e+00> : vector<8xf32>
    %1194 = vector.multi_reduction <add>, %1191, %cst_372 [1] : vector<8x32xf32> to vector<8xf32>
    %1195 = vector.shape_cast %1194 : vector<8xf32> to vector<8x1xf32>
    %cst_373 = arith.constant 3.200000e+01 : f32
    %1196 = vector.broadcast %cst_373 : f32 to vector<8x1xf32>
    %1197 = arith.divf %1195, %1196 : vector<8x1xf32>
    %1198 = vector.broadcast %1197 : vector<8x1xf32> to vector<8x32xf32>
    %1199 = arith.subf %1191, %1198 : vector<8x32xf32>
    %1200 = arith.mulf %1199, %1199 : vector<8x32xf32>
    %cst_374 = arith.constant dense<0.000000e+00> : vector<8xf32>
    %1201 = vector.multi_reduction <add>, %1200, %cst_374 [1] : vector<8x32xf32> to vector<8xf32>
    %1202 = vector.shape_cast %1201 : vector<8xf32> to vector<8x1xf32>
    %cst_375 = arith.constant 3.200000e+01 : f32
    %1203 = vector.broadcast %cst_375 : f32 to vector<8x1xf32>
    %1204 = arith.divf %1202, %1203 : vector<8x1xf32>
    %cst_376 = arith.constant 9.99999974E-6 : f32
    %1205 = vector.broadcast %cst_376 : f32 to vector<8x1xf32>
    %1206 = arith.addf %1204, %1205 : vector<8x1xf32>
    %1207 = math.rsqrt %1206 : vector<8x1xf32>
    %1208 = vector.broadcast %1207 : vector<8x1xf32> to vector<8x32xf32>
    %1209 = arith.mulf %1199, %1208 : vector<8x32xf32>
    %1210 = vector.broadcast %1192 : vector<1x32xf32> to vector<8x32xf32>
    %1211 = arith.mulf %1209, %1210 : vector<8x32xf32>
    %1212 = vector.broadcast %1193 : vector<1x32xf32> to vector<8x32xf32>
    %1213 = arith.addf %1211, %1212 : vector<8x32xf32>
    %cst_377 = arith.constant dense<0.000000e+00> : vector<8x32xf32>
    %1214 = tpu.matmul %1213, %1, %cst_377 {dimension_numbers = #tpu.dot_dimension_numbers<[1], [0], [0], [1], [0, 0, 1, 1], [], []>} : vector<8x32xf32>, vector<32x32xf32>, vector<8x32xf32> -> vector<8x32xf32>
    %1215 = vector.extract_strided_slice %4 {offsets = [2, 0], sizes = [1, 32], strides = [1, 1]} : vector<4x32xf32> to vector<1x32xf32>
    %1216 = vector.broadcast %1215 : vector<1x32xf32> to vector<8x32xf32>
    %1217 = arith.addf %1214, %1216 : vector<8x32xf32>
    %cst_378 = arith.constant 0.000000e+00 : f32
    %1218 = vector.broadcast %cst_378 : f32 to vector<8x32xf32>
    %1219 = arith.maximumf %1217, %1218 : vector<8x32xf32>
    %cst_379 = arith.constant dense<0.000000e+00> : vector<8x32xf32>
    %1220 = tpu.matmul %1219, %2, %cst_379 {dimension_numbers = #tpu.dot_dimension_numbers<[1], [0], [0], [1], [0, 0, 1, 1], [], []>} : vector<8x32xf32>, vector<32x32xf32>, vector<8x32xf32> -> vector<8x32xf32>
    %1221 = vector.extract_strided_slice %4 {offsets = [3, 0], sizes = [1, 32], strides = [1, 1]} : vector<4x32xf32> to vector<1x32xf32>
    %1222 = vector.broadcast %1221 : vector<1x32xf32> to vector<8x32xf32>
    %1223 = arith.addf %1220, %1222 : vector<8x32xf32>
    %cst_380 = arith.constant 0.000000e+00 : f32
    %1224 = vector.broadcast %cst_380 : f32 to vector<8x32xf32>
    %1225 = arith.maximumf %1223, %1224 : vector<8x32xf32>
    %cst_381 = arith.constant dense<0.000000e+00> : vector<8x32xf32>
    %1226 = tpu.matmul %1225, %3, %cst_381 {dimension_numbers = #tpu.dot_dimension_numbers<[1], [0], [0], [1], [0, 0, 1, 1], [], []>} : vector<8x32xf32>, vector<32x32xf32>, vector<8x32xf32> -> vector<8x32xf32>
    %1227 = vector.broadcast %5 : vector<1x32xf32> to vector<8x32xf32>
    %1228 = arith.addf %1226, %1227 : vector<8x32xf32>
    %cst_382 = arith.constant dense<0.000000e+00> : vector<8x16xf32>
    %1229 = tpu.matmul %1228, %753, %cst_382 {dimension_numbers = #tpu.dot_dimension_numbers<[1], [0], [0], [1], [0, 0, 1, 1], [], []>} : vector<8x32xf32>, vector<32x16xf32>, vector<8x16xf32> -> vector<8x16xf32>
    %cst_383 = arith.constant dense<0xFF800000> : vector<8xf32>
    %1230 = vector.multi_reduction <maximumf>, %1229, %cst_383 [1] : vector<8x16xf32> to vector<8xf32>
    %1231 = vector.shape_cast %1230 : vector<8xf32> to vector<8x1xf32>
    %cst_384 = arith.constant 0.000000e+00 : f32
    %1232 = vector.broadcast %cst_384 : f32 to vector<8x16xf32>
    %1233 = arith.cmpf olt, %1229, %1232 : vector<8x16xf32>
    %cst_385 = arith.constant 0.000000e+00 : f32
    %1234 = vector.broadcast %cst_385 : f32 to vector<8x1xf32>
    %1235 = arith.cmpf oge, %1231, %1234 : vector<8x1xf32>
    %1236 = vector.broadcast %1235 : vector<8x1xi1> to vector<8x16xi1>
    %1237 = arith.andi %1233, %1236 : vector<8x16xi1>
    %cst_386 = arith.constant -1.000000e+09 : f32
    %cst_387 = arith.constant 0.000000e+00 : f32
    %1238 = vector.broadcast %cst_386 : f32 to vector<8x16xf32>
    %1239 = vector.broadcast %cst_387 : f32 to vector<8x16xf32>
    %1240 = arith.select %1237, %1238, %1239 : vector<8x16xi1>, vector<8x16xf32>
    %cst_388 = arith.constant dense<0.000000e+00> : vector<8x32xf32>
    %1241 = tpu.matmul %1191, %35, %cst_388 {dimension_numbers = #tpu.dot_dimension_numbers<[1], [0], [0], [1], [0, 0, 1, 1], [], []>} : vector<8x32xf32>, vector<32x32xf32>, vector<8x32xf32> -> vector<8x32xf32>
    %1242 = arith.addf %1241, %36 : vector<8x32xf32>
    %1243 = vector.extract_strided_slice %750 {offsets = [0, 80], sizes = [16, 16], strides = [1, 1]} : vector<16x96xf32> to vector<16x16xf32>
    %cst_389 = arith.constant dense<0.000000e+00> : vector<64x16xf32>
    %1244 = tpu.matmul %37, %1243, %cst_389 {dimension_numbers = #tpu.dot_dimension_numbers<[1], [0], [0], [1], [0, 0, 1, 1], [], []>} : vector<64x16xf32>, vector<16x16xf32>, vector<64x16xf32> -> vector<64x16xf32>
    %1245 = arith.addf %1244, %38 : vector<64x16xf32>
    %1246 = vector.extract_strided_slice %1245 {offsets = [0, 0], sizes = [32, 16], strides = [1, 1]} : vector<64x16xf32> to vector<32x16xf32>
    %1247 = vector.extract_strided_slice %1245 {offsets = [32, 0], sizes = [32, 16], strides = [1, 1]} : vector<64x16xf32> to vector<32x16xf32>
    %1248 = vector.extract_strided_slice %1242 {offsets = [0, 0], sizes = [8, 8], strides = [1, 1]} : vector<8x32xf32> to vector<8x8xf32>
    %1249 = vector.extract_strided_slice %1246 {offsets = [0, 0], sizes = [8, 16], strides = [1, 1]} : vector<32x16xf32> to vector<8x16xf32>
    %cst_390 = arith.constant dense<0.000000e+00> : vector<8x16xf32>
    %1250 = tpu.matmul %1248, %1249, %cst_390 {dimension_numbers = #tpu.dot_dimension_numbers<[1], [0], [0], [1], [0, 0, 1, 1], [], []>} : vector<8x8xf32>, vector<8x16xf32>, vector<8x16xf32> -> vector<8x16xf32>
    %1251 = vector.extract_strided_slice %1242 {offsets = [0, 8], sizes = [8, 8], strides = [1, 1]} : vector<8x32xf32> to vector<8x8xf32>
    %1252 = vector.extract_strided_slice %1246 {offsets = [8, 0], sizes = [8, 16], strides = [1, 1]} : vector<32x16xf32> to vector<8x16xf32>
    %cst_391 = arith.constant dense<0.000000e+00> : vector<8x16xf32>
    %1253 = tpu.matmul %1251, %1252, %cst_391 {dimension_numbers = #tpu.dot_dimension_numbers<[1], [0], [0], [1], [0, 0, 1, 1], [], []>} : vector<8x8xf32>, vector<8x16xf32>, vector<8x16xf32> -> vector<8x16xf32>
    %1254 = vector.extract_strided_slice %1242 {offsets = [0, 16], sizes = [8, 8], strides = [1, 1]} : vector<8x32xf32> to vector<8x8xf32>
    %1255 = vector.extract_strided_slice %1246 {offsets = [16, 0], sizes = [8, 16], strides = [1, 1]} : vector<32x16xf32> to vector<8x16xf32>
    %cst_392 = arith.constant dense<0.000000e+00> : vector<8x16xf32>
    %1256 = tpu.matmul %1254, %1255, %cst_392 {dimension_numbers = #tpu.dot_dimension_numbers<[1], [0], [0], [1], [0, 0, 1, 1], [], []>} : vector<8x8xf32>, vector<8x16xf32>, vector<8x16xf32> -> vector<8x16xf32>
    %1257 = vector.extract_strided_slice %1242 {offsets = [0, 24], sizes = [8, 8], strides = [1, 1]} : vector<8x32xf32> to vector<8x8xf32>
    %1258 = vector.extract_strided_slice %1246 {offsets = [24, 0], sizes = [8, 16], strides = [1, 1]} : vector<32x16xf32> to vector<8x16xf32>
    %cst_393 = arith.constant dense<0.000000e+00> : vector<8x16xf32>
    %1259 = tpu.matmul %1257, %1258, %cst_393 {dimension_numbers = #tpu.dot_dimension_numbers<[1], [0], [0], [1], [0, 0, 1, 1], [], []>} : vector<8x8xf32>, vector<8x16xf32>, vector<8x16xf32> -> vector<8x16xf32>
    %1260 = tpu.concatenate %1250, %1253, %1256, %1259 in 0 : vector<8x16xf32>, vector<8x16xf32>, vector<8x16xf32>, vector<8x16xf32> -> vector<32x16xf32>
    %1261 = tpu.concatenate %1240, %1240, %1240, %1240 in 0 : vector<8x16xf32>, vector<8x16xf32>, vector<8x16xf32>, vector<8x16xf32> -> vector<32x16xf32>
    %1262 = arith.addf %1260, %1261 : vector<32x16xf32>
    %cst_394 = arith.constant dense<0xFF800000> : vector<32xf32>
    %1263 = vector.multi_reduction <maximumf>, %1262, %cst_394 [1] : vector<32x16xf32> to vector<32xf32>
    %1264 = vector.shape_cast %1263 : vector<32xf32> to vector<32x1xf32>
    %1265 = vector.broadcast %1264 : vector<32x1xf32> to vector<32x16xf32>
    %1266 = arith.subf %1262, %1265 : vector<32x16xf32>
    %1267 = math.exp %1266 : vector<32x16xf32>
    %cst_395 = arith.constant dense<0.000000e+00> : vector<32xf32>
    %1268 = vector.multi_reduction <add>, %1267, %cst_395 [1] : vector<32x16xf32> to vector<32xf32>
    %1269 = vector.shape_cast %1268 : vector<32xf32> to vector<32x1xf32>
    %1270 = vector.broadcast %1269 : vector<32x1xf32> to vector<32x16xf32>
    %1271 = arith.divf %1267, %1270 : vector<32x16xf32>
    %1272 = vector.extract_strided_slice %1271 {offsets = [0, 0], sizes = [8, 16], strides = [1, 1]} : vector<32x16xf32> to vector<8x16xf32>
    %1273 = vector.extract_strided_slice %1247 {offsets = [0, 0], sizes = [8, 16], strides = [1, 1]} : vector<32x16xf32> to vector<8x16xf32>
    %cst_396 = arith.constant dense<0.000000e+00> : vector<8x8xf32>
    %1274 = tpu.matmul %1272, %1273, %cst_396 {dimension_numbers = #tpu.dot_dimension_numbers<[1], [1], [0], [0], [0, 0, 1, 0], [], []>} : vector<8x16xf32>, vector<8x16xf32>, vector<8x8xf32> -> vector<8x8xf32>
    %1275 = vector.extract_strided_slice %1271 {offsets = [8, 0], sizes = [8, 16], strides = [1, 1]} : vector<32x16xf32> to vector<8x16xf32>
    %1276 = vector.extract_strided_slice %1247 {offsets = [8, 0], sizes = [8, 16], strides = [1, 1]} : vector<32x16xf32> to vector<8x16xf32>
    %cst_397 = arith.constant dense<0.000000e+00> : vector<8x8xf32>
    %1277 = tpu.matmul %1275, %1276, %cst_397 {dimension_numbers = #tpu.dot_dimension_numbers<[1], [1], [0], [0], [0, 0, 1, 0], [], []>} : vector<8x16xf32>, vector<8x16xf32>, vector<8x8xf32> -> vector<8x8xf32>
    %1278 = vector.extract_strided_slice %1271 {offsets = [16, 0], sizes = [8, 16], strides = [1, 1]} : vector<32x16xf32> to vector<8x16xf32>
    %1279 = vector.extract_strided_slice %1247 {offsets = [16, 0], sizes = [8, 16], strides = [1, 1]} : vector<32x16xf32> to vector<8x16xf32>
    %cst_398 = arith.constant dense<0.000000e+00> : vector<8x8xf32>
    %1280 = tpu.matmul %1278, %1279, %cst_398 {dimension_numbers = #tpu.dot_dimension_numbers<[1], [1], [0], [0], [0, 0, 1, 0], [], []>} : vector<8x16xf32>, vector<8x16xf32>, vector<8x8xf32> -> vector<8x8xf32>
    %1281 = vector.extract_strided_slice %1271 {offsets = [24, 0], sizes = [8, 16], strides = [1, 1]} : vector<32x16xf32> to vector<8x16xf32>
    %1282 = vector.extract_strided_slice %1247 {offsets = [24, 0], sizes = [8, 16], strides = [1, 1]} : vector<32x16xf32> to vector<8x16xf32>
    %cst_399 = arith.constant dense<0.000000e+00> : vector<8x8xf32>
    %1283 = tpu.matmul %1281, %1282, %cst_399 {dimension_numbers = #tpu.dot_dimension_numbers<[1], [1], [0], [0], [0, 0, 1, 0], [], []>} : vector<8x16xf32>, vector<8x16xf32>, vector<8x8xf32> -> vector<8x8xf32>
    %1284 = tpu.concatenate %1274, %1277, %1280, %1283 in 1 : vector<8x8xf32>, vector<8x8xf32>, vector<8x8xf32>, vector<8x8xf32> -> vector<8x32xf32>
    %cst_400 = arith.constant dense<0.000000e+00> : vector<8x32xf32>
    %1285 = tpu.matmul %1284, %39, %cst_400 {dimension_numbers = #tpu.dot_dimension_numbers<[1], [0], [0], [1], [0, 0, 1, 1], [], []>} : vector<8x32xf32>, vector<32x32xf32>, vector<8x32xf32> -> vector<8x32xf32>
    %1286 = arith.addf %1191, %1285 : vector<8x32xf32>
    %1287 = vector.extract_strided_slice %40 {offsets = [0, 0], sizes = [1, 32], strides = [1, 1]} : vector<3x32xf32> to vector<1x32xf32>
    %1288 = vector.broadcast %1287 : vector<1x32xf32> to vector<8x32xf32>
    %1289 = arith.addf %1286, %1288 : vector<8x32xf32>
    %1290 = vector.extract_strided_slice %40 {offsets = [1, 0], sizes = [1, 32], strides = [1, 1]} : vector<3x32xf32> to vector<1x32xf32>
    %1291 = vector.extract_strided_slice %40 {offsets = [2, 0], sizes = [1, 32], strides = [1, 1]} : vector<3x32xf32> to vector<1x32xf32>
    %cst_401 = arith.constant dense<0.000000e+00> : vector<8xf32>
    %1292 = vector.multi_reduction <add>, %1289, %cst_401 [1] : vector<8x32xf32> to vector<8xf32>
    %1293 = vector.shape_cast %1292 : vector<8xf32> to vector<8x1xf32>
    %cst_402 = arith.constant 3.200000e+01 : f32
    %1294 = vector.broadcast %cst_402 : f32 to vector<8x1xf32>
    %1295 = arith.divf %1293, %1294 : vector<8x1xf32>
    %1296 = vector.broadcast %1295 : vector<8x1xf32> to vector<8x32xf32>
    %1297 = arith.subf %1289, %1296 : vector<8x32xf32>
    %1298 = arith.mulf %1297, %1297 : vector<8x32xf32>
    %cst_403 = arith.constant dense<0.000000e+00> : vector<8xf32>
    %1299 = vector.multi_reduction <add>, %1298, %cst_403 [1] : vector<8x32xf32> to vector<8xf32>
    %1300 = vector.shape_cast %1299 : vector<8xf32> to vector<8x1xf32>
    %cst_404 = arith.constant 3.200000e+01 : f32
    %1301 = vector.broadcast %cst_404 : f32 to vector<8x1xf32>
    %1302 = arith.divf %1300, %1301 : vector<8x1xf32>
    %cst_405 = arith.constant 9.99999974E-6 : f32
    %1303 = vector.broadcast %cst_405 : f32 to vector<8x1xf32>
    %1304 = arith.addf %1302, %1303 : vector<8x1xf32>
    %1305 = math.rsqrt %1304 : vector<8x1xf32>
    %1306 = vector.broadcast %1305 : vector<8x1xf32> to vector<8x32xf32>
    %1307 = arith.mulf %1297, %1306 : vector<8x32xf32>
    %1308 = vector.broadcast %1290 : vector<1x32xf32> to vector<8x32xf32>
    %1309 = arith.mulf %1307, %1308 : vector<8x32xf32>
    %1310 = vector.broadcast %1291 : vector<1x32xf32> to vector<8x32xf32>
    %1311 = arith.addf %1309, %1310 : vector<8x32xf32>
    %cst_406 = arith.constant dense<0.000000e+00> : vector<8x96xf32>
    %1312 = tpu.matmul %1311, %41, %cst_406 {dimension_numbers = #tpu.dot_dimension_numbers<[1], [0], [0], [1], [0, 0, 1, 1], [], []>} : vector<8x32xf32>, vector<32x96xf32>, vector<8x96xf32> -> vector<8x96xf32>
    %1313 = arith.addf %1312, %42 : vector<8x96xf32>
    %1314 = vector.extract_strided_slice %1313 {offsets = [0, 0], sizes = [8, 32], strides = [1, 1]} : vector<8x96xf32> to vector<8x32xf32>
    %1315 = vector.extract_strided_slice %1313 {offsets = [0, 32], sizes = [8, 32], strides = [1, 1]} : vector<8x96xf32> to vector<8x32xf32>
    %1316 = vector.extract_strided_slice %1313 {offsets = [0, 64], sizes = [8, 32], strides = [1, 1]} : vector<8x96xf32> to vector<8x32xf32>
    %1317 = vector.extract_strided_slice %1314 {offsets = [0, 0], sizes = [8, 8], strides = [1, 1]} : vector<8x32xf32> to vector<8x8xf32>
    %1318 = vector.extract_strided_slice %1315 {offsets = [0, 0], sizes = [8, 8], strides = [1, 1]} : vector<8x32xf32> to vector<8x8xf32>
    %cst_407 = arith.constant dense<0.000000e+00> : vector<8x8xf32>
    %1319 = tpu.matmul %1317, %1318, %cst_407 {dimension_numbers = #tpu.dot_dimension_numbers<[1], [1], [0], [0], [0, 0, 1, 0], [], []>} : vector<8x8xf32>, vector<8x8xf32>, vector<8x8xf32> -> vector<8x8xf32>
    %1320 = vector.extract_strided_slice %1314 {offsets = [0, 8], sizes = [8, 8], strides = [1, 1]} : vector<8x32xf32> to vector<8x8xf32>
    %1321 = vector.extract_strided_slice %1315 {offsets = [0, 8], sizes = [8, 8], strides = [1, 1]} : vector<8x32xf32> to vector<8x8xf32>
    %cst_408 = arith.constant dense<0.000000e+00> : vector<8x8xf32>
    %1322 = tpu.matmul %1320, %1321, %cst_408 {dimension_numbers = #tpu.dot_dimension_numbers<[1], [1], [0], [0], [0, 0, 1, 0], [], []>} : vector<8x8xf32>, vector<8x8xf32>, vector<8x8xf32> -> vector<8x8xf32>
    %1323 = vector.extract_strided_slice %1314 {offsets = [0, 16], sizes = [8, 8], strides = [1, 1]} : vector<8x32xf32> to vector<8x8xf32>
    %1324 = vector.extract_strided_slice %1315 {offsets = [0, 16], sizes = [8, 8], strides = [1, 1]} : vector<8x32xf32> to vector<8x8xf32>
    %cst_409 = arith.constant dense<0.000000e+00> : vector<8x8xf32>
    %1325 = tpu.matmul %1323, %1324, %cst_409 {dimension_numbers = #tpu.dot_dimension_numbers<[1], [1], [0], [0], [0, 0, 1, 0], [], []>} : vector<8x8xf32>, vector<8x8xf32>, vector<8x8xf32> -> vector<8x8xf32>
    %1326 = vector.extract_strided_slice %1314 {offsets = [0, 24], sizes = [8, 8], strides = [1, 1]} : vector<8x32xf32> to vector<8x8xf32>
    %1327 = vector.extract_strided_slice %1315 {offsets = [0, 24], sizes = [8, 8], strides = [1, 1]} : vector<8x32xf32> to vector<8x8xf32>
    %cst_410 = arith.constant dense<0.000000e+00> : vector<8x8xf32>
    %1328 = tpu.matmul %1326, %1327, %cst_410 {dimension_numbers = #tpu.dot_dimension_numbers<[1], [1], [0], [0], [0, 0, 1, 0], [], []>} : vector<8x8xf32>, vector<8x8xf32>, vector<8x8xf32> -> vector<8x8xf32>
    %1329 = tpu.concatenate %1319, %1322, %1325, %1328 in 0 : vector<8x8xf32>, vector<8x8xf32>, vector<8x8xf32>, vector<8x8xf32> -> vector<32x8xf32>
    %cst_411 = arith.constant dense<0xFF800000> : vector<32xf32>
    %1330 = vector.multi_reduction <maximumf>, %1329, %cst_411 [1] : vector<32x8xf32> to vector<32xf32>
    %1331 = vector.shape_cast %1330 : vector<32xf32> to vector<32x1xf32>
    %1332 = vector.broadcast %1331 : vector<32x1xf32> to vector<32x8xf32>
    %1333 = arith.subf %1329, %1332 : vector<32x8xf32>
    %1334 = math.exp %1333 : vector<32x8xf32>
    %cst_412 = arith.constant dense<0.000000e+00> : vector<32xf32>
    %1335 = vector.multi_reduction <add>, %1334, %cst_412 [1] : vector<32x8xf32> to vector<32xf32>
    %1336 = vector.shape_cast %1335 : vector<32xf32> to vector<32x1xf32>
    %1337 = vector.broadcast %1336 : vector<32x1xf32> to vector<32x8xf32>
    %1338 = arith.divf %1334, %1337 : vector<32x8xf32>
    %1339 = vector.extract_strided_slice %1338 {offsets = [0, 0], sizes = [8, 8], strides = [1, 1]} : vector<32x8xf32> to vector<8x8xf32>
    %1340 = vector.extract_strided_slice %1316 {offsets = [0, 0], sizes = [8, 8], strides = [1, 1]} : vector<8x32xf32> to vector<8x8xf32>
    %cst_413 = arith.constant dense<0.000000e+00> : vector<8x8xf32>
    %1341 = tpu.matmul %1339, %1340, %cst_413 {dimension_numbers = #tpu.dot_dimension_numbers<[1], [0], [0], [1], [0, 0, 1, 1], [], []>} : vector<8x8xf32>, vector<8x8xf32>, vector<8x8xf32> -> vector<8x8xf32>
    %1342 = vector.extract_strided_slice %1338 {offsets = [8, 0], sizes = [8, 8], strides = [1, 1]} : vector<32x8xf32> to vector<8x8xf32>
    %1343 = vector.extract_strided_slice %1316 {offsets = [0, 8], sizes = [8, 8], strides = [1, 1]} : vector<8x32xf32> to vector<8x8xf32>
    %cst_414 = arith.constant dense<0.000000e+00> : vector<8x8xf32>
    %1344 = tpu.matmul %1342, %1343, %cst_414 {dimension_numbers = #tpu.dot_dimension_numbers<[1], [0], [0], [1], [0, 0, 1, 1], [], []>} : vector<8x8xf32>, vector<8x8xf32>, vector<8x8xf32> -> vector<8x8xf32>
    %1345 = vector.extract_strided_slice %1338 {offsets = [16, 0], sizes = [8, 8], strides = [1, 1]} : vector<32x8xf32> to vector<8x8xf32>
    %1346 = vector.extract_strided_slice %1316 {offsets = [0, 16], sizes = [8, 8], strides = [1, 1]} : vector<8x32xf32> to vector<8x8xf32>
    %cst_415 = arith.constant dense<0.000000e+00> : vector<8x8xf32>
    %1347 = tpu.matmul %1345, %1346, %cst_415 {dimension_numbers = #tpu.dot_dimension_numbers<[1], [0], [0], [1], [0, 0, 1, 1], [], []>} : vector<8x8xf32>, vector<8x8xf32>, vector<8x8xf32> -> vector<8x8xf32>
    %1348 = vector.extract_strided_slice %1338 {offsets = [24, 0], sizes = [8, 8], strides = [1, 1]} : vector<32x8xf32> to vector<8x8xf32>
    %1349 = vector.extract_strided_slice %1316 {offsets = [0, 24], sizes = [8, 8], strides = [1, 1]} : vector<8x32xf32> to vector<8x8xf32>
    %cst_416 = arith.constant dense<0.000000e+00> : vector<8x8xf32>
    %1350 = tpu.matmul %1348, %1349, %cst_416 {dimension_numbers = #tpu.dot_dimension_numbers<[1], [0], [0], [1], [0, 0, 1, 1], [], []>} : vector<8x8xf32>, vector<8x8xf32>, vector<8x8xf32> -> vector<8x8xf32>
    %1351 = tpu.concatenate %1341, %1344, %1347, %1350 in 1 : vector<8x8xf32>, vector<8x8xf32>, vector<8x8xf32>, vector<8x8xf32> -> vector<8x32xf32>
    %cst_417 = arith.constant dense<0.000000e+00> : vector<8x32xf32>
    %1352 = tpu.matmul %1351, %43, %cst_417 {dimension_numbers = #tpu.dot_dimension_numbers<[1], [0], [0], [1], [0, 0, 1, 1], [], []>} : vector<8x32xf32>, vector<32x32xf32>, vector<8x32xf32> -> vector<8x32xf32>
    %1353 = arith.addf %1311, %1352 : vector<8x32xf32>
    %1354 = vector.extract_strided_slice %44 {offsets = [0, 0], sizes = [1, 32], strides = [1, 1]} : vector<3x32xf32> to vector<1x32xf32>
    %1355 = vector.broadcast %1354 : vector<1x32xf32> to vector<8x32xf32>
    %1356 = arith.addf %1353, %1355 : vector<8x32xf32>
    %1357 = vector.extract_strided_slice %44 {offsets = [1, 0], sizes = [1, 32], strides = [1, 1]} : vector<3x32xf32> to vector<1x32xf32>
    %1358 = vector.extract_strided_slice %44 {offsets = [2, 0], sizes = [1, 32], strides = [1, 1]} : vector<3x32xf32> to vector<1x32xf32>
    %cst_418 = arith.constant dense<0.000000e+00> : vector<8xf32>
    %1359 = vector.multi_reduction <add>, %1356, %cst_418 [1] : vector<8x32xf32> to vector<8xf32>
    %1360 = vector.shape_cast %1359 : vector<8xf32> to vector<8x1xf32>
    %cst_419 = arith.constant 3.200000e+01 : f32
    %1361 = vector.broadcast %cst_419 : f32 to vector<8x1xf32>
    %1362 = arith.divf %1360, %1361 : vector<8x1xf32>
    %1363 = vector.broadcast %1362 : vector<8x1xf32> to vector<8x32xf32>
    %1364 = arith.subf %1356, %1363 : vector<8x32xf32>
    %1365 = arith.mulf %1364, %1364 : vector<8x32xf32>
    %cst_420 = arith.constant dense<0.000000e+00> : vector<8xf32>
    %1366 = vector.multi_reduction <add>, %1365, %cst_420 [1] : vector<8x32xf32> to vector<8xf32>
    %1367 = vector.shape_cast %1366 : vector<8xf32> to vector<8x1xf32>
    %cst_421 = arith.constant 3.200000e+01 : f32
    %1368 = vector.broadcast %cst_421 : f32 to vector<8x1xf32>
    %1369 = arith.divf %1367, %1368 : vector<8x1xf32>
    %cst_422 = arith.constant 9.99999974E-6 : f32
    %1370 = vector.broadcast %cst_422 : f32 to vector<8x1xf32>
    %1371 = arith.addf %1369, %1370 : vector<8x1xf32>
    %1372 = math.rsqrt %1371 : vector<8x1xf32>
    %1373 = vector.broadcast %1372 : vector<8x1xf32> to vector<8x32xf32>
    %1374 = arith.mulf %1364, %1373 : vector<8x32xf32>
    %1375 = vector.broadcast %1357 : vector<1x32xf32> to vector<8x32xf32>
    %1376 = arith.mulf %1374, %1375 : vector<8x32xf32>
    %1377 = vector.broadcast %1358 : vector<1x32xf32> to vector<8x32xf32>
    %1378 = arith.addf %1376, %1377 : vector<8x32xf32>
    %cst_423 = arith.constant dense<0.000000e+00> : vector<8x64xf32>
    %1379 = tpu.matmul %1378, %45, %cst_423 {dimension_numbers = #tpu.dot_dimension_numbers<[1], [0], [0], [1], [0, 0, 1, 1], [], []>} : vector<8x32xf32>, vector<32x64xf32>, vector<8x64xf32> -> vector<8x64xf32>
    %1380 = vector.broadcast %46 : vector<1x64xf32> to vector<8x64xf32>
    %1381 = arith.addf %1379, %1380 : vector<8x64xf32>
    %cst_424 = arith.constant 0.000000e+00 : f32
    %1382 = vector.broadcast %cst_424 : f32 to vector<8x64xf32>
    %1383 = arith.maximumf %1381, %1382 : vector<8x64xf32>
    %cst_425 = arith.constant dense<0.000000e+00> : vector<8x32xf32>
    %1384 = tpu.matmul %1383, %47, %cst_425 {dimension_numbers = #tpu.dot_dimension_numbers<[1], [0], [0], [1], [0, 0, 1, 1], [], []>} : vector<8x64xf32>, vector<64x32xf32>, vector<8x32xf32> -> vector<8x32xf32>
    %1385 = vector.extract_strided_slice %48 {offsets = [0, 0], sizes = [1, 32], strides = [1, 1]} : vector<3x32xf32> to vector<1x32xf32>
    %1386 = vector.broadcast %1385 : vector<1x32xf32> to vector<8x32xf32>
    %1387 = arith.addf %1384, %1386 : vector<8x32xf32>
    %1388 = arith.addf %1378, %1387 : vector<8x32xf32>
    %1389 = vector.extract_strided_slice %48 {offsets = [1, 0], sizes = [1, 32], strides = [1, 1]} : vector<3x32xf32> to vector<1x32xf32>
    %1390 = vector.extract_strided_slice %48 {offsets = [2, 0], sizes = [1, 32], strides = [1, 1]} : vector<3x32xf32> to vector<1x32xf32>
    %cst_426 = arith.constant dense<0.000000e+00> : vector<8xf32>
    %1391 = vector.multi_reduction <add>, %1388, %cst_426 [1] : vector<8x32xf32> to vector<8xf32>
    %1392 = vector.shape_cast %1391 : vector<8xf32> to vector<8x1xf32>
    %cst_427 = arith.constant 3.200000e+01 : f32
    %1393 = vector.broadcast %cst_427 : f32 to vector<8x1xf32>
    %1394 = arith.divf %1392, %1393 : vector<8x1xf32>
    %1395 = vector.broadcast %1394 : vector<8x1xf32> to vector<8x32xf32>
    %1396 = arith.subf %1388, %1395 : vector<8x32xf32>
    %1397 = arith.mulf %1396, %1396 : vector<8x32xf32>
    %cst_428 = arith.constant dense<0.000000e+00> : vector<8xf32>
    %1398 = vector.multi_reduction <add>, %1397, %cst_428 [1] : vector<8x32xf32> to vector<8xf32>
    %1399 = vector.shape_cast %1398 : vector<8xf32> to vector<8x1xf32>
    %cst_429 = arith.constant 3.200000e+01 : f32
    %1400 = vector.broadcast %cst_429 : f32 to vector<8x1xf32>
    %1401 = arith.divf %1399, %1400 : vector<8x1xf32>
    %cst_430 = arith.constant 9.99999974E-6 : f32
    %1402 = vector.broadcast %cst_430 : f32 to vector<8x1xf32>
    %1403 = arith.addf %1401, %1402 : vector<8x1xf32>
    %1404 = math.rsqrt %1403 : vector<8x1xf32>
    %1405 = vector.broadcast %1404 : vector<8x1xf32> to vector<8x32xf32>
    %1406 = arith.mulf %1396, %1405 : vector<8x32xf32>
    %1407 = vector.broadcast %1389 : vector<1x32xf32> to vector<8x32xf32>
    %1408 = arith.mulf %1406, %1407 : vector<8x32xf32>
    %1409 = vector.broadcast %1390 : vector<1x32xf32> to vector<8x32xf32>
    %1410 = arith.addf %1408, %1409 : vector<8x32xf32>
    %1411 = vector.extract_strided_slice %4 {offsets = [0, 0], sizes = [1, 32], strides = [1, 1]} : vector<4x32xf32> to vector<1x32xf32>
    %1412 = vector.extract_strided_slice %4 {offsets = [1, 0], sizes = [1, 32], strides = [1, 1]} : vector<4x32xf32> to vector<1x32xf32>
    %cst_431 = arith.constant dense<0.000000e+00> : vector<8xf32>
    %1413 = vector.multi_reduction <add>, %1410, %cst_431 [1] : vector<8x32xf32> to vector<8xf32>
    %1414 = vector.shape_cast %1413 : vector<8xf32> to vector<8x1xf32>
    %cst_432 = arith.constant 3.200000e+01 : f32
    %1415 = vector.broadcast %cst_432 : f32 to vector<8x1xf32>
    %1416 = arith.divf %1414, %1415 : vector<8x1xf32>
    %1417 = vector.broadcast %1416 : vector<8x1xf32> to vector<8x32xf32>
    %1418 = arith.subf %1410, %1417 : vector<8x32xf32>
    %1419 = arith.mulf %1418, %1418 : vector<8x32xf32>
    %cst_433 = arith.constant dense<0.000000e+00> : vector<8xf32>
    %1420 = vector.multi_reduction <add>, %1419, %cst_433 [1] : vector<8x32xf32> to vector<8xf32>
    %1421 = vector.shape_cast %1420 : vector<8xf32> to vector<8x1xf32>
    %cst_434 = arith.constant 3.200000e+01 : f32
    %1422 = vector.broadcast %cst_434 : f32 to vector<8x1xf32>
    %1423 = arith.divf %1421, %1422 : vector<8x1xf32>
    %cst_435 = arith.constant 9.99999974E-6 : f32
    %1424 = vector.broadcast %cst_435 : f32 to vector<8x1xf32>
    %1425 = arith.addf %1423, %1424 : vector<8x1xf32>
    %1426 = math.rsqrt %1425 : vector<8x1xf32>
    %1427 = vector.broadcast %1426 : vector<8x1xf32> to vector<8x32xf32>
    %1428 = arith.mulf %1418, %1427 : vector<8x32xf32>
    %1429 = vector.broadcast %1411 : vector<1x32xf32> to vector<8x32xf32>
    %1430 = arith.mulf %1428, %1429 : vector<8x32xf32>
    %1431 = vector.broadcast %1412 : vector<1x32xf32> to vector<8x32xf32>
    %1432 = arith.addf %1430, %1431 : vector<8x32xf32>
    %cst_436 = arith.constant dense<0.000000e+00> : vector<8x32xf32>
    %1433 = tpu.matmul %1432, %1, %cst_436 {dimension_numbers = #tpu.dot_dimension_numbers<[1], [0], [0], [1], [0, 0, 1, 1], [], []>} : vector<8x32xf32>, vector<32x32xf32>, vector<8x32xf32> -> vector<8x32xf32>
    %1434 = vector.extract_strided_slice %4 {offsets = [2, 0], sizes = [1, 32], strides = [1, 1]} : vector<4x32xf32> to vector<1x32xf32>
    %1435 = vector.broadcast %1434 : vector<1x32xf32> to vector<8x32xf32>
    %1436 = arith.addf %1433, %1435 : vector<8x32xf32>
    %cst_437 = arith.constant 0.000000e+00 : f32
    %1437 = vector.broadcast %cst_437 : f32 to vector<8x32xf32>
    %1438 = arith.maximumf %1436, %1437 : vector<8x32xf32>
    %cst_438 = arith.constant dense<0.000000e+00> : vector<8x32xf32>
    %1439 = tpu.matmul %1438, %2, %cst_438 {dimension_numbers = #tpu.dot_dimension_numbers<[1], [0], [0], [1], [0, 0, 1, 1], [], []>} : vector<8x32xf32>, vector<32x32xf32>, vector<8x32xf32> -> vector<8x32xf32>
    %1440 = vector.extract_strided_slice %4 {offsets = [3, 0], sizes = [1, 32], strides = [1, 1]} : vector<4x32xf32> to vector<1x32xf32>
    %1441 = vector.broadcast %1440 : vector<1x32xf32> to vector<8x32xf32>
    %1442 = arith.addf %1439, %1441 : vector<8x32xf32>
    %cst_439 = arith.constant 0.000000e+00 : f32
    %1443 = vector.broadcast %cst_439 : f32 to vector<8x32xf32>
    %1444 = arith.maximumf %1442, %1443 : vector<8x32xf32>
    %cst_440 = arith.constant dense<0.000000e+00> : vector<8x32xf32>
    %1445 = tpu.matmul %1444, %3, %cst_440 {dimension_numbers = #tpu.dot_dimension_numbers<[1], [0], [0], [1], [0, 0, 1, 1], [], []>} : vector<8x32xf32>, vector<32x32xf32>, vector<8x32xf32> -> vector<8x32xf32>
    %1446 = vector.broadcast %5 : vector<1x32xf32> to vector<8x32xf32>
    %1447 = arith.addf %1445, %1446 : vector<8x32xf32>
    %cst_441 = arith.constant dense<0.000000e+00> : vector<8x64xf32>
    %1448 = tpu.matmul %1447, %752, %cst_441 {dimension_numbers = #tpu.dot_dimension_numbers<[1], [0], [0], [1], [0, 0, 1, 1], [], []>} : vector<8x32xf32>, vector<32x64xf32>, vector<8x64xf32> -> vector<8x64xf32>
    %1449 = tpu.concatenate %748, %1448 in 1 : vector<8x64xf32>, vector<8x64xf32> -> vector<8x128xf32>
    %c0_442 = arith.constant 0 : index
    %c0_443 = arith.constant 0 : index
    %1450 = vector.load %arg4[%c0_442, %c0_443] : memref<8x128xf32, #tpu.memory_space<vmem>>, vector<8x128xf32>
    tpu.vector_store %arg4[%c0_442, %c0_443], %1449 {strides = array<i32>} : memref<8x128xf32, #tpu.memory_space<vmem>>, vector<8x128xf32>,
    return
  }
}

</mosaic_0001>

<llo_original>
// kernel: forward.1
$region0: #{forward.1}
  #allocation0 [shape = 'u32[]', space=smem, size = 0x4, offset = 0x4, fixed_abs, tag = 'smem constant byte address 0x4 - core index']
  #allocation1 [shape = 'u32[72,128]{1,0:T(1,128)}', space=vmem, size = 0x9000, scoped, tag = 'internal scratch']
  %s0 = inlined_call_operand.vmem [shape: f32[2,16,96], index: 0, kind: input, shape index: {}]
  %s1 = inlined_call_operand.vmem [shape: f32[2,32,64], index: 1, kind: input, shape index: {}]
  %s2 = inlined_call_operand.vmem [shape: f32[1080,32], index: 2, kind: input, shape index: {}]
  %s3 = inlined_call_operand.vmem [shape: f32[304,96], index: 3, kind: input, shape index: {}]
  %s4 = inlined_call_operand.vmem [shape: f32[8,128], index: 4, kind: output, shape index: {}]
  %s5 = sld [smem:[#allocation0]]
  $region26: #{forward.1} parent=0
    _
  %s7 = ssub.s32 1, %s5
  %s8 = scalar_select 0, %s7, %s5
  // Predicated region
  $region2: #{forward.1} parent=0 // pred_check
    _
  $region3: #{forward.1} parent=0 // pred_check_branch
    %10 = sbr.rel (0) target = $region5
  $region4: #{forward.1} parent=0 // pred_region
    _
  $region5: #{forward.1} parent=0 // pred_fallthru
    _
  // Predicated region
  $region6: #{forward.1} parent=0 // pred_check
    _
  $region7: #{forward.1} parent=0 // pred_check_branch
    %12 = sbr.rel (0) target = $region9
  $region8: #{forward.1} parent=0 // pred_region
    _
  $region9: #{forward.1} parent=0 // pred_fallthru
    _
  // Predicated region
  $region10: #{forward.1} parent=0 // pred_check
    _
  $region11: #{forward.1} parent=0 // pred_check_branch
    %14 = sbr.rel (0) target = $region13
  $region12: #{forward.1} parent=0 // pred_region
    _
  $region13: #{forward.1} parent=0 // pred_fallthru
    _
  // Predicated region
  $region14: #{forward.1} parent=0 // pred_check
    _
  $region15: #{forward.1} parent=0 // pred_check_branch
    %16 = sbr.rel (0) target = $region17
  $region16: #{forward.1} parent=0 // pred_region
    _
  $region17: #{forward.1} parent=0 // pred_fallthru
    _
  %v17 = vld [vmem:[%s2] sm:$0xff]
  %v18 = vld [vmem:[%s2 + $0x8] sm:$0xff]
  %v19 = vld [vmem:[%s2 + $0x10] sm:$0xff]
  %v20 = vld [vmem:[%s2 + $0x18] sm:$0xff]
  %v21 = vld [vmem:[%s2 + $0x20] sm:$0xff]
  %v22 = vld [vmem:[%s2 + $0x28] sm:$0xff]
  %v23 = vld [vmem:[%s2 + $0x30] sm:$0xff]
  %v24 = vld [vmem:[%s2 + $0x38] sm:$0xff]
  %v25 = vld [vmem:[%s2 + $0x40] sm:$0xff]
  %v26 = vld [vmem:[%s2 + $0x48] sm:$0xff]
  %v27 = vld [vmem:[%s2 + $0x50] sm:$0xff]
  %v28 = vld [vmem:[%s2 + $0x58] sm:$0xff]
  %v29 = vld [vmem:[%s2 + $0x60] sm:$0xff]
  %v30 = vld [vmem:[%s2 + $0x68] sm:$0xf]
  %v31 = vld [vmem:[%s2 + $0x70] sm:$0x1]
  %v32 = vld [vmem:[%s2 + $0x78] sm:$0xff]
  %v33 = vld [vmem:[%s2 + $0x80] sm:$0xff]
  %v34 = vld [vmem:[%s2 + $0x88] sm:$0xff]
  %v35 = vld [vmem:[%s2 + $0x90] sm:$0xff]
  %v36 = vld [vmem:[%s2 + $0x98] sm:$0xff]
  %v37 = vld [vmem:[%s2 + $0xa0] sm:$0xff]
  %v38 = vld [vmem:[%s2 + $0xa8] sm:$0xff]
  %v39 = vld [vmem:[%s2 + $0xb0] sm:$0xff]
  %v40 = vld [vmem:[%s2 + $0xb8] sm:$0xff]
  %v41 = vld [vmem:[%s2 + $0xc0] sm:$0xff]
  %v42 = vld [vmem:[%s2 + $0xc8] sm:$0xff]
  %v43 = vld [vmem:[%s2 + $0xd0] sm:$0xff]
  %v44 = vld [vmem:[%s2 + $0xd8] sm:$0xff]
  %v45 = vld [vmem:[%s2 + $0xe0] sm:$0xff]
  %v46 = vld [vmem:[%s2 + $0xe8] sm:$0xff]
  %v47 = vld [vmem:[%s2 + $0xf0] sm:$0xff]
  %v48 = vld [vmem:[%s2 + $0xf8] sm:$0xff]
  %v49 = vld [vmem:[%s2 + $0x100] sm:$0xff]
  %v50 = vld [vmem:[%s2 + $0x108] sm:$0xff]
  %v51 = vld [vmem:[%s2 + $0x110] sm:$0xff]
  %v52 = vld [vmem:[%s2 + $0x118] sm:$0xff]
  %v53 = vld [vmem:[%s3] sm:$0xff]
  %v54 = vld [vmem:[%s3 + $0x8] sm:$0xff]
  %v55 = vld [vmem:[%s3 + $0x10] sm:$0xff]
  %v56 = vld [vmem:[%s3 + $0x18] sm:$0xff]
  %v57 = vld [vmem:[%s3 + $0x20] sm:$0xff]
  %v58 = vld [vmem:[%s3 + $0x28] sm:$0xff]
  %v59 = vld [vmem:[%s3 + $0x30] sm:$0xff]
  %v60 = vld [vmem:[%s3 + $0x38] sm:$0xff]
  %v61 = vld [vmem:[%s2 + $0x120] sm:$0xff]
  %v62 = vld [vmem:[%s2 + $0x128] sm:$0xff]
  %v63 = vld [vmem:[%s2 + $0x130] sm:$0xff]
  %v64 = vld [vmem:[%s2 + $0x138] sm:$0xff]
  %v65 = vld [vmem:[%s2 + $0x140] sm:$0x7]
  %v66 = vld [vmem:[%s3 + $0x40] sm:$0xff]
  %v67 = vld [vmem:[%s3 + $0x48] sm:$0xff]
  %v68 = vld [vmem:[%s3 + $0x50] sm:$0xff]
  %v69 = vld [vmem:[%s3 + $0x58] sm:$0xff]
  %v70 = vld [vmem:[%s3 + $0x60] sm:$0xff]
  %v71 = vld [vmem:[%s2 + $0x148] sm:$0xff]
  %v72 = vld [vmem:[%s2 + $0x150] sm:$0xff]
  %v73 = vld [vmem:[%s2 + $0x158] sm:$0xff]
  %v74 = vld [vmem:[%s2 + $0x160] sm:$0xff]
  %v75 = vld [vmem:[%s2 + $0x168] sm:$0x7]
  %v76 = vld [vmem:[%s3 + $0x68] sm:$0xff]
  %v77 = vld [vmem:[%s3 + $0x70] sm:$0xff]
  %v78 = vld [vmem:[%s3 + $0x78] sm:$0xff]
  %v79 = vld [vmem:[%s3 + $0x80] sm:$0xff]
  %v80 = vld [vmem:[%s3 + $0x88] sm:$0x1]
  %v81 = vld [vmem:[%s2 + $0x170] sm:$0xff]
  %v82 = vld [vmem:[%s2 + $0x178] sm:$0xff]
  %v83 = vld [vmem:[%s2 + $0x180] sm:$0xff]
  %v84 = vld [vmem:[%s2 + $0x188] sm:$0xff]
  %v85 = vld [vmem:[%s2 + $0x190] sm:$0xff]
  %v86 = vld [vmem:[%s2 + $0x198] sm:$0xff]
  %v87 = vld [vmem:[%s2 + $0x1a0] sm:$0xff]
  %v88 = vld [vmem:[%s2 + $0x1a8] sm:$0xff]
  %v89 = vld [vmem:[%s2 + $0x1b0] sm:$0x7]
  %v90 = vld [vmem:[%s2 + $0x1b8] sm:$0xff]
  %v91 = vld [vmem:[%s2 + $0x1c0] sm:$0xff]
  %v92 = vld [vmem:[%s2 + $0x1c8] sm:$0xff]
  %v93 = vld [vmem:[%s2 + $0x1d0] sm:$0xff]
  %v94 = vld [vmem:[%s2 + $0x1d8] sm:$0xff]
  %v95 = vld [vmem:[%s2 + $0x1e0] sm:$0xff]
  %v96 = vld [vmem:[%s2 + $0x1e8] sm:$0xff]
  %v97 = vld [vmem:[%s2 + $0x1f0] sm:$0xff]
  %v98 = vld [vmem:[%s2 + $0x1f8] sm:$0xff]
  %v99 = vld [vmem:[%s2 + $0x200] sm:$0xff]
  %v100 = vld [vmem:[%s2 + $0x208] sm:$0xff]
  %v101 = vld [vmem:[%s2 + $0x210] sm:$0xff]
  %v102 = vld [vmem:[%s2 + $0x218] sm:$0xff]
  %v103 = vld [vmem:[%s2 + $0x220] sm:$0xff]
  %v104 = vld [vmem:[%s2 + $0x228] sm:$0xff]
  %v105 = vld [vmem:[%s2 + $0x230] sm:$0xff]
  %v106 = vld [vmem:[%s2 + $0x238] sm:$0xff]
  %v107 = vld [vmem:[%s2 + $0x240] sm:$0xff]
  %v108 = vld [vmem:[%s2 + $0x248] sm:$0xff]
  %v109 = vld [vmem:[%s2 + $0x250] sm:$0xff]
  %v110 = vld [vmem:[%s2 + $0x258] sm:$0xff]
  %v111 = vld [vmem:[%s2 + $0x260] sm:$0xff]
  %v112 = vld [vmem:[%s2 + $0x268] sm:$0xff]
  %v113 = vld [vmem:[%s2 + $0x270] sm:$0xff]
  %v114 = vld [vmem:[%s2 + $0x278] sm:$0xff]
  %v115 = vld [vmem:[%s2 + $0x280] sm:$0x7]
  %v116 = vld [vmem:[%s3 + $0x90] sm:$0xff]
  %v117 = vld [vmem:[%s3 + $0x98] sm:$0xff]
  %v118 = vld [vmem:[%s3 + $0xa0] sm:$0xff]
  %v119 = vld [vmem:[%s3 + $0xa8] sm:$0xff]
  %v120 = vld [vmem:[%s3 + $0xb0] sm:$0xff]
  %v121 = vld [vmem:[%s2 + $0x288] sm:$0xff]
  %v122 = vld [vmem:[%s2 + $0x290] sm:$0xff]
  %v123 = vld [vmem:[%s2 + $0x298] sm:$0xff]
  %v124 = vld [vmem:[%s2 + $0x2a0] sm:$0xff]
  %v125 = vld [vmem:[%s2 + $0x2a8] sm:$0x7]
  %v126 = vld [vmem:[%s3 + $0xb8] sm:$0xff]
  %v127 = vld [vmem:[%s3 + $0xc0] sm:$0xff]
  %v128 = vld [vmem:[%s3 + $0xc8] sm:$0xff]
  %v129 = vld [vmem:[%s3 + $0xd0] sm:$0xff]
  %v130 = vld [vmem:[%s3 + $0xd8] sm:$0x1]
  %v131 = vld [vmem:[%s2 + $0x2b0] sm:$0xff]
  %v132 = vld [vmem:[%s2 + $0x2b8] sm:$0xff]
  %v133 = vld [vmem:[%s2 + $0x2c0] sm:$0xff]
  %v134 = vld [vmem:[%s2 + $0x2c8] sm:$0xff]
  %v135 = vld [vmem:[%s2 + $0x2d0] sm:$0xff]
  %v136 = vld [vmem:[%s2 + $0x2d8] sm:$0xff]
  %v137 = vld [vmem:[%s2 + $0x2e0] sm:$0xff]
  %v138 = vld [vmem:[%s2 + $0x2e8] sm:$0xff]
  %v139 = vld [vmem:[%s2 + $0x2f0] sm:$0x7]
  %v140 = vld [vmem:[%s2 + $0x2f8] sm:$0xff]
  %v141 = vld [vmem:[%s2 + $0x300] sm:$0xff]
  %v142 = vld [vmem:[%s2 + $0x308] sm:$0xff]
  %v143 = vld [vmem:[%s2 + $0x310] sm:$0xff]
  %v144 = vld [vmem:[%s2 + $0x318] sm:$0xff]
  %v145 = vld [vmem:[%s2 + $0x320] sm:$0xff]
  %v146 = vld [vmem:[%s2 + $0x328] sm:$0xff]
  %v147 = vld [vmem:[%s2 + $0x330] sm:$0xff]
  %v148 = vld [vmem:[%s2 + $0x338] sm:$0xff]
  %v149 = vld [vmem:[%s2 + $0x340] sm:$0xff]
  %v150 = vld [vmem:[%s2 + $0x348] sm:$0xff]
  %v151 = vld [vmem:[%s2 + $0x350] sm:$0xff]
  %v152 = vld [vmem:[%s2 + $0x358] sm:$0xff]
  %v153 = vld [vmem:[%s2 + $0x360] sm:$0xff]
  %v154 = vld [vmem:[%s2 + $0x368] sm:$0xff]
  %v155 = vld [vmem:[%s2 + $0x370] sm:$0xff]
  %v156 = vld [vmem:[%s2 + $0x378] sm:$0xff]
  %v157 = vld [vmem:[%s2 + $0x380] sm:$0xff]
  %v158 = vld [vmem:[%s2 + $0x388] sm:$0xff]
  %v159 = vld [vmem:[%s2 + $0x390] sm:$0xff]
  %v160 = vld [vmem:[%s2 + $0x398] sm:$0xff]
  %v161 = vld [vmem:[%s2 + $0x3a0] sm:$0xff]
  %v162 = vld [vmem:[%s2 + $0x3a8] sm:$0xff]
  %v163 = vld [vmem:[%s2 + $0x3b0] sm:$0xff]
  %v164 = vld [vmem:[%s2 + $0x3b8] sm:$0xff]
  %v165 = vld [vmem:[%s2 + $0x3c0] sm:$0x7]
  %v166 = vld [vmem:[%s3 + $0xe0] sm:$0xff]
  %v167 = vld [vmem:[%s3 + $0xe8] sm:$0xff]
  %v168 = vld [vmem:[%s3 + $0xf0] sm:$0xff]
  %v169 = vld [vmem:[%s3 + $0xf8] sm:$0xff]
  %v170 = vld [vmem:[%s3 + $0x100] sm:$0xff]
  %v171 = vld [vmem:[%s2 + $0x3c8] sm:$0xff]
  %v172 = vld [vmem:[%s2 + $0x3d0] sm:$0xff]
  %v173 = vld [vmem:[%s2 + $0x3d8] sm:$0xff]
  %v174 = vld [vmem:[%s2 + $0x3e0] sm:$0xff]
  %v175 = vld [vmem:[%s2 + $0x3e8] sm:$0x7]
  %v176 = vld [vmem:[%s3 + $0x108] sm:$0xff]
  %v177 = vld [vmem:[%s3 + $0x110] sm:$0xff]
  %v178 = vld [vmem:[%s3 + $0x118] sm:$0xff]
  %v179 = vld [vmem:[%s3 + $0x120] sm:$0xff]
  %v180 = vld [vmem:[%s3 + $0x128] sm:$0x1]
  %v181 = vld [vmem:[%s2 + $0x3f0] sm:$0xff]
  %v182 = vld [vmem:[%s2 + $0x3f8] sm:$0xff]
  %v183 = vld [vmem:[%s2 + $0x400] sm:$0xff]
  %v184 = vld [vmem:[%s2 + $0x408] sm:$0xff]
  %v185 = vld [vmem:[%s2 + $0x410] sm:$0xff]
  %v186 = vld [vmem:[%s2 + $0x418] sm:$0xff]
  %v187 = vld [vmem:[%s2 + $0x420] sm:$0xff]
  %v188 = vld [vmem:[%s2 + $0x428] sm:$0xff]
  %v189 = vld [vmem:[%s2 + $0x430] sm:$0x7]
  %v190 = vld [vmem:[%s0] sm:$0xff]
  %v191 = vld [vmem:[%s0 + $0x8] sm:$0xff]
  %v192 = vld [vmem:[%s1] sm:$0xff]
  %v193 = vld [vmem:[%s1 + $0x8] sm:$0xff]
  %v194 = vld [vmem:[%s1 + $0x10] sm:$0xff]
  %v195 = vld [vmem:[%s1 + $0x18] sm:$0xff]
  %vm196 = vcmask 523264
  %v198 = vsel %vm196, %v192, 0
  %v201 = vsel %vm196, %v193, 0
  %v204 = vsel %vm196, %v194, 0
  %v207 = vsel %vm196, %v195, 0
  %209 = vmatpush.msra.mxu0 0.0
  %210 = vmatpush.msra.mxu0 0.0
  %211 = vmatpush.msra.mxu0 0.0
  %212 = vmatpush.msra.mxu0 0.0
  %213 = vmatpush.msra.mxu0 0.0
  %214 = vmatpush.msra.mxu0 0.0
  %215 = vmatpush.msra.mxu0 0.0
  %216 = vmatpush.msra.mxu0 0.0
  %217 = vmatpush.msra.mxu0 %v39
  %218 = vmatpush.msra.mxu0 %v38
  %219 = vmatpush.msra.mxu0 %v37
  %220 = vmatpush.msra.mxu0 %v36
  %221 = vmatpush.msra.mxu0 %v35
  %222 = vmatpush.msra.mxu0 %v34
  %223 = vmatpush.msra.mxu0 %v33
  %224 = vmatpush.msra.mxu0 %v32
  %225 = vmatmul.f32.gmra.mxu0 %v198
  %v226 = vpop.f32.mrf.mxu0
  %v227 = vadd.f32 0.0, %v226
  %228 = vmatmul.f32.gmra.mxu0 %v201
  %v229 = vpop.f32.mrf.mxu0
  %v230 = vadd.f32 0.0, %v229
  %231 = vmatmul.f32.gmra.mxu0 %v204
  %v232 = vpop.f32.mrf.mxu0
  %v233 = vadd.f32 0.0, %v232
  %234 = vmatmul.f32.gmra.mxu0 %v207
  %v235 = vpop.f32.mrf.mxu0
  %v236 = vadd.f32 0.0, %v235
  %237 = vdwg.mxu0
  %vm238 = vcmask 261120
  %v239 = vsel %vm238, %v17, 0.0
  %240 = vadd.xlane.f32.xlu0 %v239
  %v241 = vpop.xlane.xlu0 %240
  %v242 = vrcp.pop 32.0
  %v243 = vmul.f32 32.0, %v242
  %v244 = vsub.f32 1.0, %v243
  %v245 = vmul.f32 %v242, %v244
  %v246 = vadd.f32 %v242, %v245
  %vm247 = vweird.f32 %v242
  %v248 = vsel %vm247, %v242, %v246
  %v249 = vmul.f32 %v241, %v248
  %v250 = vsub.f32 %v17, %v249
  %v251 = vmul.f32 %v250, %v250
  %v252 = vsel %vm238, %v251, 0.0
  %253 = vadd.xlane.f32.xlu0 %v252
  %v254 = vpop.xlane.xlu0 %253
  %v255 = vmul.f32 %v254, %v248
  %v256 = vadd.f32 %v255, 1e-05
  %v257 = vrsqrt.pop %v256
  %v258 = vmul.f32 %v257, %v256
  %v259 = vmul.f32 %v258, %v257
  %v260 = vmul.f32 0.5, %v259
  %v261 = vsub.f32 1.5, %v260
  %v262 = vmul.f32 %v257, %v261
  %vm263 = vweird.f32 %v256
  %vm264 = vweird.f32 %v257
  %vm265 = vmor %vm263, %vm264
  %v266 = vsel %vm265, %v257, %v262
  %v267 = vmul.f32 %v250, %v266
  %v268 = vperm.slane %v30, 0
  %v269 = vmul.f32 %v267, %v268
  %v270 = vperm.slane %v30, 1
  %v271 = vadd.f32 %v269, %v270
  %v272 = vperm.slane %v30, 2
  %v274 = vsel %vm238, %v271, 0
  %276 = vmatpush.msra.mxu0 0.0
  %277 = vmatpush.msra.mxu0 0.0
  %278 = vmatpush.msra.mxu0 0.0
  %279 = vmatpush.msra.mxu0 0.0
  %280 = vmatpush.msra.mxu0 0.0
  %281 = vmatpush.msra.mxu0 0.0
  %282 = vmatpush.msra.mxu0 0.0
  %283 = vmatpush.msra.mxu0 0.0
  %284 = vmatpush.msra.mxu0 0.0
  %285 = vmatpush.msra.mxu0 0.0
  %286 = vmatpush.msra.mxu0 0.0
  %287 = vmatpush.msra.mxu0 0.0
  %288 = vmatpush.msra.mxu0 %v21
  %289 = vmatpush.msra.mxu0 %v20
  %290 = vmatpush.msra.mxu0 %v19
  %291 = vmatpush.msra.mxu0 %v18
  %292 = vmatmul.f32.gmra.mxu0 %v274
  %v293 = vpop.f32.mrf.mxu0
  %v294 = vadd.f32 %v272, %v293
  %295 = vdwg.mxu0
  %v296 = vmax.f32 %v294, 0.0
  %v297 = vperm.slane %v30, 3
  %v299 = vsel %vm238, %v296, 0
  %301 = vmatpush.msra.mxu0 0.0
  %302 = vmatpush.msra.mxu0 0.0
  %303 = vmatpush.msra.mxu0 0.0
  %304 = vmatpush.msra.mxu0 0.0
  %305 = vmatpush.msra.mxu0 0.0
  %306 = vmatpush.msra.mxu0 0.0
  %307 = vmatpush.msra.mxu0 0.0
  %308 = vmatpush.msra.mxu0 0.0
  %309 = vmatpush.msra.mxu0 0.0
  %310 = vmatpush.msra.mxu0 0.0
  %311 = vmatpush.msra.mxu0 0.0
  %312 = vmatpush.msra.mxu0 0.0
  %313 = vmatpush.msra.mxu0 %v25
  %314 = vmatpush.msra.mxu0 %v24
  %315 = vmatpush.msra.mxu0 %v23
  %316 = vmatpush.msra.mxu0 %v22
  %317 = vmatmul.f32.gmra.mxu0 %v299
  %v318 = vpop.f32.mrf.mxu0
  %v319 = vadd.f32 %v297, %v318
  %320 = vdwg.mxu0
  %v321 = vmax.f32 %v319, 0.0
  %v322 = vperm.slane %v31, 0
  %v324 = vsel %vm238, %v321, 0
  %326 = vmatpush.msra.mxu0 0.0
  %327 = vmatpush.msra.mxu0 0.0
  %328 = vmatpush.msra.mxu0 0.0
  %329 = vmatpush.msra.mxu0 0.0
  %330 = vmatpush.msra.mxu0 0.0
  %331 = vmatpush.msra.mxu0 0.0
  %332 = vmatpush.msra.mxu0 0.0
  %333 = vmatpush.msra.mxu0 0.0
  %334 = vmatpush.msra.mxu0 0.0
  %335 = vmatpush.msra.mxu0 0.0
  %336 = vmatpush.msra.mxu0 0.0
  %337 = vmatpush.msra.mxu0 0.0
  %338 = vmatpush.msra.mxu0 %v29
  %339 = vmatpush.msra.mxu0 %v28
  %340 = vmatpush.msra.mxu0 %v27
  %341 = vmatpush.msra.mxu0 %v26
  %342 = vmatmul.f32.gmra.mxu0 %v324
  %v343 = vpop.f32.mrf.mxu0
  %v344 = vadd.f32 %v322, %v343
  %345 = vdwg.mxu0
  %v347 = vsel %vm238, %v344, 0
  %349 = vmatpush.msra.mxu0 0.0
  %350 = vmatpush.msra.mxu0 0.0
  %351 = vmatpush.msra.mxu0 0.0
  %352 = vmatpush.msra.mxu0 0.0
  %353 = vmatpush.msra.mxu0 0.0
  %354 = vmatpush.msra.mxu0 0.0
  %355 = vmatpush.msra.mxu0 0.0
  %356 = vmatpush.msra.mxu0 0.0
  %357 = vmatpush.msra.mxu0 0.0
  %358 = vmatpush.msra.mxu0 0.0
  %359 = vmatpush.msra.mxu0 0.0
  %360 = vmatpush.msra.mxu0 0.0
  %361 = vmatpush.msra.mxu0 %v195
  %362 = vmatpush.msra.mxu0 %v194
  %363 = vmatpush.msra.mxu0 %v193
  %364 = vmatpush.msra.mxu0 %v192
  %365 = vmatmul.f32.gmra.mxu0 %v347
  %v366 = vpop.f32.mrf.mxu0
  %v367 = vadd.f32 0.0, %v366
  %368 = vdwg.mxu0
  %v369 = vsel %vm196, %v367, -inf
  %370 = vmax.xlane.f32.xlu0 %v369
  %v371 = vpop.xlane.xlu0 %370
  %vm372 = vcmp.lt.f32.partialorder %v367, 0.0
  %vm373 = vcmp.ge.f32.partialorder %v371, 0.0
  %v374 = vsel %vm373, 1, 0
  %vm375 = vcmp.eq.s32.totalorder %v374, 1
  %vm376 = vmand %vm372, %vm375
  %v377 = vsel %vm376, -1e+09, 0.0
  %v379 = vsel %vm238, %v17, 0
  %381 = vmatpush.msra.mxu0 0.0
  %382 = vmatpush.msra.mxu0 0.0
  %383 = vmatpush.msra.mxu0 0.0
  %384 = vmatpush.msra.mxu0 0.0
  %385 = vmatpush.msra.mxu0 0.0
  %386 = vmatpush.msra.mxu0 0.0
  %387 = vmatpush.msra.mxu0 0.0
  %388 = vmatpush.msra.mxu0 0.0
  %389 = vmatpush.msra.mxu0 0.0
  %390 = vmatpush.msra.mxu0 0.0
  %391 = vmatpush.msra.mxu0 0.0
  %392 = vmatpush.msra.mxu0 0.0
  %393 = vmatpush.msra.mxu0 %v43
  %394 = vmatpush.msra.mxu0 %v42
  %395 = vmatpush.msra.mxu0 %v41
  %396 = vmatpush.msra.mxu0 %v40
  %397 = vmatmul.f32.gmra.mxu0 %v379
  %v398 = vpop.f32.mrf.mxu0
  %v399 = vadd.f32 %v44, %v398
  %400 = vdwg.mxu0
  %vm401 = vcmask 130048
  %v403 = vsel %vm401, %v45, 0
  %v406 = vsel %vm401, %v46, 0
  %v409 = vsel %vm401, %v47, 0
  %v412 = vsel %vm401, %v48, 0
  %v415 = vsel %vm401, %v49, 0
  %v418 = vsel %vm401, %v50, 0
  %v421 = vsel %vm401, %v51, 0
  %v424 = vsel %vm401, %v52, 0
  %426 = vmatpush.msra.mxu0 0.0
  %427 = vmatpush.msra.mxu0 0.0
  %428 = vmatpush.msra.mxu0 0.0
  %429 = vmatpush.msra.mxu0 0.0
  %430 = vmatpush.msra.mxu0 0.0
  %431 = vmatpush.msra.mxu0 0.0
  %432 = vmatpush.msra.mxu0 0.0
  %433 = vmatpush.msra.mxu0 0.0
  %434 = vmatpush.msra.mxu0 0.0
  %435 = vmatpush.msra.mxu0 0.0
  %436 = vmatpush.msra.mxu0 0.0
  %437 = vmatpush.msra.mxu0 0.0
  %438 = vmatpush.msra.mxu0 0.0
  %439 = vmatpush.msra.mxu0 0.0
  %440 = vmatpush.msra.mxu0 %v191
  %441 = vmatpush.msra.mxu0 %v190
  %442 = vmatmul.f32.gmra.mxu0 %v403
  %v443 = vpop.f32.mrf.mxu0
  %v444 = vadd.f32 %v53, %v443
  %445 = vmatmul.f32.gmra.mxu0 %v406
  %v446 = vpop.f32.mrf.mxu0
  %v447 = vadd.f32 %v54, %v446
  %448 = vmatmul.f32.gmra.mxu0 %v409
  %v449 = vpop.f32.mrf.mxu0
  %v450 = vadd.f32 %v55, %v449
  %451 = vmatmul.f32.gmra.mxu0 %v412
  %v452 = vpop.f32.mrf.mxu0
  %v453 = vadd.f32 %v56, %v452
  %454 = vmatmul.f32.gmra.mxu0 %v415
  %v455 = vpop.f32.mrf.mxu0
  %v456 = vadd.f32 %v57, %v455
  %457 = vmatmul.f32.gmra.mxu0 %v418
  %v458 = vpop.f32.mrf.mxu0
  %v459 = vadd.f32 %v58, %v458
  %460 = vmatmul.f32.gmra.mxu0 %v421
  %v461 = vpop.f32.mrf.mxu0
  %v462 = vadd.f32 %v59, %v461
  %463 = vmatmul.f32.gmra.mxu0 %v424
  %v464 = vpop.f32.mrf.mxu0
  %v465 = vadd.f32 %v60, %v464
  %466 = vdwg.mxu0
  %vm467 = vcmask 64512
  %v469 = vsel %vm467, %v399, 0
  %471 = vmatpush.msra.mxu0 0.0
  %472 = vmatpush.msra.mxu0 0.0
  %473 = vmatpush.msra.mxu0 0.0
  %474 = vmatpush.msra.mxu0 0.0
  %475 = vmatpush.msra.mxu0 0.0
  %476 = vmatpush.msra.mxu0 0.0
  %477 = vmatpush.msra.mxu0 0.0
  %478 = vmatpush.msra.mxu0 0.0
  %479 = vmatpush.msra.mxu0 0.0
  %480 = vmatpush.msra.mxu0 0.0
  %481 = vmatpush.msra.mxu0 0.0
  %482 = vmatpush.msra.mxu0 0.0
  %483 = vmatpush.msra.mxu0 0.0
  %484 = vmatpush.msra.mxu0 0.0
  %485 = vmatpush.msra.mxu0 0.0
  %486 = vmatpush.msra.mxu0 %v444
  %487 = vmatmul.f32.gmra.mxu0 %v469
  %v488 = vpop.f32.mrf.mxu0
  %v489 = vadd.f32 0.0, %v488
  %490 = vdwg.mxu0
  %491 = vrot.lane.b32.xlu0 %v399, 120
  %v492 = vpop.permute.xlu0 %491
  %v493 = vsel %vm467, %v492, 0
  %495 = vmatpush.msra.mxu0 0.0
  %496 = vmatpush.msra.mxu0 0.0
  %497 = vmatpush.msra.mxu0 0.0
  %498 = vmatpush.msra.mxu0 0.0
  %499 = vmatpush.msra.mxu0 0.0
  %500 = vmatpush.msra.mxu0 0.0
  %501 = vmatpush.msra.mxu0 0.0
  %502 = vmatpush.msra.mxu0 0.0
  %503 = vmatpush.msra.mxu0 0.0
  %504 = vmatpush.msra.mxu0 0.0
  %505 = vmatpush.msra.mxu0 0.0
  %506 = vmatpush.msra.mxu0 0.0
  %507 = vmatpush.msra.mxu0 0.0
  %508 = vmatpush.msra.mxu0 0.0
  %509 = vmatpush.msra.mxu0 0.0
  %510 = vmatpush.msra.mxu0 %v447
  %511 = vmatmul.f32.gmra.mxu0 %v493
  %v512 = vpop.f32.mrf.mxu0
  %v513 = vadd.f32 0.0, %v512
  %514 = vdwg.mxu0
  %515 = vrot.lane.b32.xlu0 %v399, 112
  %v516 = vpop.permute.xlu0 %515
  %v517 = vsel %vm467, %v516, 0
  %519 = vmatpush.msra.mxu0 0.0
  %520 = vmatpush.msra.mxu0 0.0
  %521 = vmatpush.msra.mxu0 0.0
  %522 = vmatpush.msra.mxu0 0.0
  %523 = vmatpush.msra.mxu0 0.0
  %524 = vmatpush.msra.mxu0 0.0
  %525 = vmatpush.msra.mxu0 0.0
  %526 = vmatpush.msra.mxu0 0.0
  %527 = vmatpush.msra.mxu0 0.0
  %528 = vmatpush.msra.mxu0 0.0
  %529 = vmatpush.msra.mxu0 0.0
  %530 = vmatpush.msra.mxu0 0.0
  %531 = vmatpush.msra.mxu0 0.0
  %532 = vmatpush.msra.mxu0 0.0
  %533 = vmatpush.msra.mxu0 0.0
  %534 = vmatpush.msra.mxu0 %v450
  %535 = vmatmul.f32.gmra.mxu0 %v517
  %v536 = vpop.f32.mrf.mxu0
  %v537 = vadd.f32 0.0, %v536
  %538 = vdwg.mxu0
  %539 = vrot.lane.b32.xlu0 %v399, 104
  %v540 = vpop.permute.xlu0 %539
  %v541 = vsel %vm467, %v540, 0
  %543 = vmatpush.msra.mxu0 0.0
  %544 = vmatpush.msra.mxu0 0.0
  %545 = vmatpush.msra.mxu0 0.0
  %546 = vmatpush.msra.mxu0 0.0
  %547 = vmatpush.msra.mxu0 0.0
  %548 = vmatpush.msra.mxu0 0.0
  %549 = vmatpush.msra.mxu0 0.0
  %550 = vmatpush.msra.mxu0 0.0
  %551 = vmatpush.msra.mxu0 0.0
  %552 = vmatpush.msra.mxu0 0.0
  %553 = vmatpush.msra.mxu0 0.0
  %554 = vmatpush.msra.mxu0 0.0
  %555 = vmatpush.msra.mxu0 0.0
  %556 = vmatpush.msra.mxu0 0.0
  %557 = vmatpush.msra.mxu0 0.0
  %558 = vmatpush.msra.mxu0 %v453
  %559 = vmatmul.f32.gmra.mxu0 %v541
  %v560 = vpop.f32.mrf.mxu0
  %v561 = vadd.f32 0.0, %v560
  %562 = vdwg.mxu0
  %v563 = vadd.f32 %v489, %v377
  %v564 = vadd.f32 %v513, %v377
  %v565 = vadd.f32 %v537, %v377
  %v566 = vadd.f32 %v561, %v377
  %v567 = vsel %vm196, %v563, -inf
  %568 = vmax.xlane.f32.xlu0 %v567
  %v569 = vpop.xlane.xlu0 %568
  %v570 = vsel %vm196, %v564, -inf
  %571 = vmax.xlane.f32.xlu0 %v570
  %v572 = vpop.xlane.xlu0 %571
  %v573 = vsel %vm196, %v565, -inf
  %574 = vmax.xlane.f32.xlu0 %v573
  %v575 = vpop.xlane.xlu0 %574
  %v576 = vsel %vm196, %v566, -inf
  %577 = vmax.xlane.f32.xlu0 %v576
  %v578 = vpop.xlane.xlu0 %577
  %v579 = vsub.f32 %v563, %v569
  %v580 = vsub.f32 %v564, %v572
  %v581 = vsub.f32 %v565, %v575
  %v582 = vsub.f32 %v566, %v578
  %v583 = vmul.f32 %v579, 1.442695
  %v584 = vpow.pop %v583
  %v585 = vmul.f32 %v580, 1.442695
  %v586 = vpow.pop %v585
  %v587 = vmul.f32 %v581, 1.442695
  %v588 = vpow.pop %v587
  %v589 = vmul.f32 %v582, 1.442695
  %v590 = vpow.pop %v589
  %v591 = vsel %vm196, %v584, 0.0
  %592 = vadd.xlane.f32.xlu0 %v591
  %v593 = vpop.xlane.xlu0 %592
  %v594 = vsel %vm196, %v586, 0.0
  %595 = vadd.xlane.f32.xlu0 %v594
  %v596 = vpop.xlane.xlu0 %595
  %v597 = vsel %vm196, %v588, 0.0
  %598 = vadd.xlane.f32.xlu0 %v597
  %v599 = vpop.xlane.xlu0 %598
  %v600 = vsel %vm196, %v590, 0.0
  %601 = vadd.xlane.f32.xlu0 %v600
  %v602 = vpop.xlane.xlu0 %601
  %v603 = vrcp.pop %v593
  %v604 = vmul.f32 %v593, %v603
  %v605 = vsub.f32 1.0, %v604
  %v606 = vmul.f32 %v603, %v605
  %v607 = vadd.f32 %v603, %v606
  %vm608 = vweird.f32 %v593
  %vm609 = vweird.f32 %v603
  %vm610 = vmor %vm608, %vm609
  %v611 = vsel %vm610, %v603, %v607
  %v612 = vand.u32 2147483647, %v593
  %vm613 = vcmp.eq.f32.partialorder %v612, 8.507059e+37
  %v614 = vand.u32 %v593, 2147483648
  %v615 = vor.u32 1.1754944e-38, %v614
  %v616 = vsel %vm613, %v615, %v611
  %v617 = vmul.f32 %v584, %v616
  %v618 = vrcp.pop %v596
  %v619 = vmul.f32 %v596, %v618
  %v620 = vsub.f32 1.0, %v619
  %v621 = vmul.f32 %v618, %v620
  %v622 = vadd.f32 %v618, %v621
  %vm623 = vweird.f32 %v596
  %vm624 = vweird.f32 %v618
  %vm625 = vmor %vm623, %vm624
  %v626 = vsel %vm625, %v618, %v622
  %v627 = vand.u32 2147483647, %v596
  %vm628 = vcmp.eq.f32.partialorder %v627, 8.507059e+37
  %v629 = vand.u32 %v596, 2147483648
  %v630 = vor.u32 1.1754944e-38, %v629
  %v631 = vsel %vm628, %v630, %v626
  %v632 = vmul.f32 %v586, %v631
  %v633 = vrcp.pop %v599
  %v634 = vmul.f32 %v599, %v633
  %v635 = vsub.f32 1.0, %v634
  %v636 = vmul.f32 %v633, %v635
  %v637 = vadd.f32 %v633, %v636
  %vm638 = vweird.f32 %v599
  %vm639 = vweird.f32 %v633
  %vm640 = vmor %vm638, %vm639
  %v641 = vsel %vm640, %v633, %v637
  %v642 = vand.u32 2147483647, %v599
  %vm643 = vcmp.eq.f32.partialorder %v642, 8.507059e+37
  %v644 = vand.u32 %v599, 2147483648
  %v645 = vor.u32 1.1754944e-38, %v644
  %v646 = vsel %vm643, %v645, %v641
  %v647 = vmul.f32 %v588, %v646
  %v648 = vrcp.pop %v602
  %v649 = vmul.f32 %v602, %v648
  %v650 = vsub.f32 1.0, %v649
  %v651 = vmul.f32 %v648, %v650
  %v652 = vadd.f32 %v648, %v651
  %vm653 = vweird.f32 %v602
  %vm654 = vweird.f32 %v648
  %vm655 = vmor %vm653, %vm654
  %v656 = vsel %vm655, %v648, %v652
  %v657 = vand.u32 2147483647, %v602
  %vm658 = vcmp.eq.f32.partialorder %v657, 8.507059e+37
  %v659 = vand.u32 %v602, 2147483648
  %v660 = vor.u32 1.1754944e-38, %v659
  %v661 = vsel %vm658, %v660, %v656
  %v662 = vmul.f32 %v590, %v661
  %v664 = vsel %vm196, %v617, 0
  %v667 = vsel %vm196, %v456, 0
  %669 = vmatpush.xpose.msra.mxu0 0.0
  %670 = vmatpush.xpose.msra.mxu0 0.0
  %671 = vmatpush.xpose.msra.mxu0 0.0
  %672 = vmatpush.xpose.msra.mxu0 0.0
  %673 = vmatpush.xpose.msra.mxu0 0.0
  %674 = vmatpush.xpose.msra.mxu0 0.0
  %675 = vmatpush.xpose.msra.mxu0 0.0
  %676 = vmatpush.xpose.msra.mxu0 0.0
  %677 = vmatpush.xpose.msra.mxu0 0.0
  %678 = vmatpush.xpose.msra.mxu0 0.0
  %679 = vmatpush.xpose.msra.mxu0 0.0
  %680 = vmatpush.xpose.msra.mxu0 0.0
  %681 = vmatpush.xpose.msra.mxu0 0.0
  %682 = vmatpush.xpose.msra.mxu0 0.0
  %683 = vmatpush.xpose.msra.mxu0 0.0
  %684 = vmatpush.xpose.msra.mxu0 %v667
  %685 = vmatmul.f32.gmra.mxu0 %v664
  %v686 = vpop.f32.mrf.mxu0
  %v687 = vadd.f32 0.0, %v686
  %688 = vdwg.mxu0
  %v690 = vsel %vm196, %v632, 0
  %v693 = vsel %vm196, %v459, 0
  %695 = vmatpush.xpose.msra.mxu0 0.0
  %696 = vmatpush.xpose.msra.mxu0 0.0
  %697 = vmatpush.xpose.msra.mxu0 0.0
  %698 = vmatpush.xpose.msra.mxu0 0.0
  %699 = vmatpush.xpose.msra.mxu0 0.0
  %700 = vmatpush.xpose.msra.mxu0 0.0
  %701 = vmatpush.xpose.msra.mxu0 0.0
  %702 = vmatpush.xpose.msra.mxu0 0.0
  %703 = vmatpush.xpose.msra.mxu0 0.0
  %704 = vmatpush.xpose.msra.mxu0 0.0
  %705 = vmatpush.xpose.msra.mxu0 0.0
  %706 = vmatpush.xpose.msra.mxu0 0.0
  %707 = vmatpush.xpose.msra.mxu0 0.0
  %708 = vmatpush.xpose.msra.mxu0 0.0
  %709 = vmatpush.xpose.msra.mxu0 0.0
  %710 = vmatpush.xpose.msra.mxu0 %v693
  %711 = vmatmul.f32.gmra.mxu0 %v690
  %v712 = vpop.f32.mrf.mxu0
  %v713 = vadd.f32 0.0, %v712
  %714 = vdwg.mxu0
  %v716 = vsel %vm196, %v647, 0
  %v719 = vsel %vm196, %v462, 0
  %721 = vmatpush.xpose.msra.mxu0 0.0
  %722 = vmatpush.xpose.msra.mxu0 0.0
  %723 = vmatpush.xpose.msra.mxu0 0.0
  %724 = vmatpush.xpose.msra.mxu0 0.0
  %725 = vmatpush.xpose.msra.mxu0 0.0
  %726 = vmatpush.xpose.msra.mxu0 0.0
  %727 = vmatpush.xpose.msra.mxu0 0.0
  %728 = vmatpush.xpose.msra.mxu0 0.0
  %729 = vmatpush.xpose.msra.mxu0 0.0
  %730 = vmatpush.xpose.msra.mxu0 0.0
  %731 = vmatpush.xpose.msra.mxu0 0.0
  %732 = vmatpush.xpose.msra.mxu0 0.0
  %733 = vmatpush.xpose.msra.mxu0 0.0
  %734 = vmatpush.xpose.msra.mxu0 0.0
  %735 = vmatpush.xpose.msra.mxu0 0.0
  %736 = vmatpush.xpose.msra.mxu0 %v719
  %737 = vmatmul.f32.gmra.mxu0 %v716
  %v738 = vpop.f32.mrf.mxu0
  %v739 = vadd.f32 0.0, %v738
  %740 = vdwg.mxu0
  %v742 = vsel %vm196, %v662, 0
  %v745 = vsel %vm196, %v465, 0
  %747 = vmatpush.xpose.msra.mxu0 0.0
  %748 = vmatpush.xpose.msra.mxu0 0.0
  %749 = vmatpush.xpose.msra.mxu0 0.0
  %750 = vmatpush.xpose.msra.mxu0 0.0
  %751 = vmatpush.xpose.msra.mxu0 0.0
  %752 = vmatpush.xpose.msra.mxu0 0.0
  %753 = vmatpush.xpose.msra.mxu0 0.0
  %754 = vmatpush.xpose.msra.mxu0 0.0
  %755 = vmatpush.xpose.msra.mxu0 0.0
  %756 = vmatpush.xpose.msra.mxu0 0.0
  %757 = vmatpush.xpose.msra.mxu0 0.0
  %758 = vmatpush.xpose.msra.mxu0 0.0
  %759 = vmatpush.xpose.msra.mxu0 0.0
  %760 = vmatpush.xpose.msra.mxu0 0.0
  %761 = vmatpush.xpose.msra.mxu0 0.0
  %762 = vmatpush.xpose.msra.mxu0 %v745
  %763 = vmatmul.f32.gmra.mxu0 %v742
  %v764 = vpop.f32.mrf.mxu0
  %v765 = vadd.f32 0.0, %v764
  %766 = vdwg.mxu0
  %768 = vrot.lane.b32.xlu0 %v713, 8
  %v769 = vpop.permute.xlu0 %768
  %772 = vrot.lane.b32.xlu0 %v739, 16
  %v773 = vpop.permute.xlu0 %772
  %776 = vrot.lane.b32.xlu0 %v765, 24
  %v777 = vpop.permute.xlu0 %776
  %v779 = vsel %vm467, %v687, %v769
  %v780 = vsel %vm401, %v779, %v773
  %vm781 = vcmask 195584
  %v782 = vsel %vm781, %v780, %v777
  %v784 = vsel %vm238, %v782, 0
  %786 = vmatpush.msra.mxu0 0.0
  %787 = vmatpush.msra.mxu0 0.0
  %788 = vmatpush.msra.mxu0 0.0
  %789 = vmatpush.msra.mxu0 0.0
  %790 = vmatpush.msra.mxu0 0.0
  %791 = vmatpush.msra.mxu0 0.0
  %792 = vmatpush.msra.mxu0 0.0
  %793 = vmatpush.msra.mxu0 0.0
  %794 = vmatpush.msra.mxu0 0.0
  %795 = vmatpush.msra.mxu0 0.0
  %796 = vmatpush.msra.mxu0 0.0
  %797 = vmatpush.msra.mxu0 0.0
  %798 = vmatpush.msra.mxu0 %v64
  %799 = vmatpush.msra.mxu0 %v63
  %800 = vmatpush.msra.mxu0 %v62
  %801 = vmatpush.msra.mxu0 %v61
  %802 = vmatmul.f32.gmra.mxu0 %v784
  %v803 = vpop.f32.mrf.mxu0
  %v804 = vadd.f32 0.0, %v803
  %805 = vdwg.mxu0
  %v806 = vadd.f32 %v17, %v804
  %v807 = vperm.slane %v65, 0
  %v808 = vadd.f32 %v806, %v807
  %v809 = vsel %vm238, %v808, 0.0
  %810 = vadd.xlane.f32.xlu0 %v809
  %v811 = vpop.xlane.xlu0 %810
  %v812 = vmul.f32 %v811, %v248
  %v813 = vsub.f32 %v808, %v812
  %v814 = vmul.f32 %v813, %v813
  %v815 = vsel %vm238, %v814, 0.0
  %816 = vadd.xlane.f32.xlu0 %v815
  %v817 = vpop.xlane.xlu0 %816
  %v818 = vmul.f32 %v817, %v248
  %v819 = vadd.f32 %v818, 1e-05
  %v820 = vrsqrt.pop %v819
  %v821 = vmul.f32 %v820, %v819
  %v822 = vmul.f32 %v821, %v820
  %v823 = vmul.f32 0.5, %v822
  %v824 = vsub.f32 1.5, %v823
  %v825 = vmul.f32 %v820, %v824
  %vm826 = vweird.f32 %v819
  %vm827 = vweird.f32 %v820
  %vm828 = vmor %vm826, %vm827
  %v829 = vsel %vm828, %v820, %v825
  %v830 = vmul.f32 %v813, %v829
  %v831 = vperm.slane %v65, 1
  %v832 = vmul.f32 %v830, %v831
  %v833 = vperm.slane %v65, 2
  %v834 = vadd.f32 %v832, %v833
  %v836 = vsel %vm238, %v834, 0
  %838 = vmatpush.msra.mxu0 0.0
  %839 = vmatpush.msra.mxu0 0.0
  %840 = vmatpush.msra.mxu0 0.0
  %841 = vmatpush.msra.mxu0 0.0
  %842 = vmatpush.msra.mxu0 0.0
  %843 = vmatpush.msra.mxu0 0.0
  %844 = vmatpush.msra.mxu0 0.0
  %845 = vmatpush.msra.mxu0 0.0
  %846 = vmatpush.msra.mxu0 0.0
  %847 = vmatpush.msra.mxu0 0.0
  %848 = vmatpush.msra.mxu0 0.0
  %849 = vmatpush.msra.mxu0 0.0
  %850 = vmatpush.msra.mxu0 %v69
  %851 = vmatpush.msra.mxu0 %v68
  %852 = vmatpush.msra.mxu0 %v67
  %853 = vmatpush.msra.mxu0 %v66
  %854 = vmatmul.f32.gmra.mxu0 %v836
  %v855 = vpop.f32.mrf.mxu0
  %v856 = vadd.f32 %v70, %v855
  %857 = vdwg.mxu0
  %859 = vrot.lane.b32.xlu0 %v856, 96
  %v860 = vpop.permute.xlu0 %859
  %v861 = vsel %vm467, %v856, 0
  %v863 = vsel %vm467, %v860, 0
  %865 = vmatpush.xpose.msra.mxu0 0.0
  %866 = vmatpush.xpose.msra.mxu0 0.0
  %867 = vmatpush.xpose.msra.mxu0 0.0
  %868 = vmatpush.xpose.msra.mxu0 0.0
  %869 = vmatpush.xpose.msra.mxu0 0.0
  %870 = vmatpush.xpose.msra.mxu0 0.0
  %871 = vmatpush.xpose.msra.mxu0 0.0
  %872 = vmatpush.xpose.msra.mxu0 0.0
  %873 = vmatpush.xpose.msra.mxu0 0.0
  %874 = vmatpush.xpose.msra.mxu0 0.0
  %875 = vmatpush.xpose.msra.mxu0 0.0
  %876 = vmatpush.xpose.msra.mxu0 0.0
  %877 = vmatpush.xpose.msra.mxu0 0.0
  %878 = vmatpush.xpose.msra.mxu0 0.0
  %879 = vmatpush.xpose.msra.mxu0 0.0
  %880 = vmatpush.xpose.msra.mxu0 %v863
  %881 = vmatmul.f32.gmra.mxu0 %v861
  %v882 = vpop.f32.mrf.mxu0
  %v883 = vadd.f32 0.0, %v882
  %884 = vdwg.mxu0
  %885 = vrot.lane.b32.xlu0 %v856, 120
  %v886 = vpop.permute.xlu0 %885
  %887 = vrot.lane.b32.xlu0 %v856, 88
  %v888 = vpop.permute.xlu0 %887
  %v889 = vsel %vm467, %v886, 0
  %v891 = vsel %vm467, %v888, 0
  %893 = vmatpush.xpose.msra.mxu0 0.0
  %894 = vmatpush.xpose.msra.mxu0 0.0
  %895 = vmatpush.xpose.msra.mxu0 0.0
  %896 = vmatpush.xpose.msra.mxu0 0.0
  %897 = vmatpush.xpose.msra.mxu0 0.0
  %898 = vmatpush.xpose.msra.mxu0 0.0
  %899 = vmatpush.xpose.msra.mxu0 0.0
  %900 = vmatpush.xpose.msra.mxu0 0.0
  %901 = vmatpush.xpose.msra.mxu0 0.0
  %902 = vmatpush.xpose.msra.mxu0 0.0
  %903 = vmatpush.xpose.msra.mxu0 0.0
  %904 = vmatpush.xpose.msra.mxu0 0.0
  %905 = vmatpush.xpose.msra.mxu0 0.0
  %906 = vmatpush.xpose.msra.mxu0 0.0
  %907 = vmatpush.xpose.msra.mxu0 0.0
  %908 = vmatpush.xpose.msra.mxu0 %v891
  %909 = vmatmul.f32.gmra.mxu0 %v889
  %v910 = vpop.f32.mrf.mxu0
  %v911 = vadd.f32 0.0, %v910
  %912 = vdwg.mxu0
  %913 = vrot.lane.b32.xlu0 %v856, 112
  %v914 = vpop.permute.xlu0 %913
  %915 = vrot.lane.b32.xlu0 %v856, 80
  %v916 = vpop.permute.xlu0 %915
  %v917 = vsel %vm467, %v914, 0
  %v919 = vsel %vm467, %v916, 0
  %921 = vmatpush.xpose.msra.mxu0 0.0
  %922 = vmatpush.xpose.msra.mxu0 0.0
  %923 = vmatpush.xpose.msra.mxu0 0.0
  %924 = vmatpush.xpose.msra.mxu0 0.0
  %925 = vmatpush.xpose.msra.mxu0 0.0
  %926 = vmatpush.xpose.msra.mxu0 0.0
  %927 = vmatpush.xpose.msra.mxu0 0.0
  %928 = vmatpush.xpose.msra.mxu0 0.0
  %929 = vmatpush.xpose.msra.mxu0 0.0
  %930 = vmatpush.xpose.msra.mxu0 0.0
  %931 = vmatpush.xpose.msra.mxu0 0.0
  %932 = vmatpush.xpose.msra.mxu0 0.0
  %933 = vmatpush.xpose.msra.mxu0 0.0
  %934 = vmatpush.xpose.msra.mxu0 0.0
  %935 = vmatpush.xpose.msra.mxu0 0.0
  %936 = vmatpush.xpose.msra.mxu0 %v919
  %937 = vmatmul.f32.gmra.mxu0 %v917
  %v938 = vpop.f32.mrf.mxu0
  %v939 = vadd.f32 0.0, %v938
  %940 = vdwg.mxu0
  %941 = vrot.lane.b32.xlu0 %v856, 104
  %v942 = vpop.permute.xlu0 %941
  %943 = vrot.lane.b32.xlu0 %v856, 72
  %v944 = vpop.permute.xlu0 %943
  %v945 = vsel %vm467, %v942, 0
  %v947 = vsel %vm467, %v944, 0
  %949 = vmatpush.xpose.msra.mxu0 0.0
  %950 = vmatpush.xpose.msra.mxu0 0.0
  %951 = vmatpush.xpose.msra.mxu0 0.0
  %952 = vmatpush.xpose.msra.mxu0 0.0
  %953 = vmatpush.xpose.msra.mxu0 0.0
  %954 = vmatpush.xpose.msra.mxu0 0.0
  %955 = vmatpush.xpose.msra.mxu0 0.0
  %956 = vmatpush.xpose.msra.mxu0 0.0
  %957 = vmatpush.xpose.msra.mxu0 0.0
  %958 = vmatpush.xpose.msra.mxu0 0.0
  %959 = vmatpush.xpose.msra.mxu0 0.0
  %960 = vmatpush.xpose.msra.mxu0 0.0
  %961 = vmatpush.xpose.msra.mxu0 0.0
  %962 = vmatpush.xpose.msra.mxu0 0.0
  %963 = vmatpush.xpose.msra.mxu0 0.0
  %964 = vmatpush.xpose.msra.mxu0 %v947
  %965 = vmatmul.f32.gmra.mxu0 %v945
  %v966 = vpop.f32.mrf.mxu0
  %v967 = vadd.f32 0.0, %v966
  %968 = vdwg.mxu0
  %v969 = vsel %vm467, %v883, -inf
  %970 = vmax.xlane.f32.xlu0 %v969
  %v971 = vpop.xlane.xlu0 %970
  %v972 = vsel %vm467, %v911, -inf
  %973 = vmax.xlane.f32.xlu0 %v972
  %v974 = vpop.xlane.xlu0 %973
  %v975 = vsel %vm467, %v939, -inf
  %976 = vmax.xlane.f32.xlu0 %v975
  %v977 = vpop.xlane.xlu0 %976
  %v978 = vsel %vm467, %v967, -inf
  %979 = vmax.xlane.f32.xlu0 %v978
  %v980 = vpop.xlane.xlu0 %979
  %v981 = vsub.f32 %v883, %v971
  %v982 = vsub.f32 %v911, %v974
  %v983 = vsub.f32 %v939, %v977
  %v984 = vsub.f32 %v967, %v980
  %v985 = vmul.f32 %v981, 1.442695
  %v986 = vpow.pop %v985
  %v987 = vmul.f32 %v982, 1.442695
  %v988 = vpow.pop %v987
  %v989 = vmul.f32 %v983, 1.442695
  %v990 = vpow.pop %v989
  %v991 = vmul.f32 %v984, 1.442695
  %v992 = vpow.pop %v991
  %v993 = vsel %vm467, %v986, 0.0
  %994 = vadd.xlane.f32.xlu0 %v993
  %v995 = vpop.xlane.xlu0 %994
  %v996 = vsel %vm467, %v988, 0.0
  %997 = vadd.xlane.f32.xlu0 %v996
  %v998 = vpop.xlane.xlu0 %997
  %v999 = vsel %vm467, %v990, 0.0
  %1000 = vadd.xlane.f32.xlu0 %v999
  %v1001 = vpop.xlane.xlu0 %1000
  %v1002 = vsel %vm467, %v992, 0.0
  %1003 = vadd.xlane.f32.xlu0 %v1002
  %v1004 = vpop.xlane.xlu0 %1003
  %v1005 = vrcp.pop %v995
  %v1006 = vmul.f32 %v995, %v1005
  %v1007 = vsub.f32 1.0, %v1006
  %v1008 = vmul.f32 %v1005, %v1007
  %v1009 = vadd.f32 %v1005, %v1008
  %vm1010 = vweird.f32 %v995
  %vm1011 = vweird.f32 %v1005
  %vm1012 = vmor %vm1010, %vm1011
  %v1013 = vsel %vm1012, %v1005, %v1009
  %v1014 = vand.u32 2147483647, %v995
  %vm1015 = vcmp.eq.f32.partialorder %v1014, 8.507059e+37
  %v1016 = vand.u32 %v995, 2147483648
  %v1017 = vor.u32 1.1754944e-38, %v1016
  %v1018 = vsel %vm1015, %v1017, %v1013
  %v1019 = vmul.f32 %v986, %v1018
  %v1020 = vrcp.pop %v998
  %v1021 = vmul.f32 %v998, %v1020
  %v1022 = vsub.f32 1.0, %v1021
  %v1023 = vmul.f32 %v1020, %v1022
  %v1024 = vadd.f32 %v1020, %v1023
  %vm1025 = vweird.f32 %v998
  %vm1026 = vweird.f32 %v1020
  %vm1027 = vmor %vm1025, %vm1026
  %v1028 = vsel %vm1027, %v1020, %v1024
  %v1029 = vand.u32 2147483647, %v998
  %vm1030 = vcmp.eq.f32.partialorder %v1029, 8.507059e+37
  %v1031 = vand.u32 %v998, 2147483648
  %v1032 = vor.u32 1.1754944e-38, %v1031
  %v1033 = vsel %vm1030, %v1032, %v1028
  %v1034 = vmul.f32 %v988, %v1033
  %v1035 = vrcp.pop %v1001
  %v1036 = vmul.f32 %v1001, %v1035
  %v1037 = vsub.f32 1.0, %v1036
  %v1038 = vmul.f32 %v1035, %v1037
  %v1039 = vadd.f32 %v1035, %v1038
  %vm1040 = vweird.f32 %v1001
  %vm1041 = vweird.f32 %v1035
  %vm1042 = vmor %vm1040, %vm1041
  %v1043 = vsel %vm1042, %v1035, %v1039
  %v1044 = vand.u32 2147483647, %v1001
  %vm1045 = vcmp.eq.f32.partialorder %v1044, 8.507059e+37
  %v1046 = vand.u32 %v1001, 2147483648
  %v1047 = vor.u32 1.1754944e-38, %v1046
  %v1048 = vsel %vm1045, %v1047, %v1043
  %v1049 = vmul.f32 %v990, %v1048
  %v1050 = vrcp.pop %v1004
  %v1051 = vmul.f32 %v1004, %v1050
  %v1052 = vsub.f32 1.0, %v1051
  %v1053 = vmul.f32 %v1050, %v1052
  %v1054 = vadd.f32 %v1050, %v1053
  %vm1055 = vweird.f32 %v1004
  %vm1056 = vweird.f32 %v1050
  %vm1057 = vmor %vm1055, %vm1056
  %v1058 = vsel %vm1057, %v1050, %v1054
  %v1059 = vand.u32 2147483647, %v1004
  %vm1060 = vcmp.eq.f32.partialorder %v1059, 8.507059e+37
  %v1061 = vand.u32 %v1004, 2147483648
  %v1062 = vor.u32 1.1754944e-38, %v1061
  %v1063 = vsel %vm1060, %v1062, %v1058
  %v1064 = vmul.f32 %v992, %v1063
  %1065 = vrot.lane.b32.xlu0 %v856, 64
  %v1066 = vpop.permute.xlu0 %1065
  %v1069 = vsel %vm467, %v1019, 0
  %1071 = vmatpush.msra.mxu0 0.0
  %1072 = vmatpush.msra.mxu0 0.0
  %1073 = vmatpush.msra.mxu0 0.0
  %1074 = vmatpush.msra.mxu0 0.0
  %1075 = vmatpush.msra.mxu0 0.0
  %1076 = vmatpush.msra.mxu0 0.0
  %1077 = vmatpush.msra.mxu0 0.0
  %1078 = vmatpush.msra.mxu0 0.0
  %1079 = vmatpush.msra.mxu0 0.0
  %1080 = vmatpush.msra.mxu0 0.0
  %1081 = vmatpush.msra.mxu0 0.0
  %1082 = vmatpush.msra.mxu0 0.0
  %1083 = vmatpush.msra.mxu0 0.0
  %1084 = vmatpush.msra.mxu0 0.0
  %1085 = vmatpush.msra.mxu0 0.0
  %1086 = vmatpush.msra.mxu0 %v1066
  %1087 = vmatmul.f32.gmra.mxu0 %v1069
  %v1088 = vpop.f32.mrf.mxu0
  %v1089 = vadd.f32 0.0, %v1088
  %1090 = vdwg.mxu0
  %1091 = vrot.lane.b32.xlu0 %v856, 56
  %v1092 = vpop.permute.xlu0 %1091
  %v1095 = vsel %vm467, %v1034, 0
  %1097 = vmatpush.msra.mxu0 0.0
  %1098 = vmatpush.msra.mxu0 0.0
  %1099 = vmatpush.msra.mxu0 0.0
  %1100 = vmatpush.msra.mxu0 0.0
  %1101 = vmatpush.msra.mxu0 0.0
  %1102 = vmatpush.msra.mxu0 0.0
  %1103 = vmatpush.msra.mxu0 0.0
  %1104 = vmatpush.msra.mxu0 0.0
  %1105 = vmatpush.msra.mxu0 0.0
  %1106 = vmatpush.msra.mxu0 0.0
  %1107 = vmatpush.msra.mxu0 0.0
  %1108 = vmatpush.msra.mxu0 0.0
  %1109 = vmatpush.msra.mxu0 0.0
  %1110 = vmatpush.msra.mxu0 0.0
  %1111 = vmatpush.msra.mxu0 0.0
  %1112 = vmatpush.msra.mxu0 %v1092
  %1113 = vmatmul.f32.gmra.mxu0 %v1095
  %v1114 = vpop.f32.mrf.mxu0
  %v1115 = vadd.f32 0.0, %v1114
  %1116 = vdwg.mxu0
  %1117 = vrot.lane.b32.xlu0 %v856, 48
  %v1118 = vpop.permute.xlu0 %1117
  %v1121 = vsel %vm467, %v1049, 0
  %1123 = vmatpush.msra.mxu0 0.0
  %1124 = vmatpush.msra.mxu0 0.0
  %1125 = vmatpush.msra.mxu0 0.0
  %1126 = vmatpush.msra.mxu0 0.0
  %1127 = vmatpush.msra.mxu0 0.0
  %1128 = vmatpush.msra.mxu0 0.0
  %1129 = vmatpush.msra.mxu0 0.0
  %1130 = vmatpush.msra.mxu0 0.0
  %1131 = vmatpush.msra.mxu0 0.0
  %1132 = vmatpush.msra.mxu0 0.0
  %1133 = vmatpush.msra.mxu0 0.0
  %1134 = vmatpush.msra.mxu0 0.0
  %1135 = vmatpush.msra.mxu0 0.0
  %1136 = vmatpush.msra.mxu0 0.0
  %1137 = vmatpush.msra.mxu0 0.0
  %1138 = vmatpush.msra.mxu0 %v1118
  %1139 = vmatmul.f32.gmra.mxu0 %v1121
  %v1140 = vpop.f32.mrf.mxu0
  %v1141 = vadd.f32 0.0, %v1140
  %1142 = vdwg.mxu0
  %1143 = vrot.lane.b32.xlu0 %v856, 40
  %v1144 = vpop.permute.xlu0 %1143
  %v1147 = vsel %vm467, %v1064, 0
  %1149 = vmatpush.msra.mxu0 0.0
  %1150 = vmatpush.msra.mxu0 0.0
  %1151 = vmatpush.msra.mxu0 0.0
  %1152 = vmatpush.msra.mxu0 0.0
  %1153 = vmatpush.msra.mxu0 0.0
  %1154 = vmatpush.msra.mxu0 0.0
  %1155 = vmatpush.msra.mxu0 0.0
  %1156 = vmatpush.msra.mxu0 0.0
  %1157 = vmatpush.msra.mxu0 0.0
  %1158 = vmatpush.msra.mxu0 0.0
  %1159 = vmatpush.msra.mxu0 0.0
  %1160 = vmatpush.msra.mxu0 0.0
  %1161 = vmatpush.msra.mxu0 0.0
  %1162 = vmatpush.msra.mxu0 0.0
  %1163 = vmatpush.msra.mxu0 0.0
  %1164 = vmatpush.msra.mxu0 %v1144
  %1165 = vmatmul.f32.gmra.mxu0 %v1147
  %v1166 = vpop.f32.mrf.mxu0
  %v1167 = vadd.f32 0.0, %v1166
  %1168 = vdwg.mxu0
  %1170 = vrot.lane.b32.xlu0 %v1115, 8
  %v1171 = vpop.permute.xlu0 %1170
  %1174 = vrot.lane.b32.xlu0 %v1141, 16
  %v1175 = vpop.permute.xlu0 %1174
  %1178 = vrot.lane.b32.xlu0 %v1167, 24
  %v1179 = vpop.permute.xlu0 %1178
  %v1181 = vsel %vm467, %v1089, %v1171
  %v1182 = vsel %vm401, %v1181, %v1175
  %v1183 = vsel %vm781, %v1182, %v1179
  %v1185 = vsel %vm238, %v1183, 0
  %1187 = vmatpush.msra.mxu0 0.0
  %1188 = vmatpush.msra.mxu0 0.0
  %1189 = vmatpush.msra.mxu0 0.0
  %1190 = vmatpush.msra.mxu0 0.0
  %1191 = vmatpush.msra.mxu0 0.0
  %1192 = vmatpush.msra.mxu0 0.0
  %1193 = vmatpush.msra.mxu0 0.0
  %1194 = vmatpush.msra.mxu0 0.0
  %1195 = vmatpush.msra.mxu0 0.0
  %1196 = vmatpush.msra.mxu0 0.0
  %1197 = vmatpush.msra.mxu0 0.0
  %1198 = vmatpush.msra.mxu0 0.0
  %1199 = vmatpush.msra.mxu0 %v74
  %1200 = vmatpush.msra.mxu0 %v73
  %1201 = vmatpush.msra.mxu0 %v72
  %1202 = vmatpush.msra.mxu0 %v71
  %1203 = vmatmul.f32.gmra.mxu0 %v1185
  %v1204 = vpop.f32.mrf.mxu0
  %v1205 = vadd.f32 0.0, %v1204
  %1206 = vdwg.mxu0
  %v1207 = vadd.f32 %v834, %v1205
  %v1208 = vperm.slane %v75, 0
  %v1209 = vadd.f32 %v1207, %v1208
  %v1210 = vsel %vm238, %v1209, 0.0
  %1211 = vadd.xlane.f32.xlu0 %v1210
  %v1212 = vpop.xlane.xlu0 %1211
  %v1213 = vmul.f32 %v1212, %v248
  %v1214 = vsub.f32 %v1209, %v1213
  %v1215 = vmul.f32 %v1214, %v1214
  %v1216 = vsel %vm238, %v1215, 0.0
  %1217 = vadd.xlane.f32.xlu0 %v1216
  %v1218 = vpop.xlane.xlu0 %1217
  %v1219 = vmul.f32 %v1218, %v248
  %v1220 = vadd.f32 %v1219, 1e-05
  %v1221 = vrsqrt.pop %v1220
  %v1222 = vmul.f32 %v1221, %v1220
  %v1223 = vmul.f32 %v1222, %v1221
  %v1224 = vmul.f32 0.5, %v1223
  %v1225 = vsub.f32 1.5, %v1224
  %v1226 = vmul.f32 %v1221, %v1225
  %vm1227 = vweird.f32 %v1220
  %vm1228 = vweird.f32 %v1221
  %vm1229 = vmor %vm1227, %vm1228
  %v1230 = vsel %vm1229, %v1221, %v1226
  %v1231 = vmul.f32 %v1214, %v1230
  %v1232 = vperm.slane %v75, 1
  %v1233 = vmul.f32 %v1231, %v1232
  %v1234 = vperm.slane %v75, 2
  %v1235 = vadd.f32 %v1233, %v1234
  %v1236 = vperm.slane %v80, 0
  %v1238 = vsel %vm238, %v1235, 0
  %1240 = vmatpush.msra.mxu0 0.0
  %1241 = vmatpush.msra.mxu0 0.0
  %1242 = vmatpush.msra.mxu0 0.0
  %1243 = vmatpush.msra.mxu0 0.0
  %1244 = vmatpush.msra.mxu0 0.0
  %1245 = vmatpush.msra.mxu0 0.0
  %1246 = vmatpush.msra.mxu0 0.0
  %1247 = vmatpush.msra.mxu0 0.0
  %1248 = vmatpush.msra.mxu0 0.0
  %1249 = vmatpush.msra.mxu0 0.0
  %1250 = vmatpush.msra.mxu0 0.0
  %1251 = vmatpush.msra.mxu0 0.0
  %1252 = vmatpush.msra.mxu0 %v79
  %1253 = vmatpush.msra.mxu0 %v78
  %1254 = vmatpush.msra.mxu0 %v77
  %1255 = vmatpush.msra.mxu0 %v76
  %1256 = vmatmul.f32.gmra.mxu0 %v1238
  %v1257 = vpop.f32.mrf.mxu0
  %v1258 = vadd.f32 %v1236, %v1257
  %1259 = vdwg.mxu0
  %v1260 = vmax.f32 %v1258, 0.0
  %v1261 = vperm.slane %v89, 0
  %v1263 = vsel %vm196, %v1260, 0
  %1265 = vmatpush.msra.mxu0 0.0
  %1266 = vmatpush.msra.mxu0 0.0
  %1267 = vmatpush.msra.mxu0 0.0
  %1268 = vmatpush.msra.mxu0 0.0
  %1269 = vmatpush.msra.mxu0 0.0
  %1270 = vmatpush.msra.mxu0 0.0
  %1271 = vmatpush.msra.mxu0 0.0
  %1272 = vmatpush.msra.mxu0 0.0
  %1273 = vmatpush.msra.mxu0 %v88
  %1274 = vmatpush.msra.mxu0 %v87
  %1275 = vmatpush.msra.mxu0 %v86
  %1276 = vmatpush.msra.mxu0 %v85
  %1277 = vmatpush.msra.mxu0 %v84
  %1278 = vmatpush.msra.mxu0 %v83
  %1279 = vmatpush.msra.mxu0 %v82
  %1280 = vmatpush.msra.mxu0 %v81
  %1281 = vmatmul.f32.gmra.mxu0 %v1263
  %v1282 = vpop.f32.mrf.mxu0
  %v1283 = vadd.f32 %v1261, %v1282
  %1284 = vdwg.mxu0
  %v1285 = vadd.f32 %v1235, %v1283
  %v1286 = vsel %vm238, %v1285, 0.0
  %1287 = vadd.xlane.f32.xlu0 %v1286
  %v1288 = vpop.xlane.xlu0 %1287
  %v1289 = vmul.f32 %v1288, %v248
  %v1290 = vsub.f32 %v1285, %v1289
  %v1291 = vmul.f32 %v1290, %v1290
  %v1292 = vsel %vm238, %v1291, 0.0
  %1293 = vadd.xlane.f32.xlu0 %v1292
  %v1294 = vpop.xlane.xlu0 %1293
  %v1295 = vmul.f32 %v1294, %v248
  %v1296 = vadd.f32 %v1295, 1e-05
  %v1297 = vrsqrt.pop %v1296
  %v1298 = vmul.f32 %v1297, %v1296
  %v1299 = vmul.f32 %v1298, %v1297
  %v1300 = vmul.f32 0.5, %v1299
  %v1301 = vsub.f32 1.5, %v1300
  %v1302 = vmul.f32 %v1297, %v1301
  %vm1303 = vweird.f32 %v1296
  %vm1304 = vweird.f32 %v1297
  %vm1305 = vmor %vm1303, %vm1304
  %v1306 = vsel %vm1305, %v1297, %v1302
  %v1307 = vmul.f32 %v1290, %v1306
  %v1308 = vperm.slane %v89, 1
  %v1309 = vmul.f32 %v1307, %v1308
  %v1310 = vperm.slane %v89, 2
  %v1311 = vadd.f32 %v1309, %v1310
  %v1312 = vsel %vm238, %v1311, 0.0
  %1313 = vadd.xlane.f32.xlu0 %v1312
  %v1314 = vpop.xlane.xlu0 %1313
  %v1315 = vmul.f32 %v1314, %v248
  %v1316 = vsub.f32 %v1311, %v1315
  %v1317 = vmul.f32 %v1316, %v1316
  %v1318 = vsel %vm238, %v1317, 0.0
  %1319 = vadd.xlane.f32.xlu0 %v1318
  %v1320 = vpop.xlane.xlu0 %1319
  %v1321 = vmul.f32 %v1320, %v248
  %v1322 = vadd.f32 %v1321, 1e-05
  %v1323 = vrsqrt.pop %v1322
  %v1324 = vmul.f32 %v1323, %v1322
  %v1325 = vmul.f32 %v1324, %v1323
  %v1326 = vmul.f32 0.5, %v1325
  %v1327 = vsub.f32 1.5, %v1326
  %v1328 = vmul.f32 %v1323, %v1327
  %vm1329 = vweird.f32 %v1322
  %vm1330 = vweird.f32 %v1323
  %vm1331 = vmor %vm1329, %vm1330
  %v1332 = vsel %vm1331, %v1323, %v1328
  %v1333 = vmul.f32 %v1316, %v1332
  %v1334 = vmul.f32 %v1333, %v268
  %v1335 = vadd.f32 %v1334, %v270
  %v1337 = vsel %vm238, %v1335, 0
  %1339 = vmatpush.msra.mxu0 0.0
  %1340 = vmatpush.msra.mxu0 0.0
  %1341 = vmatpush.msra.mxu0 0.0
  %1342 = vmatpush.msra.mxu0 0.0
  %1343 = vmatpush.msra.mxu0 0.0
  %1344 = vmatpush.msra.mxu0 0.0
  %1345 = vmatpush.msra.mxu0 0.0
  %1346 = vmatpush.msra.mxu0 0.0
  %1347 = vmatpush.msra.mxu0 0.0
  %1348 = vmatpush.msra.mxu0 0.0
  %1349 = vmatpush.msra.mxu0 0.0
  %1350 = vmatpush.msra.mxu0 0.0
  %1351 = vmatpush.msra.mxu0 %v21
  %1352 = vmatpush.msra.mxu0 %v20
  %1353 = vmatpush.msra.mxu0 %v19
  %1354 = vmatpush.msra.mxu0 %v18
  %1355 = vmatmul.f32.gmra.mxu0 %v1337
  %v1356 = vpop.f32.mrf.mxu0
  %v1357 = vadd.f32 %v272, %v1356
  %1358 = vdwg.mxu0
  %v1359 = vmax.f32 %v1357, 0.0
  %v1361 = vsel %vm238, %v1359, 0
  %1363 = vmatpush.msra.mxu0 0.0
  %1364 = vmatpush.msra.mxu0 0.0
  %1365 = vmatpush.msra.mxu0 0.0
  %1366 = vmatpush.msra.mxu0 0.0
  %1367 = vmatpush.msra.mxu0 0.0
  %1368 = vmatpush.msra.mxu0 0.0
  %1369 = vmatpush.msra.mxu0 0.0
  %1370 = vmatpush.msra.mxu0 0.0
  %1371 = vmatpush.msra.mxu0 0.0
  %1372 = vmatpush.msra.mxu0 0.0
  %1373 = vmatpush.msra.mxu0 0.0
  %1374 = vmatpush.msra.mxu0 0.0
  %1375 = vmatpush.msra.mxu0 %v25
  %1376 = vmatpush.msra.mxu0 %v24
  %1377 = vmatpush.msra.mxu0 %v23
  %1378 = vmatpush.msra.mxu0 %v22
  %1379 = vmatmul.f32.gmra.mxu0 %v1361
  %v1380 = vpop.f32.mrf.mxu0
  %v1381 = vadd.f32 %v297, %v1380
  %1382 = vdwg.mxu0
  %v1383 = vmax.f32 %v1381, 0.0
  %v1385 = vsel %vm238, %v1383, 0
  %1387 = vmatpush.msra.mxu0 0.0
  %1388 = vmatpush.msra.mxu0 0.0
  %1389 = vmatpush.msra.mxu0 0.0
  %1390 = vmatpush.msra.mxu0 0.0
  %1391 = vmatpush.msra.mxu0 0.0
  %1392 = vmatpush.msra.mxu0 0.0
  %1393 = vmatpush.msra.mxu0 0.0
  %1394 = vmatpush.msra.mxu0 0.0
  %1395 = vmatpush.msra.mxu0 0.0
  %1396 = vmatpush.msra.mxu0 0.0
  %1397 = vmatpush.msra.mxu0 0.0
  %1398 = vmatpush.msra.mxu0 0.0
  %1399 = vmatpush.msra.mxu0 %v29
  %1400 = vmatpush.msra.mxu0 %v28
  %1401 = vmatpush.msra.mxu0 %v27
  %1402 = vmatpush.msra.mxu0 %v26
  %1403 = vmatmul.f32.gmra.mxu0 %v1385
  %v1404 = vpop.f32.mrf.mxu0
  %v1405 = vadd.f32 %v322, %v1404
  %1406 = vdwg.mxu0
  %v1408 = vsel %vm238, %v1405, 0
  %1410 = vmatpush.msra.mxu0 0.0
  %1411 = vmatpush.msra.mxu0 0.0
  %1412 = vmatpush.msra.mxu0 0.0
  %1413 = vmatpush.msra.mxu0 0.0
  %1414 = vmatpush.msra.mxu0 0.0
  %1415 = vmatpush.msra.mxu0 0.0
  %1416 = vmatpush.msra.mxu0 0.0
  %1417 = vmatpush.msra.mxu0 0.0
  %1418 = vmatpush.msra.mxu0 0.0
  %1419 = vmatpush.msra.mxu0 0.0
  %1420 = vmatpush.msra.mxu0 0.0
  %1421 = vmatpush.msra.mxu0 0.0
  %1422 = vmatpush.msra.mxu0 %v236
  %1423 = vmatpush.msra.mxu0 %v233
  %1424 = vmatpush.msra.mxu0 %v230
  %1425 = vmatpush.msra.mxu0 %v227
  %1426 = vmatmul.f32.gmra.mxu0 %v1408
  %v1427 = vpop.f32.mrf.mxu0
  %v1428 = vadd.f32 0.0, %v1427
  %1429 = vdwg.mxu0
  %v1430 = vsel %vm401, %v1428, -inf
  %1431 = vmax.xlane.f32.xlu0 %v1430
  %v1432 = vpop.xlane.xlu0 %1431
  %vm1433 = vcmp.lt.f32.partialorder %v1428, 0.0
  %vm1434 = vcmp.ge.f32.partialorder %v1432, 0.0
  %v1435 = vsel %vm1434, 1, 0
  %vm1436 = vcmp.eq.s32.totalorder %v1435, 1
  %vm1437 = vmand %vm1433, %vm1436
  %v1438 = vsel %vm1437, -1e+09, 0.0
  %v1440 = vsel %vm238, %v1311, 0
  %1442 = vmatpush.msra.mxu0 0.0
  %1443 = vmatpush.msra.mxu0 0.0
  %1444 = vmatpush.msra.mxu0 0.0
  %1445 = vmatpush.msra.mxu0 0.0
  %1446 = vmatpush.msra.mxu0 0.0
  %1447 = vmatpush.msra.mxu0 0.0
  %1448 = vmatpush.msra.mxu0 0.0
  %1449 = vmatpush.msra.mxu0 0.0
  %1450 = vmatpush.msra.mxu0 0.0
  %1451 = vmatpush.msra.mxu0 0.0
  %1452 = vmatpush.msra.mxu0 0.0
  %1453 = vmatpush.msra.mxu0 0.0
  %1454 = vmatpush.msra.mxu0 %v93
  %1455 = vmatpush.msra.mxu0 %v92
  %1456 = vmatpush.msra.mxu0 %v91
  %1457 = vmatpush.msra.mxu0 %v90
  %1458 = vmatmul.f32.gmra.mxu0 %v1440
  %v1459 = vpop.f32.mrf.mxu0
  %v1460 = vadd.f32 %v94, %v1459
  %1461 = vdwg.mxu0
  %1464 = vrot.lane.b32.xlu0 %v190, 64
  %v1465 = vpop.permute.xlu0 %1464
  %1466 = vrot.lane.b32.xlu0 %v191, 64
  %v1467 = vpop.permute.xlu0 %1466
  %v1471 = vsel %vm401, %v95, 0
  %v1474 = vsel %vm401, %v96, 0
  %v1477 = vsel %vm401, %v97, 0
  %v1480 = vsel %vm401, %v98, 0
  %v1483 = vsel %vm401, %v99, 0
  %v1486 = vsel %vm401, %v100, 0
  %v1489 = vsel %vm401, %v101, 0
  %v1492 = vsel %vm401, %v102, 0
  %1494 = vmatpush.msra.mxu0 0.0
  %1495 = vmatpush.msra.mxu0 0.0
  %1496 = vmatpush.msra.mxu0 0.0
  %1497 = vmatpush.msra.mxu0 0.0
  %1498 = vmatpush.msra.mxu0 0.0
  %1499 = vmatpush.msra.mxu0 0.0
  %1500 = vmatpush.msra.mxu0 0.0
  %1501 = vmatpush.msra.mxu0 0.0
  %1502 = vmatpush.msra.mxu0 0.0
  %1503 = vmatpush.msra.mxu0 0.0
  %1504 = vmatpush.msra.mxu0 0.0
  %1505 = vmatpush.msra.mxu0 0.0
  %1506 = vmatpush.msra.mxu0 0.0
  %1507 = vmatpush.msra.mxu0 0.0
  %1508 = vmatpush.msra.mxu0 %v1467
  %1509 = vmatpush.msra.mxu0 %v1465
  %1510 = vmatmul.f32.gmra.mxu0 %v1471
  %v1511 = vpop.f32.mrf.mxu0
  %v1512 = vadd.f32 %v103, %v1511
  %1513 = vmatmul.f32.gmra.mxu0 %v1474
  %v1514 = vpop.f32.mrf.mxu0
  %v1515 = vadd.f32 %v104, %v1514
  %1516 = vmatmul.f32.gmra.mxu0 %v1477
  %v1517 = vpop.f32.mrf.mxu0
  %v1518 = vadd.f32 %v105, %v1517
  %1519 = vmatmul.f32.gmra.mxu0 %v1480
  %v1520 = vpop.f32.mrf.mxu0
  %v1521 = vadd.f32 %v106, %v1520
  %1522 = vmatmul.f32.gmra.mxu0 %v1483
  %v1523 = vpop.f32.mrf.mxu0
  %v1524 = vadd.f32 %v107, %v1523
  %1525 = vmatmul.f32.gmra.mxu0 %v1486
  %v1526 = vpop.f32.mrf.mxu0
  %v1527 = vadd.f32 %v108, %v1526
  %1528 = vmatmul.f32.gmra.mxu0 %v1489
  %v1529 = vpop.f32.mrf.mxu0
  %v1530 = vadd.f32 %v109, %v1529
  %1531 = vmatmul.f32.gmra.mxu0 %v1492
  %v1532 = vpop.f32.mrf.mxu0
  %v1533 = vadd.f32 %v110, %v1532
  %1534 = vdwg.mxu0
  %v1536 = vsel %vm467, %v1460, 0
  %1538 = vmatpush.msra.mxu0 0.0
  %1539 = vmatpush.msra.mxu0 0.0
  %1540 = vmatpush.msra.mxu0 0.0
  %1541 = vmatpush.msra.mxu0 0.0
  %1542 = vmatpush.msra.mxu0 0.0
  %1543 = vmatpush.msra.mxu0 0.0
  %1544 = vmatpush.msra.mxu0 0.0
  %1545 = vmatpush.msra.mxu0 0.0
  %1546 = vmatpush.msra.mxu0 0.0
  %1547 = vmatpush.msra.mxu0 0.0
  %1548 = vmatpush.msra.mxu0 0.0
  %1549 = vmatpush.msra.mxu0 0.0
  %1550 = vmatpush.msra.mxu0 0.0
  %1551 = vmatpush.msra.mxu0 0.0
  %1552 = vmatpush.msra.mxu0 0.0
  %1553 = vmatpush.msra.mxu0 %v1512
  %1554 = vmatmul.f32.gmra.mxu0 %v1536
  %v1555 = vpop.f32.mrf.mxu0
  %v1556 = vadd.f32 0.0, %v1555
  %1557 = vdwg.mxu0
  %1558 = vrot.lane.b32.xlu0 %v1460, 120
  %v1559 = vpop.permute.xlu0 %1558
  %v1560 = vsel %vm467, %v1559, 0
  %1562 = vmatpush.msra.mxu0 0.0
  %1563 = vmatpush.msra.mxu0 0.0
  %1564 = vmatpush.msra.mxu0 0.0
  %1565 = vmatpush.msra.mxu0 0.0
  %1566 = vmatpush.msra.mxu0 0.0
  %1567 = vmatpush.msra.mxu0 0.0
  %1568 = vmatpush.msra.mxu0 0.0
  %1569 = vmatpush.msra.mxu0 0.0
  %1570 = vmatpush.msra.mxu0 0.0
  %1571 = vmatpush.msra.mxu0 0.0
  %1572 = vmatpush.msra.mxu0 0.0
  %1573 = vmatpush.msra.mxu0 0.0
  %1574 = vmatpush.msra.mxu0 0.0
  %1575 = vmatpush.msra.mxu0 0.0
  %1576 = vmatpush.msra.mxu0 0.0
  %1577 = vmatpush.msra.mxu0 %v1515
  %1578 = vmatmul.f32.gmra.mxu0 %v1560
  %v1579 = vpop.f32.mrf.mxu0
  %v1580 = vadd.f32 0.0, %v1579
  %1581 = vdwg.mxu0
  %1582 = vrot.lane.b32.xlu0 %v1460, 112
  %v1583 = vpop.permute.xlu0 %1582
  %v1584 = vsel %vm467, %v1583, 0
  %1586 = vmatpush.msra.mxu0 0.0
  %1587 = vmatpush.msra.mxu0 0.0
  %1588 = vmatpush.msra.mxu0 0.0
  %1589 = vmatpush.msra.mxu0 0.0
  %1590 = vmatpush.msra.mxu0 0.0
  %1591 = vmatpush.msra.mxu0 0.0
  %1592 = vmatpush.msra.mxu0 0.0
  %1593 = vmatpush.msra.mxu0 0.0
  %1594 = vmatpush.msra.mxu0 0.0
  %1595 = vmatpush.msra.mxu0 0.0
  %1596 = vmatpush.msra.mxu0 0.0
  %1597 = vmatpush.msra.mxu0 0.0
  %1598 = vmatpush.msra.mxu0 0.0
  %1599 = vmatpush.msra.mxu0 0.0
  %1600 = vmatpush.msra.mxu0 0.0
  %1601 = vmatpush.msra.mxu0 %v1518
  %1602 = vmatmul.f32.gmra.mxu0 %v1584
  %v1603 = vpop.f32.mrf.mxu0
  %v1604 = vadd.f32 0.0, %v1603
  %1605 = vdwg.mxu0
  %1606 = vrot.lane.b32.xlu0 %v1460, 104
  %v1607 = vpop.permute.xlu0 %1606
  %v1608 = vsel %vm467, %v1607, 0
  %1610 = vmatpush.msra.mxu0 0.0
  %1611 = vmatpush.msra.mxu0 0.0
  %1612 = vmatpush.msra.mxu0 0.0
  %1613 = vmatpush.msra.mxu0 0.0
  %1614 = vmatpush.msra.mxu0 0.0
  %1615 = vmatpush.msra.mxu0 0.0
  %1616 = vmatpush.msra.mxu0 0.0
  %1617 = vmatpush.msra.mxu0 0.0
  %1618 = vmatpush.msra.mxu0 0.0
  %1619 = vmatpush.msra.mxu0 0.0
  %1620 = vmatpush.msra.mxu0 0.0
  %1621 = vmatpush.msra.mxu0 0.0
  %1622 = vmatpush.msra.mxu0 0.0
  %1623 = vmatpush.msra.mxu0 0.0
  %1624 = vmatpush.msra.mxu0 0.0
  %1625 = vmatpush.msra.mxu0 %v1521
  %1626 = vmatmul.f32.gmra.mxu0 %v1608
  %v1627 = vpop.f32.mrf.mxu0
  %v1628 = vadd.f32 0.0, %v1627
  %1629 = vdwg.mxu0
  %v1630 = vadd.f32 %v1556, %v1438
  %v1631 = vadd.f32 %v1580, %v1438
  %v1632 = vadd.f32 %v1604, %v1438
  %v1633 = vadd.f32 %v1628, %v1438
  %v1634 = vsel %vm401, %v1630, -inf
  %1635 = vmax.xlane.f32.xlu0 %v1634
  %v1636 = vpop.xlane.xlu0 %1635
  %v1637 = vsel %vm401, %v1631, -inf
  %1638 = vmax.xlane.f32.xlu0 %v1637
  %v1639 = vpop.xlane.xlu0 %1638
  %v1640 = vsel %vm401, %v1632, -inf
  %1641 = vmax.xlane.f32.xlu0 %v1640
  %v1642 = vpop.xlane.xlu0 %1641
  %v1643 = vsel %vm401, %v1633, -inf
  %1644 = vmax.xlane.f32.xlu0 %v1643
  %v1645 = vpop.xlane.xlu0 %1644
  %v1646 = vsub.f32 %v1630, %v1636
  %v1647 = vsub.f32 %v1631, %v1639
  %v1648 = vsub.f32 %v1632, %v1642
  %v1649 = vsub.f32 %v1633, %v1645
  %v1650 = vmul.f32 %v1646, 1.442695
  %v1651 = vpow.pop %v1650
  %v1652 = vmul.f32 %v1647, 1.442695
  %v1653 = vpow.pop %v1652
  %v1654 = vmul.f32 %v1648, 1.442695
  %v1655 = vpow.pop %v1654
  %v1656 = vmul.f32 %v1649, 1.442695
  %v1657 = vpow.pop %v1656
  %v1658 = vsel %vm401, %v1651, 0.0
  %1659 = vadd.xlane.f32.xlu0 %v1658
  %v1660 = vpop.xlane.xlu0 %1659
  %v1661 = vsel %vm401, %v1653, 0.0
  %1662 = vadd.xlane.f32.xlu0 %v1661
  %v1663 = vpop.xlane.xlu0 %1662
  %v1664 = vsel %vm401, %v1655, 0.0
  %1665 = vadd.xlane.f32.xlu0 %v1664
  %v1666 = vpop.xlane.xlu0 %1665
  %v1667 = vsel %vm401, %v1657, 0.0
  %1668 = vadd.xlane.f32.xlu0 %v1667
  %v1669 = vpop.xlane.xlu0 %1668
  %v1670 = vrcp.pop %v1660
  %v1671 = vmul.f32 %v1660, %v1670
  %v1672 = vsub.f32 1.0, %v1671
  %v1673 = vmul.f32 %v1670, %v1672
  %v1674 = vadd.f32 %v1670, %v1673
  %vm1675 = vweird.f32 %v1660
  %vm1676 = vweird.f32 %v1670
  %vm1677 = vmor %vm1675, %vm1676
  %v1678 = vsel %vm1677, %v1670, %v1674
  %v1679 = vand.u32 2147483647, %v1660
  %vm1680 = vcmp.eq.f32.partialorder %v1679, 8.507059e+37
  %v1681 = vand.u32 %v1660, 2147483648
  %v1682 = vor.u32 1.1754944e-38, %v1681
  %v1683 = vsel %vm1680, %v1682, %v1678
  %v1684 = vmul.f32 %v1651, %v1683
  %v1685 = vrcp.pop %v1663
  %v1686 = vmul.f32 %v1663, %v1685
  %v1687 = vsub.f32 1.0, %v1686
  %v1688 = vmul.f32 %v1685, %v1687
  %v1689 = vadd.f32 %v1685, %v1688
  %vm1690 = vweird.f32 %v1663
  %vm1691 = vweird.f32 %v1685
  %vm1692 = vmor %vm1690, %vm1691
  %v1693 = vsel %vm1692, %v1685, %v1689
  %v1694 = vand.u32 2147483647, %v1663
  %vm1695 = vcmp.eq.f32.partialorder %v1694, 8.507059e+37
  %v1696 = vand.u32 %v1663, 2147483648
  %v1697 = vor.u32 1.1754944e-38, %v1696
  %v1698 = vsel %vm1695, %v1697, %v1693
  %v1699 = vmul.f32 %v1653, %v1698
  %v1700 = vrcp.pop %v1666
  %v1701 = vmul.f32 %v1666, %v1700
  %v1702 = vsub.f32 1.0, %v1701
  %v1703 = vmul.f32 %v1700, %v1702
  %v1704 = vadd.f32 %v1700, %v1703
  %vm1705 = vweird.f32 %v1666
  %vm1706 = vweird.f32 %v1700
  %vm1707 = vmor %vm1705, %vm1706
  %v1708 = vsel %vm1707, %v1700, %v1704
  %v1709 = vand.u32 2147483647, %v1666
  %vm1710 = vcmp.eq.f32.partialorder %v1709, 8.507059e+37
  %v1711 = vand.u32 %v1666, 2147483648
  %v1712 = vor.u32 1.1754944e-38, %v1711
  %v1713 = vsel %vm1710, %v1712, %v1708
  %v1714 = vmul.f32 %v1655, %v1713
  %v1715 = vrcp.pop %v1669
  %v1716 = vmul.f32 %v1669, %v1715
  %v1717 = vsub.f32 1.0, %v1716
  %v1718 = vmul.f32 %v1715, %v1717
  %v1719 = vadd.f32 %v1715, %v1718
  %vm1720 = vweird.f32 %v1669
  %vm1721 = vweird.f32 %v1715
  %vm1722 = vmor %vm1720, %vm1721
  %v1723 = vsel %vm1722, %v1715, %v1719
  %v1724 = vand.u32 2147483647, %v1669
  %vm1725 = vcmp.eq.f32.partialorder %v1724, 8.507059e+37
  %v1726 = vand.u32 %v1669, 2147483648
  %v1727 = vor.u32 1.1754944e-38, %v1726
  %v1728 = vsel %vm1725, %v1727, %v1723
  %v1729 = vmul.f32 %v1657, %v1728
  %v1731 = vsel %vm401, %v1684, 0
  %v1734 = vsel %vm401, %v1524, 0
  %1736 = vmatpush.xpose.msra.mxu0 0.0
  %1737 = vmatpush.xpose.msra.mxu0 0.0
  %1738 = vmatpush.xpose.msra.mxu0 0.0
  %1739 = vmatpush.xpose.msra.mxu0 0.0
  %1740 = vmatpush.xpose.msra.mxu0 0.0
  %1741 = vmatpush.xpose.msra.mxu0 0.0
  %1742 = vmatpush.xpose.msra.mxu0 0.0
  %1743 = vmatpush.xpose.msra.mxu0 0.0
  %1744 = vmatpush.xpose.msra.mxu0 0.0
  %1745 = vmatpush.xpose.msra.mxu0 0.0
  %1746 = vmatpush.xpose.msra.mxu0 0.0
  %1747 = vmatpush.xpose.msra.mxu0 0.0
  %1748 = vmatpush.xpose.msra.mxu0 0.0
  %1749 = vmatpush.xpose.msra.mxu0 0.0
  %1750 = vmatpush.xpose.msra.mxu0 0.0
  %1751 = vmatpush.xpose.msra.mxu0 %v1734
  %1752 = vmatmul.f32.gmra.mxu0 %v1731
  %v1753 = vpop.f32.mrf.mxu0
  %v1754 = vadd.f32 0.0, %v1753
  %1755 = vdwg.mxu0
  %v1757 = vsel %vm401, %v1699, 0
  %v1760 = vsel %vm401, %v1527, 0
  %1762 = vmatpush.xpose.msra.mxu0 0.0
  %1763 = vmatpush.xpose.msra.mxu0 0.0
  %1764 = vmatpush.xpose.msra.mxu0 0.0
  %1765 = vmatpush.xpose.msra.mxu0 0.0
  %1766 = vmatpush.xpose.msra.mxu0 0.0
  %1767 = vmatpush.xpose.msra.mxu0 0.0
  %1768 = vmatpush.xpose.msra.mxu0 0.0
  %1769 = vmatpush.xpose.msra.mxu0 0.0
  %1770 = vmatpush.xpose.msra.mxu0 0.0
  %1771 = vmatpush.xpose.msra.mxu0 0.0
  %1772 = vmatpush.xpose.msra.mxu0 0.0
  %1773 = vmatpush.xpose.msra.mxu0 0.0
  %1774 = vmatpush.xpose.msra.mxu0 0.0
  %1775 = vmatpush.xpose.msra.mxu0 0.0
  %1776 = vmatpush.xpose.msra.mxu0 0.0
  %1777 = vmatpush.xpose.msra.mxu0 %v1760
  %1778 = vmatmul.f32.gmra.mxu0 %v1757
  %v1779 = vpop.f32.mrf.mxu0
  %v1780 = vadd.f32 0.0, %v1779
  %1781 = vdwg.mxu0
  %v1783 = vsel %vm401, %v1714, 0
  %v1786 = vsel %vm401, %v1530, 0
  %1788 = vmatpush.xpose.msra.mxu0 0.0
  %1789 = vmatpush.xpose.msra.mxu0 0.0
  %1790 = vmatpush.xpose.msra.mxu0 0.0
  %1791 = vmatpush.xpose.msra.mxu0 0.0
  %1792 = vmatpush.xpose.msra.mxu0 0.0
  %1793 = vmatpush.xpose.msra.mxu0 0.0
  %1794 = vmatpush.xpose.msra.mxu0 0.0
  %1795 = vmatpush.xpose.msra.mxu0 0.0
  %1796 = vmatpush.xpose.msra.mxu0 0.0
  %1797 = vmatpush.xpose.msra.mxu0 0.0
  %1798 = vmatpush.xpose.msra.mxu0 0.0
  %1799 = vmatpush.xpose.msra.mxu0 0.0
  %1800 = vmatpush.xpose.msra.mxu0 0.0
  %1801 = vmatpush.xpose.msra.mxu0 0.0
  %1802 = vmatpush.xpose.msra.mxu0 0.0
  %1803 = vmatpush.xpose.msra.mxu0 %v1786
  %1804 = vmatmul.f32.gmra.mxu0 %v1783
  %v1805 = vpop.f32.mrf.mxu0
  %v1806 = vadd.f32 0.0, %v1805
  %1807 = vdwg.mxu0
  %v1809 = vsel %vm401, %v1729, 0
  %v1812 = vsel %vm401, %v1533, 0
  %1814 = vmatpush.xpose.msra.mxu0 0.0
  %1815 = vmatpush.xpose.msra.mxu0 0.0
  %1816 = vmatpush.xpose.msra.mxu0 0.0
  %1817 = vmatpush.xpose.msra.mxu0 0.0
  %1818 = vmatpush.xpose.msra.mxu0 0.0
  %1819 = vmatpush.xpose.msra.mxu0 0.0
  %1820 = vmatpush.xpose.msra.mxu0 0.0
  %1821 = vmatpush.xpose.msra.mxu0 0.0
  %1822 = vmatpush.xpose.msra.mxu0 0.0
  %1823 = vmatpush.xpose.msra.mxu0 0.0
  %1824 = vmatpush.xpose.msra.mxu0 0.0
  %1825 = vmatpush.xpose.msra.mxu0 0.0
  %1826 = vmatpush.xpose.msra.mxu0 0.0
  %1827 = vmatpush.xpose.msra.mxu0 0.0
  %1828 = vmatpush.xpose.msra.mxu0 0.0
  %1829 = vmatpush.xpose.msra.mxu0 %v1812
  %1830 = vmatmul.f32.gmra.mxu0 %v1809
  %v1831 = vpop.f32.mrf.mxu0
  %v1832 = vadd.f32 0.0, %v1831
  %1833 = vdwg.mxu0
  %1835 = vrot.lane.b32.xlu0 %v1780, 8
  %v1836 = vpop.permute.xlu0 %1835
  %1839 = vrot.lane.b32.xlu0 %v1806, 16
  %v1840 = vpop.permute.xlu0 %1839
  %1843 = vrot.lane.b32.xlu0 %v1832, 24
  %v1844 = vpop.permute.xlu0 %1843
  %v1846 = vsel %vm467, %v1754, %v1836
  %v1847 = vsel %vm401, %v1846, %v1840
  %v1848 = vsel %vm781, %v1847, %v1844
  %v1850 = vsel %vm238, %v1848, 0
  %1852 = vmatpush.msra.mxu0 0.0
  %1853 = vmatpush.msra.mxu0 0.0
  %1854 = vmatpush.msra.mxu0 0.0
  %1855 = vmatpush.msra.mxu0 0.0
  %1856 = vmatpush.msra.mxu0 0.0
  %1857 = vmatpush.msra.mxu0 0.0
  %1858 = vmatpush.msra.mxu0 0.0
  %1859 = vmatpush.msra.mxu0 0.0
  %1860 = vmatpush.msra.mxu0 0.0
  %1861 = vmatpush.msra.mxu0 0.0
  %1862 = vmatpush.msra.mxu0 0.0
  %1863 = vmatpush.msra.mxu0 0.0
  %1864 = vmatpush.msra.mxu0 %v114
  %1865 = vmatpush.msra.mxu0 %v113
  %1866 = vmatpush.msra.mxu0 %v112
  %1867 = vmatpush.msra.mxu0 %v111
  %1868 = vmatmul.f32.gmra.mxu0 %v1850
  %v1869 = vpop.f32.mrf.mxu0
  %v1870 = vadd.f32 0.0, %v1869
  %1871 = vdwg.mxu0
  %v1872 = vadd.f32 %v1311, %v1870
  %v1873 = vperm.slane %v115, 0
  %v1874 = vadd.f32 %v1872, %v1873
  %v1875 = vsel %vm238, %v1874, 0.0
  %1876 = vadd.xlane.f32.xlu0 %v1875
  %v1877 = vpop.xlane.xlu0 %1876
  %v1878 = vmul.f32 %v1877, %v248
  %v1879 = vsub.f32 %v1874, %v1878
  %v1880 = vmul.f32 %v1879, %v1879
  %v1881 = vsel %vm238, %v1880, 0.0
  %1882 = vadd.xlane.f32.xlu0 %v1881
  %v1883 = vpop.xlane.xlu0 %1882
  %v1884 = vmul.f32 %v1883, %v248
  %v1885 = vadd.f32 %v1884, 1e-05
  %v1886 = vrsqrt.pop %v1885
  %v1887 = vmul.f32 %v1886, %v1885
  %v1888 = vmul.f32 %v1887, %v1886
  %v1889 = vmul.f32 0.5, %v1888
  %v1890 = vsub.f32 1.5, %v1889
  %v1891 = vmul.f32 %v1886, %v1890
  %vm1892 = vweird.f32 %v1885
  %vm1893 = vweird.f32 %v1886
  %vm1894 = vmor %vm1892, %vm1893
  %v1895 = vsel %vm1894, %v1886, %v1891
  %v1896 = vmul.f32 %v1879, %v1895
  %v1897 = vperm.slane %v115, 1
  %v1898 = vmul.f32 %v1896, %v1897
  %v1899 = vperm.slane %v115, 2
  %v1900 = vadd.f32 %v1898, %v1899
  %v1902 = vsel %vm238, %v1900, 0
  %1904 = vmatpush.msra.mxu0 0.0
  %1905 = vmatpush.msra.mxu0 0.0
  %1906 = vmatpush.msra.mxu0 0.0
  %1907 = vmatpush.msra.mxu0 0.0
  %1908 = vmatpush.msra.mxu0 0.0
  %1909 = vmatpush.msra.mxu0 0.0
  %1910 = vmatpush.msra.mxu0 0.0
  %1911 = vmatpush.msra.mxu0 0.0
  %1912 = vmatpush.msra.mxu0 0.0
  %1913 = vmatpush.msra.mxu0 0.0
  %1914 = vmatpush.msra.mxu0 0.0
  %1915 = vmatpush.msra.mxu0 0.0
  %1916 = vmatpush.msra.mxu0 %v119
  %1917 = vmatpush.msra.mxu0 %v118
  %1918 = vmatpush.msra.mxu0 %v117
  %1919 = vmatpush.msra.mxu0 %v116
  %1920 = vmatmul.f32.gmra.mxu0 %v1902
  %v1921 = vpop.f32.mrf.mxu0
  %v1922 = vadd.f32 %v120, %v1921
  %1923 = vdwg.mxu0
  %1925 = vrot.lane.b32.xlu0 %v1922, 96
  %v1926 = vpop.permute.xlu0 %1925
  %v1927 = vsel %vm467, %v1922, 0
  %v1929 = vsel %vm467, %v1926, 0
  %1931 = vmatpush.xpose.msra.mxu0 0.0
  %1932 = vmatpush.xpose.msra.mxu0 0.0
  %1933 = vmatpush.xpose.msra.mxu0 0.0
  %1934 = vmatpush.xpose.msra.mxu0 0.0
  %1935 = vmatpush.xpose.msra.mxu0 0.0
  %1936 = vmatpush.xpose.msra.mxu0 0.0
  %1937 = vmatpush.xpose.msra.mxu0 0.0
  %1938 = vmatpush.xpose.msra.mxu0 0.0
  %1939 = vmatpush.xpose.msra.mxu0 0.0
  %1940 = vmatpush.xpose.msra.mxu0 0.0
  %1941 = vmatpush.xpose.msra.mxu0 0.0
  %1942 = vmatpush.xpose.msra.mxu0 0.0
  %1943 = vmatpush.xpose.msra.mxu0 0.0
  %1944 = vmatpush.xpose.msra.mxu0 0.0
  %1945 = vmatpush.xpose.msra.mxu0 0.0
  %1946 = vmatpush.xpose.msra.mxu0 %v1929
  %1947 = vmatmul.f32.gmra.mxu0 %v1927
  %v1948 = vpop.f32.mrf.mxu0
  %v1949 = vadd.f32 0.0, %v1948
  %1950 = vdwg.mxu0
  %1951 = vrot.lane.b32.xlu0 %v1922, 120
  %v1952 = vpop.permute.xlu0 %1951
  %1953 = vrot.lane.b32.xlu0 %v1922, 88
  %v1954 = vpop.permute.xlu0 %1953
  %v1955 = vsel %vm467, %v1952, 0
  %v1957 = vsel %vm467, %v1954, 0
  %1959 = vmatpush.xpose.msra.mxu0 0.0
  %1960 = vmatpush.xpose.msra.mxu0 0.0
  %1961 = vmatpush.xpose.msra.mxu0 0.0
  %1962 = vmatpush.xpose.msra.mxu0 0.0
  %1963 = vmatpush.xpose.msra.mxu0 0.0
  %1964 = vmatpush.xpose.msra.mxu0 0.0
  %1965 = vmatpush.xpose.msra.mxu0 0.0
  %1966 = vmatpush.xpose.msra.mxu0 0.0
  %1967 = vmatpush.xpose.msra.mxu0 0.0
  %1968 = vmatpush.xpose.msra.mxu0 0.0
  %1969 = vmatpush.xpose.msra.mxu0 0.0
  %1970 = vmatpush.xpose.msra.mxu0 0.0
  %1971 = vmatpush.xpose.msra.mxu0 0.0
  %1972 = vmatpush.xpose.msra.mxu0 0.0
  %1973 = vmatpush.xpose.msra.mxu0 0.0
  %1974 = vmatpush.xpose.msra.mxu0 %v1957
  %1975 = vmatmul.f32.gmra.mxu0 %v1955
  %v1976 = vpop.f32.mrf.mxu0
  %v1977 = vadd.f32 0.0, %v1976
  %1978 = vdwg.mxu0
  %1979 = vrot.lane.b32.xlu0 %v1922, 112
  %v1980 = vpop.permute.xlu0 %1979
  %1981 = vrot.lane.b32.xlu0 %v1922, 80
  %v1982 = vpop.permute.xlu0 %1981
  %v1983 = vsel %vm467, %v1980, 0
  %v1985 = vsel %vm467, %v1982, 0
  %1987 = vmatpush.xpose.msra.mxu0 0.0
  %1988 = vmatpush.xpose.msra.mxu0 0.0
  %1989 = vmatpush.xpose.msra.mxu0 0.0
  %1990 = vmatpush.xpose.msra.mxu0 0.0
  %1991 = vmatpush.xpose.msra.mxu0 0.0
  %1992 = vmatpush.xpose.msra.mxu0 0.0
  %1993 = vmatpush.xpose.msra.mxu0 0.0
  %1994 = vmatpush.xpose.msra.mxu0 0.0
  %1995 = vmatpush.xpose.msra.mxu0 0.0
  %1996 = vmatpush.xpose.msra.mxu0 0.0
  %1997 = vmatpush.xpose.msra.mxu0 0.0
  %1998 = vmatpush.xpose.msra.mxu0 0.0
  %1999 = vmatpush.xpose.msra.mxu0 0.0
  %2000 = vmatpush.xpose.msra.mxu0 0.0
  %2001 = vmatpush.xpose.msra.mxu0 0.0
  %2002 = vmatpush.xpose.msra.mxu0 %v1985
  %2003 = vmatmul.f32.gmra.mxu0 %v1983
  %v2004 = vpop.f32.mrf.mxu0
  %v2005 = vadd.f32 0.0, %v2004
  %2006 = vdwg.mxu0
  %2007 = vrot.lane.b32.xlu0 %v1922, 104
  %v2008 = vpop.permute.xlu0 %2007
  %2009 = vrot.lane.b32.xlu0 %v1922, 72
  %v2010 = vpop.permute.xlu0 %2009
  %v2011 = vsel %vm467, %v2008, 0
  %v2013 = vsel %vm467, %v2010, 0
  %2015 = vmatpush.xpose.msra.mxu0 0.0
  %2016 = vmatpush.xpose.msra.mxu0 0.0
  %2017 = vmatpush.xpose.msra.mxu0 0.0
  %2018 = vmatpush.xpose.msra.mxu0 0.0
  %2019 = vmatpush.xpose.msra.mxu0 0.0
  %2020 = vmatpush.xpose.msra.mxu0 0.0
  %2021 = vmatpush.xpose.msra.mxu0 0.0
  %2022 = vmatpush.xpose.msra.mxu0 0.0
  %2023 = vmatpush.xpose.msra.mxu0 0.0
  %2024 = vmatpush.xpose.msra.mxu0 0.0
  %2025 = vmatpush.xpose.msra.mxu0 0.0
  %2026 = vmatpush.xpose.msra.mxu0 0.0
  %2027 = vmatpush.xpose.msra.mxu0 0.0
  %2028 = vmatpush.xpose.msra.mxu0 0.0
  %2029 = vmatpush.xpose.msra.mxu0 0.0
  %2030 = vmatpush.xpose.msra.mxu0 %v2013
  %2031 = vmatmul.f32.gmra.mxu0 %v2011
  %v2032 = vpop.f32.mrf.mxu0
  %v2033 = vadd.f32 0.0, %v2032
  %2034 = vdwg.mxu0
  %v2035 = vsel %vm467, %v1949, -inf
  %2036 = vmax.xlane.f32.xlu0 %v2035
  %v2037 = vpop.xlane.xlu0 %2036
  %v2038 = vsel %vm467, %v1977, -inf
  %2039 = vmax.xlane.f32.xlu0 %v2038
  %v2040 = vpop.xlane.xlu0 %2039
  %v2041 = vsel %vm467, %v2005, -inf
  %2042 = vmax.xlane.f32.xlu0 %v2041
  %v2043 = vpop.xlane.xlu0 %2042
  %v2044 = vsel %vm467, %v2033, -inf
  %2045 = vmax.xlane.f32.xlu0 %v2044
  %v2046 = vpop.xlane.xlu0 %2045
  %v2047 = vsub.f32 %v1949, %v2037
  %v2048 = vsub.f32 %v1977, %v2040
  %v2049 = vsub.f32 %v2005, %v2043
  %v2050 = vsub.f32 %v2033, %v2046
  %v2051 = vmul.f32 %v2047, 1.442695
  %v2052 = vpow.pop %v2051
  %v2053 = vmul.f32 %v2048, 1.442695
  %v2054 = vpow.pop %v2053
  %v2055 = vmul.f32 %v2049, 1.442695
  %v2056 = vpow.pop %v2055
  %v2057 = vmul.f32 %v2050, 1.442695
  %v2058 = vpow.pop %v2057
  %v2059 = vsel %vm467, %v2052, 0.0
  %2060 = vadd.xlane.f32.xlu0 %v2059
  %v2061 = vpop.xlane.xlu0 %2060
  %v2062 = vsel %vm467, %v2054, 0.0
  %2063 = vadd.xlane.f32.xlu0 %v2062
  %v2064 = vpop.xlane.xlu0 %2063
  %v2065 = vsel %vm467, %v2056, 0.0
  %2066 = vadd.xlane.f32.xlu0 %v2065
  %v2067 = vpop.xlane.xlu0 %2066
  %v2068 = vsel %vm467, %v2058, 0.0
  %2069 = vadd.xlane.f32.xlu0 %v2068
  %v2070 = vpop.xlane.xlu0 %2069
  %v2071 = vrcp.pop %v2061
  %v2072 = vmul.f32 %v2061, %v2071
  %v2073 = vsub.f32 1.0, %v2072
  %v2074 = vmul.f32 %v2071, %v2073
  %v2075 = vadd.f32 %v2071, %v2074
  %vm2076 = vweird.f32 %v2061
  %vm2077 = vweird.f32 %v2071
  %vm2078 = vmor %vm2076, %vm2077
  %v2079 = vsel %vm2078, %v2071, %v2075
  %v2080 = vand.u32 2147483647, %v2061
  %vm2081 = vcmp.eq.f32.partialorder %v2080, 8.507059e+37
  %v2082 = vand.u32 %v2061, 2147483648
  %v2083 = vor.u32 1.1754944e-38, %v2082
  %v2084 = vsel %vm2081, %v2083, %v2079
  %v2085 = vmul.f32 %v2052, %v2084
  %v2086 = vrcp.pop %v2064
  %v2087 = vmul.f32 %v2064, %v2086
  %v2088 = vsub.f32 1.0, %v2087
  %v2089 = vmul.f32 %v2086, %v2088
  %v2090 = vadd.f32 %v2086, %v2089
  %vm2091 = vweird.f32 %v2064
  %vm2092 = vweird.f32 %v2086
  %vm2093 = vmor %vm2091, %vm2092
  %v2094 = vsel %vm2093, %v2086, %v2090
  %v2095 = vand.u32 2147483647, %v2064
  %vm2096 = vcmp.eq.f32.partialorder %v2095, 8.507059e+37
  %v2097 = vand.u32 %v2064, 2147483648
  %v2098 = vor.u32 1.1754944e-38, %v2097
  %v2099 = vsel %vm2096, %v2098, %v2094
  %v2100 = vmul.f32 %v2054, %v2099
  %v2101 = vrcp.pop %v2067
  %v2102 = vmul.f32 %v2067, %v2101
  %v2103 = vsub.f32 1.0, %v2102
  %v2104 = vmul.f32 %v2101, %v2103
  %v2105 = vadd.f32 %v2101, %v2104
  %vm2106 = vweird.f32 %v2067
  %vm2107 = vweird.f32 %v2101
  %vm2108 = vmor %vm2106, %vm2107
  %v2109 = vsel %vm2108, %v2101, %v2105
  %v2110 = vand.u32 2147483647, %v2067
  %vm2111 = vcmp.eq.f32.partialorder %v2110, 8.507059e+37
  %v2112 = vand.u32 %v2067, 2147483648
  %v2113 = vor.u32 1.1754944e-38, %v2112
  %v2114 = vsel %vm2111, %v2113, %v2109
  %v2115 = vmul.f32 %v2056, %v2114
  %v2116 = vrcp.pop %v2070
  %v2117 = vmul.f32 %v2070, %v2116
  %v2118 = vsub.f32 1.0, %v2117
  %v2119 = vmul.f32 %v2116, %v2118
  %v2120 = vadd.f32 %v2116, %v2119
  %vm2121 = vweird.f32 %v2070
  %vm2122 = vweird.f32 %v2116
  %vm2123 = vmor %vm2121, %vm2122
  %v2124 = vsel %vm2123, %v2116, %v2120
  %v2125 = vand.u32 2147483647, %v2070
  %vm2126 = vcmp.eq.f32.partialorder %v2125, 8.507059e+37
  %v2127 = vand.u32 %v2070, 2147483648
  %v2128 = vor.u32 1.1754944e-38, %v2127
  %v2129 = vsel %vm2126, %v2128, %v2124
  %v2130 = vmul.f32 %v2058, %v2129
  %2131 = vrot.lane.b32.xlu0 %v1922, 64
  %v2132 = vpop.permute.xlu0 %2131
  %v2135 = vsel %vm467, %v2085, 0
  %2137 = vmatpush.msra.mxu0 0.0
  %2138 = vmatpush.msra.mxu0 0.0
  %2139 = vmatpush.msra.mxu0 0.0
  %2140 = vmatpush.msra.mxu0 0.0
  %2141 = vmatpush.msra.mxu0 0.0
  %2142 = vmatpush.msra.mxu0 0.0
  %2143 = vmatpush.msra.mxu0 0.0
  %2144 = vmatpush.msra.mxu0 0.0
  %2145 = vmatpush.msra.mxu0 0.0
  %2146 = vmatpush.msra.mxu0 0.0
  %2147 = vmatpush.msra.mxu0 0.0
  %2148 = vmatpush.msra.mxu0 0.0
  %2149 = vmatpush.msra.mxu0 0.0
  %2150 = vmatpush.msra.mxu0 0.0
  %2151 = vmatpush.msra.mxu0 0.0
  %2152 = vmatpush.msra.mxu0 %v2132
  %2153 = vmatmul.f32.gmra.mxu0 %v2135
  %v2154 = vpop.f32.mrf.mxu0
  %v2155 = vadd.f32 0.0, %v2154
  %2156 = vdwg.mxu0
  %2157 = vrot.lane.b32.xlu0 %v1922, 56
  %v2158 = vpop.permute.xlu0 %2157
  %v2161 = vsel %vm467, %v2100, 0
  %2163 = vmatpush.msra.mxu0 0.0
  %2164 = vmatpush.msra.mxu0 0.0
  %2165 = vmatpush.msra.mxu0 0.0
  %2166 = vmatpush.msra.mxu0 0.0
  %2167 = vmatpush.msra.mxu0 0.0
  %2168 = vmatpush.msra.mxu0 0.0
  %2169 = vmatpush.msra.mxu0 0.0
  %2170 = vmatpush.msra.mxu0 0.0
  %2171 = vmatpush.msra.mxu0 0.0
  %2172 = vmatpush.msra.mxu0 0.0
  %2173 = vmatpush.msra.mxu0 0.0
  %2174 = vmatpush.msra.mxu0 0.0
  %2175 = vmatpush.msra.mxu0 0.0
  %2176 = vmatpush.msra.mxu0 0.0
  %2177 = vmatpush.msra.mxu0 0.0
  %2178 = vmatpush.msra.mxu0 %v2158
  %2179 = vmatmul.f32.gmra.mxu0 %v2161
  %v2180 = vpop.f32.mrf.mxu0
  %v2181 = vadd.f32 0.0, %v2180
  %2182 = vdwg.mxu0
  %2183 = vrot.lane.b32.xlu0 %v1922, 48
  %v2184 = vpop.permute.xlu0 %2183
  %v2187 = vsel %vm467, %v2115, 0
  %2189 = vmatpush.msra.mxu0 0.0
  %2190 = vmatpush.msra.mxu0 0.0
  %2191 = vmatpush.msra.mxu0 0.0
  %2192 = vmatpush.msra.mxu0 0.0
  %2193 = vmatpush.msra.mxu0 0.0
  %2194 = vmatpush.msra.mxu0 0.0
  %2195 = vmatpush.msra.mxu0 0.0
  %2196 = vmatpush.msra.mxu0 0.0
  %2197 = vmatpush.msra.mxu0 0.0
  %2198 = vmatpush.msra.mxu0 0.0
  %2199 = vmatpush.msra.mxu0 0.0
  %2200 = vmatpush.msra.mxu0 0.0
  %2201 = vmatpush.msra.mxu0 0.0
  %2202 = vmatpush.msra.mxu0 0.0
  %2203 = vmatpush.msra.mxu0 0.0
  %2204 = vmatpush.msra.mxu0 %v2184
  %2205 = vmatmul.f32.gmra.mxu0 %v2187
  %v2206 = vpop.f32.mrf.mxu0
  %v2207 = vadd.f32 0.0, %v2206
  %2208 = vdwg.mxu0
  %2209 = vrot.lane.b32.xlu0 %v1922, 40
  %v2210 = vpop.permute.xlu0 %2209
  %v2213 = vsel %vm467, %v2130, 0
  %2215 = vmatpush.msra.mxu0 0.0
  %2216 = vmatpush.msra.mxu0 0.0
  %2217 = vmatpush.msra.mxu0 0.0
  %2218 = vmatpush.msra.mxu0 0.0
  %2219 = vmatpush.msra.mxu0 0.0
  %2220 = vmatpush.msra.mxu0 0.0
  %2221 = vmatpush.msra.mxu0 0.0
  %2222 = vmatpush.msra.mxu0 0.0
  %2223 = vmatpush.msra.mxu0 0.0
  %2224 = vmatpush.msra.mxu0 0.0
  %2225 = vmatpush.msra.mxu0 0.0
  %2226 = vmatpush.msra.mxu0 0.0
  %2227 = vmatpush.msra.mxu0 0.0
  %2228 = vmatpush.msra.mxu0 0.0
  %2229 = vmatpush.msra.mxu0 0.0
  %2230 = vmatpush.msra.mxu0 %v2210
  %2231 = vmatmul.f32.gmra.mxu0 %v2213
  %v2232 = vpop.f32.mrf.mxu0
  %v2233 = vadd.f32 0.0, %v2232
  %2234 = vdwg.mxu0
  %2236 = vrot.lane.b32.xlu0 %v2181, 8
  %v2237 = vpop.permute.xlu0 %2236
  %2240 = vrot.lane.b32.xlu0 %v2207, 16
  %v2241 = vpop.permute.xlu0 %2240
  %2244 = vrot.lane.b32.xlu0 %v2233, 24
  %v2245 = vpop.permute.xlu0 %2244
  %v2247 = vsel %vm467, %v2155, %v2237
  %v2248 = vsel %vm401, %v2247, %v2241
  %v2249 = vsel %vm781, %v2248, %v2245
  %v2251 = vsel %vm238, %v2249, 0
  %2253 = vmatpush.msra.mxu0 0.0
  %2254 = vmatpush.msra.mxu0 0.0
  %2255 = vmatpush.msra.mxu0 0.0
  %2256 = vmatpush.msra.mxu0 0.0
  %2257 = vmatpush.msra.mxu0 0.0
  %2258 = vmatpush.msra.mxu0 0.0
  %2259 = vmatpush.msra.mxu0 0.0
  %2260 = vmatpush.msra.mxu0 0.0
  %2261 = vmatpush.msra.mxu0 0.0
  %2262 = vmatpush.msra.mxu0 0.0
  %2263 = vmatpush.msra.mxu0 0.0
  %2264 = vmatpush.msra.mxu0 0.0
  %2265 = vmatpush.msra.mxu0 %v124
  %2266 = vmatpush.msra.mxu0 %v123
  %2267 = vmatpush.msra.mxu0 %v122
  %2268 = vmatpush.msra.mxu0 %v121
  %2269 = vmatmul.f32.gmra.mxu0 %v2251
  %v2270 = vpop.f32.mrf.mxu0
  %v2271 = vadd.f32 0.0, %v2270
  %2272 = vdwg.mxu0
  %v2273 = vadd.f32 %v1900, %v2271
  %v2274 = vperm.slane %v125, 0
  %v2275 = vadd.f32 %v2273, %v2274
  %v2276 = vsel %vm238, %v2275, 0.0
  %2277 = vadd.xlane.f32.xlu0 %v2276
  %v2278 = vpop.xlane.xlu0 %2277
  %v2279 = vmul.f32 %v2278, %v248
  %v2280 = vsub.f32 %v2275, %v2279
  %v2281 = vmul.f32 %v2280, %v2280
  %v2282 = vsel %vm238, %v2281, 0.0
  %2283 = vadd.xlane.f32.xlu0 %v2282
  %v2284 = vpop.xlane.xlu0 %2283
  %v2285 = vmul.f32 %v2284, %v248
  %v2286 = vadd.f32 %v2285, 1e-05
  %v2287 = vrsqrt.pop %v2286
  %v2288 = vmul.f32 %v2287, %v2286
  %v2289 = vmul.f32 %v2288, %v2287
  %v2290 = vmul.f32 0.5, %v2289
  %v2291 = vsub.f32 1.5, %v2290
  %v2292 = vmul.f32 %v2287, %v2291
  %vm2293 = vweird.f32 %v2286
  %vm2294 = vweird.f32 %v2287
  %vm2295 = vmor %vm2293, %vm2294
  %v2296 = vsel %vm2295, %v2287, %v2292
  %v2297 = vmul.f32 %v2280, %v2296
  %v2298 = vperm.slane %v125, 1
  %v2299 = vmul.f32 %v2297, %v2298
  %v2300 = vperm.slane %v125, 2
  %v2301 = vadd.f32 %v2299, %v2300
  %v2302 = vperm.slane %v130, 0
  %v2304 = vsel %vm238, %v2301, 0
  %2306 = vmatpush.msra.mxu0 0.0
  %2307 = vmatpush.msra.mxu0 0.0
  %2308 = vmatpush.msra.mxu0 0.0
  %2309 = vmatpush.msra.mxu0 0.0
  %2310 = vmatpush.msra.mxu0 0.0
  %2311 = vmatpush.msra.mxu0 0.0
  %2312 = vmatpush.msra.mxu0 0.0
  %2313 = vmatpush.msra.mxu0 0.0
  %2314 = vmatpush.msra.mxu0 0.0
  %2315 = vmatpush.msra.mxu0 0.0
  %2316 = vmatpush.msra.mxu0 0.0
  %2317 = vmatpush.msra.mxu0 0.0
  %2318 = vmatpush.msra.mxu0 %v129
  %2319 = vmatpush.msra.mxu0 %v128
  %2320 = vmatpush.msra.mxu0 %v127
  %2321 = vmatpush.msra.mxu0 %v126
  %2322 = vmatmul.f32.gmra.mxu0 %v2304
  %v2323 = vpop.f32.mrf.mxu0
  %v2324 = vadd.f32 %v2302, %v2323
  %2325 = vdwg.mxu0
  %v2326 = vmax.f32 %v2324, 0.0
  %v2327 = vperm.slane %v139, 0
  %v2329 = vsel %vm196, %v2326, 0
  %2331 = vmatpush.msra.mxu0 0.0
  %2332 = vmatpush.msra.mxu0 0.0
  %2333 = vmatpush.msra.mxu0 0.0
  %2334 = vmatpush.msra.mxu0 0.0
  %2335 = vmatpush.msra.mxu0 0.0
  %2336 = vmatpush.msra.mxu0 0.0
  %2337 = vmatpush.msra.mxu0 0.0
  %2338 = vmatpush.msra.mxu0 0.0
  %2339 = vmatpush.msra.mxu0 %v138
  %2340 = vmatpush.msra.mxu0 %v137
  %2341 = vmatpush.msra.mxu0 %v136
  %2342 = vmatpush.msra.mxu0 %v135
  %2343 = vmatpush.msra.mxu0 %v134
  %2344 = vmatpush.msra.mxu0 %v133
  %2345 = vmatpush.msra.mxu0 %v132
  %2346 = vmatpush.msra.mxu0 %v131
  %2347 = vmatmul.f32.gmra.mxu0 %v2329
  %v2348 = vpop.f32.mrf.mxu0
  %v2349 = vadd.f32 %v2327, %v2348
  %2350 = vdwg.mxu0
  %v2351 = vadd.f32 %v2301, %v2349
  %v2352 = vsel %vm238, %v2351, 0.0
  %2353 = vadd.xlane.f32.xlu0 %v2352
  %v2354 = vpop.xlane.xlu0 %2353
  %v2355 = vmul.f32 %v2354, %v248
  %v2356 = vsub.f32 %v2351, %v2355
  %v2357 = vmul.f32 %v2356, %v2356
  %v2358 = vsel %vm238, %v2357, 0.0
  %2359 = vadd.xlane.f32.xlu0 %v2358
  %v2360 = vpop.xlane.xlu0 %2359
  %v2361 = vmul.f32 %v2360, %v248
  %v2362 = vadd.f32 %v2361, 1e-05
  %v2363 = vrsqrt.pop %v2362
  %v2364 = vmul.f32 %v2363, %v2362
  %v2365 = vmul.f32 %v2364, %v2363
  %v2366 = vmul.f32 0.5, %v2365
  %v2367 = vsub.f32 1.5, %v2366
  %v2368 = vmul.f32 %v2363, %v2367
  %vm2369 = vweird.f32 %v2362
  %vm2370 = vweird.f32 %v2363
  %vm2371 = vmor %vm2369, %vm2370
  %v2372 = vsel %vm2371, %v2363, %v2368
  %v2373 = vmul.f32 %v2356, %v2372
  %v2374 = vperm.slane %v139, 1
  %v2375 = vmul.f32 %v2373, %v2374
  %v2376 = vperm.slane %v139, 2
  %v2377 = vadd.f32 %v2375, %v2376
  %v2378 = vsel %vm238, %v2377, 0.0
  %2379 = vadd.xlane.f32.xlu0 %v2378
  %v2380 = vpop.xlane.xlu0 %2379
  %v2381 = vmul.f32 %v2380, %v248
  %v2382 = vsub.f32 %v2377, %v2381
  %v2383 = vmul.f32 %v2382, %v2382
  %v2384 = vsel %vm238, %v2383, 0.0
  %2385 = vadd.xlane.f32.xlu0 %v2384
  %v2386 = vpop.xlane.xlu0 %2385
  %v2387 = vmul.f32 %v2386, %v248
  %v2388 = vadd.f32 %v2387, 1e-05
  %v2389 = vrsqrt.pop %v2388
  %v2390 = vmul.f32 %v2389, %v2388
  %v2391 = vmul.f32 %v2390, %v2389
  %v2392 = vmul.f32 0.5, %v2391
  %v2393 = vsub.f32 1.5, %v2392
  %v2394 = vmul.f32 %v2389, %v2393
  %vm2395 = vweird.f32 %v2388
  %vm2396 = vweird.f32 %v2389
  %vm2397 = vmor %vm2395, %vm2396
  %v2398 = vsel %vm2397, %v2389, %v2394
  %v2399 = vmul.f32 %v2382, %v2398
  %v2400 = vmul.f32 %v2399, %v268
  %v2401 = vadd.f32 %v2400, %v270
  %v2403 = vsel %vm238, %v2401, 0
  %2405 = vmatpush.msra.mxu0 0.0
  %2406 = vmatpush.msra.mxu0 0.0
  %2407 = vmatpush.msra.mxu0 0.0
  %2408 = vmatpush.msra.mxu0 0.0
  %2409 = vmatpush.msra.mxu0 0.0
  %2410 = vmatpush.msra.mxu0 0.0
  %2411 = vmatpush.msra.mxu0 0.0
  %2412 = vmatpush.msra.mxu0 0.0
  %2413 = vmatpush.msra.mxu0 0.0
  %2414 = vmatpush.msra.mxu0 0.0
  %2415 = vmatpush.msra.mxu0 0.0
  %2416 = vmatpush.msra.mxu0 0.0
  %2417 = vmatpush.msra.mxu0 %v21
  %2418 = vmatpush.msra.mxu0 %v20
  %2419 = vmatpush.msra.mxu0 %v19
  %2420 = vmatpush.msra.mxu0 %v18
  %2421 = vmatmul.f32.gmra.mxu0 %v2403
  %v2422 = vpop.f32.mrf.mxu0
  %v2423 = vadd.f32 %v272, %v2422
  %2424 = vdwg.mxu0
  %v2425 = vmax.f32 %v2423, 0.0
  %v2427 = vsel %vm238, %v2425, 0
  %2429 = vmatpush.msra.mxu0 0.0
  %2430 = vmatpush.msra.mxu0 0.0
  %2431 = vmatpush.msra.mxu0 0.0
  %2432 = vmatpush.msra.mxu0 0.0
  %2433 = vmatpush.msra.mxu0 0.0
  %2434 = vmatpush.msra.mxu0 0.0
  %2435 = vmatpush.msra.mxu0 0.0
  %2436 = vmatpush.msra.mxu0 0.0
  %2437 = vmatpush.msra.mxu0 0.0
  %2438 = vmatpush.msra.mxu0 0.0
  %2439 = vmatpush.msra.mxu0 0.0
  %2440 = vmatpush.msra.mxu0 0.0
  %2441 = vmatpush.msra.mxu0 %v25
  %2442 = vmatpush.msra.mxu0 %v24
  %2443 = vmatpush.msra.mxu0 %v23
  %2444 = vmatpush.msra.mxu0 %v22
  %2445 = vmatmul.f32.gmra.mxu0 %v2427
  %v2446 = vpop.f32.mrf.mxu0
  %v2447 = vadd.f32 %v297, %v2446
  %2448 = vdwg.mxu0
  %v2449 = vmax.f32 %v2447, 0.0
  %v2451 = vsel %vm238, %v2449, 0
  %2453 = vmatpush.msra.mxu0 0.0
  %2454 = vmatpush.msra.mxu0 0.0
  %2455 = vmatpush.msra.mxu0 0.0
  %2456 = vmatpush.msra.mxu0 0.0
  %2457 = vmatpush.msra.mxu0 0.0
  %2458 = vmatpush.msra.mxu0 0.0
  %2459 = vmatpush.msra.mxu0 0.0
  %2460 = vmatpush.msra.mxu0 0.0
  %2461 = vmatpush.msra.mxu0 0.0
  %2462 = vmatpush.msra.mxu0 0.0
  %2463 = vmatpush.msra.mxu0 0.0
  %2464 = vmatpush.msra.mxu0 0.0
  %2465 = vmatpush.msra.mxu0 %v29
  %2466 = vmatpush.msra.mxu0 %v28
  %2467 = vmatpush.msra.mxu0 %v27
  %2468 = vmatpush.msra.mxu0 %v26
  %2469 = vmatmul.f32.gmra.mxu0 %v2451
  %v2470 = vpop.f32.mrf.mxu0
  %v2471 = vadd.f32 %v322, %v2470
  %2472 = vdwg.mxu0
  %v2474 = vsel %vm238, %v2471, 0
  %2476 = vmatpush.msra.mxu0 0.0
  %2477 = vmatpush.msra.mxu0 0.0
  %2478 = vmatpush.msra.mxu0 0.0
  %2479 = vmatpush.msra.mxu0 0.0
  %2480 = vmatpush.msra.mxu0 0.0
  %2481 = vmatpush.msra.mxu0 0.0
  %2482 = vmatpush.msra.mxu0 0.0
  %2483 = vmatpush.msra.mxu0 0.0
  %2484 = vmatpush.msra.mxu0 0.0
  %2485 = vmatpush.msra.mxu0 0.0
  %2486 = vmatpush.msra.mxu0 0.0
  %2487 = vmatpush.msra.mxu0 0.0
  %2488 = vmatpush.msra.mxu0 %v236
  %2489 = vmatpush.msra.mxu0 %v233
  %2490 = vmatpush.msra.mxu0 %v230
  %2491 = vmatpush.msra.mxu0 %v227
  %2492 = vmatmul.f32.gmra.mxu0 %v2474
  %v2493 = vpop.f32.mrf.mxu0
  %v2494 = vadd.f32 0.0, %v2493
  %2495 = vdwg.mxu0
  %v2496 = vsel %vm401, %v2494, -inf
  %2497 = vmax.xlane.f32.xlu0 %v2496
  %v2498 = vpop.xlane.xlu0 %2497
  %vm2499 = vcmp.lt.f32.partialorder %v2494, 0.0
  %vm2500 = vcmp.ge.f32.partialorder %v2498, 0.0
  %v2501 = vsel %vm2500, 1, 0
  %vm2502 = vcmp.eq.s32.totalorder %v2501, 1
  %vm2503 = vmand %vm2499, %vm2502
  %v2504 = vsel %vm2503, -1e+09, 0.0
  %v2506 = vsel %vm238, %v2377, 0
  %2508 = vmatpush.msra.mxu0 0.0
  %2509 = vmatpush.msra.mxu0 0.0
  %2510 = vmatpush.msra.mxu0 0.0
  %2511 = vmatpush.msra.mxu0 0.0
  %2512 = vmatpush.msra.mxu0 0.0
  %2513 = vmatpush.msra.mxu0 0.0
  %2514 = vmatpush.msra.mxu0 0.0
  %2515 = vmatpush.msra.mxu0 0.0
  %2516 = vmatpush.msra.mxu0 0.0
  %2517 = vmatpush.msra.mxu0 0.0
  %2518 = vmatpush.msra.mxu0 0.0
  %2519 = vmatpush.msra.mxu0 0.0
  %2520 = vmatpush.msra.mxu0 %v143
  %2521 = vmatpush.msra.mxu0 %v142
  %2522 = vmatpush.msra.mxu0 %v141
  %2523 = vmatpush.msra.mxu0 %v140
  %2524 = vmatmul.f32.gmra.mxu0 %v2506
  %v2525 = vpop.f32.mrf.mxu0
  %v2526 = vadd.f32 %v144, %v2525
  %2527 = vdwg.mxu0
  %2528 = vrot.lane.b32.xlu0 %v190, 48
  %v2529 = vpop.permute.xlu0 %2528
  %2530 = vrot.lane.b32.xlu0 %v191, 48
  %v2531 = vpop.permute.xlu0 %2530
  %v2535 = vsel %vm401, %v145, 0
  %v2538 = vsel %vm401, %v146, 0
  %v2541 = vsel %vm401, %v147, 0
  %v2544 = vsel %vm401, %v148, 0
  %v2547 = vsel %vm401, %v149, 0
  %v2550 = vsel %vm401, %v150, 0
  %v2553 = vsel %vm401, %v151, 0
  %v2556 = vsel %vm401, %v152, 0
  %2558 = vmatpush.msra.mxu0 0.0
  %2559 = vmatpush.msra.mxu0 0.0
  %2560 = vmatpush.msra.mxu0 0.0
  %2561 = vmatpush.msra.mxu0 0.0
  %2562 = vmatpush.msra.mxu0 0.0
  %2563 = vmatpush.msra.mxu0 0.0
  %2564 = vmatpush.msra.mxu0 0.0
  %2565 = vmatpush.msra.mxu0 0.0
  %2566 = vmatpush.msra.mxu0 0.0
  %2567 = vmatpush.msra.mxu0 0.0
  %2568 = vmatpush.msra.mxu0 0.0
  %2569 = vmatpush.msra.mxu0 0.0
  %2570 = vmatpush.msra.mxu0 0.0
  %2571 = vmatpush.msra.mxu0 0.0
  %2572 = vmatpush.msra.mxu0 %v2531
  %2573 = vmatpush.msra.mxu0 %v2529
  %2574 = vmatmul.f32.gmra.mxu0 %v2535
  %v2575 = vpop.f32.mrf.mxu0
  %v2576 = vadd.f32 %v153, %v2575
  %2577 = vmatmul.f32.gmra.mxu0 %v2538
  %v2578 = vpop.f32.mrf.mxu0
  %v2579 = vadd.f32 %v154, %v2578
  %2580 = vmatmul.f32.gmra.mxu0 %v2541
  %v2581 = vpop.f32.mrf.mxu0
  %v2582 = vadd.f32 %v155, %v2581
  %2583 = vmatmul.f32.gmra.mxu0 %v2544
  %v2584 = vpop.f32.mrf.mxu0
  %v2585 = vadd.f32 %v156, %v2584
  %2586 = vmatmul.f32.gmra.mxu0 %v2547
  %v2587 = vpop.f32.mrf.mxu0
  %v2588 = vadd.f32 %v157, %v2587
  %2589 = vmatmul.f32.gmra.mxu0 %v2550
  %v2590 = vpop.f32.mrf.mxu0
  %v2591 = vadd.f32 %v158, %v2590
  %2592 = vmatmul.f32.gmra.mxu0 %v2553
  %v2593 = vpop.f32.mrf.mxu0
  %v2594 = vadd.f32 %v159, %v2593
  %2595 = vmatmul.f32.gmra.mxu0 %v2556
  %v2596 = vpop.f32.mrf.mxu0
  %v2597 = vadd.f32 %v160, %v2596
  %2598 = vdwg.mxu0
  %v2600 = vsel %vm467, %v2526, 0
  %2602 = vmatpush.msra.mxu0 0.0
  %2603 = vmatpush.msra.mxu0 0.0
  %2604 = vmatpush.msra.mxu0 0.0
  %2605 = vmatpush.msra.mxu0 0.0
  %2606 = vmatpush.msra.mxu0 0.0
  %2607 = vmatpush.msra.mxu0 0.0
  %2608 = vmatpush.msra.mxu0 0.0
  %2609 = vmatpush.msra.mxu0 0.0
  %2610 = vmatpush.msra.mxu0 0.0
  %2611 = vmatpush.msra.mxu0 0.0
  %2612 = vmatpush.msra.mxu0 0.0
  %2613 = vmatpush.msra.mxu0 0.0
  %2614 = vmatpush.msra.mxu0 0.0
  %2615 = vmatpush.msra.mxu0 0.0
  %2616 = vmatpush.msra.mxu0 0.0
  %2617 = vmatpush.msra.mxu0 %v2576
  %2618 = vmatmul.f32.gmra.mxu0 %v2600
  %v2619 = vpop.f32.mrf.mxu0
  %v2620 = vadd.f32 0.0, %v2619
  %2621 = vdwg.mxu0
  %2622 = vrot.lane.b32.xlu0 %v2526, 120
  %v2623 = vpop.permute.xlu0 %2622
  %v2624 = vsel %vm467, %v2623, 0
  %2626 = vmatpush.msra.mxu0 0.0
  %2627 = vmatpush.msra.mxu0 0.0
  %2628 = vmatpush.msra.mxu0 0.0
  %2629 = vmatpush.msra.mxu0 0.0
  %2630 = vmatpush.msra.mxu0 0.0
  %2631 = vmatpush.msra.mxu0 0.0
  %2632 = vmatpush.msra.mxu0 0.0
  %2633 = vmatpush.msra.mxu0 0.0
  %2634 = vmatpush.msra.mxu0 0.0
  %2635 = vmatpush.msra.mxu0 0.0
  %2636 = vmatpush.msra.mxu0 0.0
  %2637 = vmatpush.msra.mxu0 0.0
  %2638 = vmatpush.msra.mxu0 0.0
  %2639 = vmatpush.msra.mxu0 0.0
  %2640 = vmatpush.msra.mxu0 0.0
  %2641 = vmatpush.msra.mxu0 %v2579
  %2642 = vmatmul.f32.gmra.mxu0 %v2624
  %v2643 = vpop.f32.mrf.mxu0
  %v2644 = vadd.f32 0.0, %v2643
  %2645 = vdwg.mxu0
  %2646 = vrot.lane.b32.xlu0 %v2526, 112
  %v2647 = vpop.permute.xlu0 %2646
  %v2648 = vsel %vm467, %v2647, 0
  %2650 = vmatpush.msra.mxu0 0.0
  %2651 = vmatpush.msra.mxu0 0.0
  %2652 = vmatpush.msra.mxu0 0.0
  %2653 = vmatpush.msra.mxu0 0.0
  %2654 = vmatpush.msra.mxu0 0.0
  %2655 = vmatpush.msra.mxu0 0.0
  %2656 = vmatpush.msra.mxu0 0.0
  %2657 = vmatpush.msra.mxu0 0.0
  %2658 = vmatpush.msra.mxu0 0.0
  %2659 = vmatpush.msra.mxu0 0.0
  %2660 = vmatpush.msra.mxu0 0.0
  %2661 = vmatpush.msra.mxu0 0.0
  %2662 = vmatpush.msra.mxu0 0.0
  %2663 = vmatpush.msra.mxu0 0.0
  %2664 = vmatpush.msra.mxu0 0.0
  %2665 = vmatpush.msra.mxu0 %v2582
  %2666 = vmatmul.f32.gmra.mxu0 %v2648
  %v2667 = vpop.f32.mrf.mxu0
  %v2668 = vadd.f32 0.0, %v2667
  %2669 = vdwg.mxu0
  %2670 = vrot.lane.b32.xlu0 %v2526, 104
  %v2671 = vpop.permute.xlu0 %2670
  %v2672 = vsel %vm467, %v2671, 0
  %2674 = vmatpush.msra.mxu0 0.0
  %2675 = vmatpush.msra.mxu0 0.0
  %2676 = vmatpush.msra.mxu0 0.0
  %2677 = vmatpush.msra.mxu0 0.0
  %2678 = vmatpush.msra.mxu0 0.0
  %2679 = vmatpush.msra.mxu0 0.0
  %2680 = vmatpush.msra.mxu0 0.0
  %2681 = vmatpush.msra.mxu0 0.0
  %2682 = vmatpush.msra.mxu0 0.0
  %2683 = vmatpush.msra.mxu0 0.0
  %2684 = vmatpush.msra.mxu0 0.0
  %2685 = vmatpush.msra.mxu0 0.0
  %2686 = vmatpush.msra.mxu0 0.0
  %2687 = vmatpush.msra.mxu0 0.0
  %2688 = vmatpush.msra.mxu0 0.0
  %2689 = vmatpush.msra.mxu0 %v2585
  %2690 = vmatmul.f32.gmra.mxu0 %v2672
  %v2691 = vpop.f32.mrf.mxu0
  %v2692 = vadd.f32 0.0, %v2691
  %2693 = vdwg.mxu0
  %v2694 = vadd.f32 %v2620, %v2504
  %v2695 = vadd.f32 %v2644, %v2504
  %v2696 = vadd.f32 %v2668, %v2504
  %v2697 = vadd.f32 %v2692, %v2504
  %v2698 = vsel %vm401, %v2694, -inf
  %2699 = vmax.xlane.f32.xlu0 %v2698
  %v2700 = vpop.xlane.xlu0 %2699
  %v2701 = vsel %vm401, %v2695, -inf
  %2702 = vmax.xlane.f32.xlu0 %v2701
  %v2703 = vpop.xlane.xlu0 %2702
  %v2704 = vsel %vm401, %v2696, -inf
  %2705 = vmax.xlane.f32.xlu0 %v2704
  %v2706 = vpop.xlane.xlu0 %2705
  %v2707 = vsel %vm401, %v2697, -inf
  %2708 = vmax.xlane.f32.xlu0 %v2707
  %v2709 = vpop.xlane.xlu0 %2708
  %v2710 = vsub.f32 %v2694, %v2700
  %v2711 = vsub.f32 %v2695, %v2703
  %v2712 = vsub.f32 %v2696, %v2706
  %v2713 = vsub.f32 %v2697, %v2709
  %v2714 = vmul.f32 %v2710, 1.442695
  %v2715 = vpow.pop %v2714
  %v2716 = vmul.f32 %v2711, 1.442695
  %v2717 = vpow.pop %v2716
  %v2718 = vmul.f32 %v2712, 1.442695
  %v2719 = vpow.pop %v2718
  %v2720 = vmul.f32 %v2713, 1.442695
  %v2721 = vpow.pop %v2720
  %v2722 = vsel %vm401, %v2715, 0.0
  %2723 = vadd.xlane.f32.xlu0 %v2722
  %v2724 = vpop.xlane.xlu0 %2723
  %v2725 = vsel %vm401, %v2717, 0.0
  %2726 = vadd.xlane.f32.xlu0 %v2725
  %v2727 = vpop.xlane.xlu0 %2726
  %v2728 = vsel %vm401, %v2719, 0.0
  %2729 = vadd.xlane.f32.xlu0 %v2728
  %v2730 = vpop.xlane.xlu0 %2729
  %v2731 = vsel %vm401, %v2721, 0.0
  %2732 = vadd.xlane.f32.xlu0 %v2731
  %v2733 = vpop.xlane.xlu0 %2732
  %v2734 = vrcp.pop %v2724
  %v2735 = vmul.f32 %v2724, %v2734
  %v2736 = vsub.f32 1.0, %v2735
  %v2737 = vmul.f32 %v2734, %v2736
  %v2738 = vadd.f32 %v2734, %v2737
  %vm2739 = vweird.f32 %v2724
  %vm2740 = vweird.f32 %v2734
  %vm2741 = vmor %vm2739, %vm2740
  %v2742 = vsel %vm2741, %v2734, %v2738
  %v2743 = vand.u32 2147483647, %v2724
  %vm2744 = vcmp.eq.f32.partialorder %v2743, 8.507059e+37
  %v2745 = vand.u32 %v2724, 2147483648
  %v2746 = vor.u32 1.1754944e-38, %v2745
  %v2747 = vsel %vm2744, %v2746, %v2742
  %v2748 = vmul.f32 %v2715, %v2747
  %v2749 = vrcp.pop %v2727
  %v2750 = vmul.f32 %v2727, %v2749
  %v2751 = vsub.f32 1.0, %v2750
  %v2752 = vmul.f32 %v2749, %v2751
  %v2753 = vadd.f32 %v2749, %v2752
  %vm2754 = vweird.f32 %v2727
  %vm2755 = vweird.f32 %v2749
  %vm2756 = vmor %vm2754, %vm2755
  %v2757 = vsel %vm2756, %v2749, %v2753
  %v2758 = vand.u32 2147483647, %v2727
  %vm2759 = vcmp.eq.f32.partialorder %v2758, 8.507059e+37
  %v2760 = vand.u32 %v2727, 2147483648
  %v2761 = vor.u32 1.1754944e-38, %v2760
  %v2762 = vsel %vm2759, %v2761, %v2757
  %v2763 = vmul.f32 %v2717, %v2762
  %v2764 = vrcp.pop %v2730
  %v2765 = vmul.f32 %v2730, %v2764
  %v2766 = vsub.f32 1.0, %v2765
  %v2767 = vmul.f32 %v2764, %v2766
  %v2768 = vadd.f32 %v2764, %v2767
  %vm2769 = vweird.f32 %v2730
  %vm2770 = vweird.f32 %v2764
  %vm2771 = vmor %vm2769, %vm2770
  %v2772 = vsel %vm2771, %v2764, %v2768
  %v2773 = vand.u32 2147483647, %v2730
  %vm2774 = vcmp.eq.f32.partialorder %v2773, 8.507059e+37
  %v2775 = vand.u32 %v2730, 2147483648
  %v2776 = vor.u32 1.1754944e-38, %v2775
  %v2777 = vsel %vm2774, %v2776, %v2772
  %v2778 = vmul.f32 %v2719, %v2777
  %v2779 = vrcp.pop %v2733
  %v2780 = vmul.f32 %v2733, %v2779
  %v2781 = vsub.f32 1.0, %v2780
  %v2782 = vmul.f32 %v2779, %v2781
  %v2783 = vadd.f32 %v2779, %v2782
  %vm2784 = vweird.f32 %v2733
  %vm2785 = vweird.f32 %v2779
  %vm2786 = vmor %vm2784, %vm2785
  %v2787 = vsel %vm2786, %v2779, %v2783
  %v2788 = vand.u32 2147483647, %v2733
  %vm2789 = vcmp.eq.f32.partialorder %v2788, 8.507059e+37
  %v2790 = vand.u32 %v2733, 2147483648
  %v2791 = vor.u32 1.1754944e-38, %v2790
  %v2792 = vsel %vm2789, %v2791, %v2787
  %v2793 = vmul.f32 %v2721, %v2792
  %v2795 = vsel %vm401, %v2748, 0
  %v2798 = vsel %vm401, %v2588, 0
  %2800 = vmatpush.xpose.msra.mxu0 0.0
  %2801 = vmatpush.xpose.msra.mxu0 0.0
  %2802 = vmatpush.xpose.msra.mxu0 0.0
  %2803 = vmatpush.xpose.msra.mxu0 0.0
  %2804 = vmatpush.xpose.msra.mxu0 0.0
  %2805 = vmatpush.xpose.msra.mxu0 0.0
  %2806 = vmatpush.xpose.msra.mxu0 0.0
  %2807 = vmatpush.xpose.msra.mxu0 0.0
  %2808 = vmatpush.xpose.msra.mxu0 0.0
  %2809 = vmatpush.xpose.msra.mxu0 0.0
  %2810 = vmatpush.xpose.msra.mxu0 0.0
  %2811 = vmatpush.xpose.msra.mxu0 0.0
  %2812 = vmatpush.xpose.msra.mxu0 0.0
  %2813 = vmatpush.xpose.msra.mxu0 0.0
  %2814 = vmatpush.xpose.msra.mxu0 0.0
  %2815 = vmatpush.xpose.msra.mxu0 %v2798
  %2816 = vmatmul.f32.gmra.mxu0 %v2795
  %v2817 = vpop.f32.mrf.mxu0
  %v2818 = vadd.f32 0.0, %v2817
  %2819 = vdwg.mxu0
  %v2821 = vsel %vm401, %v2763, 0
  %v2824 = vsel %vm401, %v2591, 0
  %2826 = vmatpush.xpose.msra.mxu0 0.0
  %2827 = vmatpush.xpose.msra.mxu0 0.0
  %2828 = vmatpush.xpose.msra.mxu0 0.0
  %2829 = vmatpush.xpose.msra.mxu0 0.0
  %2830 = vmatpush.xpose.msra.mxu0 0.0
  %2831 = vmatpush.xpose.msra.mxu0 0.0
  %2832 = vmatpush.xpose.msra.mxu0 0.0
  %2833 = vmatpush.xpose.msra.mxu0 0.0
  %2834 = vmatpush.xpose.msra.mxu0 0.0
  %2835 = vmatpush.xpose.msra.mxu0 0.0
  %2836 = vmatpush.xpose.msra.mxu0 0.0
  %2837 = vmatpush.xpose.msra.mxu0 0.0
  %2838 = vmatpush.xpose.msra.mxu0 0.0
  %2839 = vmatpush.xpose.msra.mxu0 0.0
  %2840 = vmatpush.xpose.msra.mxu0 0.0
  %2841 = vmatpush.xpose.msra.mxu0 %v2824
  %2842 = vmatmul.f32.gmra.mxu0 %v2821
  %v2843 = vpop.f32.mrf.mxu0
  %v2844 = vadd.f32 0.0, %v2843
  %2845 = vdwg.mxu0
  %v2847 = vsel %vm401, %v2778, 0
  %v2850 = vsel %vm401, %v2594, 0
  %2852 = vmatpush.xpose.msra.mxu0 0.0
  %2853 = vmatpush.xpose.msra.mxu0 0.0
  %2854 = vmatpush.xpose.msra.mxu0 0.0
  %2855 = vmatpush.xpose.msra.mxu0 0.0
  %2856 = vmatpush.xpose.msra.mxu0 0.0
  %2857 = vmatpush.xpose.msra.mxu0 0.0
  %2858 = vmatpush.xpose.msra.mxu0 0.0
  %2859 = vmatpush.xpose.msra.mxu0 0.0
  %2860 = vmatpush.xpose.msra.mxu0 0.0
  %2861 = vmatpush.xpose.msra.mxu0 0.0
  %2862 = vmatpush.xpose.msra.mxu0 0.0
  %2863 = vmatpush.xpose.msra.mxu0 0.0
  %2864 = vmatpush.xpose.msra.mxu0 0.0
  %2865 = vmatpush.xpose.msra.mxu0 0.0
  %2866 = vmatpush.xpose.msra.mxu0 0.0
  %2867 = vmatpush.xpose.msra.mxu0 %v2850
  %2868 = vmatmul.f32.gmra.mxu0 %v2847
  %v2869 = vpop.f32.mrf.mxu0
  %v2870 = vadd.f32 0.0, %v2869
  %2871 = vdwg.mxu0
  %v2873 = vsel %vm401, %v2793, 0
  %v2876 = vsel %vm401, %v2597, 0
  %2878 = vmatpush.xpose.msra.mxu0 0.0
  %2879 = vmatpush.xpose.msra.mxu0 0.0
  %2880 = vmatpush.xpose.msra.mxu0 0.0
  %2881 = vmatpush.xpose.msra.mxu0 0.0
  %2882 = vmatpush.xpose.msra.mxu0 0.0
  %2883 = vmatpush.xpose.msra.mxu0 0.0
  %2884 = vmatpush.xpose.msra.mxu0 0.0
  %2885 = vmatpush.xpose.msra.mxu0 0.0
  %2886 = vmatpush.xpose.msra.mxu0 0.0
  %2887 = vmatpush.xpose.msra.mxu0 0.0
  %2888 = vmatpush.xpose.msra.mxu0 0.0
  %2889 = vmatpush.xpose.msra.mxu0 0.0
  %2890 = vmatpush.xpose.msra.mxu0 0.0
  %2891 = vmatpush.xpose.msra.mxu0 0.0
  %2892 = vmatpush.xpose.msra.mxu0 0.0
  %2893 = vmatpush.xpose.msra.mxu0 %v2876
  %2894 = vmatmul.f32.gmra.mxu0 %v2873
  %v2895 = vpop.f32.mrf.mxu0
  %v2896 = vadd.f32 0.0, %v2895
  %2897 = vdwg.mxu0
  %2899 = vrot.lane.b32.xlu0 %v2844, 8
  %v2900 = vpop.permute.xlu0 %2899
  %2903 = vrot.lane.b32.xlu0 %v2870, 16
  %v2904 = vpop.permute.xlu0 %2903
  %2907 = vrot.lane.b32.xlu0 %v2896, 24
  %v2908 = vpop.permute.xlu0 %2907
  %v2910 = vsel %vm467, %v2818, %v2900
  %v2911 = vsel %vm401, %v2910, %v2904
  %v2912 = vsel %vm781, %v2911, %v2908
  %v2914 = vsel %vm238, %v2912, 0
  %2916 = vmatpush.msra.mxu0 0.0
  %2917 = vmatpush.msra.mxu0 0.0
  %2918 = vmatpush.msra.mxu0 0.0
  %2919 = vmatpush.msra.mxu0 0.0
  %2920 = vmatpush.msra.mxu0 0.0
  %2921 = vmatpush.msra.mxu0 0.0
  %2922 = vmatpush.msra.mxu0 0.0
  %2923 = vmatpush.msra.mxu0 0.0
  %2924 = vmatpush.msra.mxu0 0.0
  %2925 = vmatpush.msra.mxu0 0.0
  %2926 = vmatpush.msra.mxu0 0.0
  %2927 = vmatpush.msra.mxu0 0.0
  %2928 = vmatpush.msra.mxu0 %v164
  %2929 = vmatpush.msra.mxu0 %v163
  %2930 = vmatpush.msra.mxu0 %v162
  %2931 = vmatpush.msra.mxu0 %v161
  %2932 = vmatmul.f32.gmra.mxu0 %v2914
  %v2933 = vpop.f32.mrf.mxu0
  %v2934 = vadd.f32 0.0, %v2933
  %2935 = vdwg.mxu0
  %v2936 = vadd.f32 %v2377, %v2934
  %v2937 = vperm.slane %v165, 0
  %v2938 = vadd.f32 %v2936, %v2937
  %v2939 = vsel %vm238, %v2938, 0.0
  %2940 = vadd.xlane.f32.xlu0 %v2939
  %v2941 = vpop.xlane.xlu0 %2940
  %v2942 = vmul.f32 %v2941, %v248
  %v2943 = vsub.f32 %v2938, %v2942
  %v2944 = vmul.f32 %v2943, %v2943
  %v2945 = vsel %vm238, %v2944, 0.0
  %2946 = vadd.xlane.f32.xlu0 %v2945
  %v2947 = vpop.xlane.xlu0 %2946
  %v2948 = vmul.f32 %v2947, %v248
  %v2949 = vadd.f32 %v2948, 1e-05
  %v2950 = vrsqrt.pop %v2949
  %v2951 = vmul.f32 %v2950, %v2949
  %v2952 = vmul.f32 %v2951, %v2950
  %v2953 = vmul.f32 0.5, %v2952
  %v2954 = vsub.f32 1.5, %v2953
  %v2955 = vmul.f32 %v2950, %v2954
  %vm2956 = vweird.f32 %v2949
  %vm2957 = vweird.f32 %v2950
  %vm2958 = vmor %vm2956, %vm2957
  %v2959 = vsel %vm2958, %v2950, %v2955
  %v2960 = vmul.f32 %v2943, %v2959
  %v2961 = vperm.slane %v165, 1
  %v2962 = vmul.f32 %v2960, %v2961
  %v2963 = vperm.slane %v165, 2
  %v2964 = vadd.f32 %v2962, %v2963
  %v2966 = vsel %vm238, %v2964, 0
  %2968 = vmatpush.msra.mxu0 0.0
  %2969 = vmatpush.msra.mxu0 0.0
  %2970 = vmatpush.msra.mxu0 0.0
  %2971 = vmatpush.msra.mxu0 0.0
  %2972 = vmatpush.msra.mxu0 0.0
  %2973 = vmatpush.msra.mxu0 0.0
  %2974 = vmatpush.msra.mxu0 0.0
  %2975 = vmatpush.msra.mxu0 0.0
  %2976 = vmatpush.msra.mxu0 0.0
  %2977 = vmatpush.msra.mxu0 0.0
  %2978 = vmatpush.msra.mxu0 0.0
  %2979 = vmatpush.msra.mxu0 0.0
  %2980 = vmatpush.msra.mxu0 %v169
  %2981 = vmatpush.msra.mxu0 %v168
  %2982 = vmatpush.msra.mxu0 %v167
  %2983 = vmatpush.msra.mxu0 %v166
  %2984 = vmatmul.f32.gmra.mxu0 %v2966
  %v2985 = vpop.f32.mrf.mxu0
  %v2986 = vadd.f32 %v170, %v2985
  %2987 = vdwg.mxu0
  %2989 = vrot.lane.b32.xlu0 %v2986, 96
  %v2990 = vpop.permute.xlu0 %2989
  %v2991 = vsel %vm467, %v2986, 0
  %v2993 = vsel %vm467, %v2990, 0
  %2995 = vmatpush.xpose.msra.mxu0 0.0
  %2996 = vmatpush.xpose.msra.mxu0 0.0
  %2997 = vmatpush.xpose.msra.mxu0 0.0
  %2998 = vmatpush.xpose.msra.mxu0 0.0
  %2999 = vmatpush.xpose.msra.mxu0 0.0
  %3000 = vmatpush.xpose.msra.mxu0 0.0
  %3001 = vmatpush.xpose.msra.mxu0 0.0
  %3002 = vmatpush.xpose.msra.mxu0 0.0
  %3003 = vmatpush.xpose.msra.mxu0 0.0
  %3004 = vmatpush.xpose.msra.mxu0 0.0
  %3005 = vmatpush.xpose.msra.mxu0 0.0
  %3006 = vmatpush.xpose.msra.mxu0 0.0
  %3007 = vmatpush.xpose.msra.mxu0 0.0
  %3008 = vmatpush.xpose.msra.mxu0 0.0
  %3009 = vmatpush.xpose.msra.mxu0 0.0
  %3010 = vmatpush.xpose.msra.mxu0 %v2993
  %3011 = vmatmul.f32.gmra.mxu0 %v2991
  %v3012 = vpop.f32.mrf.mxu0
  %v3013 = vadd.f32 0.0, %v3012
  %3014 = vdwg.mxu0
  %3015 = vrot.lane.b32.xlu0 %v2986, 120
  %v3016 = vpop.permute.xlu0 %3015
  %3017 = vrot.lane.b32.xlu0 %v2986, 88
  %v3018 = vpop.permute.xlu0 %3017
  %v3019 = vsel %vm467, %v3016, 0
  %v3021 = vsel %vm467, %v3018, 0
  %3023 = vmatpush.xpose.msra.mxu0 0.0
  %3024 = vmatpush.xpose.msra.mxu0 0.0
  %3025 = vmatpush.xpose.msra.mxu0 0.0
  %3026 = vmatpush.xpose.msra.mxu0 0.0
  %3027 = vmatpush.xpose.msra.mxu0 0.0
  %3028 = vmatpush.xpose.msra.mxu0 0.0
  %3029 = vmatpush.xpose.msra.mxu0 0.0
  %3030 = vmatpush.xpose.msra.mxu0 0.0
  %3031 = vmatpush.xpose.msra.mxu0 0.0
  %3032 = vmatpush.xpose.msra.mxu0 0.0
  %3033 = vmatpush.xpose.msra.mxu0 0.0
  %3034 = vmatpush.xpose.msra.mxu0 0.0
  %3035 = vmatpush.xpose.msra.mxu0 0.0
  %3036 = vmatpush.xpose.msra.mxu0 0.0
  %3037 = vmatpush.xpose.msra.mxu0 0.0
  %3038 = vmatpush.xpose.msra.mxu0 %v3021
  %3039 = vmatmul.f32.gmra.mxu0 %v3019
  %v3040 = vpop.f32.mrf.mxu0
  %v3041 = vadd.f32 0.0, %v3040
  %3042 = vdwg.mxu0
  %3043 = vrot.lane.b32.xlu0 %v2986, 112
  %v3044 = vpop.permute.xlu0 %3043
  %3045 = vrot.lane.b32.xlu0 %v2986, 80
  %v3046 = vpop.permute.xlu0 %3045
  %v3047 = vsel %vm467, %v3044, 0
  %v3049 = vsel %vm467, %v3046, 0
  %3051 = vmatpush.xpose.msra.mxu0 0.0
  %3052 = vmatpush.xpose.msra.mxu0 0.0
  %3053 = vmatpush.xpose.msra.mxu0 0.0
  %3054 = vmatpush.xpose.msra.mxu0 0.0
  %3055 = vmatpush.xpose.msra.mxu0 0.0
  %3056 = vmatpush.xpose.msra.mxu0 0.0
  %3057 = vmatpush.xpose.msra.mxu0 0.0
  %3058 = vmatpush.xpose.msra.mxu0 0.0
  %3059 = vmatpush.xpose.msra.mxu0 0.0
  %3060 = vmatpush.xpose.msra.mxu0 0.0
  %3061 = vmatpush.xpose.msra.mxu0 0.0
  %3062 = vmatpush.xpose.msra.mxu0 0.0
  %3063 = vmatpush.xpose.msra.mxu0 0.0
  %3064 = vmatpush.xpose.msra.mxu0 0.0
  %3065 = vmatpush.xpose.msra.mxu0 0.0
  %3066 = vmatpush.xpose.msra.mxu0 %v3049
  %3067 = vmatmul.f32.gmra.mxu0 %v3047
  %v3068 = vpop.f32.mrf.mxu0
  %v3069 = vadd.f32 0.0, %v3068
  %3070 = vdwg.mxu0
  %3071 = vrot.lane.b32.xlu0 %v2986, 104
  %v3072 = vpop.permute.xlu0 %3071
  %3073 = vrot.lane.b32.xlu0 %v2986, 72
  %v3074 = vpop.permute.xlu0 %3073
  %v3075 = vsel %vm467, %v3072, 0
  %v3077 = vsel %vm467, %v3074, 0
  %3079 = vmatpush.xpose.msra.mxu0 0.0
  %3080 = vmatpush.xpose.msra.mxu0 0.0
  %3081 = vmatpush.xpose.msra.mxu0 0.0
  %3082 = vmatpush.xpose.msra.mxu0 0.0
  %3083 = vmatpush.xpose.msra.mxu0 0.0
  %3084 = vmatpush.xpose.msra.mxu0 0.0
  %3085 = vmatpush.xpose.msra.mxu0 0.0
  %3086 = vmatpush.xpose.msra.mxu0 0.0
  %3087 = vmatpush.xpose.msra.mxu0 0.0
  %3088 = vmatpush.xpose.msra.mxu0 0.0
  %3089 = vmatpush.xpose.msra.mxu0 0.0
  %3090 = vmatpush.xpose.msra.mxu0 0.0
  %3091 = vmatpush.xpose.msra.mxu0 0.0
  %3092 = vmatpush.xpose.msra.mxu0 0.0
  %3093 = vmatpush.xpose.msra.mxu0 0.0
  %3094 = vmatpush.xpose.msra.mxu0 %v3077
  %3095 = vmatmul.f32.gmra.mxu0 %v3075
  %v3096 = vpop.f32.mrf.mxu0
  %v3097 = vadd.f32 0.0, %v3096
  %3098 = vdwg.mxu0
  %v3099 = vsel %vm467, %v3013, -inf
  %3100 = vmax.xlane.f32.xlu0 %v3099
  %v3101 = vpop.xlane.xlu0 %3100
  %v3102 = vsel %vm467, %v3041, -inf
  %3103 = vmax.xlane.f32.xlu0 %v3102
  %v3104 = vpop.xlane.xlu0 %3103
  %v3105 = vsel %vm467, %v3069, -inf
  %3106 = vmax.xlane.f32.xlu0 %v3105
  %v3107 = vpop.xlane.xlu0 %3106
  %v3108 = vsel %vm467, %v3097, -inf
  %3109 = vmax.xlane.f32.xlu0 %v3108
  %v3110 = vpop.xlane.xlu0 %3109
  %v3111 = vsub.f32 %v3013, %v3101
  %v3112 = vsub.f32 %v3041, %v3104
  %v3113 = vsub.f32 %v3069, %v3107
  %v3114 = vsub.f32 %v3097, %v3110
  %v3115 = vmul.f32 %v3111, 1.442695
  %v3116 = vpow.pop %v3115
  %v3117 = vmul.f32 %v3112, 1.442695
  %v3118 = vpow.pop %v3117
  %v3119 = vmul.f32 %v3113, 1.442695
  %v3120 = vpow.pop %v3119
  %v3121 = vmul.f32 %v3114, 1.442695
  %v3122 = vpow.pop %v3121
  %v3123 = vsel %vm467, %v3116, 0.0
  %3124 = vadd.xlane.f32.xlu0 %v3123
  %v3125 = vpop.xlane.xlu0 %3124
  %v3126 = vsel %vm467, %v3118, 0.0
  %3127 = vadd.xlane.f32.xlu0 %v3126
  %v3128 = vpop.xlane.xlu0 %3127
  %v3129 = vsel %vm467, %v3120, 0.0
  %3130 = vadd.xlane.f32.xlu0 %v3129
  %v3131 = vpop.xlane.xlu0 %3130
  %v3132 = vsel %vm467, %v3122, 0.0
  %3133 = vadd.xlane.f32.xlu0 %v3132
  %v3134 = vpop.xlane.xlu0 %3133
  %v3135 = vrcp.pop %v3125
  %v3136 = vmul.f32 %v3125, %v3135
  %v3137 = vsub.f32 1.0, %v3136
  %v3138 = vmul.f32 %v3135, %v3137
  %v3139 = vadd.f32 %v3135, %v3138
  %vm3140 = vweird.f32 %v3125
  %vm3141 = vweird.f32 %v3135
  %vm3142 = vmor %vm3140, %vm3141
  %v3143 = vsel %vm3142, %v3135, %v3139
  %v3144 = vand.u32 2147483647, %v3125
  %vm3145 = vcmp.eq.f32.partialorder %v3144, 8.507059e+37
  %v3146 = vand.u32 %v3125, 2147483648
  %v3147 = vor.u32 1.1754944e-38, %v3146
  %v3148 = vsel %vm3145, %v3147, %v3143
  %v3149 = vmul.f32 %v3116, %v3148
  %v3150 = vrcp.pop %v3128
  %v3151 = vmul.f32 %v3128, %v3150
  %v3152 = vsub.f32 1.0, %v3151
  %v3153 = vmul.f32 %v3150, %v3152
  %v3154 = vadd.f32 %v3150, %v3153
  %vm3155 = vweird.f32 %v3128
  %vm3156 = vweird.f32 %v3150
  %vm3157 = vmor %vm3155, %vm3156
  %v3158 = vsel %vm3157, %v3150, %v3154
  %v3159 = vand.u32 2147483647, %v3128
  %vm3160 = vcmp.eq.f32.partialorder %v3159, 8.507059e+37
  %v3161 = vand.u32 %v3128, 2147483648
  %v3162 = vor.u32 1.1754944e-38, %v3161
  %v3163 = vsel %vm3160, %v3162, %v3158
  %v3164 = vmul.f32 %v3118, %v3163
  %v3165 = vrcp.pop %v3131
  %v3166 = vmul.f32 %v3131, %v3165
  %v3167 = vsub.f32 1.0, %v3166
  %v3168 = vmul.f32 %v3165, %v3167
  %v3169 = vadd.f32 %v3165, %v3168
  %vm3170 = vweird.f32 %v3131
  %vm3171 = vweird.f32 %v3165
  %vm3172 = vmor %vm3170, %vm3171
  %v3173 = vsel %vm3172, %v3165, %v3169
  %v3174 = vand.u32 2147483647, %v3131
  %vm3175 = vcmp.eq.f32.partialorder %v3174, 8.507059e+37
  %v3176 = vand.u32 %v3131, 2147483648
  %v3177 = vor.u32 1.1754944e-38, %v3176
  %v3178 = vsel %vm3175, %v3177, %v3173
  %v3179 = vmul.f32 %v3120, %v3178
  %v3180 = vrcp.pop %v3134
  %v3181 = vmul.f32 %v3134, %v3180
  %v3182 = vsub.f32 1.0, %v3181
  %v3183 = vmul.f32 %v3180, %v3182
  %v3184 = vadd.f32 %v3180, %v3183
  %vm3185 = vweird.f32 %v3134
  %vm3186 = vweird.f32 %v3180
  %vm3187 = vmor %vm3185, %vm3186
  %v3188 = vsel %vm3187, %v3180, %v3184
  %v3189 = vand.u32 2147483647, %v3134
  %vm3190 = vcmp.eq.f32.partialorder %v3189, 8.507059e+37
  %v3191 = vand.u32 %v3134, 2147483648
  %v3192 = vor.u32 1.1754944e-38, %v3191
  %v3193 = vsel %vm3190, %v3192, %v3188
  %v3194 = vmul.f32 %v3122, %v3193
  %3195 = vrot.lane.b32.xlu0 %v2986, 64
  %v3196 = vpop.permute.xlu0 %3195
  %v3199 = vsel %vm467, %v3149, 0
  %3201 = vmatpush.msra.mxu0 0.0
  %3202 = vmatpush.msra.mxu0 0.0
  %3203 = vmatpush.msra.mxu0 0.0
  %3204 = vmatpush.msra.mxu0 0.0
  %3205 = vmatpush.msra.mxu0 0.0
  %3206 = vmatpush.msra.mxu0 0.0
  %3207 = vmatpush.msra.mxu0 0.0
  %3208 = vmatpush.msra.mxu0 0.0
  %3209 = vmatpush.msra.mxu0 0.0
  %3210 = vmatpush.msra.mxu0 0.0
  %3211 = vmatpush.msra.mxu0 0.0
  %3212 = vmatpush.msra.mxu0 0.0
  %3213 = vmatpush.msra.mxu0 0.0
  %3214 = vmatpush.msra.mxu0 0.0
  %3215 = vmatpush.msra.mxu0 0.0
  %3216 = vmatpush.msra.mxu0 %v3196
  %3217 = vmatmul.f32.gmra.mxu0 %v3199
  %v3218 = vpop.f32.mrf.mxu0
  %v3219 = vadd.f32 0.0, %v3218
  %3220 = vdwg.mxu0
  %3221 = vrot.lane.b32.xlu0 %v2986, 56
  %v3222 = vpop.permute.xlu0 %3221
  %v3225 = vsel %vm467, %v3164, 0
  %3227 = vmatpush.msra.mxu0 0.0
  %3228 = vmatpush.msra.mxu0 0.0
  %3229 = vmatpush.msra.mxu0 0.0
  %3230 = vmatpush.msra.mxu0 0.0
  %3231 = vmatpush.msra.mxu0 0.0
  %3232 = vmatpush.msra.mxu0 0.0
  %3233 = vmatpush.msra.mxu0 0.0
  %3234 = vmatpush.msra.mxu0 0.0
  %3235 = vmatpush.msra.mxu0 0.0
  %3236 = vmatpush.msra.mxu0 0.0
  %3237 = vmatpush.msra.mxu0 0.0
  %3238 = vmatpush.msra.mxu0 0.0
  %3239 = vmatpush.msra.mxu0 0.0
  %3240 = vmatpush.msra.mxu0 0.0
  %3241 = vmatpush.msra.mxu0 0.0
  %3242 = vmatpush.msra.mxu0 %v3222
  %3243 = vmatmul.f32.gmra.mxu0 %v3225
  %v3244 = vpop.f32.mrf.mxu0
  %v3245 = vadd.f32 0.0, %v3244
  %3246 = vdwg.mxu0
  %3247 = vrot.lane.b32.xlu0 %v2986, 48
  %v3248 = vpop.permute.xlu0 %3247
  %v3251 = vsel %vm467, %v3179, 0
  %3253 = vmatpush.msra.mxu0 0.0
  %3254 = vmatpush.msra.mxu0 0.0
  %3255 = vmatpush.msra.mxu0 0.0
  %3256 = vmatpush.msra.mxu0 0.0
  %3257 = vmatpush.msra.mxu0 0.0
  %3258 = vmatpush.msra.mxu0 0.0
  %3259 = vmatpush.msra.mxu0 0.0
  %3260 = vmatpush.msra.mxu0 0.0
  %3261 = vmatpush.msra.mxu0 0.0
  %3262 = vmatpush.msra.mxu0 0.0
  %3263 = vmatpush.msra.mxu0 0.0
  %3264 = vmatpush.msra.mxu0 0.0
  %3265 = vmatpush.msra.mxu0 0.0
  %3266 = vmatpush.msra.mxu0 0.0
  %3267 = vmatpush.msra.mxu0 0.0
  %3268 = vmatpush.msra.mxu0 %v3248
  %3269 = vmatmul.f32.gmra.mxu0 %v3251
  %v3270 = vpop.f32.mrf.mxu0
  %v3271 = vadd.f32 0.0, %v3270
  %3272 = vdwg.mxu0
  %3273 = vrot.lane.b32.xlu0 %v2986, 40
  %v3274 = vpop.permute.xlu0 %3273
  %v3277 = vsel %vm467, %v3194, 0
  %3279 = vmatpush.msra.mxu0 0.0
  %3280 = vmatpush.msra.mxu0 0.0
  %3281 = vmatpush.msra.mxu0 0.0
  %3282 = vmatpush.msra.mxu0 0.0
  %3283 = vmatpush.msra.mxu0 0.0
  %3284 = vmatpush.msra.mxu0 0.0
  %3285 = vmatpush.msra.mxu0 0.0
  %3286 = vmatpush.msra.mxu0 0.0
  %3287 = vmatpush.msra.mxu0 0.0
  %3288 = vmatpush.msra.mxu0 0.0
  %3289 = vmatpush.msra.mxu0 0.0
  %3290 = vmatpush.msra.mxu0 0.0
  %3291 = vmatpush.msra.mxu0 0.0
  %3292 = vmatpush.msra.mxu0 0.0
  %3293 = vmatpush.msra.mxu0 0.0
  %3294 = vmatpush.msra.mxu0 %v3274
  %3295 = vmatmul.f32.gmra.mxu0 %v3277
  %v3296 = vpop.f32.mrf.mxu0
  %v3297 = vadd.f32 0.0, %v3296
  %3298 = vdwg.mxu0
  %3300 = vrot.lane.b32.xlu0 %v3245, 8
  %v3301 = vpop.permute.xlu0 %3300
  %3304 = vrot.lane.b32.xlu0 %v3271, 16
  %v3305 = vpop.permute.xlu0 %3304
  %3308 = vrot.lane.b32.xlu0 %v3297, 24
  %v3309 = vpop.permute.xlu0 %3308
  %v3311 = vsel %vm467, %v3219, %v3301
  %v3312 = vsel %vm401, %v3311, %v3305
  %v3313 = vsel %vm781, %v3312, %v3309
  %v3315 = vsel %vm238, %v3313, 0
  %3317 = vmatpush.msra.mxu0 0.0
  %3318 = vmatpush.msra.mxu0 0.0
  %3319 = vmatpush.msra.mxu0 0.0
  %3320 = vmatpush.msra.mxu0 0.0
  %3321 = vmatpush.msra.mxu0 0.0
  %3322 = vmatpush.msra.mxu0 0.0
  %3323 = vmatpush.msra.mxu0 0.0
  %3324 = vmatpush.msra.mxu0 0.0
  %3325 = vmatpush.msra.mxu0 0.0
  %3326 = vmatpush.msra.mxu0 0.0
  %3327 = vmatpush.msra.mxu0 0.0
  %3328 = vmatpush.msra.mxu0 0.0
  %3329 = vmatpush.msra.mxu0 %v174
  %3330 = vmatpush.msra.mxu0 %v173
  %3331 = vmatpush.msra.mxu0 %v172
  %3332 = vmatpush.msra.mxu0 %v171
  %3333 = vmatmul.f32.gmra.mxu0 %v3315
  %v3334 = vpop.f32.mrf.mxu0
  %v3335 = vadd.f32 0.0, %v3334
  %3336 = vdwg.mxu0
  %v3337 = vadd.f32 %v2964, %v3335
  %v3338 = vperm.slane %v175, 0
  %v3339 = vadd.f32 %v3337, %v3338
  %v3340 = vsel %vm238, %v3339, 0.0
  %3341 = vadd.xlane.f32.xlu0 %v3340
  %v3342 = vpop.xlane.xlu0 %3341
  %v3343 = vmul.f32 %v3342, %v248
  %v3344 = vsub.f32 %v3339, %v3343
  %v3345 = vmul.f32 %v3344, %v3344
  %v3346 = vsel %vm238, %v3345, 0.0
  %3347 = vadd.xlane.f32.xlu0 %v3346
  %v3348 = vpop.xlane.xlu0 %3347
  %v3349 = vmul.f32 %v3348, %v248
  %v3350 = vadd.f32 %v3349, 1e-05
  %v3351 = vrsqrt.pop %v3350
  %v3352 = vmul.f32 %v3351, %v3350
  %v3353 = vmul.f32 %v3352, %v3351
  %v3354 = vmul.f32 0.5, %v3353
  %v3355 = vsub.f32 1.5, %v3354
  %v3356 = vmul.f32 %v3351, %v3355
  %vm3357 = vweird.f32 %v3350
  %vm3358 = vweird.f32 %v3351
  %vm3359 = vmor %vm3357, %vm3358
  %v3360 = vsel %vm3359, %v3351, %v3356
  %v3361 = vmul.f32 %v3344, %v3360
  %v3362 = vperm.slane %v175, 1
  %v3363 = vmul.f32 %v3361, %v3362
  %v3364 = vperm.slane %v175, 2
  %v3365 = vadd.f32 %v3363, %v3364
  %v3366 = vperm.slane %v180, 0
  %v3368 = vsel %vm238, %v3365, 0
  %3370 = vmatpush.msra.mxu0 0.0
  %3371 = vmatpush.msra.mxu0 0.0
  %3372 = vmatpush.msra.mxu0 0.0
  %3373 = vmatpush.msra.mxu0 0.0
  %3374 = vmatpush.msra.mxu0 0.0
  %3375 = vmatpush.msra.mxu0 0.0
  %3376 = vmatpush.msra.mxu0 0.0
  %3377 = vmatpush.msra.mxu0 0.0
  %3378 = vmatpush.msra.mxu0 0.0
  %3379 = vmatpush.msra.mxu0 0.0
  %3380 = vmatpush.msra.mxu0 0.0
  %3381 = vmatpush.msra.mxu0 0.0
  %3382 = vmatpush.msra.mxu0 %v179
  %3383 = vmatpush.msra.mxu0 %v178
  %3384 = vmatpush.msra.mxu0 %v177
  %3385 = vmatpush.msra.mxu0 %v176
  %3386 = vmatmul.f32.gmra.mxu0 %v3368
  %v3387 = vpop.f32.mrf.mxu0
  %v3388 = vadd.f32 %v3366, %v3387
  %3389 = vdwg.mxu0
  %v3390 = vmax.f32 %v3388, 0.0
  %v3391 = vperm.slane %v189, 0
  %v3393 = vsel %vm196, %v3390, 0
  %3395 = vmatpush.msra.mxu0 0.0
  %3396 = vmatpush.msra.mxu0 0.0
  %3397 = vmatpush.msra.mxu0 0.0
  %3398 = vmatpush.msra.mxu0 0.0
  %3399 = vmatpush.msra.mxu0 0.0
  %3400 = vmatpush.msra.mxu0 0.0
  %3401 = vmatpush.msra.mxu0 0.0
  %3402 = vmatpush.msra.mxu0 0.0
  %3403 = vmatpush.msra.mxu0 %v188
  %3404 = vmatpush.msra.mxu0 %v187
  %3405 = vmatpush.msra.mxu0 %v186
  %3406 = vmatpush.msra.mxu0 %v185
  %3407 = vmatpush.msra.mxu0 %v184
  %3408 = vmatpush.msra.mxu0 %v183
  %3409 = vmatpush.msra.mxu0 %v182
  %3410 = vmatpush.msra.mxu0 %v181
  %3411 = vmatmul.f32.gmra.mxu0 %v3393
  %v3412 = vpop.f32.mrf.mxu0
  %v3413 = vadd.f32 %v3391, %v3412
  %3414 = vdwg.mxu0
  %v3415 = vadd.f32 %v3365, %v3413
  %v3416 = vsel %vm238, %v3415, 0.0
  %3417 = vadd.xlane.f32.xlu0 %v3416
  %v3418 = vpop.xlane.xlu0 %3417
  %v3419 = vmul.f32 %v3418, %v248
  %v3420 = vsub.f32 %v3415, %v3419
  %v3421 = vmul.f32 %v3420, %v3420
  %v3422 = vsel %vm238, %v3421, 0.0
  %3423 = vadd.xlane.f32.xlu0 %v3422
  %v3424 = vpop.xlane.xlu0 %3423
  %v3425 = vmul.f32 %v3424, %v248
  %v3426 = vadd.f32 %v3425, 1e-05
  %v3427 = vrsqrt.pop %v3426
  %v3428 = vmul.f32 %v3427, %v3426
  %v3429 = vmul.f32 %v3428, %v3427
  %v3430 = vmul.f32 0.5, %v3429
  %v3431 = vsub.f32 1.5, %v3430
  %v3432 = vmul.f32 %v3427, %v3431
  %vm3433 = vweird.f32 %v3426
  %vm3434 = vweird.f32 %v3427
  %vm3435 = vmor %vm3433, %vm3434
  %v3436 = vsel %vm3435, %v3427, %v3432
  %v3437 = vmul.f32 %v3420, %v3436
  %v3438 = vperm.slane %v189, 1
  %v3439 = vmul.f32 %v3437, %v3438
  %v3440 = vperm.slane %v189, 2
  %v3441 = vadd.f32 %v3439, %v3440
  %v3442 = vsel %vm238, %v3441, 0.0
  %3443 = vadd.xlane.f32.xlu0 %v3442
  %v3444 = vpop.xlane.xlu0 %3443
  %v3445 = vmul.f32 %v3444, %v248
  %v3446 = vsub.f32 %v3441, %v3445
  %v3447 = vmul.f32 %v3446, %v3446
  %v3448 = vsel %vm238, %v3447, 0.0
  %3449 = vadd.xlane.f32.xlu0 %v3448
  %v3450 = vpop.xlane.xlu0 %3449
  %v3451 = vmul.f32 %v3450, %v248
  %v3452 = vadd.f32 %v3451, 1e-05
  %v3453 = vrsqrt.pop %v3452
  %v3454 = vmul.f32 %v3453, %v3452
  %v3455 = vmul.f32 %v3454, %v3453
  %v3456 = vmul.f32 0.5, %v3455
  %v3457 = vsub.f32 1.5, %v3456
  %v3458 = vmul.f32 %v3453, %v3457
  %vm3459 = vweird.f32 %v3452
  %vm3460 = vweird.f32 %v3453
  %vm3461 = vmor %vm3459, %vm3460
  %v3462 = vsel %vm3461, %v3453, %v3458
  %v3463 = vmul.f32 %v3446, %v3462
  %v3464 = vmul.f32 %v3463, %v268
  %v3465 = vadd.f32 %v3464, %v270
  %v3467 = vsel %vm238, %v3465, 0
  %3469 = vmatpush.msra.mxu0 0.0
  %3470 = vmatpush.msra.mxu0 0.0
  %3471 = vmatpush.msra.mxu0 0.0
  %3472 = vmatpush.msra.mxu0 0.0
  %3473 = vmatpush.msra.mxu0 0.0
  %3474 = vmatpush.msra.mxu0 0.0
  %3475 = vmatpush.msra.mxu0 0.0
  %3476 = vmatpush.msra.mxu0 0.0
  %3477 = vmatpush.msra.mxu0 0.0
  %3478 = vmatpush.msra.mxu0 0.0
  %3479 = vmatpush.msra.mxu0 0.0
  %3480 = vmatpush.msra.mxu0 0.0
  %3481 = vmatpush.msra.mxu0 %v21
  %3482 = vmatpush.msra.mxu0 %v20
  %3483 = vmatpush.msra.mxu0 %v19
  %3484 = vmatpush.msra.mxu0 %v18
  %3485 = vmatmul.f32.gmra.mxu0 %v3467
  %v3486 = vpop.f32.mrf.mxu0
  %v3487 = vadd.f32 %v272, %v3486
  %3488 = vdwg.mxu0
  %v3489 = vmax.f32 %v3487, 0.0
  %v3491 = vsel %vm238, %v3489, 0
  %3493 = vmatpush.msra.mxu0 0.0
  %3494 = vmatpush.msra.mxu0 0.0
  %3495 = vmatpush.msra.mxu0 0.0
  %3496 = vmatpush.msra.mxu0 0.0
  %3497 = vmatpush.msra.mxu0 0.0
  %3498 = vmatpush.msra.mxu0 0.0
  %3499 = vmatpush.msra.mxu0 0.0
  %3500 = vmatpush.msra.mxu0 0.0
  %3501 = vmatpush.msra.mxu0 0.0
  %3502 = vmatpush.msra.mxu0 0.0
  %3503 = vmatpush.msra.mxu0 0.0
  %3504 = vmatpush.msra.mxu0 0.0
  %3505 = vmatpush.msra.mxu0 %v25
  %3506 = vmatpush.msra.mxu0 %v24
  %3507 = vmatpush.msra.mxu0 %v23
  %3508 = vmatpush.msra.mxu0 %v22
  %3509 = vmatmul.f32.gmra.mxu0 %v3491
  %v3510 = vpop.f32.mrf.mxu0
  %v3511 = vadd.f32 %v297, %v3510
  %3512 = vdwg.mxu0
  %v3513 = vmax.f32 %v3511, 0.0
  %v3515 = vsel %vm238, %v3513, 0
  %3517 = vmatpush.msra.mxu0 0.0
  %3518 = vmatpush.msra.mxu0 0.0
  %3519 = vmatpush.msra.mxu0 0.0
  %3520 = vmatpush.msra.mxu0 0.0
  %3521 = vmatpush.msra.mxu0 0.0
  %3522 = vmatpush.msra.mxu0 0.0
  %3523 = vmatpush.msra.mxu0 0.0
  %3524 = vmatpush.msra.mxu0 0.0
  %3525 = vmatpush.msra.mxu0 0.0
  %3526 = vmatpush.msra.mxu0 0.0
  %3527 = vmatpush.msra.mxu0 0.0
  %3528 = vmatpush.msra.mxu0 0.0
  %3529 = vmatpush.msra.mxu0 %v29
  %3530 = vmatpush.msra.mxu0 %v28
  %3531 = vmatpush.msra.mxu0 %v27
  %3532 = vmatpush.msra.mxu0 %v26
  %3533 = vmatmul.f32.gmra.mxu0 %v3515
  %v3534 = vpop.f32.mrf.mxu0
  %v3535 = vadd.f32 %v322, %v3534
  %3536 = vdwg.mxu0
  %v3538 = vsel %vm238, %v3535, 0
  %3540 = vmatpush.msra.mxu0 0.0
  %3541 = vmatpush.msra.mxu0 0.0
  %3542 = vmatpush.msra.mxu0 0.0
  %3543 = vmatpush.msra.mxu0 0.0
  %3544 = vmatpush.msra.mxu0 0.0
  %3545 = vmatpush.msra.mxu0 0.0
  %3546 = vmatpush.msra.mxu0 0.0
  %3547 = vmatpush.msra.mxu0 0.0
  %3548 = vmatpush.msra.mxu0 0.0
  %3549 = vmatpush.msra.mxu0 0.0
  %3550 = vmatpush.msra.mxu0 0.0
  %3551 = vmatpush.msra.mxu0 0.0
  %3552 = vmatpush.msra.mxu0 %v195
  %3553 = vmatpush.msra.mxu0 %v194
  %3554 = vmatpush.msra.mxu0 %v193
  %3555 = vmatpush.msra.mxu0 %v192
  %3556 = vmatmul.f32.gmra.mxu0 %v3538
  %v3557 = vpop.f32.mrf.mxu0
  %v3558 = vadd.f32 0.0, %v3557
  %3559 = vdwg.mxu0
  %s3560 = scalar_lea.vmem %s0, 16
  %v3561 = vld [vmem:[%s3560] sm:$0xff]
  %v3562 = vld [vmem:[%s3560 + $0x8] sm:$0xff]
  %s3563 = scalar_lea.vmem %s1, 32
  %v3564 = vld [vmem:[%s3563] sm:$0xff]
  %v3565 = vld [vmem:[%s3563 + $0x8] sm:$0xff]
  %v3566 = vld [vmem:[%s3563 + $0x10] sm:$0xff]
  %v3567 = vld [vmem:[%s3563 + $0x18] sm:$0xff]
  %v3569 = vsel %vm196, %v3564, 0
  %v3572 = vsel %vm196, %v3565, 0
  %v3575 = vsel %vm196, %v3566, 0
  %v3578 = vsel %vm196, %v3567, 0
  %3580 = vmatpush.msra.mxu0 0.0
  %3581 = vmatpush.msra.mxu0 0.0
  %3582 = vmatpush.msra.mxu0 0.0
  %3583 = vmatpush.msra.mxu0 0.0
  %3584 = vmatpush.msra.mxu0 0.0
  %3585 = vmatpush.msra.mxu0 0.0
  %3586 = vmatpush.msra.mxu0 0.0
  %3587 = vmatpush.msra.mxu0 0.0
  %3588 = vmatpush.msra.mxu0 %v39
  %3589 = vmatpush.msra.mxu0 %v38
  %3590 = vmatpush.msra.mxu0 %v37
  %3591 = vmatpush.msra.mxu0 %v36
  %3592 = vmatpush.msra.mxu0 %v35
  %3593 = vmatpush.msra.mxu0 %v34
  %3594 = vmatpush.msra.mxu0 %v33
  %3595 = vmatpush.msra.mxu0 %v32
  %3596 = vmatmul.f32.gmra.mxu0 %v3569
  %v3597 = vpop.f32.mrf.mxu0
  %v3598 = vadd.f32 0.0, %v3597
  %3599 = vmatmul.f32.gmra.mxu0 %v3572
  %v3600 = vpop.f32.mrf.mxu0
  %v3601 = vadd.f32 0.0, %v3600
  %3602 = vmatmul.f32.gmra.mxu0 %v3575
  %v3603 = vpop.f32.mrf.mxu0
  %v3604 = vadd.f32 0.0, %v3603
  %3605 = vmatmul.f32.gmra.mxu0 %v3578
  %v3606 = vpop.f32.mrf.mxu0
  %v3607 = vadd.f32 0.0, %v3606
  %3608 = vdwg.mxu0
  %3609 = vmatpush.msra.mxu0 0.0
  %3610 = vmatpush.msra.mxu0 0.0
  %3611 = vmatpush.msra.mxu0 0.0
  %3612 = vmatpush.msra.mxu0 0.0
  %3613 = vmatpush.msra.mxu0 0.0
  %3614 = vmatpush.msra.mxu0 0.0
  %3615 = vmatpush.msra.mxu0 0.0
  %3616 = vmatpush.msra.mxu0 0.0
  %3617 = vmatpush.msra.mxu0 0.0
  %3618 = vmatpush.msra.mxu0 0.0
  %3619 = vmatpush.msra.mxu0 0.0
  %3620 = vmatpush.msra.mxu0 0.0
  %3621 = vmatpush.msra.mxu0 %v3567
  %3622 = vmatpush.msra.mxu0 %v3566
  %3623 = vmatpush.msra.mxu0 %v3565
  %3624 = vmatpush.msra.mxu0 %v3564
  %3625 = vmatmul.f32.gmra.mxu0 %v347
  %v3626 = vpop.f32.mrf.mxu0
  %v3627 = vadd.f32 0.0, %v3626
  %3628 = vdwg.mxu0
  %v3629 = vsel %vm196, %v3627, -inf
  %3630 = vmax.xlane.f32.xlu0 %v3629
  %v3631 = vpop.xlane.xlu0 %3630
  %vm3632 = vcmp.lt.f32.partialorder %v3627, 0.0
  %vm3633 = vcmp.ge.f32.partialorder %v3631, 0.0
  %v3634 = vsel %vm3633, 1, 0
  %vm3635 = vcmp.eq.s32.totalorder %v3634, 1
  %vm3636 = vmand %vm3632, %vm3635
  %v3637 = vsel %vm3636, -1e+09, 0.0
  %3638 = vmatpush.msra.mxu0 0.0
  %3639 = vmatpush.msra.mxu0 0.0
  %3640 = vmatpush.msra.mxu0 0.0
  %3641 = vmatpush.msra.mxu0 0.0
  %3642 = vmatpush.msra.mxu0 0.0
  %3643 = vmatpush.msra.mxu0 0.0
  %3644 = vmatpush.msra.mxu0 0.0
  %3645 = vmatpush.msra.mxu0 0.0
  %3646 = vmatpush.msra.mxu0 0.0
  %3647 = vmatpush.msra.mxu0 0.0
  %3648 = vmatpush.msra.mxu0 0.0
  %3649 = vmatpush.msra.mxu0 0.0
  %3650 = vmatpush.msra.mxu0 0.0
  %3651 = vmatpush.msra.mxu0 0.0
  %3652 = vmatpush.msra.mxu0 %v3562
  %3653 = vmatpush.msra.mxu0 %v3561
  %3654 = vmatmul.f32.gmra.mxu0 %v403
  %v3655 = vpop.f32.mrf.mxu0
  %v3656 = vadd.f32 %v53, %v3655
  %3657 = vmatmul.f32.gmra.mxu0 %v406
  %v3658 = vpop.f32.mrf.mxu0
  %v3659 = vadd.f32 %v54, %v3658
  %3660 = vmatmul.f32.gmra.mxu0 %v409
  %v3661 = vpop.f32.mrf.mxu0
  %v3662 = vadd.f32 %v55, %v3661
  %3663 = vmatmul.f32.gmra.mxu0 %v412
  %v3664 = vpop.f32.mrf.mxu0
  %v3665 = vadd.f32 %v56, %v3664
  %3666 = vmatmul.f32.gmra.mxu0 %v415
  %v3667 = vpop.f32.mrf.mxu0
  %v3668 = vadd.f32 %v57, %v3667
  %3669 = vmatmul.f32.gmra.mxu0 %v418
  %v3670 = vpop.f32.mrf.mxu0
  %v3671 = vadd.f32 %v58, %v3670
  %3672 = vmatmul.f32.gmra.mxu0 %v421
  %v3673 = vpop.f32.mrf.mxu0
  %v3674 = vadd.f32 %v59, %v3673
  %3675 = vmatmul.f32.gmra.mxu0 %v424
  %v3676 = vpop.f32.mrf.mxu0
  %v3677 = vadd.f32 %v60, %v3676
  %3678 = vdwg.mxu0
  %3679 = vmatpush.msra.mxu0 0.0
  %3680 = vmatpush.msra.mxu0 0.0
  %3681 = vmatpush.msra.mxu0 0.0
  %3682 = vmatpush.msra.mxu0 0.0
  %3683 = vmatpush.msra.mxu0 0.0
  %3684 = vmatpush.msra.mxu0 0.0
  %3685 = vmatpush.msra.mxu0 0.0
  %3686 = vmatpush.msra.mxu0 0.0
  %3687 = vmatpush.msra.mxu0 0.0
  %3688 = vmatpush.msra.mxu0 0.0
  %3689 = vmatpush.msra.mxu0 0.0
  %3690 = vmatpush.msra.mxu0 0.0
  %3691 = vmatpush.msra.mxu0 0.0
  %3692 = vmatpush.msra.mxu0 0.0
  %3693 = vmatpush.msra.mxu0 0.0
  %3694 = vmatpush.msra.mxu0 %v3656
  %3695 = vmatmul.f32.gmra.mxu0 %v469
  %v3696 = vpop.f32.mrf.mxu0
  %v3697 = vadd.f32 0.0, %v3696
  %3698 = vdwg.mxu0
  %3699 = vmatpush.msra.mxu0 0.0
  %3700 = vmatpush.msra.mxu0 0.0
  %3701 = vmatpush.msra.mxu0 0.0
  %3702 = vmatpush.msra.mxu0 0.0
  %3703 = vmatpush.msra.mxu0 0.0
  %3704 = vmatpush.msra.mxu0 0.0
  %3705 = vmatpush.msra.mxu0 0.0
  %3706 = vmatpush.msra.mxu0 0.0
  %3707 = vmatpush.msra.mxu0 0.0
  %3708 = vmatpush.msra.mxu0 0.0
  %3709 = vmatpush.msra.mxu0 0.0
  %3710 = vmatpush.msra.mxu0 0.0
  %3711 = vmatpush.msra.mxu0 0.0
  %3712 = vmatpush.msra.mxu0 0.0
  %3713 = vmatpush.msra.mxu0 0.0
  %3714 = vmatpush.msra.mxu0 %v3659
  %3715 = vmatmul.f32.gmra.mxu0 %v493
  %v3716 = vpop.f32.mrf.mxu0
  %v3717 = vadd.f32 0.0, %v3716
  %3718 = vdwg.mxu0
  %3719 = vmatpush.msra.mxu0 0.0
  %3720 = vmatpush.msra.mxu0 0.0
  %3721 = vmatpush.msra.mxu0 0.0
  %3722 = vmatpush.msra.mxu0 0.0
  %3723 = vmatpush.msra.mxu0 0.0
  %3724 = vmatpush.msra.mxu0 0.0
  %3725 = vmatpush.msra.mxu0 0.0
  %3726 = vmatpush.msra.mxu0 0.0
  %3727 = vmatpush.msra.mxu0 0.0
  %3728 = vmatpush.msra.mxu0 0.0
  %3729 = vmatpush.msra.mxu0 0.0
  %3730 = vmatpush.msra.mxu0 0.0
  %3731 = vmatpush.msra.mxu0 0.0
  %3732 = vmatpush.msra.mxu0 0.0
  %3733 = vmatpush.msra.mxu0 0.0
  %3734 = vmatpush.msra.mxu0 %v3662
  %3735 = vmatmul.f32.gmra.mxu0 %v517
  %v3736 = vpop.f32.mrf.mxu0
  %v3737 = vadd.f32 0.0, %v3736
  %3738 = vdwg.mxu0
  %3739 = vmatpush.msra.mxu0 0.0
  %3740 = vmatpush.msra.mxu0 0.0
  %3741 = vmatpush.msra.mxu0 0.0
  %3742 = vmatpush.msra.mxu0 0.0
  %3743 = vmatpush.msra.mxu0 0.0
  %3744 = vmatpush.msra.mxu0 0.0
  %3745 = vmatpush.msra.mxu0 0.0
  %3746 = vmatpush.msra.mxu0 0.0
  %3747 = vmatpush.msra.mxu0 0.0
  %3748 = vmatpush.msra.mxu0 0.0
  %3749 = vmatpush.msra.mxu0 0.0
  %3750 = vmatpush.msra.mxu0 0.0
  %3751 = vmatpush.msra.mxu0 0.0
  %3752 = vmatpush.msra.mxu0 0.0
  %3753 = vmatpush.msra.mxu0 0.0
  %3754 = vmatpush.msra.mxu0 %v3665
  %3755 = vmatmul.f32.gmra.mxu0 %v541
  %v3756 = vpop.f32.mrf.mxu0
  %v3757 = vadd.f32 0.0, %v3756
  %3758 = vdwg.mxu0
  %v3759 = vadd.f32 %v3697, %v3637
  %v3760 = vadd.f32 %v3717, %v3637
  %v3761 = vadd.f32 %v3737, %v3637
  %v3762 = vadd.f32 %v3757, %v3637
  %v3763 = vsel %vm196, %v3759, -inf
  %3764 = vmax.xlane.f32.xlu0 %v3763
  %v3765 = vpop.xlane.xlu0 %3764
  %v3766 = vsel %vm196, %v3760, -inf
  %3767 = vmax.xlane.f32.xlu0 %v3766
  %v3768 = vpop.xlane.xlu0 %3767
  %v3769 = vsel %vm196, %v3761, -inf
  %3770 = vmax.xlane.f32.xlu0 %v3769
  %v3771 = vpop.xlane.xlu0 %3770
  %v3772 = vsel %vm196, %v3762, -inf
  %3773 = vmax.xlane.f32.xlu0 %v3772
  %v3774 = vpop.xlane.xlu0 %3773
  %v3775 = vsub.f32 %v3759, %v3765
  %v3776 = vsub.f32 %v3760, %v3768
  %v3777 = vsub.f32 %v3761, %v3771
  %v3778 = vsub.f32 %v3762, %v3774
  %v3779 = vmul.f32 %v3775, 1.442695
  %v3780 = vpow.pop %v3779
  %v3781 = vmul.f32 %v3776, 1.442695
  %v3782 = vpow.pop %v3781
  %v3783 = vmul.f32 %v3777, 1.442695
  %v3784 = vpow.pop %v3783
  %v3785 = vmul.f32 %v3778, 1.442695
  %v3786 = vpow.pop %v3785
  %v3787 = vsel %vm196, %v3780, 0.0
  %3788 = vadd.xlane.f32.xlu0 %v3787
  %v3789 = vpop.xlane.xlu0 %3788
  %v3790 = vsel %vm196, %v3782, 0.0
  %3791 = vadd.xlane.f32.xlu0 %v3790
  %v3792 = vpop.xlane.xlu0 %3791
  %v3793 = vsel %vm196, %v3784, 0.0
  %3794 = vadd.xlane.f32.xlu0 %v3793
  %v3795 = vpop.xlane.xlu0 %3794
  %v3796 = vsel %vm196, %v3786, 0.0
  %3797 = vadd.xlane.f32.xlu0 %v3796
  %v3798 = vpop.xlane.xlu0 %3797
  %v3799 = vrcp.pop %v3789
  %v3800 = vmul.f32 %v3789, %v3799
  %v3801 = vsub.f32 1.0, %v3800
  %v3802 = vmul.f32 %v3799, %v3801
  %v3803 = vadd.f32 %v3799, %v3802
  %vm3804 = vweird.f32 %v3789
  %vm3805 = vweird.f32 %v3799
  %vm3806 = vmor %vm3804, %vm3805
  %v3807 = vsel %vm3806, %v3799, %v3803
  %v3808 = vand.u32 2147483647, %v3789
  %vm3809 = vcmp.eq.f32.partialorder %v3808, 8.507059e+37
  %v3810 = vand.u32 %v3789, 2147483648
  %v3811 = vor.u32 1.1754944e-38, %v3810
  %v3812 = vsel %vm3809, %v3811, %v3807
  %v3813 = vmul.f32 %v3780, %v3812
  %v3814 = vrcp.pop %v3792
  %v3815 = vmul.f32 %v3792, %v3814
  %v3816 = vsub.f32 1.0, %v3815
  %v3817 = vmul.f32 %v3814, %v3816
  %v3818 = vadd.f32 %v3814, %v3817
  %vm3819 = vweird.f32 %v3792
  %vm3820 = vweird.f32 %v3814
  %vm3821 = vmor %vm3819, %vm3820
  %v3822 = vsel %vm3821, %v3814, %v3818
  %v3823 = vand.u32 2147483647, %v3792
  %vm3824 = vcmp.eq.f32.partialorder %v3823, 8.507059e+37
  %v3825 = vand.u32 %v3792, 2147483648
  %v3826 = vor.u32 1.1754944e-38, %v3825
  %v3827 = vsel %vm3824, %v3826, %v3822
  %v3828 = vmul.f32 %v3782, %v3827
  %v3829 = vrcp.pop %v3795
  %v3830 = vmul.f32 %v3795, %v3829
  %v3831 = vsub.f32 1.0, %v3830
  %v3832 = vmul.f32 %v3829, %v3831
  %v3833 = vadd.f32 %v3829, %v3832
  %vm3834 = vweird.f32 %v3795
  %vm3835 = vweird.f32 %v3829
  %vm3836 = vmor %vm3834, %vm3835
  %v3837 = vsel %vm3836, %v3829, %v3833
  %v3838 = vand.u32 2147483647, %v3795
  %vm3839 = vcmp.eq.f32.partialorder %v3838, 8.507059e+37
  %v3840 = vand.u32 %v3795, 2147483648
  %v3841 = vor.u32 1.1754944e-38, %v3840
  %v3842 = vsel %vm3839, %v3841, %v3837
  %v3843 = vmul.f32 %v3784, %v3842
  %v3844 = vrcp.pop %v3798
  %v3845 = vmul.f32 %v3798, %v3844
  %v3846 = vsub.f32 1.0, %v3845
  %v3847 = vmul.f32 %v3844, %v3846
  %v3848 = vadd.f32 %v3844, %v3847
  %vm3849 = vweird.f32 %v3798
  %vm3850 = vweird.f32 %v3844
  %vm3851 = vmor %vm3849, %vm3850
  %v3852 = vsel %vm3851, %v3844, %v3848
  %v3853 = vand.u32 2147483647, %v3798
  %vm3854 = vcmp.eq.f32.partialorder %v3853, 8.507059e+37
  %v3855 = vand.u32 %v3798, 2147483648
  %v3856 = vor.u32 1.1754944e-38, %v3855
  %v3857 = vsel %vm3854, %v3856, %v3852
  %v3858 = vmul.f32 %v3786, %v3857
  %v3860 = vsel %vm196, %v3813, 0
  %v3863 = vsel %vm196, %v3668, 0
  %3865 = vmatpush.xpose.msra.mxu0 0.0
  %3866 = vmatpush.xpose.msra.mxu0 0.0
  %3867 = vmatpush.xpose.msra.mxu0 0.0
  %3868 = vmatpush.xpose.msra.mxu0 0.0
  %3869 = vmatpush.xpose.msra.mxu0 0.0
  %3870 = vmatpush.xpose.msra.mxu0 0.0
  %3871 = vmatpush.xpose.msra.mxu0 0.0
  %3872 = vmatpush.xpose.msra.mxu0 0.0
  %3873 = vmatpush.xpose.msra.mxu0 0.0
  %3874 = vmatpush.xpose.msra.mxu0 0.0
  %3875 = vmatpush.xpose.msra.mxu0 0.0
  %3876 = vmatpush.xpose.msra.mxu0 0.0
  %3877 = vmatpush.xpose.msra.mxu0 0.0
  %3878 = vmatpush.xpose.msra.mxu0 0.0
  %3879 = vmatpush.xpose.msra.mxu0 0.0
  %3880 = vmatpush.xpose.msra.mxu0 %v3863
  %3881 = vmatmul.f32.gmra.mxu0 %v3860
  %v3882 = vpop.f32.mrf.mxu0
  %v3883 = vadd.f32 0.0, %v3882
  %3884 = vdwg.mxu0
  %v3886 = vsel %vm196, %v3828, 0
  %v3889 = vsel %vm196, %v3671, 0
  %3891 = vmatpush.xpose.msra.mxu0 0.0
  %3892 = vmatpush.xpose.msra.mxu0 0.0
  %3893 = vmatpush.xpose.msra.mxu0 0.0
  %3894 = vmatpush.xpose.msra.mxu0 0.0
  %3895 = vmatpush.xpose.msra.mxu0 0.0
  %3896 = vmatpush.xpose.msra.mxu0 0.0
  %3897 = vmatpush.xpose.msra.mxu0 0.0
  %3898 = vmatpush.xpose.msra.mxu0 0.0
  %3899 = vmatpush.xpose.msra.mxu0 0.0
  %3900 = vmatpush.xpose.msra.mxu0 0.0
  %3901 = vmatpush.xpose.msra.mxu0 0.0
  %3902 = vmatpush.xpose.msra.mxu0 0.0
  %3903 = vmatpush.xpose.msra.mxu0 0.0
  %3904 = vmatpush.xpose.msra.mxu0 0.0
  %3905 = vmatpush.xpose.msra.mxu0 0.0
  %3906 = vmatpush.xpose.msra.mxu0 %v3889
  %3907 = vmatmul.f32.gmra.mxu0 %v3886
  %v3908 = vpop.f32.mrf.mxu0
  %v3909 = vadd.f32 0.0, %v3908
  %3910 = vdwg.mxu0
  %v3912 = vsel %vm196, %v3843, 0
  %v3915 = vsel %vm196, %v3674, 0
  %3917 = vmatpush.xpose.msra.mxu0 0.0
  %3918 = vmatpush.xpose.msra.mxu0 0.0
  %3919 = vmatpush.xpose.msra.mxu0 0.0
  %3920 = vmatpush.xpose.msra.mxu0 0.0
  %3921 = vmatpush.xpose.msra.mxu0 0.0
  %3922 = vmatpush.xpose.msra.mxu0 0.0
  %3923 = vmatpush.xpose.msra.mxu0 0.0
  %3924 = vmatpush.xpose.msra.mxu0 0.0
  %3925 = vmatpush.xpose.msra.mxu0 0.0
  %3926 = vmatpush.xpose.msra.mxu0 0.0
  %3927 = vmatpush.xpose.msra.mxu0 0.0
  %3928 = vmatpush.xpose.msra.mxu0 0.0
  %3929 = vmatpush.xpose.msra.mxu0 0.0
  %3930 = vmatpush.xpose.msra.mxu0 0.0
  %3931 = vmatpush.xpose.msra.mxu0 0.0
  %3932 = vmatpush.xpose.msra.mxu0 %v3915
  %3933 = vmatmul.f32.gmra.mxu0 %v3912
  %v3934 = vpop.f32.mrf.mxu0
  %v3935 = vadd.f32 0.0, %v3934
  %3936 = vdwg.mxu0
  %v3938 = vsel %vm196, %v3858, 0
  %v3941 = vsel %vm196, %v3677, 0
  %3943 = vmatpush.xpose.msra.mxu0 0.0
  %3944 = vmatpush.xpose.msra.mxu0 0.0
  %3945 = vmatpush.xpose.msra.mxu0 0.0
  %3946 = vmatpush.xpose.msra.mxu0 0.0
  %3947 = vmatpush.xpose.msra.mxu0 0.0
  %3948 = vmatpush.xpose.msra.mxu0 0.0
  %3949 = vmatpush.xpose.msra.mxu0 0.0
  %3950 = vmatpush.xpose.msra.mxu0 0.0
  %3951 = vmatpush.xpose.msra.mxu0 0.0
  %3952 = vmatpush.xpose.msra.mxu0 0.0
  %3953 = vmatpush.xpose.msra.mxu0 0.0
  %3954 = vmatpush.xpose.msra.mxu0 0.0
  %3955 = vmatpush.xpose.msra.mxu0 0.0
  %3956 = vmatpush.xpose.msra.mxu0 0.0
  %3957 = vmatpush.xpose.msra.mxu0 0.0
  %3958 = vmatpush.xpose.msra.mxu0 %v3941
  %3959 = vmatmul.f32.gmra.mxu0 %v3938
  %v3960 = vpop.f32.mrf.mxu0
  %v3961 = vadd.f32 0.0, %v3960
  %3962 = vdwg.mxu0
  %3964 = vrot.lane.b32.xlu0 %v3909, 8
  %v3965 = vpop.permute.xlu0 %3964
  %3968 = vrot.lane.b32.xlu0 %v3935, 16
  %v3969 = vpop.permute.xlu0 %3968
  %3972 = vrot.lane.b32.xlu0 %v3961, 24
  %v3973 = vpop.permute.xlu0 %3972
  %v3975 = vsel %vm467, %v3883, %v3965
  %v3976 = vsel %vm401, %v3975, %v3969
  %v3977 = vsel %vm781, %v3976, %v3973
  %v3979 = vsel %vm238, %v3977, 0
  %3981 = vmatpush.msra.mxu0 0.0
  %3982 = vmatpush.msra.mxu0 0.0
  %3983 = vmatpush.msra.mxu0 0.0
  %3984 = vmatpush.msra.mxu0 0.0
  %3985 = vmatpush.msra.mxu0 0.0
  %3986 = vmatpush.msra.mxu0 0.0
  %3987 = vmatpush.msra.mxu0 0.0
  %3988 = vmatpush.msra.mxu0 0.0
  %3989 = vmatpush.msra.mxu0 0.0
  %3990 = vmatpush.msra.mxu0 0.0
  %3991 = vmatpush.msra.mxu0 0.0
  %3992 = vmatpush.msra.mxu0 0.0
  %3993 = vmatpush.msra.mxu0 %v64
  %3994 = vmatpush.msra.mxu0 %v63
  %3995 = vmatpush.msra.mxu0 %v62
  %3996 = vmatpush.msra.mxu0 %v61
  %3997 = vmatmul.f32.gmra.mxu0 %v3979
  %v3998 = vpop.f32.mrf.mxu0
  %v3999 = vadd.f32 0.0, %v3998
  %4000 = vdwg.mxu0
  %v4001 = vadd.f32 %v17, %v3999
  %v4002 = vadd.f32 %v4001, %v807
  %v4003 = vsel %vm238, %v4002, 0.0
  %4004 = vadd.xlane.f32.xlu0 %v4003
  %v4005 = vpop.xlane.xlu0 %4004
  %v4006 = vmul.f32 %v4005, %v248
  %v4007 = vsub.f32 %v4002, %v4006
  %v4008 = vmul.f32 %v4007, %v4007
  %v4009 = vsel %vm238, %v4008, 0.0
  %4010 = vadd.xlane.f32.xlu0 %v4009
  %v4011 = vpop.xlane.xlu0 %4010
  %v4012 = vmul.f32 %v4011, %v248
  %v4013 = vadd.f32 %v4012, 1e-05
  %v4014 = vrsqrt.pop %v4013
  %v4015 = vmul.f32 %v4014, %v4013
  %v4016 = vmul.f32 %v4015, %v4014
  %v4017 = vmul.f32 0.5, %v4016
  %v4018 = vsub.f32 1.5, %v4017
  %v4019 = vmul.f32 %v4014, %v4018
  %vm4020 = vweird.f32 %v4013
  %vm4021 = vweird.f32 %v4014
  %vm4022 = vmor %vm4020, %vm4021
  %v4023 = vsel %vm4022, %v4014, %v4019
  %v4024 = vmul.f32 %v4007, %v4023
  %v4025 = vmul.f32 %v4024, %v831
  %v4026 = vadd.f32 %v4025, %v833
  %v4028 = vsel %vm238, %v4026, 0
  %4030 = vmatpush.msra.mxu0 0.0
  %4031 = vmatpush.msra.mxu0 0.0
  %4032 = vmatpush.msra.mxu0 0.0
  %4033 = vmatpush.msra.mxu0 0.0
  %4034 = vmatpush.msra.mxu0 0.0
  %4035 = vmatpush.msra.mxu0 0.0
  %4036 = vmatpush.msra.mxu0 0.0
  %4037 = vmatpush.msra.mxu0 0.0
  %4038 = vmatpush.msra.mxu0 0.0
  %4039 = vmatpush.msra.mxu0 0.0
  %4040 = vmatpush.msra.mxu0 0.0
  %4041 = vmatpush.msra.mxu0 0.0
  %4042 = vmatpush.msra.mxu0 %v69
  %4043 = vmatpush.msra.mxu0 %v68
  %4044 = vmatpush.msra.mxu0 %v67
  %4045 = vmatpush.msra.mxu0 %v66
  %4046 = vmatmul.f32.gmra.mxu0 %v4028
  %v4047 = vpop.f32.mrf.mxu0
  %v4048 = vadd.f32 %v70, %v4047
  %4049 = vdwg.mxu0
  %4051 = vrot.lane.b32.xlu0 %v4048, 96
  %v4052 = vpop.permute.xlu0 %4051
  %v4053 = vsel %vm467, %v4048, 0
  %v4055 = vsel %vm467, %v4052, 0
  %4057 = vmatpush.xpose.msra.mxu0 0.0
  %4058 = vmatpush.xpose.msra.mxu0 0.0
  %4059 = vmatpush.xpose.msra.mxu0 0.0
  %4060 = vmatpush.xpose.msra.mxu0 0.0
  %4061 = vmatpush.xpose.msra.mxu0 0.0
  %4062 = vmatpush.xpose.msra.mxu0 0.0
  %4063 = vmatpush.xpose.msra.mxu0 0.0
  %4064 = vmatpush.xpose.msra.mxu0 0.0
  %4065 = vmatpush.xpose.msra.mxu0 0.0
  %4066 = vmatpush.xpose.msra.mxu0 0.0
  %4067 = vmatpush.xpose.msra.mxu0 0.0
  %4068 = vmatpush.xpose.msra.mxu0 0.0
  %4069 = vmatpush.xpose.msra.mxu0 0.0
  %4070 = vmatpush.xpose.msra.mxu0 0.0
  %4071 = vmatpush.xpose.msra.mxu0 0.0
  %4072 = vmatpush.xpose.msra.mxu0 %v4055
  %4073 = vmatmul.f32.gmra.mxu0 %v4053
  %v4074 = vpop.f32.mrf.mxu0
  %v4075 = vadd.f32 0.0, %v4074
  %4076 = vdwg.mxu0
  %4077 = vrot.lane.b32.xlu0 %v4048, 120
  %v4078 = vpop.permute.xlu0 %4077
  %4079 = vrot.lane.b32.xlu0 %v4048, 88
  %v4080 = vpop.permute.xlu0 %4079
  %v4081 = vsel %vm467, %v4078, 0
  %v4083 = vsel %vm467, %v4080, 0
  %4085 = vmatpush.xpose.msra.mxu0 0.0
  %4086 = vmatpush.xpose.msra.mxu0 0.0
  %4087 = vmatpush.xpose.msra.mxu0 0.0
  %4088 = vmatpush.xpose.msra.mxu0 0.0
  %4089 = vmatpush.xpose.msra.mxu0 0.0
  %4090 = vmatpush.xpose.msra.mxu0 0.0
  %4091 = vmatpush.xpose.msra.mxu0 0.0
  %4092 = vmatpush.xpose.msra.mxu0 0.0
  %4093 = vmatpush.xpose.msra.mxu0 0.0
  %4094 = vmatpush.xpose.msra.mxu0 0.0
  %4095 = vmatpush.xpose.msra.mxu0 0.0
  %4096 = vmatpush.xpose.msra.mxu0 0.0
  %4097 = vmatpush.xpose.msra.mxu0 0.0
  %4098 = vmatpush.xpose.msra.mxu0 0.0
  %4099 = vmatpush.xpose.msra.mxu0 0.0
  %4100 = vmatpush.xpose.msra.mxu0 %v4083
  %4101 = vmatmul.f32.gmra.mxu0 %v4081
  %v4102 = vpop.f32.mrf.mxu0
  %v4103 = vadd.f32 0.0, %v4102
  %4104 = vdwg.mxu0
  %4105 = vrot.lane.b32.xlu0 %v4048, 112
  %v4106 = vpop.permute.xlu0 %4105
  %4107 = vrot.lane.b32.xlu0 %v4048, 80
  %v4108 = vpop.permute.xlu0 %4107
  %v4109 = vsel %vm467, %v4106, 0
  %v4111 = vsel %vm467, %v4108, 0
  %4113 = vmatpush.xpose.msra.mxu0 0.0
  %4114 = vmatpush.xpose.msra.mxu0 0.0
  %4115 = vmatpush.xpose.msra.mxu0 0.0
  %4116 = vmatpush.xpose.msra.mxu0 0.0
  %4117 = vmatpush.xpose.msra.mxu0 0.0
  %4118 = vmatpush.xpose.msra.mxu0 0.0
  %4119 = vmatpush.xpose.msra.mxu0 0.0
  %4120 = vmatpush.xpose.msra.mxu0 0.0
  %4121 = vmatpush.xpose.msra.mxu0 0.0
  %4122 = vmatpush.xpose.msra.mxu0 0.0
  %4123 = vmatpush.xpose.msra.mxu0 0.0
  %4124 = vmatpush.xpose.msra.mxu0 0.0
  %4125 = vmatpush.xpose.msra.mxu0 0.0
  %4126 = vmatpush.xpose.msra.mxu0 0.0
  %4127 = vmatpush.xpose.msra.mxu0 0.0
  %4128 = vmatpush.xpose.msra.mxu0 %v4111
  %4129 = vmatmul.f32.gmra.mxu0 %v4109
  %v4130 = vpop.f32.mrf.mxu0
  %v4131 = vadd.f32 0.0, %v4130
  %4132 = vdwg.mxu0
  %4133 = vrot.lane.b32.xlu0 %v4048, 104
  %v4134 = vpop.permute.xlu0 %4133
  %4135 = vrot.lane.b32.xlu0 %v4048, 72
  %v4136 = vpop.permute.xlu0 %4135
  %v4137 = vsel %vm467, %v4134, 0
  %v4139 = vsel %vm467, %v4136, 0
  %4141 = vmatpush.xpose.msra.mxu0 0.0
  %4142 = vmatpush.xpose.msra.mxu0 0.0
  %4143 = vmatpush.xpose.msra.mxu0 0.0
  %4144 = vmatpush.xpose.msra.mxu0 0.0
  %4145 = vmatpush.xpose.msra.mxu0 0.0
  %4146 = vmatpush.xpose.msra.mxu0 0.0
  %4147 = vmatpush.xpose.msra.mxu0 0.0
  %4148 = vmatpush.xpose.msra.mxu0 0.0
  %4149 = vmatpush.xpose.msra.mxu0 0.0
  %4150 = vmatpush.xpose.msra.mxu0 0.0
  %4151 = vmatpush.xpose.msra.mxu0 0.0
  %4152 = vmatpush.xpose.msra.mxu0 0.0
  %4153 = vmatpush.xpose.msra.mxu0 0.0
  %4154 = vmatpush.xpose.msra.mxu0 0.0
  %4155 = vmatpush.xpose.msra.mxu0 0.0
  %4156 = vmatpush.xpose.msra.mxu0 %v4139
  %4157 = vmatmul.f32.gmra.mxu0 %v4137
  %v4158 = vpop.f32.mrf.mxu0
  %v4159 = vadd.f32 0.0, %v4158
  %4160 = vdwg.mxu0
  %v4161 = vsel %vm467, %v4075, -inf
  %4162 = vmax.xlane.f32.xlu0 %v4161
  %v4163 = vpop.xlane.xlu0 %4162
  %v4164 = vsel %vm467, %v4103, -inf
  %4165 = vmax.xlane.f32.xlu0 %v4164
  %v4166 = vpop.xlane.xlu0 %4165
  %v4167 = vsel %vm467, %v4131, -inf
  %4168 = vmax.xlane.f32.xlu0 %v4167
  %v4169 = vpop.xlane.xlu0 %4168
  %v4170 = vsel %vm467, %v4159, -inf
  %4171 = vmax.xlane.f32.xlu0 %v4170
  %v4172 = vpop.xlane.xlu0 %4171
  %v4173 = vsub.f32 %v4075, %v4163
  %v4174 = vsub.f32 %v4103, %v4166
  %v4175 = vsub.f32 %v4131, %v4169
  %v4176 = vsub.f32 %v4159, %v4172
  %v4177 = vmul.f32 %v4173, 1.442695
  %v4178 = vpow.pop %v4177
  %v4179 = vmul.f32 %v4174, 1.442695
  %v4180 = vpow.pop %v4179
  %v4181 = vmul.f32 %v4175, 1.442695
  %v4182 = vpow.pop %v4181
  %v4183 = vmul.f32 %v4176, 1.442695
  %v4184 = vpow.pop %v4183
  %v4185 = vsel %vm467, %v4178, 0.0
  %4186 = vadd.xlane.f32.xlu0 %v4185
  %v4187 = vpop.xlane.xlu0 %4186
  %v4188 = vsel %vm467, %v4180, 0.0
  %4189 = vadd.xlane.f32.xlu0 %v4188
  %v4190 = vpop.xlane.xlu0 %4189
  %v4191 = vsel %vm467, %v4182, 0.0
  %4192 = vadd.xlane.f32.xlu0 %v4191
  %v4193 = vpop.xlane.xlu0 %4192
  %v4194 = vsel %vm467, %v4184, 0.0
  %4195 = vadd.xlane.f32.xlu0 %v4194
  %v4196 = vpop.xlane.xlu0 %4195
  %v4197 = vrcp.pop %v4187
  %v4198 = vmul.f32 %v4187, %v4197
  %v4199 = vsub.f32 1.0, %v4198
  %v4200 = vmul.f32 %v4197, %v4199
  %v4201 = vadd.f32 %v4197, %v4200
  %vm4202 = vweird.f32 %v4187
  %vm4203 = vweird.f32 %v4197
  %vm4204 = vmor %vm4202, %vm4203
  %v4205 = vsel %vm4204, %v4197, %v4201
  %v4206 = vand.u32 2147483647, %v4187
  %vm4207 = vcmp.eq.f32.partialorder %v4206, 8.507059e+37
  %v4208 = vand.u32 %v4187, 2147483648
  %v4209 = vor.u32 1.1754944e-38, %v4208
  %v4210 = vsel %vm4207, %v4209, %v4205
  %v4211 = vmul.f32 %v4178, %v4210
  %v4212 = vrcp.pop %v4190
  %v4213 = vmul.f32 %v4190, %v4212
  %v4214 = vsub.f32 1.0, %v4213
  %v4215 = vmul.f32 %v4212, %v4214
  %v4216 = vadd.f32 %v4212, %v4215
  %vm4217 = vweird.f32 %v4190
  %vm4218 = vweird.f32 %v4212
  %vm4219 = vmor %vm4217, %vm4218
  %v4220 = vsel %vm4219, %v4212, %v4216
  %v4221 = vand.u32 2147483647, %v4190
  %vm4222 = vcmp.eq.f32.partialorder %v4221, 8.507059e+37
  %v4223 = vand.u32 %v4190, 2147483648
  %v4224 = vor.u32 1.1754944e-38, %v4223
  %v4225 = vsel %vm4222, %v4224, %v4220
  %v4226 = vmul.f32 %v4180, %v4225
  %v4227 = vrcp.pop %v4193
  %v4228 = vmul.f32 %v4193, %v4227
  %v4229 = vsub.f32 1.0, %v4228
  %v4230 = vmul.f32 %v4227, %v4229
  %v4231 = vadd.f32 %v4227, %v4230
  %vm4232 = vweird.f32 %v4193
  %vm4233 = vweird.f32 %v4227
  %vm4234 = vmor %vm4232, %vm4233
  %v4235 = vsel %vm4234, %v4227, %v4231
  %v4236 = vand.u32 2147483647, %v4193
  %vm4237 = vcmp.eq.f32.partialorder %v4236, 8.507059e+37
  %v4238 = vand.u32 %v4193, 2147483648
  %v4239 = vor.u32 1.1754944e-38, %v4238
  %v4240 = vsel %vm4237, %v4239, %v4235
  %v4241 = vmul.f32 %v4182, %v4240
  %v4242 = vrcp.pop %v4196
  %v4243 = vmul.f32 %v4196, %v4242
  %v4244 = vsub.f32 1.0, %v4243
  %v4245 = vmul.f32 %v4242, %v4244
  %v4246 = vadd.f32 %v4242, %v4245
  %vm4247 = vweird.f32 %v4196
  %vm4248 = vweird.f32 %v4242
  %vm4249 = vmor %vm4247, %vm4248
  %v4250 = vsel %vm4249, %v4242, %v4246
  %v4251 = vand.u32 2147483647, %v4196
  %vm4252 = vcmp.eq.f32.partialorder %v4251, 8.507059e+37
  %v4253 = vand.u32 %v4196, 2147483648
  %v4254 = vor.u32 1.1754944e-38, %v4253
  %v4255 = vsel %vm4252, %v4254, %v4250
  %v4256 = vmul.f32 %v4184, %v4255
  %4257 = vrot.lane.b32.xlu0 %v4048, 64
  %v4258 = vpop.permute.xlu0 %4257
  %v4261 = vsel %vm467, %v4211, 0
  %4263 = vmatpush.msra.mxu0 0.0
  %4264 = vmatpush.msra.mxu0 0.0
  %4265 = vmatpush.msra.mxu0 0.0
  %4266 = vmatpush.msra.mxu0 0.0
  %4267 = vmatpush.msra.mxu0 0.0
  %4268 = vmatpush.msra.mxu0 0.0
  %4269 = vmatpush.msra.mxu0 0.0
  %4270 = vmatpush.msra.mxu0 0.0
  %4271 = vmatpush.msra.mxu0 0.0
  %4272 = vmatpush.msra.mxu0 0.0
  %4273 = vmatpush.msra.mxu0 0.0
  %4274 = vmatpush.msra.mxu0 0.0
  %4275 = vmatpush.msra.mxu0 0.0
  %4276 = vmatpush.msra.mxu0 0.0
  %4277 = vmatpush.msra.mxu0 0.0
  %4278 = vmatpush.msra.mxu0 %v4258
  %4279 = vmatmul.f32.gmra.mxu0 %v4261
  %v4280 = vpop.f32.mrf.mxu0
  %v4281 = vadd.f32 0.0, %v4280
  %4282 = vdwg.mxu0
  %4283 = vrot.lane.b32.xlu0 %v4048, 56
  %v4284 = vpop.permute.xlu0 %4283
  %v4287 = vsel %vm467, %v4226, 0
  %4289 = vmatpush.msra.mxu0 0.0
  %4290 = vmatpush.msra.mxu0 0.0
  %4291 = vmatpush.msra.mxu0 0.0
  %4292 = vmatpush.msra.mxu0 0.0
  %4293 = vmatpush.msra.mxu0 0.0
  %4294 = vmatpush.msra.mxu0 0.0
  %4295 = vmatpush.msra.mxu0 0.0
  %4296 = vmatpush.msra.mxu0 0.0
  %4297 = vmatpush.msra.mxu0 0.0
  %4298 = vmatpush.msra.mxu0 0.0
  %4299 = vmatpush.msra.mxu0 0.0
  %4300 = vmatpush.msra.mxu0 0.0
  %4301 = vmatpush.msra.mxu0 0.0
  %4302 = vmatpush.msra.mxu0 0.0
  %4303 = vmatpush.msra.mxu0 0.0
  %4304 = vmatpush.msra.mxu0 %v4284
  %4305 = vmatmul.f32.gmra.mxu0 %v4287
  %v4306 = vpop.f32.mrf.mxu0
  %v4307 = vadd.f32 0.0, %v4306
  %4308 = vdwg.mxu0
  %4309 = vrot.lane.b32.xlu0 %v4048, 48
  %v4310 = vpop.permute.xlu0 %4309
  %v4313 = vsel %vm467, %v4241, 0
  %4315 = vmatpush.msra.mxu0 0.0
  %4316 = vmatpush.msra.mxu0 0.0
  %4317 = vmatpush.msra.mxu0 0.0
  %4318 = vmatpush.msra.mxu0 0.0
  %4319 = vmatpush.msra.mxu0 0.0
  %4320 = vmatpush.msra.mxu0 0.0
  %4321 = vmatpush.msra.mxu0 0.0
  %4322 = vmatpush.msra.mxu0 0.0
  %4323 = vmatpush.msra.mxu0 0.0
  %4324 = vmatpush.msra.mxu0 0.0
  %4325 = vmatpush.msra.mxu0 0.0
  %4326 = vmatpush.msra.mxu0 0.0
  %4327 = vmatpush.msra.mxu0 0.0
  %4328 = vmatpush.msra.mxu0 0.0
  %4329 = vmatpush.msra.mxu0 0.0
  %4330 = vmatpush.msra.mxu0 %v4310
  %4331 = vmatmul.f32.gmra.mxu0 %v4313
  %v4332 = vpop.f32.mrf.mxu0
  %v4333 = vadd.f32 0.0, %v4332
  %4334 = vdwg.mxu0
  %4335 = vrot.lane.b32.xlu0 %v4048, 40
  %v4336 = vpop.permute.xlu0 %4335
  %v4339 = vsel %vm467, %v4256, 0
  %4341 = vmatpush.msra.mxu0 0.0
  %4342 = vmatpush.msra.mxu0 0.0
  %4343 = vmatpush.msra.mxu0 0.0
  %4344 = vmatpush.msra.mxu0 0.0
  %4345 = vmatpush.msra.mxu0 0.0
  %4346 = vmatpush.msra.mxu0 0.0
  %4347 = vmatpush.msra.mxu0 0.0
  %4348 = vmatpush.msra.mxu0 0.0
  %4349 = vmatpush.msra.mxu0 0.0
  %4350 = vmatpush.msra.mxu0 0.0
  %4351 = vmatpush.msra.mxu0 0.0
  %4352 = vmatpush.msra.mxu0 0.0
  %4353 = vmatpush.msra.mxu0 0.0
  %4354 = vmatpush.msra.mxu0 0.0
  %4355 = vmatpush.msra.mxu0 0.0
  %4356 = vmatpush.msra.mxu0 %v4336
  %4357 = vmatmul.f32.gmra.mxu0 %v4339
  %v4358 = vpop.f32.mrf.mxu0
  %v4359 = vadd.f32 0.0, %v4358
  %4360 = vdwg.mxu0
  %4362 = vrot.lane.b32.xlu0 %v4307, 8
  %v4363 = vpop.permute.xlu0 %4362
  %4366 = vrot.lane.b32.xlu0 %v4333, 16
  %v4367 = vpop.permute.xlu0 %4366
  %4370 = vrot.lane.b32.xlu0 %v4359, 24
  %v4371 = vpop.permute.xlu0 %4370
  %v4373 = vsel %vm467, %v4281, %v4363
  %v4374 = vsel %vm401, %v4373, %v4367
  %v4375 = vsel %vm781, %v4374, %v4371
  %v4377 = vsel %vm238, %v4375, 0
  %4379 = vmatpush.msra.mxu0 0.0
  %4380 = vmatpush.msra.mxu0 0.0
  %4381 = vmatpush.msra.mxu0 0.0
  %4382 = vmatpush.msra.mxu0 0.0
  %4383 = vmatpush.msra.mxu0 0.0
  %4384 = vmatpush.msra.mxu0 0.0
  %4385 = vmatpush.msra.mxu0 0.0
  %4386 = vmatpush.msra.mxu0 0.0
  %4387 = vmatpush.msra.mxu0 0.0
  %4388 = vmatpush.msra.mxu0 0.0
  %4389 = vmatpush.msra.mxu0 0.0
  %4390 = vmatpush.msra.mxu0 0.0
  %4391 = vmatpush.msra.mxu0 %v74
  %4392 = vmatpush.msra.mxu0 %v73
  %4393 = vmatpush.msra.mxu0 %v72
  %4394 = vmatpush.msra.mxu0 %v71
  %4395 = vmatmul.f32.gmra.mxu0 %v4377
  %v4396 = vpop.f32.mrf.mxu0
  %v4397 = vadd.f32 0.0, %v4396
  %4398 = vdwg.mxu0
  %v4399 = vadd.f32 %v4026, %v4397
  %v4400 = vadd.f32 %v4399, %v1208
  %v4401 = vsel %vm238, %v4400, 0.0
  %4402 = vadd.xlane.f32.xlu0 %v4401
  %v4403 = vpop.xlane.xlu0 %4402
  %v4404 = vmul.f32 %v4403, %v248
  %v4405 = vsub.f32 %v4400, %v4404
  %v4406 = vmul.f32 %v4405, %v4405
  %v4407 = vsel %vm238, %v4406, 0.0
  %4408 = vadd.xlane.f32.xlu0 %v4407
  %v4409 = vpop.xlane.xlu0 %4408
  %v4410 = vmul.f32 %v4409, %v248
  %v4411 = vadd.f32 %v4410, 1e-05
  %v4412 = vrsqrt.pop %v4411
  %v4413 = vmul.f32 %v4412, %v4411
  %v4414 = vmul.f32 %v4413, %v4412
  %v4415 = vmul.f32 0.5, %v4414
  %v4416 = vsub.f32 1.5, %v4415
  %v4417 = vmul.f32 %v4412, %v4416
  %vm4418 = vweird.f32 %v4411
  %vm4419 = vweird.f32 %v4412
  %vm4420 = vmor %vm4418, %vm4419
  %v4421 = vsel %vm4420, %v4412, %v4417
  %v4422 = vmul.f32 %v4405, %v4421
  %v4423 = vmul.f32 %v4422, %v1232
  %v4424 = vadd.f32 %v4423, %v1234
  %v4426 = vsel %vm238, %v4424, 0
  %4428 = vmatpush.msra.mxu0 0.0
  %4429 = vmatpush.msra.mxu0 0.0
  %4430 = vmatpush.msra.mxu0 0.0
  %4431 = vmatpush.msra.mxu0 0.0
  %4432 = vmatpush.msra.mxu0 0.0
  %4433 = vmatpush.msra.mxu0 0.0
  %4434 = vmatpush.msra.mxu0 0.0
  %4435 = vmatpush.msra.mxu0 0.0
  %4436 = vmatpush.msra.mxu0 0.0
  %4437 = vmatpush.msra.mxu0 0.0
  %4438 = vmatpush.msra.mxu0 0.0
  %4439 = vmatpush.msra.mxu0 0.0
  %4440 = vmatpush.msra.mxu0 %v79
  %4441 = vmatpush.msra.mxu0 %v78
  %4442 = vmatpush.msra.mxu0 %v77
  %4443 = vmatpush.msra.mxu0 %v76
  %4444 = vmatmul.f32.gmra.mxu0 %v4426
  %v4445 = vpop.f32.mrf.mxu0
  %v4446 = vadd.f32 %v1236, %v4445
  %4447 = vdwg.mxu0
  %v4448 = vmax.f32 %v4446, 0.0
  %v4450 = vsel %vm196, %v4448, 0
  %4452 = vmatpush.msra.mxu0 0.0
  %4453 = vmatpush.msra.mxu0 0.0
  %4454 = vmatpush.msra.mxu0 0.0
  %4455 = vmatpush.msra.mxu0 0.0
  %4456 = vmatpush.msra.mxu0 0.0
  %4457 = vmatpush.msra.mxu0 0.0
  %4458 = vmatpush.msra.mxu0 0.0
  %4459 = vmatpush.msra.mxu0 0.0
  %4460 = vmatpush.msra.mxu0 %v88
  %4461 = vmatpush.msra.mxu0 %v87
  %4462 = vmatpush.msra.mxu0 %v86
  %4463 = vmatpush.msra.mxu0 %v85
  %4464 = vmatpush.msra.mxu0 %v84
  %4465 = vmatpush.msra.mxu0 %v83
  %4466 = vmatpush.msra.mxu0 %v82
  %4467 = vmatpush.msra.mxu0 %v81
  %4468 = vmatmul.f32.gmra.mxu0 %v4450
  %v4469 = vpop.f32.mrf.mxu0
  %v4470 = vadd.f32 %v1261, %v4469
  %4471 = vdwg.mxu0
  %v4472 = vadd.f32 %v4424, %v4470
  %v4473 = vsel %vm238, %v4472, 0.0
  %4474 = vadd.xlane.f32.xlu0 %v4473
  %v4475 = vpop.xlane.xlu0 %4474
  %v4476 = vmul.f32 %v4475, %v248
  %v4477 = vsub.f32 %v4472, %v4476
  %v4478 = vmul.f32 %v4477, %v4477
  %v4479 = vsel %vm238, %v4478, 0.0
  %4480 = vadd.xlane.f32.xlu0 %v4479
  %v4481 = vpop.xlane.xlu0 %4480
  %v4482 = vmul.f32 %v4481, %v248
  %v4483 = vadd.f32 %v4482, 1e-05
  %v4484 = vrsqrt.pop %v4483
  %v4485 = vmul.f32 %v4484, %v4483
  %v4486 = vmul.f32 %v4485, %v4484
  %v4487 = vmul.f32 0.5, %v4486
  %v4488 = vsub.f32 1.5, %v4487
  %v4489 = vmul.f32 %v4484, %v4488
  %vm4490 = vweird.f32 %v4483
  %vm4491 = vweird.f32 %v4484
  %vm4492 = vmor %vm4490, %vm4491
  %v4493 = vsel %vm4492, %v4484, %v4489
  %v4494 = vmul.f32 %v4477, %v4493
  %v4495 = vmul.f32 %v4494, %v1308
  %v4496 = vadd.f32 %v4495, %v1310
  %v4497 = vsel %vm238, %v4496, 0.0
  %4498 = vadd.xlane.f32.xlu0 %v4497
  %v4499 = vpop.xlane.xlu0 %4498
  %v4500 = vmul.f32 %v4499, %v248
  %v4501 = vsub.f32 %v4496, %v4500
  %v4502 = vmul.f32 %v4501, %v4501
  %v4503 = vsel %vm238, %v4502, 0.0
  %4504 = vadd.xlane.f32.xlu0 %v4503
  %v4505 = vpop.xlane.xlu0 %4504
  %v4506 = vmul.f32 %v4505, %v248
  %v4507 = vadd.f32 %v4506, 1e-05
  %v4508 = vrsqrt.pop %v4507
  %v4509 = vmul.f32 %v4508, %v4507
  %v4510 = vmul.f32 %v4509, %v4508
  %v4511 = vmul.f32 0.5, %v4510
  %v4512 = vsub.f32 1.5, %v4511
  %v4513 = vmul.f32 %v4508, %v4512
  %vm4514 = vweird.f32 %v4507
  %vm4515 = vweird.f32 %v4508
  %vm4516 = vmor %vm4514, %vm4515
  %v4517 = vsel %vm4516, %v4508, %v4513
  %v4518 = vmul.f32 %v4501, %v4517
  %v4519 = vmul.f32 %v4518, %v268
  %v4520 = vadd.f32 %v4519, %v270
  %v4522 = vsel %vm238, %v4520, 0
  %4524 = vmatpush.msra.mxu0 0.0
  %4525 = vmatpush.msra.mxu0 0.0
  %4526 = vmatpush.msra.mxu0 0.0
  %4527 = vmatpush.msra.mxu0 0.0
  %4528 = vmatpush.msra.mxu0 0.0
  %4529 = vmatpush.msra.mxu0 0.0
  %4530 = vmatpush.msra.mxu0 0.0
  %4531 = vmatpush.msra.mxu0 0.0
  %4532 = vmatpush.msra.mxu0 0.0
  %4533 = vmatpush.msra.mxu0 0.0
  %4534 = vmatpush.msra.mxu0 0.0
  %4535 = vmatpush.msra.mxu0 0.0
  %4536 = vmatpush.msra.mxu0 %v21
  %4537 = vmatpush.msra.mxu0 %v20
  %4538 = vmatpush.msra.mxu0 %v19
  %4539 = vmatpush.msra.mxu0 %v18
  %4540 = vmatmul.f32.gmra.mxu0 %v4522
  %v4541 = vpop.f32.mrf.mxu0
  %v4542 = vadd.f32 %v272, %v4541
  %4543 = vdwg.mxu0
  %v4544 = vmax.f32 %v4542, 0.0
  %v4546 = vsel %vm238, %v4544, 0
  %4548 = vmatpush.msra.mxu0 0.0
  %4549 = vmatpush.msra.mxu0 0.0
  %4550 = vmatpush.msra.mxu0 0.0
  %4551 = vmatpush.msra.mxu0 0.0
  %4552 = vmatpush.msra.mxu0 0.0
  %4553 = vmatpush.msra.mxu0 0.0
  %4554 = vmatpush.msra.mxu0 0.0
  %4555 = vmatpush.msra.mxu0 0.0
  %4556 = vmatpush.msra.mxu0 0.0
  %4557 = vmatpush.msra.mxu0 0.0
  %4558 = vmatpush.msra.mxu0 0.0
  %4559 = vmatpush.msra.mxu0 0.0
  %4560 = vmatpush.msra.mxu0 %v25
  %4561 = vmatpush.msra.mxu0 %v24
  %4562 = vmatpush.msra.mxu0 %v23
  %4563 = vmatpush.msra.mxu0 %v22
  %4564 = vmatmul.f32.gmra.mxu0 %v4546
  %v4565 = vpop.f32.mrf.mxu0
  %v4566 = vadd.f32 %v297, %v4565
  %4567 = vdwg.mxu0
  %v4568 = vmax.f32 %v4566, 0.0
  %v4570 = vsel %vm238, %v4568, 0
  %4572 = vmatpush.msra.mxu0 0.0
  %4573 = vmatpush.msra.mxu0 0.0
  %4574 = vmatpush.msra.mxu0 0.0
  %4575 = vmatpush.msra.mxu0 0.0
  %4576 = vmatpush.msra.mxu0 0.0
  %4577 = vmatpush.msra.mxu0 0.0
  %4578 = vmatpush.msra.mxu0 0.0
  %4579 = vmatpush.msra.mxu0 0.0
  %4580 = vmatpush.msra.mxu0 0.0
  %4581 = vmatpush.msra.mxu0 0.0
  %4582 = vmatpush.msra.mxu0 0.0
  %4583 = vmatpush.msra.mxu0 0.0
  %4584 = vmatpush.msra.mxu0 %v29
  %4585 = vmatpush.msra.mxu0 %v28
  %4586 = vmatpush.msra.mxu0 %v27
  %4587 = vmatpush.msra.mxu0 %v26
  %4588 = vmatmul.f32.gmra.mxu0 %v4570
  %v4589 = vpop.f32.mrf.mxu0
  %v4590 = vadd.f32 %v322, %v4589
  %4591 = vdwg.mxu0
  %v4593 = vsel %vm238, %v4590, 0
  %4595 = vmatpush.msra.mxu0 0.0
  %4596 = vmatpush.msra.mxu0 0.0
  %4597 = vmatpush.msra.mxu0 0.0
  %4598 = vmatpush.msra.mxu0 0.0
  %4599 = vmatpush.msra.mxu0 0.0
  %4600 = vmatpush.msra.mxu0 0.0
  %4601 = vmatpush.msra.mxu0 0.0
  %4602 = vmatpush.msra.mxu0 0.0
  %4603 = vmatpush.msra.mxu0 0.0
  %4604 = vmatpush.msra.mxu0 0.0
  %4605 = vmatpush.msra.mxu0 0.0
  %4606 = vmatpush.msra.mxu0 0.0
  %4607 = vmatpush.msra.mxu0 %v3607
  %4608 = vmatpush.msra.mxu0 %v3604
  %4609 = vmatpush.msra.mxu0 %v3601
  %4610 = vmatpush.msra.mxu0 %v3598
  %4611 = vmatmul.f32.gmra.mxu0 %v4593
  %v4612 = vpop.f32.mrf.mxu0
  %v4613 = vadd.f32 0.0, %v4612
  %4614 = vdwg.mxu0
  %v4615 = vsel %vm401, %v4613, -inf
  %4616 = vmax.xlane.f32.xlu0 %v4615
  %v4617 = vpop.xlane.xlu0 %4616
  %vm4618 = vcmp.lt.f32.partialorder %v4613, 0.0
  %vm4619 = vcmp.ge.f32.partialorder %v4617, 0.0
  %v4620 = vsel %vm4619, 1, 0
  %vm4621 = vcmp.eq.s32.totalorder %v4620, 1
  %vm4622 = vmand %vm4618, %vm4621
  %v4623 = vsel %vm4622, -1e+09, 0.0
  %v4625 = vsel %vm238, %v4496, 0
  %4627 = vmatpush.msra.mxu0 0.0
  %4628 = vmatpush.msra.mxu0 0.0
  %4629 = vmatpush.msra.mxu0 0.0
  %4630 = vmatpush.msra.mxu0 0.0
  %4631 = vmatpush.msra.mxu0 0.0
  %4632 = vmatpush.msra.mxu0 0.0
  %4633 = vmatpush.msra.mxu0 0.0
  %4634 = vmatpush.msra.mxu0 0.0
  %4635 = vmatpush.msra.mxu0 0.0
  %4636 = vmatpush.msra.mxu0 0.0
  %4637 = vmatpush.msra.mxu0 0.0
  %4638 = vmatpush.msra.mxu0 0.0
  %4639 = vmatpush.msra.mxu0 %v93
  %4640 = vmatpush.msra.mxu0 %v92
  %4641 = vmatpush.msra.mxu0 %v91
  %4642 = vmatpush.msra.mxu0 %v90
  %4643 = vmatmul.f32.gmra.mxu0 %v4625
  %v4644 = vpop.f32.mrf.mxu0
  %v4645 = vadd.f32 %v94, %v4644
  %4646 = vdwg.mxu0
  %4649 = vrot.lane.b32.xlu0 %v3561, 64
  %v4650 = vpop.permute.xlu0 %4649
  %4651 = vrot.lane.b32.xlu0 %v3562, 64
  %v4652 = vpop.permute.xlu0 %4651
  %4655 = vmatpush.msra.mxu0 0.0
  %4656 = vmatpush.msra.mxu0 0.0
  %4657 = vmatpush.msra.mxu0 0.0
  %4658 = vmatpush.msra.mxu0 0.0
  %4659 = vmatpush.msra.mxu0 0.0
  %4660 = vmatpush.msra.mxu0 0.0
  %4661 = vmatpush.msra.mxu0 0.0
  %4662 = vmatpush.msra.mxu0 0.0
  %4663 = vmatpush.msra.mxu0 0.0
  %4664 = vmatpush.msra.mxu0 0.0
  %4665 = vmatpush.msra.mxu0 0.0
  %4666 = vmatpush.msra.mxu0 0.0
  %4667 = vmatpush.msra.mxu0 0.0
  %4668 = vmatpush.msra.mxu0 0.0
  %4669 = vmatpush.msra.mxu0 %v4652
  %4670 = vmatpush.msra.mxu0 %v4650
  %4671 = vmatmul.f32.gmra.mxu0 %v1471
  %v4672 = vpop.f32.mrf.mxu0
  %v4673 = vadd.f32 %v103, %v4672
  %4674 = vmatmul.f32.gmra.mxu0 %v1474
  %v4675 = vpop.f32.mrf.mxu0
  %v4676 = vadd.f32 %v104, %v4675
  %4677 = vmatmul.f32.gmra.mxu0 %v1477
  %v4678 = vpop.f32.mrf.mxu0
  %v4679 = vadd.f32 %v105, %v4678
  %4680 = vmatmul.f32.gmra.mxu0 %v1480
  %v4681 = vpop.f32.mrf.mxu0
  %v4682 = vadd.f32 %v106, %v4681
  %4683 = vmatmul.f32.gmra.mxu0 %v1483
  %v4684 = vpop.f32.mrf.mxu0
  %v4685 = vadd.f32 %v107, %v4684
  %4686 = vmatmul.f32.gmra.mxu0 %v1486
  %v4687 = vpop.f32.mrf.mxu0
  %v4688 = vadd.f32 %v108, %v4687
  %4689 = vmatmul.f32.gmra.mxu0 %v1489
  %v4690 = vpop.f32.mrf.mxu0
  %v4691 = vadd.f32 %v109, %v4690
  %4692 = vmatmul.f32.gmra.mxu0 %v1492
  %v4693 = vpop.f32.mrf.mxu0
  %v4694 = vadd.f32 %v110, %v4693
  %4695 = vdwg.mxu0
  %v4697 = vsel %vm467, %v4645, 0
  %4699 = vmatpush.msra.mxu0 0.0
  %4700 = vmatpush.msra.mxu0 0.0
  %4701 = vmatpush.msra.mxu0 0.0
  %4702 = vmatpush.msra.mxu0 0.0
  %4703 = vmatpush.msra.mxu0 0.0
  %4704 = vmatpush.msra.mxu0 0.0
  %4705 = vmatpush.msra.mxu0 0.0
  %4706 = vmatpush.msra.mxu0 0.0
  %4707 = vmatpush.msra.mxu0 0.0
  %4708 = vmatpush.msra.mxu0 0.0
  %4709 = vmatpush.msra.mxu0 0.0
  %4710 = vmatpush.msra.mxu0 0.0
  %4711 = vmatpush.msra.mxu0 0.0
  %4712 = vmatpush.msra.mxu0 0.0
  %4713 = vmatpush.msra.mxu0 0.0
  %4714 = vmatpush.msra.mxu0 %v4673
  %4715 = vmatmul.f32.gmra.mxu0 %v4697
  %v4716 = vpop.f32.mrf.mxu0
  %v4717 = vadd.f32 0.0, %v4716
  %4718 = vdwg.mxu0
  %4719 = vrot.lane.b32.xlu0 %v4645, 120
  %v4720 = vpop.permute.xlu0 %4719
  %v4721 = vsel %vm467, %v4720, 0
  %4723 = vmatpush.msra.mxu0 0.0
  %4724 = vmatpush.msra.mxu0 0.0
  %4725 = vmatpush.msra.mxu0 0.0
  %4726 = vmatpush.msra.mxu0 0.0
  %4727 = vmatpush.msra.mxu0 0.0
  %4728 = vmatpush.msra.mxu0 0.0
  %4729 = vmatpush.msra.mxu0 0.0
  %4730 = vmatpush.msra.mxu0 0.0
  %4731 = vmatpush.msra.mxu0 0.0
  %4732 = vmatpush.msra.mxu0 0.0
  %4733 = vmatpush.msra.mxu0 0.0
  %4734 = vmatpush.msra.mxu0 0.0
  %4735 = vmatpush.msra.mxu0 0.0
  %4736 = vmatpush.msra.mxu0 0.0
  %4737 = vmatpush.msra.mxu0 0.0
  %4738 = vmatpush.msra.mxu0 %v4676
  %4739 = vmatmul.f32.gmra.mxu0 %v4721
  %v4740 = vpop.f32.mrf.mxu0
  %v4741 = vadd.f32 0.0, %v4740
  %4742 = vdwg.mxu0
  %4743 = vrot.lane.b32.xlu0 %v4645, 112
  %v4744 = vpop.permute.xlu0 %4743
  %v4745 = vsel %vm467, %v4744, 0
  %4747 = vmatpush.msra.mxu0 0.0
  %4748 = vmatpush.msra.mxu0 0.0
  %4749 = vmatpush.msra.mxu0 0.0
  %4750 = vmatpush.msra.mxu0 0.0
  %4751 = vmatpush.msra.mxu0 0.0
  %4752 = vmatpush.msra.mxu0 0.0
  %4753 = vmatpush.msra.mxu0 0.0
  %4754 = vmatpush.msra.mxu0 0.0
  %4755 = vmatpush.msra.mxu0 0.0
  %4756 = vmatpush.msra.mxu0 0.0
  %4757 = vmatpush.msra.mxu0 0.0
  %4758 = vmatpush.msra.mxu0 0.0
  %4759 = vmatpush.msra.mxu0 0.0
  %4760 = vmatpush.msra.mxu0 0.0
  %4761 = vmatpush.msra.mxu0 0.0
  %4762 = vmatpush.msra.mxu0 %v4679
  %4763 = vmatmul.f32.gmra.mxu0 %v4745
  %v4764 = vpop.f32.mrf.mxu0
  %v4765 = vadd.f32 0.0, %v4764
  %4766 = vdwg.mxu0
  %4767 = vrot.lane.b32.xlu0 %v4645, 104
  %v4768 = vpop.permute.xlu0 %4767
  %v4769 = vsel %vm467, %v4768, 0
  %4771 = vmatpush.msra.mxu0 0.0
  %4772 = vmatpush.msra.mxu0 0.0
  %4773 = vmatpush.msra.mxu0 0.0
  %4774 = vmatpush.msra.mxu0 0.0
  %4775 = vmatpush.msra.mxu0 0.0
  %4776 = vmatpush.msra.mxu0 0.0
  %4777 = vmatpush.msra.mxu0 0.0
  %4778 = vmatpush.msra.mxu0 0.0
  %4779 = vmatpush.msra.mxu0 0.0
  %4780 = vmatpush.msra.mxu0 0.0
  %4781 = vmatpush.msra.mxu0 0.0
  %4782 = vmatpush.msra.mxu0 0.0
  %4783 = vmatpush.msra.mxu0 0.0
  %4784 = vmatpush.msra.mxu0 0.0
  %4785 = vmatpush.msra.mxu0 0.0
  %4786 = vmatpush.msra.mxu0 %v4682
  %4787 = vmatmul.f32.gmra.mxu0 %v4769
  %v4788 = vpop.f32.mrf.mxu0
  %v4789 = vadd.f32 0.0, %v4788
  %4790 = vdwg.mxu0
  %v4791 = vadd.f32 %v4717, %v4623
  %v4792 = vadd.f32 %v4741, %v4623
  %v4793 = vadd.f32 %v4765, %v4623
  %v4794 = vadd.f32 %v4789, %v4623
  %v4795 = vsel %vm401, %v4791, -inf
  %4796 = vmax.xlane.f32.xlu0 %v4795
  %v4797 = vpop.xlane.xlu0 %4796
  %v4798 = vsel %vm401, %v4792, -inf
  %4799 = vmax.xlane.f32.xlu0 %v4798
  %v4800 = vpop.xlane.xlu0 %4799
  %v4801 = vsel %vm401, %v4793, -inf
  %4802 = vmax.xlane.f32.xlu0 %v4801
  %v4803 = vpop.xlane.xlu0 %4802
  %v4804 = vsel %vm401, %v4794, -inf
  %4805 = vmax.xlane.f32.xlu0 %v4804
  %v4806 = vpop.xlane.xlu0 %4805
  %v4807 = vsub.f32 %v4791, %v4797
  %v4808 = vsub.f32 %v4792, %v4800
  %v4809 = vsub.f32 %v4793, %v4803
  %v4810 = vsub.f32 %v4794, %v4806
  %v4811 = vmul.f32 %v4807, 1.442695
  %v4812 = vpow.pop %v4811
  %v4813 = vmul.f32 %v4808, 1.442695
  %v4814 = vpow.pop %v4813
  %v4815 = vmul.f32 %v4809, 1.442695
  %v4816 = vpow.pop %v4815
  %v4817 = vmul.f32 %v4810, 1.442695
  %v4818 = vpow.pop %v4817
  %v4819 = vsel %vm401, %v4812, 0.0
  %4820 = vadd.xlane.f32.xlu0 %v4819
  %v4821 = vpop.xlane.xlu0 %4820
  %v4822 = vsel %vm401, %v4814, 0.0
  %4823 = vadd.xlane.f32.xlu0 %v4822
  %v4824 = vpop.xlane.xlu0 %4823
  %v4825 = vsel %vm401, %v4816, 0.0
  %4826 = vadd.xlane.f32.xlu0 %v4825
  %v4827 = vpop.xlane.xlu0 %4826
  %v4828 = vsel %vm401, %v4818, 0.0
  %4829 = vadd.xlane.f32.xlu0 %v4828
  %v4830 = vpop.xlane.xlu0 %4829
  %v4831 = vrcp.pop %v4821
  %v4832 = vmul.f32 %v4821, %v4831
  %v4833 = vsub.f32 1.0, %v4832
  %v4834 = vmul.f32 %v4831, %v4833
  %v4835 = vadd.f32 %v4831, %v4834
  %vm4836 = vweird.f32 %v4821
  %vm4837 = vweird.f32 %v4831
  %vm4838 = vmor %vm4836, %vm4837
  %v4839 = vsel %vm4838, %v4831, %v4835
  %v4840 = vand.u32 2147483647, %v4821
  %vm4841 = vcmp.eq.f32.partialorder %v4840, 8.507059e+37
  %v4842 = vand.u32 %v4821, 2147483648
  %v4843 = vor.u32 1.1754944e-38, %v4842
  %v4844 = vsel %vm4841, %v4843, %v4839
  %v4845 = vmul.f32 %v4812, %v4844
  %v4846 = vrcp.pop %v4824
  %v4847 = vmul.f32 %v4824, %v4846
  %v4848 = vsub.f32 1.0, %v4847
  %v4849 = vmul.f32 %v4846, %v4848
  %v4850 = vadd.f32 %v4846, %v4849
  %vm4851 = vweird.f32 %v4824
  %vm4852 = vweird.f32 %v4846
  %vm4853 = vmor %vm4851, %vm4852
  %v4854 = vsel %vm4853, %v4846, %v4850
  %v4855 = vand.u32 2147483647, %v4824
  %vm4856 = vcmp.eq.f32.partialorder %v4855, 8.507059e+37
  %v4857 = vand.u32 %v4824, 2147483648
  %v4858 = vor.u32 1.1754944e-38, %v4857
  %v4859 = vsel %vm4856, %v4858, %v4854
  %v4860 = vmul.f32 %v4814, %v4859
  %v4861 = vrcp.pop %v4827
  %v4862 = vmul.f32 %v4827, %v4861
  %v4863 = vsub.f32 1.0, %v4862
  %v4864 = vmul.f32 %v4861, %v4863
  %v4865 = vadd.f32 %v4861, %v4864
  %vm4866 = vweird.f32 %v4827
  %vm4867 = vweird.f32 %v4861
  %vm4868 = vmor %vm4866, %vm4867
  %v4869 = vsel %vm4868, %v4861, %v4865
  %v4870 = vand.u32 2147483647, %v4827
  %vm4871 = vcmp.eq.f32.partialorder %v4870, 8.507059e+37
  %v4872 = vand.u32 %v4827, 2147483648
  %v4873 = vor.u32 1.1754944e-38, %v4872
  %v4874 = vsel %vm4871, %v4873, %v4869
  %v4875 = vmul.f32 %v4816, %v4874
  %v4876 = vrcp.pop %v4830
  %v4877 = vmul.f32 %v4830, %v4876
  %v4878 = vsub.f32 1.0, %v4877
  %v4879 = vmul.f32 %v4876, %v4878
  %v4880 = vadd.f32 %v4876, %v4879
  %vm4881 = vweird.f32 %v4830
  %vm4882 = vweird.f32 %v4876
  %vm4883 = vmor %vm4881, %vm4882
  %v4884 = vsel %vm4883, %v4876, %v4880
  %v4885 = vand.u32 2147483647, %v4830
  %vm4886 = vcmp.eq.f32.partialorder %v4885, 8.507059e+37
  %v4887 = vand.u32 %v4830, 2147483648
  %v4888 = vor.u32 1.1754944e-38, %v4887
  %v4889 = vsel %vm4886, %v4888, %v4884
  %v4890 = vmul.f32 %v4818, %v4889
  %v4892 = vsel %vm401, %v4845, 0
  %v4895 = vsel %vm401, %v4685, 0
  %4897 = vmatpush.xpose.msra.mxu0 0.0
  %4898 = vmatpush.xpose.msra.mxu0 0.0
  %4899 = vmatpush.xpose.msra.mxu0 0.0
  %4900 = vmatpush.xpose.msra.mxu0 0.0
  %4901 = vmatpush.xpose.msra.mxu0 0.0
  %4902 = vmatpush.xpose.msra.mxu0 0.0
  %4903 = vmatpush.xpose.msra.mxu0 0.0
  %4904 = vmatpush.xpose.msra.mxu0 0.0
  %4905 = vmatpush.xpose.msra.mxu0 0.0
  %4906 = vmatpush.xpose.msra.mxu0 0.0
  %4907 = vmatpush.xpose.msra.mxu0 0.0
  %4908 = vmatpush.xpose.msra.mxu0 0.0
  %4909 = vmatpush.xpose.msra.mxu0 0.0
  %4910 = vmatpush.xpose.msra.mxu0 0.0
  %4911 = vmatpush.xpose.msra.mxu0 0.0
  %4912 = vmatpush.xpose.msra.mxu0 %v4895
  %4913 = vmatmul.f32.gmra.mxu0 %v4892
  %v4914 = vpop.f32.mrf.mxu0
  %v4915 = vadd.f32 0.0, %v4914
  %4916 = vdwg.mxu0
  %v4918 = vsel %vm401, %v4860, 0
  %v4921 = vsel %vm401, %v4688, 0
  %4923 = vmatpush.xpose.msra.mxu0 0.0
  %4924 = vmatpush.xpose.msra.mxu0 0.0
  %4925 = vmatpush.xpose.msra.mxu0 0.0
  %4926 = vmatpush.xpose.msra.mxu0 0.0
  %4927 = vmatpush.xpose.msra.mxu0 0.0
  %4928 = vmatpush.xpose.msra.mxu0 0.0
  %4929 = vmatpush.xpose.msra.mxu0 0.0
  %4930 = vmatpush.xpose.msra.mxu0 0.0
  %4931 = vmatpush.xpose.msra.mxu0 0.0
  %4932 = vmatpush.xpose.msra.mxu0 0.0
  %4933 = vmatpush.xpose.msra.mxu0 0.0
  %4934 = vmatpush.xpose.msra.mxu0 0.0
  %4935 = vmatpush.xpose.msra.mxu0 0.0
  %4936 = vmatpush.xpose.msra.mxu0 0.0
  %4937 = vmatpush.xpose.msra.mxu0 0.0
  %4938 = vmatpush.xpose.msra.mxu0 %v4921
  %4939 = vmatmul.f32.gmra.mxu0 %v4918
  %v4940 = vpop.f32.mrf.mxu0
  %v4941 = vadd.f32 0.0, %v4940
  %4942 = vdwg.mxu0
  %v4944 = vsel %vm401, %v4875, 0
  %v4947 = vsel %vm401, %v4691, 0
  %4949 = vmatpush.xpose.msra.mxu0 0.0
  %4950 = vmatpush.xpose.msra.mxu0 0.0
  %4951 = vmatpush.xpose.msra.mxu0 0.0
  %4952 = vmatpush.xpose.msra.mxu0 0.0
  %4953 = vmatpush.xpose.msra.mxu0 0.0
  %4954 = vmatpush.xpose.msra.mxu0 0.0
  %4955 = vmatpush.xpose.msra.mxu0 0.0
  %4956 = vmatpush.xpose.msra.mxu0 0.0
  %4957 = vmatpush.xpose.msra.mxu0 0.0
  %4958 = vmatpush.xpose.msra.mxu0 0.0
  %4959 = vmatpush.xpose.msra.mxu0 0.0
  %4960 = vmatpush.xpose.msra.mxu0 0.0
  %4961 = vmatpush.xpose.msra.mxu0 0.0
  %4962 = vmatpush.xpose.msra.mxu0 0.0
  %4963 = vmatpush.xpose.msra.mxu0 0.0
  %4964 = vmatpush.xpose.msra.mxu0 %v4947
  %4965 = vmatmul.f32.gmra.mxu0 %v4944
  %v4966 = vpop.f32.mrf.mxu0
  %v4967 = vadd.f32 0.0, %v4966
  %4968 = vdwg.mxu0
  %v4970 = vsel %vm401, %v4890, 0
  %v4973 = vsel %vm401, %v4694, 0
  %4975 = vmatpush.xpose.msra.mxu0 0.0
  %4976 = vmatpush.xpose.msra.mxu0 0.0
  %4977 = vmatpush.xpose.msra.mxu0 0.0
  %4978 = vmatpush.xpose.msra.mxu0 0.0
  %4979 = vmatpush.xpose.msra.mxu0 0.0
  %4980 = vmatpush.xpose.msra.mxu0 0.0
  %4981 = vmatpush.xpose.msra.mxu0 0.0
  %4982 = vmatpush.xpose.msra.mxu0 0.0
  %4983 = vmatpush.xpose.msra.mxu0 0.0
  %4984 = vmatpush.xpose.msra.mxu0 0.0
  %4985 = vmatpush.xpose.msra.mxu0 0.0
  %4986 = vmatpush.xpose.msra.mxu0 0.0
  %4987 = vmatpush.xpose.msra.mxu0 0.0
  %4988 = vmatpush.xpose.msra.mxu0 0.0
  %4989 = vmatpush.xpose.msra.mxu0 0.0
  %4990 = vmatpush.xpose.msra.mxu0 %v4973
  %4991 = vmatmul.f32.gmra.mxu0 %v4970
  %v4992 = vpop.f32.mrf.mxu0
  %v4993 = vadd.f32 0.0, %v4992
  %4994 = vdwg.mxu0
  %4996 = vrot.lane.b32.xlu0 %v4941, 8
  %v4997 = vpop.permute.xlu0 %4996
  %5000 = vrot.lane.b32.xlu0 %v4967, 16
  %v5001 = vpop.permute.xlu0 %5000
  %5004 = vrot.lane.b32.xlu0 %v4993, 24
  %v5005 = vpop.permute.xlu0 %5004
  %v5007 = vsel %vm467, %v4915, %v4997
  %v5008 = vsel %vm401, %v5007, %v5001
  %v5009 = vsel %vm781, %v5008, %v5005
  %v5011 = vsel %vm238, %v5009, 0
  %5013 = vmatpush.msra.mxu0 0.0
  %5014 = vmatpush.msra.mxu0 0.0
  %5015 = vmatpush.msra.mxu0 0.0
  %5016 = vmatpush.msra.mxu0 0.0
  %5017 = vmatpush.msra.mxu0 0.0
  %5018 = vmatpush.msra.mxu0 0.0
  %5019 = vmatpush.msra.mxu0 0.0
  %5020 = vmatpush.msra.mxu0 0.0
  %5021 = vmatpush.msra.mxu0 0.0
  %5022 = vmatpush.msra.mxu0 0.0
  %5023 = vmatpush.msra.mxu0 0.0
  %5024 = vmatpush.msra.mxu0 0.0
  %5025 = vmatpush.msra.mxu0 %v114
  %5026 = vmatpush.msra.mxu0 %v113
  %5027 = vmatpush.msra.mxu0 %v112
  %5028 = vmatpush.msra.mxu0 %v111
  %5029 = vmatmul.f32.gmra.mxu0 %v5011
  %v5030 = vpop.f32.mrf.mxu0
  %v5031 = vadd.f32 0.0, %v5030
  %5032 = vdwg.mxu0
  %v5033 = vadd.f32 %v4496, %v5031
  %v5034 = vadd.f32 %v5033, %v1873
  %v5035 = vsel %vm238, %v5034, 0.0
  %5036 = vadd.xlane.f32.xlu0 %v5035
  %v5037 = vpop.xlane.xlu0 %5036
  %v5038 = vmul.f32 %v5037, %v248
  %v5039 = vsub.f32 %v5034, %v5038
  %v5040 = vmul.f32 %v5039, %v5039
  %v5041 = vsel %vm238, %v5040, 0.0
  %5042 = vadd.xlane.f32.xlu0 %v5041
  %v5043 = vpop.xlane.xlu0 %5042
  %v5044 = vmul.f32 %v5043, %v248
  %v5045 = vadd.f32 %v5044, 1e-05
  %v5046 = vrsqrt.pop %v5045
  %v5047 = vmul.f32 %v5046, %v5045
  %v5048 = vmul.f32 %v5047, %v5046
  %v5049 = vmul.f32 0.5, %v5048
  %v5050 = vsub.f32 1.5, %v5049
  %v5051 = vmul.f32 %v5046, %v5050
  %vm5052 = vweird.f32 %v5045
  %vm5053 = vweird.f32 %v5046
  %vm5054 = vmor %vm5052, %vm5053
  %v5055 = vsel %vm5054, %v5046, %v5051
  %v5056 = vmul.f32 %v5039, %v5055
  %v5057 = vmul.f32 %v5056, %v1897
  %v5058 = vadd.f32 %v5057, %v1899
  %v5060 = vsel %vm238, %v5058, 0
  %5062 = vmatpush.msra.mxu0 0.0
  %5063 = vmatpush.msra.mxu0 0.0
  %5064 = vmatpush.msra.mxu0 0.0
  %5065 = vmatpush.msra.mxu0 0.0
  %5066 = vmatpush.msra.mxu0 0.0
  %5067 = vmatpush.msra.mxu0 0.0
  %5068 = vmatpush.msra.mxu0 0.0
  %5069 = vmatpush.msra.mxu0 0.0
  %5070 = vmatpush.msra.mxu0 0.0
  %5071 = vmatpush.msra.mxu0 0.0
  %5072 = vmatpush.msra.mxu0 0.0
  %5073 = vmatpush.msra.mxu0 0.0
  %5074 = vmatpush.msra.mxu0 %v119
  %5075 = vmatpush.msra.mxu0 %v118
  %5076 = vmatpush.msra.mxu0 %v117
  %5077 = vmatpush.msra.mxu0 %v116
  %5078 = vmatmul.f32.gmra.mxu0 %v5060
  %v5079 = vpop.f32.mrf.mxu0
  %v5080 = vadd.f32 %v120, %v5079
  %5081 = vdwg.mxu0
  %5083 = vrot.lane.b32.xlu0 %v5080, 96
  %v5084 = vpop.permute.xlu0 %5083
  %v5085 = vsel %vm467, %v5080, 0
  %v5087 = vsel %vm467, %v5084, 0
  %5089 = vmatpush.xpose.msra.mxu0 0.0
  %5090 = vmatpush.xpose.msra.mxu0 0.0
  %5091 = vmatpush.xpose.msra.mxu0 0.0
  %5092 = vmatpush.xpose.msra.mxu0 0.0
  %5093 = vmatpush.xpose.msra.mxu0 0.0
  %5094 = vmatpush.xpose.msra.mxu0 0.0
  %5095 = vmatpush.xpose.msra.mxu0 0.0
  %5096 = vmatpush.xpose.msra.mxu0 0.0
  %5097 = vmatpush.xpose.msra.mxu0 0.0
  %5098 = vmatpush.xpose.msra.mxu0 0.0
  %5099 = vmatpush.xpose.msra.mxu0 0.0
  %5100 = vmatpush.xpose.msra.mxu0 0.0
  %5101 = vmatpush.xpose.msra.mxu0 0.0
  %5102 = vmatpush.xpose.msra.mxu0 0.0
  %5103 = vmatpush.xpose.msra.mxu0 0.0
  %5104 = vmatpush.xpose.msra.mxu0 %v5087
  %5105 = vmatmul.f32.gmra.mxu0 %v5085
  %v5106 = vpop.f32.mrf.mxu0
  %v5107 = vadd.f32 0.0, %v5106
  %5108 = vdwg.mxu0
  %5109 = vrot.lane.b32.xlu0 %v5080, 120
  %v5110 = vpop.permute.xlu0 %5109
  %5111 = vrot.lane.b32.xlu0 %v5080, 88
  %v5112 = vpop.permute.xlu0 %5111
  %v5113 = vsel %vm467, %v5110, 0
  %v5115 = vsel %vm467, %v5112, 0
  %5117 = vmatpush.xpose.msra.mxu0 0.0
  %5118 = vmatpush.xpose.msra.mxu0 0.0
  %5119 = vmatpush.xpose.msra.mxu0 0.0
  %5120 = vmatpush.xpose.msra.mxu0 0.0
  %5121 = vmatpush.xpose.msra.mxu0 0.0
  %5122 = vmatpush.xpose.msra.mxu0 0.0
  %5123 = vmatpush.xpose.msra.mxu0 0.0
  %5124 = vmatpush.xpose.msra.mxu0 0.0
  %5125 = vmatpush.xpose.msra.mxu0 0.0
  %5126 = vmatpush.xpose.msra.mxu0 0.0
  %5127 = vmatpush.xpose.msra.mxu0 0.0
  %5128 = vmatpush.xpose.msra.mxu0 0.0
  %5129 = vmatpush.xpose.msra.mxu0 0.0
  %5130 = vmatpush.xpose.msra.mxu0 0.0
  %5131 = vmatpush.xpose.msra.mxu0 0.0
  %5132 = vmatpush.xpose.msra.mxu0 %v5115
  %5133 = vmatmul.f32.gmra.mxu0 %v5113
  %v5134 = vpop.f32.mrf.mxu0
  %v5135 = vadd.f32 0.0, %v5134
  %5136 = vdwg.mxu0
  %5137 = vrot.lane.b32.xlu0 %v5080, 112
  %v5138 = vpop.permute.xlu0 %5137
  %5139 = vrot.lane.b32.xlu0 %v5080, 80
  %v5140 = vpop.permute.xlu0 %5139
  %v5141 = vsel %vm467, %v5138, 0
  %v5143 = vsel %vm467, %v5140, 0
  %5145 = vmatpush.xpose.msra.mxu0 0.0
  %5146 = vmatpush.xpose.msra.mxu0 0.0
  %5147 = vmatpush.xpose.msra.mxu0 0.0
  %5148 = vmatpush.xpose.msra.mxu0 0.0
  %5149 = vmatpush.xpose.msra.mxu0 0.0
  %5150 = vmatpush.xpose.msra.mxu0 0.0
  %5151 = vmatpush.xpose.msra.mxu0 0.0
  %5152 = vmatpush.xpose.msra.mxu0 0.0
  %5153 = vmatpush.xpose.msra.mxu0 0.0
  %5154 = vmatpush.xpose.msra.mxu0 0.0
  %5155 = vmatpush.xpose.msra.mxu0 0.0
  %5156 = vmatpush.xpose.msra.mxu0 0.0
  %5157 = vmatpush.xpose.msra.mxu0 0.0
  %5158 = vmatpush.xpose.msra.mxu0 0.0
  %5159 = vmatpush.xpose.msra.mxu0 0.0
  %5160 = vmatpush.xpose.msra.mxu0 %v5143
  %5161 = vmatmul.f32.gmra.mxu0 %v5141
  %v5162 = vpop.f32.mrf.mxu0
  %v5163 = vadd.f32 0.0, %v5162
  %5164 = vdwg.mxu0
  %5165 = vrot.lane.b32.xlu0 %v5080, 104
  %v5166 = vpop.permute.xlu0 %5165
  %5167 = vrot.lane.b32.xlu0 %v5080, 72
  %v5168 = vpop.permute.xlu0 %5167
  %v5169 = vsel %vm467, %v5166, 0
  %v5171 = vsel %vm467, %v5168, 0
  %5173 = vmatpush.xpose.msra.mxu0 0.0
  %5174 = vmatpush.xpose.msra.mxu0 0.0
  %5175 = vmatpush.xpose.msra.mxu0 0.0
  %5176 = vmatpush.xpose.msra.mxu0 0.0
  %5177 = vmatpush.xpose.msra.mxu0 0.0
  %5178 = vmatpush.xpose.msra.mxu0 0.0
  %5179 = vmatpush.xpose.msra.mxu0 0.0
  %5180 = vmatpush.xpose.msra.mxu0 0.0
  %5181 = vmatpush.xpose.msra.mxu0 0.0
  %5182 = vmatpush.xpose.msra.mxu0 0.0
  %5183 = vmatpush.xpose.msra.mxu0 0.0
  %5184 = vmatpush.xpose.msra.mxu0 0.0
  %5185 = vmatpush.xpose.msra.mxu0 0.0
  %5186 = vmatpush.xpose.msra.mxu0 0.0
  %5187 = vmatpush.xpose.msra.mxu0 0.0
  %5188 = vmatpush.xpose.msra.mxu0 %v5171
  %5189 = vmatmul.f32.gmra.mxu0 %v5169
  %v5190 = vpop.f32.mrf.mxu0
  %v5191 = vadd.f32 0.0, %v5190
  %5192 = vdwg.mxu0
  %v5193 = vsel %vm467, %v5107, -inf
  %5194 = vmax.xlane.f32.xlu0 %v5193
  %v5195 = vpop.xlane.xlu0 %5194
  %v5196 = vsel %vm467, %v5135, -inf
  %5197 = vmax.xlane.f32.xlu0 %v5196
  %v5198 = vpop.xlane.xlu0 %5197
  %v5199 = vsel %vm467, %v5163, -inf
  %5200 = vmax.xlane.f32.xlu0 %v5199
  %v5201 = vpop.xlane.xlu0 %5200
  %v5202 = vsel %vm467, %v5191, -inf
  %5203 = vmax.xlane.f32.xlu0 %v5202
  %v5204 = vpop.xlane.xlu0 %5203
  %v5205 = vsub.f32 %v5107, %v5195
  %v5206 = vsub.f32 %v5135, %v5198
  %v5207 = vsub.f32 %v5163, %v5201
  %v5208 = vsub.f32 %v5191, %v5204
  %v5209 = vmul.f32 %v5205, 1.442695
  %v5210 = vpow.pop %v5209
  %v5211 = vmul.f32 %v5206, 1.442695
  %v5212 = vpow.pop %v5211
  %v5213 = vmul.f32 %v5207, 1.442695
  %v5214 = vpow.pop %v5213
  %v5215 = vmul.f32 %v5208, 1.442695
  %v5216 = vpow.pop %v5215
  %v5217 = vsel %vm467, %v5210, 0.0
  %5218 = vadd.xlane.f32.xlu0 %v5217
  %v5219 = vpop.xlane.xlu0 %5218
  %v5220 = vsel %vm467, %v5212, 0.0
  %5221 = vadd.xlane.f32.xlu0 %v5220
  %v5222 = vpop.xlane.xlu0 %5221
  %v5223 = vsel %vm467, %v5214, 0.0
  %5224 = vadd.xlane.f32.xlu0 %v5223
  %v5225 = vpop.xlane.xlu0 %5224
  %v5226 = vsel %vm467, %v5216, 0.0
  %5227 = vadd.xlane.f32.xlu0 %v5226
  %v5228 = vpop.xlane.xlu0 %5227
  %v5229 = vrcp.pop %v5219
  %v5230 = vmul.f32 %v5219, %v5229
  %v5231 = vsub.f32 1.0, %v5230
  %v5232 = vmul.f32 %v5229, %v5231
  %v5233 = vadd.f32 %v5229, %v5232
  %vm5234 = vweird.f32 %v5219
  %vm5235 = vweird.f32 %v5229
  %vm5236 = vmor %vm5234, %vm5235
  %v5237 = vsel %vm5236, %v5229, %v5233
  %v5238 = vand.u32 2147483647, %v5219
  %vm5239 = vcmp.eq.f32.partialorder %v5238, 8.507059e+37
  %v5240 = vand.u32 %v5219, 2147483648
  %v5241 = vor.u32 1.1754944e-38, %v5240
  %v5242 = vsel %vm5239, %v5241, %v5237
  %v5243 = vmul.f32 %v5210, %v5242
  %v5244 = vrcp.pop %v5222
  %v5245 = vmul.f32 %v5222, %v5244
  %v5246 = vsub.f32 1.0, %v5245
  %v5247 = vmul.f32 %v5244, %v5246
  %v5248 = vadd.f32 %v5244, %v5247
  %vm5249 = vweird.f32 %v5222
  %vm5250 = vweird.f32 %v5244
  %vm5251 = vmor %vm5249, %vm5250
  %v5252 = vsel %vm5251, %v5244, %v5248
  %v5253 = vand.u32 2147483647, %v5222
  %vm5254 = vcmp.eq.f32.partialorder %v5253, 8.507059e+37
  %v5255 = vand.u32 %v5222, 2147483648
  %v5256 = vor.u32 1.1754944e-38, %v5255
  %v5257 = vsel %vm5254, %v5256, %v5252
  %v5258 = vmul.f32 %v5212, %v5257
  %v5259 = vrcp.pop %v5225
  %v5260 = vmul.f32 %v5225, %v5259
  %v5261 = vsub.f32 1.0, %v5260
  %v5262 = vmul.f32 %v5259, %v5261
  %v5263 = vadd.f32 %v5259, %v5262
  %vm5264 = vweird.f32 %v5225
  %vm5265 = vweird.f32 %v5259
  %vm5266 = vmor %vm5264, %vm5265
  %v5267 = vsel %vm5266, %v5259, %v5263
  %v5268 = vand.u32 2147483647, %v5225
  %vm5269 = vcmp.eq.f32.partialorder %v5268, 8.507059e+37
  %v5270 = vand.u32 %v5225, 2147483648
  %v5271 = vor.u32 1.1754944e-38, %v5270
  %v5272 = vsel %vm5269, %v5271, %v5267
  %v5273 = vmul.f32 %v5214, %v5272
  %v5274 = vrcp.pop %v5228
  %v5275 = vmul.f32 %v5228, %v5274
  %v5276 = vsub.f32 1.0, %v5275
  %v5277 = vmul.f32 %v5274, %v5276
  %v5278 = vadd.f32 %v5274, %v5277
  %vm5279 = vweird.f32 %v5228
  %vm5280 = vweird.f32 %v5274
  %vm5281 = vmor %vm5279, %vm5280
  %v5282 = vsel %vm5281, %v5274, %v5278
  %v5283 = vand.u32 2147483647, %v5228
  %vm5284 = vcmp.eq.f32.partialorder %v5283, 8.507059e+37
  %v5285 = vand.u32 %v5228, 2147483648
  %v5286 = vor.u32 1.1754944e-38, %v5285
  %v5287 = vsel %vm5284, %v5286, %v5282
  %v5288 = vmul.f32 %v5216, %v5287
  %5289 = vrot.lane.b32.xlu0 %v5080, 64
  %v5290 = vpop.permute.xlu0 %5289
  %v5293 = vsel %vm467, %v5243, 0
  %5295 = vmatpush.msra.mxu0 0.0
  %5296 = vmatpush.msra.mxu0 0.0
  %5297 = vmatpush.msra.mxu0 0.0
  %5298 = vmatpush.msra.mxu0 0.0
  %5299 = vmatpush.msra.mxu0 0.0
  %5300 = vmatpush.msra.mxu0 0.0
  %5301 = vmatpush.msra.mxu0 0.0
  %5302 = vmatpush.msra.mxu0 0.0
  %5303 = vmatpush.msra.mxu0 0.0
  %5304 = vmatpush.msra.mxu0 0.0
  %5305 = vmatpush.msra.mxu0 0.0
  %5306 = vmatpush.msra.mxu0 0.0
  %5307 = vmatpush.msra.mxu0 0.0
  %5308 = vmatpush.msra.mxu0 0.0
  %5309 = vmatpush.msra.mxu0 0.0
  %5310 = vmatpush.msra.mxu0 %v5290
  %5311 = vmatmul.f32.gmra.mxu0 %v5293
  %v5312 = vpop.f32.mrf.mxu0
  %v5313 = vadd.f32 0.0, %v5312
  %5314 = vdwg.mxu0
  %5315 = vrot.lane.b32.xlu0 %v5080, 56
  %v5316 = vpop.permute.xlu0 %5315
  %v5319 = vsel %vm467, %v5258, 0
  %5321 = vmatpush.msra.mxu0 0.0
  %5322 = vmatpush.msra.mxu0 0.0
  %5323 = vmatpush.msra.mxu0 0.0
  %5324 = vmatpush.msra.mxu0 0.0
  %5325 = vmatpush.msra.mxu0 0.0
  %5326 = vmatpush.msra.mxu0 0.0
  %5327 = vmatpush.msra.mxu0 0.0
  %5328 = vmatpush.msra.mxu0 0.0
  %5329 = vmatpush.msra.mxu0 0.0
  %5330 = vmatpush.msra.mxu0 0.0
  %5331 = vmatpush.msra.mxu0 0.0
  %5332 = vmatpush.msra.mxu0 0.0
  %5333 = vmatpush.msra.mxu0 0.0
  %5334 = vmatpush.msra.mxu0 0.0
  %5335 = vmatpush.msra.mxu0 0.0
  %5336 = vmatpush.msra.mxu0 %v5316
  %5337 = vmatmul.f32.gmra.mxu0 %v5319
  %v5338 = vpop.f32.mrf.mxu0
  %v5339 = vadd.f32 0.0, %v5338
  %5340 = vdwg.mxu0
  %5341 = vrot.lane.b32.xlu0 %v5080, 48
  %v5342 = vpop.permute.xlu0 %5341
  %v5345 = vsel %vm467, %v5273, 0
  %5347 = vmatpush.msra.mxu0 0.0
  %5348 = vmatpush.msra.mxu0 0.0
  %5349 = vmatpush.msra.mxu0 0.0
  %5350 = vmatpush.msra.mxu0 0.0
  %5351 = vmatpush.msra.mxu0 0.0
  %5352 = vmatpush.msra.mxu0 0.0
  %5353 = vmatpush.msra.mxu0 0.0
  %5354 = vmatpush.msra.mxu0 0.0
  %5355 = vmatpush.msra.mxu0 0.0
  %5356 = vmatpush.msra.mxu0 0.0
  %5357 = vmatpush.msra.mxu0 0.0
  %5358 = vmatpush.msra.mxu0 0.0
  %5359 = vmatpush.msra.mxu0 0.0
  %5360 = vmatpush.msra.mxu0 0.0
  %5361 = vmatpush.msra.mxu0 0.0
  %5362 = vmatpush.msra.mxu0 %v5342
  %5363 = vmatmul.f32.gmra.mxu0 %v5345
  %v5364 = vpop.f32.mrf.mxu0
  %v5365 = vadd.f32 0.0, %v5364
  %5366 = vdwg.mxu0
  %5367 = vrot.lane.b32.xlu0 %v5080, 40
  %v5368 = vpop.permute.xlu0 %5367
  %v5371 = vsel %vm467, %v5288, 0
  %5373 = vmatpush.msra.mxu0 0.0
  %5374 = vmatpush.msra.mxu0 0.0
  %5375 = vmatpush.msra.mxu0 0.0
  %5376 = vmatpush.msra.mxu0 0.0
  %5377 = vmatpush.msra.mxu0 0.0
  %5378 = vmatpush.msra.mxu0 0.0
  %5379 = vmatpush.msra.mxu0 0.0
  %5380 = vmatpush.msra.mxu0 0.0
  %5381 = vmatpush.msra.mxu0 0.0
  %5382 = vmatpush.msra.mxu0 0.0
  %5383 = vmatpush.msra.mxu0 0.0
  %5384 = vmatpush.msra.mxu0 0.0
  %5385 = vmatpush.msra.mxu0 0.0
  %5386 = vmatpush.msra.mxu0 0.0
  %5387 = vmatpush.msra.mxu0 0.0
  %5388 = vmatpush.msra.mxu0 %v5368
  %5389 = vmatmul.f32.gmra.mxu0 %v5371
  %v5390 = vpop.f32.mrf.mxu0
  %v5391 = vadd.f32 0.0, %v5390
  %5392 = vdwg.mxu0
  %5394 = vrot.lane.b32.xlu0 %v5339, 8
  %v5395 = vpop.permute.xlu0 %5394
  %5398 = vrot.lane.b32.xlu0 %v5365, 16
  %v5399 = vpop.permute.xlu0 %5398
  %5402 = vrot.lane.b32.xlu0 %v5391, 24
  %v5403 = vpop.permute.xlu0 %5402
  %v5405 = vsel %vm467, %v5313, %v5395
  %v5406 = vsel %vm401, %v5405, %v5399
  %v5407 = vsel %vm781, %v5406, %v5403
  %v5409 = vsel %vm238, %v5407, 0
  %5411 = vmatpush.msra.mxu0 0.0
  %5412 = vmatpush.msra.mxu0 0.0
  %5413 = vmatpush.msra.mxu0 0.0
  %5414 = vmatpush.msra.mxu0 0.0
  %5415 = vmatpush.msra.mxu0 0.0
  %5416 = vmatpush.msra.mxu0 0.0
  %5417 = vmatpush.msra.mxu0 0.0
  %5418 = vmatpush.msra.mxu0 0.0
  %5419 = vmatpush.msra.mxu0 0.0
  %5420 = vmatpush.msra.mxu0 0.0
  %5421 = vmatpush.msra.mxu0 0.0
  %5422 = vmatpush.msra.mxu0 0.0
  %5423 = vmatpush.msra.mxu0 %v124
  %5424 = vmatpush.msra.mxu0 %v123
  %5425 = vmatpush.msra.mxu0 %v122
  %5426 = vmatpush.msra.mxu0 %v121
  %5427 = vmatmul.f32.gmra.mxu0 %v5409
  %v5428 = vpop.f32.mrf.mxu0
  %v5429 = vadd.f32 0.0, %v5428
  %5430 = vdwg.mxu0
  %v5431 = vadd.f32 %v5058, %v5429
  %v5432 = vadd.f32 %v5431, %v2274
  %v5433 = vsel %vm238, %v5432, 0.0
  %5434 = vadd.xlane.f32.xlu0 %v5433
  %v5435 = vpop.xlane.xlu0 %5434
  %v5436 = vmul.f32 %v5435, %v248
  %v5437 = vsub.f32 %v5432, %v5436
  %v5438 = vmul.f32 %v5437, %v5437
  %v5439 = vsel %vm238, %v5438, 0.0
  %5440 = vadd.xlane.f32.xlu0 %v5439
  %v5441 = vpop.xlane.xlu0 %5440
  %v5442 = vmul.f32 %v5441, %v248
  %v5443 = vadd.f32 %v5442, 1e-05
  %v5444 = vrsqrt.pop %v5443
  %v5445 = vmul.f32 %v5444, %v5443
  %v5446 = vmul.f32 %v5445, %v5444
  %v5447 = vmul.f32 0.5, %v5446
  %v5448 = vsub.f32 1.5, %v5447
  %v5449 = vmul.f32 %v5444, %v5448
  %vm5450 = vweird.f32 %v5443
  %vm5451 = vweird.f32 %v5444
  %vm5452 = vmor %vm5450, %vm5451
  %v5453 = vsel %vm5452, %v5444, %v5449
  %v5454 = vmul.f32 %v5437, %v5453
  %v5455 = vmul.f32 %v5454, %v2298
  %v5456 = vadd.f32 %v5455, %v2300
  %v5458 = vsel %vm238, %v5456, 0
  %5460 = vmatpush.msra.mxu0 0.0
  %5461 = vmatpush.msra.mxu0 0.0
  %5462 = vmatpush.msra.mxu0 0.0
  %5463 = vmatpush.msra.mxu0 0.0
  %5464 = vmatpush.msra.mxu0 0.0
  %5465 = vmatpush.msra.mxu0 0.0
  %5466 = vmatpush.msra.mxu0 0.0
  %5467 = vmatpush.msra.mxu0 0.0
  %5468 = vmatpush.msra.mxu0 0.0
  %5469 = vmatpush.msra.mxu0 0.0
  %5470 = vmatpush.msra.mxu0 0.0
  %5471 = vmatpush.msra.mxu0 0.0
  %5472 = vmatpush.msra.mxu0 %v129
  %5473 = vmatpush.msra.mxu0 %v128
  %5474 = vmatpush.msra.mxu0 %v127
  %5475 = vmatpush.msra.mxu0 %v126
  %5476 = vmatmul.f32.gmra.mxu0 %v5458
  %v5477 = vpop.f32.mrf.mxu0
  %v5478 = vadd.f32 %v2302, %v5477
  %5479 = vdwg.mxu0
  %v5480 = vmax.f32 %v5478, 0.0
  %v5482 = vsel %vm196, %v5480, 0
  %5484 = vmatpush.msra.mxu0 0.0
  %5485 = vmatpush.msra.mxu0 0.0
  %5486 = vmatpush.msra.mxu0 0.0
  %5487 = vmatpush.msra.mxu0 0.0
  %5488 = vmatpush.msra.mxu0 0.0
  %5489 = vmatpush.msra.mxu0 0.0
  %5490 = vmatpush.msra.mxu0 0.0
  %5491 = vmatpush.msra.mxu0 0.0
  %5492 = vmatpush.msra.mxu0 %v138
  %5493 = vmatpush.msra.mxu0 %v137
  %5494 = vmatpush.msra.mxu0 %v136
  %5495 = vmatpush.msra.mxu0 %v135
  %5496 = vmatpush.msra.mxu0 %v134
  %5497 = vmatpush.msra.mxu0 %v133
  %5498 = vmatpush.msra.mxu0 %v132
  %5499 = vmatpush.msra.mxu0 %v131
  %5500 = vmatmul.f32.gmra.mxu0 %v5482
  %v5501 = vpop.f32.mrf.mxu0
  %v5502 = vadd.f32 %v2327, %v5501
  %5503 = vdwg.mxu0
  %v5504 = vadd.f32 %v5456, %v5502
  %v5505 = vsel %vm238, %v5504, 0.0
  %5506 = vadd.xlane.f32.xlu0 %v5505
  %v5507 = vpop.xlane.xlu0 %5506
  %v5508 = vmul.f32 %v5507, %v248
  %v5509 = vsub.f32 %v5504, %v5508
  %v5510 = vmul.f32 %v5509, %v5509
  %v5511 = vsel %vm238, %v5510, 0.0
  %5512 = vadd.xlane.f32.xlu0 %v5511
  %v5513 = vpop.xlane.xlu0 %5512
  %v5514 = vmul.f32 %v5513, %v248
  %v5515 = vadd.f32 %v5514, 1e-05
  %v5516 = vrsqrt.pop %v5515
  %v5517 = vmul.f32 %v5516, %v5515
  %v5518 = vmul.f32 %v5517, %v5516
  %v5519 = vmul.f32 0.5, %v5518
  %v5520 = vsub.f32 1.5, %v5519
  %v5521 = vmul.f32 %v5516, %v5520
  %vm5522 = vweird.f32 %v5515
  %vm5523 = vweird.f32 %v5516
  %vm5524 = vmor %vm5522, %vm5523
  %v5525 = vsel %vm5524, %v5516, %v5521
  %v5526 = vmul.f32 %v5509, %v5525
  %v5527 = vmul.f32 %v5526, %v2374
  %v5528 = vadd.f32 %v5527, %v2376
  %v5529 = vsel %vm238, %v5528, 0.0
  %5530 = vadd.xlane.f32.xlu0 %v5529
  %v5531 = vpop.xlane.xlu0 %5530
  %v5532 = vmul.f32 %v5531, %v248
  %v5533 = vsub.f32 %v5528, %v5532
  %v5534 = vmul.f32 %v5533, %v5533
  %v5535 = vsel %vm238, %v5534, 0.0
  %5536 = vadd.xlane.f32.xlu0 %v5535
  %v5537 = vpop.xlane.xlu0 %5536
  %v5538 = vmul.f32 %v5537, %v248
  %v5539 = vadd.f32 %v5538, 1e-05
  %v5540 = vrsqrt.pop %v5539
  %v5541 = vmul.f32 %v5540, %v5539
  %v5542 = vmul.f32 %v5541, %v5540
  %v5543 = vmul.f32 0.5, %v5542
  %v5544 = vsub.f32 1.5, %v5543
  %v5545 = vmul.f32 %v5540, %v5544
  %vm5546 = vweird.f32 %v5539
  %vm5547 = vweird.f32 %v5540
  %vm5548 = vmor %vm5546, %vm5547
  %v5549 = vsel %vm5548, %v5540, %v5545
  %v5550 = vmul.f32 %v5533, %v5549
  %v5551 = vmul.f32 %v5550, %v268
  %v5552 = vadd.f32 %v5551, %v270
  %v5554 = vsel %vm238, %v5552, 0
  %5556 = vmatpush.msra.mxu0 0.0
  %5557 = vmatpush.msra.mxu0 0.0
  %5558 = vmatpush.msra.mxu0 0.0
  %5559 = vmatpush.msra.mxu0 0.0
  %5560 = vmatpush.msra.mxu0 0.0
  %5561 = vmatpush.msra.mxu0 0.0
  %5562 = vmatpush.msra.mxu0 0.0
  %5563 = vmatpush.msra.mxu0 0.0
  %5564 = vmatpush.msra.mxu0 0.0
  %5565 = vmatpush.msra.mxu0 0.0
  %5566 = vmatpush.msra.mxu0 0.0
  %5567 = vmatpush.msra.mxu0 0.0
  %5568 = vmatpush.msra.mxu0 %v21
  %5569 = vmatpush.msra.mxu0 %v20
  %5570 = vmatpush.msra.mxu0 %v19
  %5571 = vmatpush.msra.mxu0 %v18
  %5572 = vmatmul.f32.gmra.mxu0 %v5554
  %v5573 = vpop.f32.mrf.mxu0
  %v5574 = vadd.f32 %v272, %v5573
  %5575 = vdwg.mxu0
  %v5576 = vmax.f32 %v5574, 0.0
  %v5578 = vsel %vm238, %v5576, 0
  %5580 = vmatpush.msra.mxu0 0.0
  %5581 = vmatpush.msra.mxu0 0.0
  %5582 = vmatpush.msra.mxu0 0.0
  %5583 = vmatpush.msra.mxu0 0.0
  %5584 = vmatpush.msra.mxu0 0.0
  %5585 = vmatpush.msra.mxu0 0.0
  %5586 = vmatpush.msra.mxu0 0.0
  %5587 = vmatpush.msra.mxu0 0.0
  %5588 = vmatpush.msra.mxu0 0.0
  %5589 = vmatpush.msra.mxu0 0.0
  %5590 = vmatpush.msra.mxu0 0.0
  %5591 = vmatpush.msra.mxu0 0.0
  %5592 = vmatpush.msra.mxu0 %v25
  %5593 = vmatpush.msra.mxu0 %v24
  %5594 = vmatpush.msra.mxu0 %v23
  %5595 = vmatpush.msra.mxu0 %v22
  %5596 = vmatmul.f32.gmra.mxu0 %v5578
  %v5597 = vpop.f32.mrf.mxu0
  %v5598 = vadd.f32 %v297, %v5597
  %5599 = vdwg.mxu0
  %v5600 = vmax.f32 %v5598, 0.0
  %v5602 = vsel %vm238, %v5600, 0
  %5604 = vmatpush.msra.mxu0 0.0
  %5605 = vmatpush.msra.mxu0 0.0
  %5606 = vmatpush.msra.mxu0 0.0
  %5607 = vmatpush.msra.mxu0 0.0
  %5608 = vmatpush.msra.mxu0 0.0
  %5609 = vmatpush.msra.mxu0 0.0
  %5610 = vmatpush.msra.mxu0 0.0
  %5611 = vmatpush.msra.mxu0 0.0
  %5612 = vmatpush.msra.mxu0 0.0
  %5613 = vmatpush.msra.mxu0 0.0
  %5614 = vmatpush.msra.mxu0 0.0
  %5615 = vmatpush.msra.mxu0 0.0
  %5616 = vmatpush.msra.mxu0 %v29
  %5617 = vmatpush.msra.mxu0 %v28
  %5618 = vmatpush.msra.mxu0 %v27
  %5619 = vmatpush.msra.mxu0 %v26
  %5620 = vmatmul.f32.gmra.mxu0 %v5602
  %v5621 = vpop.f32.mrf.mxu0
  %v5622 = vadd.f32 %v322, %v5621
  %5623 = vdwg.mxu0
  %v5625 = vsel %vm238, %v5622, 0
  %5627 = vmatpush.msra.mxu0 0.0
  %5628 = vmatpush.msra.mxu0 0.0
  %5629 = vmatpush.msra.mxu0 0.0
  %5630 = vmatpush.msra.mxu0 0.0
  %5631 = vmatpush.msra.mxu0 0.0
  %5632 = vmatpush.msra.mxu0 0.0
  %5633 = vmatpush.msra.mxu0 0.0
  %5634 = vmatpush.msra.mxu0 0.0
  %5635 = vmatpush.msra.mxu0 0.0
  %5636 = vmatpush.msra.mxu0 0.0
  %5637 = vmatpush.msra.mxu0 0.0
  %5638 = vmatpush.msra.mxu0 0.0
  %5639 = vmatpush.msra.mxu0 %v3607
  %5640 = vmatpush.msra.mxu0 %v3604
  %5641 = vmatpush.msra.mxu0 %v3601
  %5642 = vmatpush.msra.mxu0 %v3598
  %5643 = vmatmul.f32.gmra.mxu0 %v5625
  %v5644 = vpop.f32.mrf.mxu0
  %v5645 = vadd.f32 0.0, %v5644
  %5646 = vdwg.mxu0
  %v5647 = vsel %vm401, %v5645, -inf
  %5648 = vmax.xlane.f32.xlu0 %v5647
  %v5649 = vpop.xlane.xlu0 %5648
  %vm5650 = vcmp.lt.f32.partialorder %v5645, 0.0
  %vm5651 = vcmp.ge.f32.partialorder %v5649, 0.0
  %v5652 = vsel %vm5651, 1, 0
  %vm5653 = vcmp.eq.s32.totalorder %v5652, 1
  %vm5654 = vmand %vm5650, %vm5653
  %v5655 = vsel %vm5654, -1e+09, 0.0
  %v5657 = vsel %vm238, %v5528, 0
  %5659 = vmatpush.msra.mxu0 0.0
  %5660 = vmatpush.msra.mxu0 0.0
  %5661 = vmatpush.msra.mxu0 0.0
  %5662 = vmatpush.msra.mxu0 0.0
  %5663 = vmatpush.msra.mxu0 0.0
  %5664 = vmatpush.msra.mxu0 0.0
  %5665 = vmatpush.msra.mxu0 0.0
  %5666 = vmatpush.msra.mxu0 0.0
  %5667 = vmatpush.msra.mxu0 0.0
  %5668 = vmatpush.msra.mxu0 0.0
  %5669 = vmatpush.msra.mxu0 0.0
  %5670 = vmatpush.msra.mxu0 0.0
  %5671 = vmatpush.msra.mxu0 %v143
  %5672 = vmatpush.msra.mxu0 %v142
  %5673 = vmatpush.msra.mxu0 %v141
  %5674 = vmatpush.msra.mxu0 %v140
  %5675 = vmatmul.f32.gmra.mxu0 %v5657
  %v5676 = vpop.f32.mrf.mxu0
  %v5677 = vadd.f32 %v144, %v5676
  %5678 = vdwg.mxu0
  %5679 = vrot.lane.b32.xlu0 %v3561, 48
  %v5680 = vpop.permute.xlu0 %5679
  %5681 = vrot.lane.b32.xlu0 %v3562, 48
  %v5682 = vpop.permute.xlu0 %5681
  %5685 = vmatpush.msra.mxu0 0.0
  %5686 = vmatpush.msra.mxu0 0.0
  %5687 = vmatpush.msra.mxu0 0.0
  %5688 = vmatpush.msra.mxu0 0.0
  %5689 = vmatpush.msra.mxu0 0.0
  %5690 = vmatpush.msra.mxu0 0.0
  %5691 = vmatpush.msra.mxu0 0.0
  %5692 = vmatpush.msra.mxu0 0.0
  %5693 = vmatpush.msra.mxu0 0.0
  %5694 = vmatpush.msra.mxu0 0.0
  %5695 = vmatpush.msra.mxu0 0.0
  %5696 = vmatpush.msra.mxu0 0.0
  %5697 = vmatpush.msra.mxu0 0.0
  %5698 = vmatpush.msra.mxu0 0.0
  %5699 = vmatpush.msra.mxu0 %v5682
  %5700 = vmatpush.msra.mxu0 %v5680
  %5701 = vmatmul.f32.gmra.mxu0 %v2535
  %v5702 = vpop.f32.mrf.mxu0
  %v5703 = vadd.f32 %v153, %v5702
  %5704 = vmatmul.f32.gmra.mxu0 %v2538
  %v5705 = vpop.f32.mrf.mxu0
  %v5706 = vadd.f32 %v154, %v5705
  %5707 = vmatmul.f32.gmra.mxu0 %v2541
  %v5708 = vpop.f32.mrf.mxu0
  %v5709 = vadd.f32 %v155, %v5708
  %5710 = vmatmul.f32.gmra.mxu0 %v2544
  %v5711 = vpop.f32.mrf.mxu0
  %v5712 = vadd.f32 %v156, %v5711
  %5713 = vmatmul.f32.gmra.mxu0 %v2547
  %v5714 = vpop.f32.mrf.mxu0
  %v5715 = vadd.f32 %v157, %v5714
  %5716 = vmatmul.f32.gmra.mxu0 %v2550
  %v5717 = vpop.f32.mrf.mxu0
  %v5718 = vadd.f32 %v158, %v5717
  %5719 = vmatmul.f32.gmra.mxu0 %v2553
  %v5720 = vpop.f32.mrf.mxu0
  %v5721 = vadd.f32 %v159, %v5720
  %5722 = vmatmul.f32.gmra.mxu0 %v2556
  %v5723 = vpop.f32.mrf.mxu0
  %v5724 = vadd.f32 %v160, %v5723
  %5725 = vdwg.mxu0
  %v5727 = vsel %vm467, %v5677, 0
  %5729 = vmatpush.msra.mxu0 0.0
  %5730 = vmatpush.msra.mxu0 0.0
  %5731 = vmatpush.msra.mxu0 0.0
  %5732 = vmatpush.msra.mxu0 0.0
  %5733 = vmatpush.msra.mxu0 0.0
  %5734 = vmatpush.msra.mxu0 0.0
  %5735 = vmatpush.msra.mxu0 0.0
  %5736 = vmatpush.msra.mxu0 0.0
  %5737 = vmatpush.msra.mxu0 0.0
  %5738 = vmatpush.msra.mxu0 0.0
  %5739 = vmatpush.msra.mxu0 0.0
  %5740 = vmatpush.msra.mxu0 0.0
  %5741 = vmatpush.msra.mxu0 0.0
  %5742 = vmatpush.msra.mxu0 0.0
  %5743 = vmatpush.msra.mxu0 0.0
  %5744 = vmatpush.msra.mxu0 %v5703
  %5745 = vmatmul.f32.gmra.mxu0 %v5727
  %v5746 = vpop.f32.mrf.mxu0
  %v5747 = vadd.f32 0.0, %v5746
  %5748 = vdwg.mxu0
  %5749 = vrot.lane.b32.xlu0 %v5677, 120
  %v5750 = vpop.permute.xlu0 %5749
  %v5751 = vsel %vm467, %v5750, 0
  %5753 = vmatpush.msra.mxu0 0.0
  %5754 = vmatpush.msra.mxu0 0.0
  %5755 = vmatpush.msra.mxu0 0.0
  %5756 = vmatpush.msra.mxu0 0.0
  %5757 = vmatpush.msra.mxu0 0.0
  %5758 = vmatpush.msra.mxu0 0.0
  %5759 = vmatpush.msra.mxu0 0.0
  %5760 = vmatpush.msra.mxu0 0.0
  %5761 = vmatpush.msra.mxu0 0.0
  %5762 = vmatpush.msra.mxu0 0.0
  %5763 = vmatpush.msra.mxu0 0.0
  %5764 = vmatpush.msra.mxu0 0.0
  %5765 = vmatpush.msra.mxu0 0.0
  %5766 = vmatpush.msra.mxu0 0.0
  %5767 = vmatpush.msra.mxu0 0.0
  %5768 = vmatpush.msra.mxu0 %v5706
  %5769 = vmatmul.f32.gmra.mxu0 %v5751
  %v5770 = vpop.f32.mrf.mxu0
  %v5771 = vadd.f32 0.0, %v5770
  %5772 = vdwg.mxu0
  %5773 = vrot.lane.b32.xlu0 %v5677, 112
  %v5774 = vpop.permute.xlu0 %5773
  %v5775 = vsel %vm467, %v5774, 0
  %5777 = vmatpush.msra.mxu0 0.0
  %5778 = vmatpush.msra.mxu0 0.0
  %5779 = vmatpush.msra.mxu0 0.0
  %5780 = vmatpush.msra.mxu0 0.0
  %5781 = vmatpush.msra.mxu0 0.0
  %5782 = vmatpush.msra.mxu0 0.0
  %5783 = vmatpush.msra.mxu0 0.0
  %5784 = vmatpush.msra.mxu0 0.0
  %5785 = vmatpush.msra.mxu0 0.0
  %5786 = vmatpush.msra.mxu0 0.0
  %5787 = vmatpush.msra.mxu0 0.0
  %5788 = vmatpush.msra.mxu0 0.0
  %5789 = vmatpush.msra.mxu0 0.0
  %5790 = vmatpush.msra.mxu0 0.0
  %5791 = vmatpush.msra.mxu0 0.0
  %5792 = vmatpush.msra.mxu0 %v5709
  %5793 = vmatmul.f32.gmra.mxu0 %v5775
  %v5794 = vpop.f32.mrf.mxu0
  %v5795 = vadd.f32 0.0, %v5794
  %5796 = vdwg.mxu0
  %5797 = vrot.lane.b32.xlu0 %v5677, 104
  %v5798 = vpop.permute.xlu0 %5797
  %v5799 = vsel %vm467, %v5798, 0
  %5801 = vmatpush.msra.mxu0 0.0
  %5802 = vmatpush.msra.mxu0 0.0
  %5803 = vmatpush.msra.mxu0 0.0
  %5804 = vmatpush.msra.mxu0 0.0
  %5805 = vmatpush.msra.mxu0 0.0
  %5806 = vmatpush.msra.mxu0 0.0
  %5807 = vmatpush.msra.mxu0 0.0
  %5808 = vmatpush.msra.mxu0 0.0
  %5809 = vmatpush.msra.mxu0 0.0
  %5810 = vmatpush.msra.mxu0 0.0
  %5811 = vmatpush.msra.mxu0 0.0
  %5812 = vmatpush.msra.mxu0 0.0
  %5813 = vmatpush.msra.mxu0 0.0
  %5814 = vmatpush.msra.mxu0 0.0
  %5815 = vmatpush.msra.mxu0 0.0
  %5816 = vmatpush.msra.mxu0 %v5712
  %5817 = vmatmul.f32.gmra.mxu0 %v5799
  %v5818 = vpop.f32.mrf.mxu0
  %v5819 = vadd.f32 0.0, %v5818
  %5820 = vdwg.mxu0
  %v5821 = vadd.f32 %v5747, %v5655
  %v5822 = vadd.f32 %v5771, %v5655
  %v5823 = vadd.f32 %v5795, %v5655
  %v5824 = vadd.f32 %v5819, %v5655
  %v5825 = vsel %vm401, %v5821, -inf
  %5826 = vmax.xlane.f32.xlu0 %v5825
  %v5827 = vpop.xlane.xlu0 %5826
  %v5828 = vsel %vm401, %v5822, -inf
  %5829 = vmax.xlane.f32.xlu0 %v5828
  %v5830 = vpop.xlane.xlu0 %5829
  %v5831 = vsel %vm401, %v5823, -inf
  %5832 = vmax.xlane.f32.xlu0 %v5831
  %v5833 = vpop.xlane.xlu0 %5832
  %v5834 = vsel %vm401, %v5824, -inf
  %5835 = vmax.xlane.f32.xlu0 %v5834
  %v5836 = vpop.xlane.xlu0 %5835
  %v5837 = vsub.f32 %v5821, %v5827
  %v5838 = vsub.f32 %v5822, %v5830
  %v5839 = vsub.f32 %v5823, %v5833
  %v5840 = vsub.f32 %v5824, %v5836
  %v5841 = vmul.f32 %v5837, 1.442695
  %v5842 = vpow.pop %v5841
  %v5843 = vmul.f32 %v5838, 1.442695
  %v5844 = vpow.pop %v5843
  %v5845 = vmul.f32 %v5839, 1.442695
  %v5846 = vpow.pop %v5845
  %v5847 = vmul.f32 %v5840, 1.442695
  %v5848 = vpow.pop %v5847
  %v5849 = vsel %vm401, %v5842, 0.0
  %5850 = vadd.xlane.f32.xlu0 %v5849
  %v5851 = vpop.xlane.xlu0 %5850
  %v5852 = vsel %vm401, %v5844, 0.0
  %5853 = vadd.xlane.f32.xlu0 %v5852
  %v5854 = vpop.xlane.xlu0 %5853
  %v5855 = vsel %vm401, %v5846, 0.0
  %5856 = vadd.xlane.f32.xlu0 %v5855
  %v5857 = vpop.xlane.xlu0 %5856
  %v5858 = vsel %vm401, %v5848, 0.0
  %5859 = vadd.xlane.f32.xlu0 %v5858
  %v5860 = vpop.xlane.xlu0 %5859
  %v5861 = vrcp.pop %v5851
  %v5862 = vmul.f32 %v5851, %v5861
  %v5863 = vsub.f32 1.0, %v5862
  %v5864 = vmul.f32 %v5861, %v5863
  %v5865 = vadd.f32 %v5861, %v5864
  %vm5866 = vweird.f32 %v5851
  %vm5867 = vweird.f32 %v5861
  %vm5868 = vmor %vm5866, %vm5867
  %v5869 = vsel %vm5868, %v5861, %v5865
  %v5870 = vand.u32 2147483647, %v5851
  %vm5871 = vcmp.eq.f32.partialorder %v5870, 8.507059e+37
  %v5872 = vand.u32 %v5851, 2147483648
  %v5873 = vor.u32 1.1754944e-38, %v5872
  %v5874 = vsel %vm5871, %v5873, %v5869
  %v5875 = vmul.f32 %v5842, %v5874
  %v5876 = vrcp.pop %v5854
  %v5877 = vmul.f32 %v5854, %v5876
  %v5878 = vsub.f32 1.0, %v5877
  %v5879 = vmul.f32 %v5876, %v5878
  %v5880 = vadd.f32 %v5876, %v5879
  %vm5881 = vweird.f32 %v5854
  %vm5882 = vweird.f32 %v5876
  %vm5883 = vmor %vm5881, %vm5882
  %v5884 = vsel %vm5883, %v5876, %v5880
  %v5885 = vand.u32 2147483647, %v5854
  %vm5886 = vcmp.eq.f32.partialorder %v5885, 8.507059e+37
  %v5887 = vand.u32 %v5854, 2147483648
  %v5888 = vor.u32 1.1754944e-38, %v5887
  %v5889 = vsel %vm5886, %v5888, %v5884
  %v5890 = vmul.f32 %v5844, %v5889
  %v5891 = vrcp.pop %v5857
  %v5892 = vmul.f32 %v5857, %v5891
  %v5893 = vsub.f32 1.0, %v5892
  %v5894 = vmul.f32 %v5891, %v5893
  %v5895 = vadd.f32 %v5891, %v5894
  %vm5896 = vweird.f32 %v5857
  %vm5897 = vweird.f32 %v5891
  %vm5898 = vmor %vm5896, %vm5897
  %v5899 = vsel %vm5898, %v5891, %v5895
  %v5900 = vand.u32 2147483647, %v5857
  %vm5901 = vcmp.eq.f32.partialorder %v5900, 8.507059e+37
  %v5902 = vand.u32 %v5857, 2147483648
  %v5903 = vor.u32 1.1754944e-38, %v5902
  %v5904 = vsel %vm5901, %v5903, %v5899
  %v5905 = vmul.f32 %v5846, %v5904
  %v5906 = vrcp.pop %v5860
  %v5907 = vmul.f32 %v5860, %v5906
  %v5908 = vsub.f32 1.0, %v5907
  %v5909 = vmul.f32 %v5906, %v5908
  %v5910 = vadd.f32 %v5906, %v5909
  %vm5911 = vweird.f32 %v5860
  %vm5912 = vweird.f32 %v5906
  %vm5913 = vmor %vm5911, %vm5912
  %v5914 = vsel %vm5913, %v5906, %v5910
  %v5915 = vand.u32 2147483647, %v5860
  %vm5916 = vcmp.eq.f32.partialorder %v5915, 8.507059e+37
  %v5917 = vand.u32 %v5860, 2147483648
  %v5918 = vor.u32 1.1754944e-38, %v5917
  %v5919 = vsel %vm5916, %v5918, %v5914
  %v5920 = vmul.f32 %v5848, %v5919
  %v5922 = vsel %vm401, %v5875, 0
  %v5925 = vsel %vm401, %v5715, 0
  %5927 = vmatpush.xpose.msra.mxu0 0.0
  %5928 = vmatpush.xpose.msra.mxu0 0.0
  %5929 = vmatpush.xpose.msra.mxu0 0.0
  %5930 = vmatpush.xpose.msra.mxu0 0.0
  %5931 = vmatpush.xpose.msra.mxu0 0.0
  %5932 = vmatpush.xpose.msra.mxu0 0.0
  %5933 = vmatpush.xpose.msra.mxu0 0.0
  %5934 = vmatpush.xpose.msra.mxu0 0.0
  %5935 = vmatpush.xpose.msra.mxu0 0.0
  %5936 = vmatpush.xpose.msra.mxu0 0.0
  %5937 = vmatpush.xpose.msra.mxu0 0.0
  %5938 = vmatpush.xpose.msra.mxu0 0.0
  %5939 = vmatpush.xpose.msra.mxu0 0.0
  %5940 = vmatpush.xpose.msra.mxu0 0.0
  %5941 = vmatpush.xpose.msra.mxu0 0.0
  %5942 = vmatpush.xpose.msra.mxu0 %v5925
  %5943 = vmatmul.f32.gmra.mxu0 %v5922
  %v5944 = vpop.f32.mrf.mxu0
  %v5945 = vadd.f32 0.0, %v5944
  %5946 = vdwg.mxu0
  %v5948 = vsel %vm401, %v5890, 0
  %v5951 = vsel %vm401, %v5718, 0
  %5953 = vmatpush.xpose.msra.mxu0 0.0
  %5954 = vmatpush.xpose.msra.mxu0 0.0
  %5955 = vmatpush.xpose.msra.mxu0 0.0
  %5956 = vmatpush.xpose.msra.mxu0 0.0
  %5957 = vmatpush.xpose.msra.mxu0 0.0
  %5958 = vmatpush.xpose.msra.mxu0 0.0
  %5959 = vmatpush.xpose.msra.mxu0 0.0
  %5960 = vmatpush.xpose.msra.mxu0 0.0
  %5961 = vmatpush.xpose.msra.mxu0 0.0
  %5962 = vmatpush.xpose.msra.mxu0 0.0
  %5963 = vmatpush.xpose.msra.mxu0 0.0
  %5964 = vmatpush.xpose.msra.mxu0 0.0
  %5965 = vmatpush.xpose.msra.mxu0 0.0
  %5966 = vmatpush.xpose.msra.mxu0 0.0
  %5967 = vmatpush.xpose.msra.mxu0 0.0
  %5968 = vmatpush.xpose.msra.mxu0 %v5951
  %5969 = vmatmul.f32.gmra.mxu0 %v5948
  %v5970 = vpop.f32.mrf.mxu0
  %v5971 = vadd.f32 0.0, %v5970
  %5972 = vdwg.mxu0
  %v5974 = vsel %vm401, %v5905, 0
  %v5977 = vsel %vm401, %v5721, 0
  %5979 = vmatpush.xpose.msra.mxu0 0.0
  %5980 = vmatpush.xpose.msra.mxu0 0.0
  %5981 = vmatpush.xpose.msra.mxu0 0.0
  %5982 = vmatpush.xpose.msra.mxu0 0.0
  %5983 = vmatpush.xpose.msra.mxu0 0.0
  %5984 = vmatpush.xpose.msra.mxu0 0.0
  %5985 = vmatpush.xpose.msra.mxu0 0.0
  %5986 = vmatpush.xpose.msra.mxu0 0.0
  %5987 = vmatpush.xpose.msra.mxu0 0.0
  %5988 = vmatpush.xpose.msra.mxu0 0.0
  %5989 = vmatpush.xpose.msra.mxu0 0.0
  %5990 = vmatpush.xpose.msra.mxu0 0.0
  %5991 = vmatpush.xpose.msra.mxu0 0.0
  %5992 = vmatpush.xpose.msra.mxu0 0.0
  %5993 = vmatpush.xpose.msra.mxu0 0.0
  %5994 = vmatpush.xpose.msra.mxu0 %v5977
  %5995 = vmatmul.f32.gmra.mxu0 %v5974
  %v5996 = vpop.f32.mrf.mxu0
  %v5997 = vadd.f32 0.0, %v5996
  %5998 = vdwg.mxu0
  %v6000 = vsel %vm401, %v5920, 0
  %v6003 = vsel %vm401, %v5724, 0
  %6005 = vmatpush.xpose.msra.mxu0 0.0
  %6006 = vmatpush.xpose.msra.mxu0 0.0
  %6007 = vmatpush.xpose.msra.mxu0 0.0
  %6008 = vmatpush.xpose.msra.mxu0 0.0
  %6009 = vmatpush.xpose.msra.mxu0 0.0
  %6010 = vmatpush.xpose.msra.mxu0 0.0
  %6011 = vmatpush.xpose.msra.mxu0 0.0
  %6012 = vmatpush.xpose.msra.mxu0 0.0
  %6013 = vmatpush.xpose.msra.mxu0 0.0
  %6014 = vmatpush.xpose.msra.mxu0 0.0
  %6015 = vmatpush.xpose.msra.mxu0 0.0
  %6016 = vmatpush.xpose.msra.mxu0 0.0
  %6017 = vmatpush.xpose.msra.mxu0 0.0
  %6018 = vmatpush.xpose.msra.mxu0 0.0
  %6019 = vmatpush.xpose.msra.mxu0 0.0
  %6020 = vmatpush.xpose.msra.mxu0 %v6003
  %6021 = vmatmul.f32.gmra.mxu0 %v6000
  %v6022 = vpop.f32.mrf.mxu0
  %v6023 = vadd.f32 0.0, %v6022
  %6024 = vdwg.mxu0
  %6026 = vrot.lane.b32.xlu0 %v5971, 8
  %v6027 = vpop.permute.xlu0 %6026
  %6030 = vrot.lane.b32.xlu0 %v5997, 16
  %v6031 = vpop.permute.xlu0 %6030
  %6034 = vrot.lane.b32.xlu0 %v6023, 24
  %v6035 = vpop.permute.xlu0 %6034
  %v6037 = vsel %vm467, %v5945, %v6027
  %v6038 = vsel %vm401, %v6037, %v6031
  %v6039 = vsel %vm781, %v6038, %v6035
  %v6041 = vsel %vm238, %v6039, 0
  %6043 = vmatpush.msra.mxu0 0.0
  %6044 = vmatpush.msra.mxu0 0.0
  %6045 = vmatpush.msra.mxu0 0.0
  %6046 = vmatpush.msra.mxu0 0.0
  %6047 = vmatpush.msra.mxu0 0.0
  %6048 = vmatpush.msra.mxu0 0.0
  %6049 = vmatpush.msra.mxu0 0.0
  %6050 = vmatpush.msra.mxu0 0.0
  %6051 = vmatpush.msra.mxu0 0.0
  %6052 = vmatpush.msra.mxu0 0.0
  %6053 = vmatpush.msra.mxu0 0.0
  %6054 = vmatpush.msra.mxu0 0.0
  %6055 = vmatpush.msra.mxu0 %v164
  %6056 = vmatpush.msra.mxu0 %v163
  %6057 = vmatpush.msra.mxu0 %v162
  %6058 = vmatpush.msra.mxu0 %v161
  %6059 = vmatmul.f32.gmra.mxu0 %v6041
  %v6060 = vpop.f32.mrf.mxu0
  %v6061 = vadd.f32 0.0, %v6060
  %6062 = vdwg.mxu0
  %v6063 = vadd.f32 %v5528, %v6061
  %v6064 = vadd.f32 %v6063, %v2937
  %v6065 = vsel %vm238, %v6064, 0.0
  %6066 = vadd.xlane.f32.xlu0 %v6065
  %v6067 = vpop.xlane.xlu0 %6066
  %v6068 = vmul.f32 %v6067, %v248
  %v6069 = vsub.f32 %v6064, %v6068
  %v6070 = vmul.f32 %v6069, %v6069
  %v6071 = vsel %vm238, %v6070, 0.0
  %6072 = vadd.xlane.f32.xlu0 %v6071
  %v6073 = vpop.xlane.xlu0 %6072
  %v6074 = vmul.f32 %v6073, %v248
  %v6075 = vadd.f32 %v6074, 1e-05
  %v6076 = vrsqrt.pop %v6075
  %v6077 = vmul.f32 %v6076, %v6075
  %v6078 = vmul.f32 %v6077, %v6076
  %v6079 = vmul.f32 0.5, %v6078
  %v6080 = vsub.f32 1.5, %v6079
  %v6081 = vmul.f32 %v6076, %v6080
  %vm6082 = vweird.f32 %v6075
  %vm6083 = vweird.f32 %v6076
  %vm6084 = vmor %vm6082, %vm6083
  %v6085 = vsel %vm6084, %v6076, %v6081
  %v6086 = vmul.f32 %v6069, %v6085
  %v6087 = vmul.f32 %v6086, %v2961
  %v6088 = vadd.f32 %v6087, %v2963
  %v6090 = vsel %vm238, %v6088, 0
  %6092 = vmatpush.msra.mxu0 0.0
  %6093 = vmatpush.msra.mxu0 0.0
  %6094 = vmatpush.msra.mxu0 0.0
  %6095 = vmatpush.msra.mxu0 0.0
  %6096 = vmatpush.msra.mxu0 0.0
  %6097 = vmatpush.msra.mxu0 0.0
  %6098 = vmatpush.msra.mxu0 0.0
  %6099 = vmatpush.msra.mxu0 0.0
  %6100 = vmatpush.msra.mxu0 0.0
  %6101 = vmatpush.msra.mxu0 0.0
  %6102 = vmatpush.msra.mxu0 0.0
  %6103 = vmatpush.msra.mxu0 0.0
  %6104 = vmatpush.msra.mxu0 %v169
  %6105 = vmatpush.msra.mxu0 %v168
  %6106 = vmatpush.msra.mxu0 %v167
  %6107 = vmatpush.msra.mxu0 %v166
  %6108 = vmatmul.f32.gmra.mxu0 %v6090
  %v6109 = vpop.f32.mrf.mxu0
  %v6110 = vadd.f32 %v170, %v6109
  %6111 = vdwg.mxu0
  %6113 = vrot.lane.b32.xlu0 %v6110, 96
  %v6114 = vpop.permute.xlu0 %6113
  %v6115 = vsel %vm467, %v6110, 0
  %v6117 = vsel %vm467, %v6114, 0
  %6119 = vmatpush.xpose.msra.mxu0 0.0
  %6120 = vmatpush.xpose.msra.mxu0 0.0
  %6121 = vmatpush.xpose.msra.mxu0 0.0
  %6122 = vmatpush.xpose.msra.mxu0 0.0
  %6123 = vmatpush.xpose.msra.mxu0 0.0
  %6124 = vmatpush.xpose.msra.mxu0 0.0
  %6125 = vmatpush.xpose.msra.mxu0 0.0
  %6126 = vmatpush.xpose.msra.mxu0 0.0
  %6127 = vmatpush.xpose.msra.mxu0 0.0
  %6128 = vmatpush.xpose.msra.mxu0 0.0
  %6129 = vmatpush.xpose.msra.mxu0 0.0
  %6130 = vmatpush.xpose.msra.mxu0 0.0
  %6131 = vmatpush.xpose.msra.mxu0 0.0
  %6132 = vmatpush.xpose.msra.mxu0 0.0
  %6133 = vmatpush.xpose.msra.mxu0 0.0
  %6134 = vmatpush.xpose.msra.mxu0 %v6117
  %6135 = vmatmul.f32.gmra.mxu0 %v6115
  %v6136 = vpop.f32.mrf.mxu0
  %v6137 = vadd.f32 0.0, %v6136
  %6138 = vdwg.mxu0
  %6139 = vrot.lane.b32.xlu0 %v6110, 120
  %v6140 = vpop.permute.xlu0 %6139
  %6141 = vrot.lane.b32.xlu0 %v6110, 88
  %v6142 = vpop.permute.xlu0 %6141
  %v6143 = vsel %vm467, %v6140, 0
  %v6145 = vsel %vm467, %v6142, 0
  %6147 = vmatpush.xpose.msra.mxu0 0.0
  %6148 = vmatpush.xpose.msra.mxu0 0.0
  %6149 = vmatpush.xpose.msra.mxu0 0.0
  %6150 = vmatpush.xpose.msra.mxu0 0.0
  %6151 = vmatpush.xpose.msra.mxu0 0.0
  %6152 = vmatpush.xpose.msra.mxu0 0.0
  %6153 = vmatpush.xpose.msra.mxu0 0.0
  %6154 = vmatpush.xpose.msra.mxu0 0.0
  %6155 = vmatpush.xpose.msra.mxu0 0.0
  %6156 = vmatpush.xpose.msra.mxu0 0.0
  %6157 = vmatpush.xpose.msra.mxu0 0.0
  %6158 = vmatpush.xpose.msra.mxu0 0.0
  %6159 = vmatpush.xpose.msra.mxu0 0.0
  %6160 = vmatpush.xpose.msra.mxu0 0.0
  %6161 = vmatpush.xpose.msra.mxu0 0.0
  %6162 = vmatpush.xpose.msra.mxu0 %v6145
  %6163 = vmatmul.f32.gmra.mxu0 %v6143
  %v6164 = vpop.f32.mrf.mxu0
  %v6165 = vadd.f32 0.0, %v6164
  %6166 = vdwg.mxu0
  %6167 = vrot.lane.b32.xlu0 %v6110, 112
  %v6168 = vpop.permute.xlu0 %6167
  %6169 = vrot.lane.b32.xlu0 %v6110, 80
  %v6170 = vpop.permute.xlu0 %6169
  %v6171 = vsel %vm467, %v6168, 0
  %v6173 = vsel %vm467, %v6170, 0
  %6175 = vmatpush.xpose.msra.mxu0 0.0
  %6176 = vmatpush.xpose.msra.mxu0 0.0
  %6177 = vmatpush.xpose.msra.mxu0 0.0
  %6178 = vmatpush.xpose.msra.mxu0 0.0
  %6179 = vmatpush.xpose.msra.mxu0 0.0
  %6180 = vmatpush.xpose.msra.mxu0 0.0
  %6181 = vmatpush.xpose.msra.mxu0 0.0
  %6182 = vmatpush.xpose.msra.mxu0 0.0
  %6183 = vmatpush.xpose.msra.mxu0 0.0
  %6184 = vmatpush.xpose.msra.mxu0 0.0
  %6185 = vmatpush.xpose.msra.mxu0 0.0
  %6186 = vmatpush.xpose.msra.mxu0 0.0
  %6187 = vmatpush.xpose.msra.mxu0 0.0
  %6188 = vmatpush.xpose.msra.mxu0 0.0
  %6189 = vmatpush.xpose.msra.mxu0 0.0
  %6190 = vmatpush.xpose.msra.mxu0 %v6173
  %6191 = vmatmul.f32.gmra.mxu0 %v6171
  %v6192 = vpop.f32.mrf.mxu0
  %v6193 = vadd.f32 0.0, %v6192
  %6194 = vdwg.mxu0
  %6195 = vrot.lane.b32.xlu0 %v6110, 104
  %v6196 = vpop.permute.xlu0 %6195
  %6197 = vrot.lane.b32.xlu0 %v6110, 72
  %v6198 = vpop.permute.xlu0 %6197
  %v6199 = vsel %vm467, %v6196, 0
  %v6201 = vsel %vm467, %v6198, 0
  %6203 = vmatpush.xpose.msra.mxu0 0.0
  %6204 = vmatpush.xpose.msra.mxu0 0.0
  %6205 = vmatpush.xpose.msra.mxu0 0.0
  %6206 = vmatpush.xpose.msra.mxu0 0.0
  %6207 = vmatpush.xpose.msra.mxu0 0.0
  %6208 = vmatpush.xpose.msra.mxu0 0.0
  %6209 = vmatpush.xpose.msra.mxu0 0.0
  %6210 = vmatpush.xpose.msra.mxu0 0.0
  %6211 = vmatpush.xpose.msra.mxu0 0.0
  %6212 = vmatpush.xpose.msra.mxu0 0.0
  %6213 = vmatpush.xpose.msra.mxu0 0.0
  %6214 = vmatpush.xpose.msra.mxu0 0.0
  %6215 = vmatpush.xpose.msra.mxu0 0.0
  %6216 = vmatpush.xpose.msra.mxu0 0.0
  %6217 = vmatpush.xpose.msra.mxu0 0.0
  %6218 = vmatpush.xpose.msra.mxu0 %v6201
  %6219 = vmatmul.f32.gmra.mxu0 %v6199
  %v6220 = vpop.f32.mrf.mxu0
  %v6221 = vadd.f32 0.0, %v6220
  %6222 = vdwg.mxu0
  %v6223 = vsel %vm467, %v6137, -inf
  %6224 = vmax.xlane.f32.xlu0 %v6223
  %v6225 = vpop.xlane.xlu0 %6224
  %v6226 = vsel %vm467, %v6165, -inf
  %6227 = vmax.xlane.f32.xlu0 %v6226
  %v6228 = vpop.xlane.xlu0 %6227
  %v6229 = vsel %vm467, %v6193, -inf
  %6230 = vmax.xlane.f32.xlu0 %v6229
  %v6231 = vpop.xlane.xlu0 %6230
  %v6232 = vsel %vm467, %v6221, -inf
  %6233 = vmax.xlane.f32.xlu0 %v6232
  %v6234 = vpop.xlane.xlu0 %6233
  %v6235 = vsub.f32 %v6137, %v6225
  %v6236 = vsub.f32 %v6165, %v6228
  %v6237 = vsub.f32 %v6193, %v6231
  %v6238 = vsub.f32 %v6221, %v6234
  %v6239 = vmul.f32 %v6235, 1.442695
  %v6240 = vpow.pop %v6239
  %v6241 = vmul.f32 %v6236, 1.442695
  %v6242 = vpow.pop %v6241
  %v6243 = vmul.f32 %v6237, 1.442695
  %v6244 = vpow.pop %v6243
  %v6245 = vmul.f32 %v6238, 1.442695
  %v6246 = vpow.pop %v6245
  %v6247 = vsel %vm467, %v6240, 0.0
  %6248 = vadd.xlane.f32.xlu0 %v6247
  %v6249 = vpop.xlane.xlu0 %6248
  %v6250 = vsel %vm467, %v6242, 0.0
  %6251 = vadd.xlane.f32.xlu0 %v6250
  %v6252 = vpop.xlane.xlu0 %6251
  %v6253 = vsel %vm467, %v6244, 0.0
  %6254 = vadd.xlane.f32.xlu0 %v6253
  %v6255 = vpop.xlane.xlu0 %6254
  %v6256 = vsel %vm467, %v6246, 0.0
  %6257 = vadd.xlane.f32.xlu0 %v6256
  %v6258 = vpop.xlane.xlu0 %6257
  %v6259 = vrcp.pop %v6249
  %v6260 = vmul.f32 %v6249, %v6259
  %v6261 = vsub.f32 1.0, %v6260
  %v6262 = vmul.f32 %v6259, %v6261
  %v6263 = vadd.f32 %v6259, %v6262
  %vm6264 = vweird.f32 %v6249
  %vm6265 = vweird.f32 %v6259
  %vm6266 = vmor %vm6264, %vm6265
  %v6267 = vsel %vm6266, %v6259, %v6263
  %v6268 = vand.u32 2147483647, %v6249
  %vm6269 = vcmp.eq.f32.partialorder %v6268, 8.507059e+37
  %v6270 = vand.u32 %v6249, 2147483648
  %v6271 = vor.u32 1.1754944e-38, %v6270
  %v6272 = vsel %vm6269, %v6271, %v6267
  %v6273 = vmul.f32 %v6240, %v6272
  %v6274 = vrcp.pop %v6252
  %v6275 = vmul.f32 %v6252, %v6274
  %v6276 = vsub.f32 1.0, %v6275
  %v6277 = vmul.f32 %v6274, %v6276
  %v6278 = vadd.f32 %v6274, %v6277
  %vm6279 = vweird.f32 %v6252
  %vm6280 = vweird.f32 %v6274
  %vm6281 = vmor %vm6279, %vm6280
  %v6282 = vsel %vm6281, %v6274, %v6278
  %v6283 = vand.u32 2147483647, %v6252
  %vm6284 = vcmp.eq.f32.partialorder %v6283, 8.507059e+37
  %v6285 = vand.u32 %v6252, 2147483648
  %v6286 = vor.u32 1.1754944e-38, %v6285
  %v6287 = vsel %vm6284, %v6286, %v6282
  %v6288 = vmul.f32 %v6242, %v6287
  %v6289 = vrcp.pop %v6255
  %v6290 = vmul.f32 %v6255, %v6289
  %v6291 = vsub.f32 1.0, %v6290
  %v6292 = vmul.f32 %v6289, %v6291
  %v6293 = vadd.f32 %v6289, %v6292
  %vm6294 = vweird.f32 %v6255
  %vm6295 = vweird.f32 %v6289
  %vm6296 = vmor %vm6294, %vm6295
  %v6297 = vsel %vm6296, %v6289, %v6293
  %v6298 = vand.u32 2147483647, %v6255
  %vm6299 = vcmp.eq.f32.partialorder %v6298, 8.507059e+37
  %v6300 = vand.u32 %v6255, 2147483648
  %v6301 = vor.u32 1.1754944e-38, %v6300
  %v6302 = vsel %vm6299, %v6301, %v6297
  %v6303 = vmul.f32 %v6244, %v6302
  %v6304 = vrcp.pop %v6258
  %v6305 = vmul.f32 %v6258, %v6304
  %v6306 = vsub.f32 1.0, %v6305
  %v6307 = vmul.f32 %v6304, %v6306
  %v6308 = vadd.f32 %v6304, %v6307
  %vm6309 = vweird.f32 %v6258
  %vm6310 = vweird.f32 %v6304
  %vm6311 = vmor %vm6309, %vm6310
  %v6312 = vsel %vm6311, %v6304, %v6308
  %v6313 = vand.u32 2147483647, %v6258
  %vm6314 = vcmp.eq.f32.partialorder %v6313, 8.507059e+37
  %v6315 = vand.u32 %v6258, 2147483648
  %v6316 = vor.u32 1.1754944e-38, %v6315
  %v6317 = vsel %vm6314, %v6316, %v6312
  %v6318 = vmul.f32 %v6246, %v6317
  %6319 = vrot.lane.b32.xlu0 %v6110, 64
  %v6320 = vpop.permute.xlu0 %6319
  %v6323 = vsel %vm467, %v6273, 0
  %6325 = vmatpush.msra.mxu0 0.0
  %6326 = vmatpush.msra.mxu0 0.0
  %6327 = vmatpush.msra.mxu0 0.0
  %6328 = vmatpush.msra.mxu0 0.0
  %6329 = vmatpush.msra.mxu0 0.0
  %6330 = vmatpush.msra.mxu0 0.0
  %6331 = vmatpush.msra.mxu0 0.0
  %6332 = vmatpush.msra.mxu0 0.0
  %6333 = vmatpush.msra.mxu0 0.0
  %6334 = vmatpush.msra.mxu0 0.0
  %6335 = vmatpush.msra.mxu0 0.0
  %6336 = vmatpush.msra.mxu0 0.0
  %6337 = vmatpush.msra.mxu0 0.0
  %6338 = vmatpush.msra.mxu0 0.0
  %6339 = vmatpush.msra.mxu0 0.0
  %6340 = vmatpush.msra.mxu0 %v6320
  %6341 = vmatmul.f32.gmra.mxu0 %v6323
  %v6342 = vpop.f32.mrf.mxu0
  %v6343 = vadd.f32 0.0, %v6342
  %6344 = vdwg.mxu0
  %6345 = vrot.lane.b32.xlu0 %v6110, 56
  %v6346 = vpop.permute.xlu0 %6345
  %v6349 = vsel %vm467, %v6288, 0
  %6351 = vmatpush.msra.mxu0 0.0
  %6352 = vmatpush.msra.mxu0 0.0
  %6353 = vmatpush.msra.mxu0 0.0
  %6354 = vmatpush.msra.mxu0 0.0
  %6355 = vmatpush.msra.mxu0 0.0
  %6356 = vmatpush.msra.mxu0 0.0
  %6357 = vmatpush.msra.mxu0 0.0
  %6358 = vmatpush.msra.mxu0 0.0
  %6359 = vmatpush.msra.mxu0 0.0
  %6360 = vmatpush.msra.mxu0 0.0
  %6361 = vmatpush.msra.mxu0 0.0
  %6362 = vmatpush.msra.mxu0 0.0
  %6363 = vmatpush.msra.mxu0 0.0
  %6364 = vmatpush.msra.mxu0 0.0
  %6365 = vmatpush.msra.mxu0 0.0
  %6366 = vmatpush.msra.mxu0 %v6346
  %6367 = vmatmul.f32.gmra.mxu0 %v6349
  %v6368 = vpop.f32.mrf.mxu0
  %v6369 = vadd.f32 0.0, %v6368
  %6370 = vdwg.mxu0
  %6371 = vrot.lane.b32.xlu0 %v6110, 48
  %v6372 = vpop.permute.xlu0 %6371
  %v6375 = vsel %vm467, %v6303, 0
  %6377 = vmatpush.msra.mxu0 0.0
  %6378 = vmatpush.msra.mxu0 0.0
  %6379 = vmatpush.msra.mxu0 0.0
  %6380 = vmatpush.msra.mxu0 0.0
  %6381 = vmatpush.msra.mxu0 0.0
  %6382 = vmatpush.msra.mxu0 0.0
  %6383 = vmatpush.msra.mxu0 0.0
  %6384 = vmatpush.msra.mxu0 0.0
  %6385 = vmatpush.msra.mxu0 0.0
  %6386 = vmatpush.msra.mxu0 0.0
  %6387 = vmatpush.msra.mxu0 0.0
  %6388 = vmatpush.msra.mxu0 0.0
  %6389 = vmatpush.msra.mxu0 0.0
  %6390 = vmatpush.msra.mxu0 0.0
  %6391 = vmatpush.msra.mxu0 0.0
  %6392 = vmatpush.msra.mxu0 %v6372
  %6393 = vmatmul.f32.gmra.mxu0 %v6375
  %v6394 = vpop.f32.mrf.mxu0
  %v6395 = vadd.f32 0.0, %v6394
  %6396 = vdwg.mxu0
  %6397 = vrot.lane.b32.xlu0 %v6110, 40
  %v6398 = vpop.permute.xlu0 %6397
  %v6401 = vsel %vm467, %v6318, 0
  %6403 = vmatpush.msra.mxu0 0.0
  %6404 = vmatpush.msra.mxu0 0.0
  %6405 = vmatpush.msra.mxu0 0.0
  %6406 = vmatpush.msra.mxu0 0.0
  %6407 = vmatpush.msra.mxu0 0.0
  %6408 = vmatpush.msra.mxu0 0.0
  %6409 = vmatpush.msra.mxu0 0.0
  %6410 = vmatpush.msra.mxu0 0.0
  %6411 = vmatpush.msra.mxu0 0.0
  %6412 = vmatpush.msra.mxu0 0.0
  %6413 = vmatpush.msra.mxu0 0.0
  %6414 = vmatpush.msra.mxu0 0.0
  %6415 = vmatpush.msra.mxu0 0.0
  %6416 = vmatpush.msra.mxu0 0.0
  %6417 = vmatpush.msra.mxu0 0.0
  %6418 = vmatpush.msra.mxu0 %v6398
  %6419 = vmatmul.f32.gmra.mxu0 %v6401
  %v6420 = vpop.f32.mrf.mxu0
  %v6421 = vadd.f32 0.0, %v6420
  %6422 = vdwg.mxu0
  %6424 = vrot.lane.b32.xlu0 %v6369, 8
  %v6425 = vpop.permute.xlu0 %6424
  %6428 = vrot.lane.b32.xlu0 %v6395, 16
  %v6429 = vpop.permute.xlu0 %6428
  %6432 = vrot.lane.b32.xlu0 %v6421, 24
  %v6433 = vpop.permute.xlu0 %6432
  %v6435 = vsel %vm467, %v6343, %v6425
  %v6436 = vsel %vm401, %v6435, %v6429
  %v6437 = vsel %vm781, %v6436, %v6433
  %v6439 = vsel %vm238, %v6437, 0
  %6441 = vmatpush.msra.mxu0 0.0
  %6442 = vmatpush.msra.mxu0 0.0
  %6443 = vmatpush.msra.mxu0 0.0
  %6444 = vmatpush.msra.mxu0 0.0
  %6445 = vmatpush.msra.mxu0 0.0
  %6446 = vmatpush.msra.mxu0 0.0
  %6447 = vmatpush.msra.mxu0 0.0
  %6448 = vmatpush.msra.mxu0 0.0
  %6449 = vmatpush.msra.mxu0 0.0
  %6450 = vmatpush.msra.mxu0 0.0
  %6451 = vmatpush.msra.mxu0 0.0
  %6452 = vmatpush.msra.mxu0 0.0
  %6453 = vmatpush.msra.mxu0 %v174
  %6454 = vmatpush.msra.mxu0 %v173
  %6455 = vmatpush.msra.mxu0 %v172
  %6456 = vmatpush.msra.mxu0 %v171
  %6457 = vmatmul.f32.gmra.mxu0 %v6439
  %v6458 = vpop.f32.mrf.mxu0
  %v6459 = vadd.f32 0.0, %v6458
  %6460 = vdwg.mxu0
  %v6461 = vadd.f32 %v6088, %v6459
  %v6462 = vadd.f32 %v6461, %v3338
  %v6463 = vsel %vm238, %v6462, 0.0
  %6464 = vadd.xlane.f32.xlu0 %v6463
  %v6465 = vpop.xlane.xlu0 %6464
  %v6466 = vmul.f32 %v6465, %v248
  %v6467 = vsub.f32 %v6462, %v6466
  %v6468 = vmul.f32 %v6467, %v6467
  %v6469 = vsel %vm238, %v6468, 0.0
  %6470 = vadd.xlane.f32.xlu0 %v6469
  %v6471 = vpop.xlane.xlu0 %6470
  %v6472 = vmul.f32 %v6471, %v248
  %v6473 = vadd.f32 %v6472, 1e-05
  %v6474 = vrsqrt.pop %v6473
  %v6475 = vmul.f32 %v6474, %v6473
  %v6476 = vmul.f32 %v6475, %v6474
  %v6477 = vmul.f32 0.5, %v6476
  %v6478 = vsub.f32 1.5, %v6477
  %v6479 = vmul.f32 %v6474, %v6478
  %vm6480 = vweird.f32 %v6473
  %vm6481 = vweird.f32 %v6474
  %vm6482 = vmor %vm6480, %vm6481
  %v6483 = vsel %vm6482, %v6474, %v6479
  %v6484 = vmul.f32 %v6467, %v6483
  %v6485 = vmul.f32 %v6484, %v3362
  %v6486 = vadd.f32 %v6485, %v3364
  %v6488 = vsel %vm238, %v6486, 0
  %6490 = vmatpush.msra.mxu0 0.0
  %6491 = vmatpush.msra.mxu0 0.0
  %6492 = vmatpush.msra.mxu0 0.0
  %6493 = vmatpush.msra.mxu0 0.0
  %6494 = vmatpush.msra.mxu0 0.0
  %6495 = vmatpush.msra.mxu0 0.0
  %6496 = vmatpush.msra.mxu0 0.0
  %6497 = vmatpush.msra.mxu0 0.0
  %6498 = vmatpush.msra.mxu0 0.0
  %6499 = vmatpush.msra.mxu0 0.0
  %6500 = vmatpush.msra.mxu0 0.0
  %6501 = vmatpush.msra.mxu0 0.0
  %6502 = vmatpush.msra.mxu0 %v179
  %6503 = vmatpush.msra.mxu0 %v178
  %6504 = vmatpush.msra.mxu0 %v177
  %6505 = vmatpush.msra.mxu0 %v176
  %6506 = vmatmul.f32.gmra.mxu0 %v6488
  %v6507 = vpop.f32.mrf.mxu0
  %v6508 = vadd.f32 %v3366, %v6507
  %6509 = vdwg.mxu0
  %v6510 = vmax.f32 %v6508, 0.0
  %v6512 = vsel %vm196, %v6510, 0
  %6514 = vmatpush.msra.mxu0 0.0
  %6515 = vmatpush.msra.mxu0 0.0
  %6516 = vmatpush.msra.mxu0 0.0
  %6517 = vmatpush.msra.mxu0 0.0
  %6518 = vmatpush.msra.mxu0 0.0
  %6519 = vmatpush.msra.mxu0 0.0
  %6520 = vmatpush.msra.mxu0 0.0
  %6521 = vmatpush.msra.mxu0 0.0
  %6522 = vmatpush.msra.mxu0 %v188
  %6523 = vmatpush.msra.mxu0 %v187
  %6524 = vmatpush.msra.mxu0 %v186
  %6525 = vmatpush.msra.mxu0 %v185
  %6526 = vmatpush.msra.mxu0 %v184
  %6527 = vmatpush.msra.mxu0 %v183
  %6528 = vmatpush.msra.mxu0 %v182
  %6529 = vmatpush.msra.mxu0 %v181
  %6530 = vmatmul.f32.gmra.mxu0 %v6512
  %v6531 = vpop.f32.mrf.mxu0
  %v6532 = vadd.f32 %v3391, %v6531
  %6533 = vdwg.mxu0
  %v6534 = vadd.f32 %v6486, %v6532
  %v6535 = vsel %vm238, %v6534, 0.0
  %6536 = vadd.xlane.f32.xlu0 %v6535
  %v6537 = vpop.xlane.xlu0 %6536
  %v6538 = vmul.f32 %v6537, %v248
  %v6539 = vsub.f32 %v6534, %v6538
  %v6540 = vmul.f32 %v6539, %v6539
  %v6541 = vsel %vm238, %v6540, 0.0
  %6542 = vadd.xlane.f32.xlu0 %v6541
  %v6543 = vpop.xlane.xlu0 %6542
  %v6544 = vmul.f32 %v6543, %v248
  %v6545 = vadd.f32 %v6544, 1e-05
  %v6546 = vrsqrt.pop %v6545
  %v6547 = vmul.f32 %v6546, %v6545
  %v6548 = vmul.f32 %v6547, %v6546
  %v6549 = vmul.f32 0.5, %v6548
  %v6550 = vsub.f32 1.5, %v6549
  %v6551 = vmul.f32 %v6546, %v6550
  %vm6552 = vweird.f32 %v6545
  %vm6553 = vweird.f32 %v6546
  %vm6554 = vmor %vm6552, %vm6553
  %v6555 = vsel %vm6554, %v6546, %v6551
  %v6556 = vmul.f32 %v6539, %v6555
  %v6557 = vmul.f32 %v6556, %v3438
  %v6558 = vadd.f32 %v6557, %v3440
  %v6559 = vsel %vm238, %v6558, 0.0
  %6560 = vadd.xlane.f32.xlu0 %v6559
  %v6561 = vpop.xlane.xlu0 %6560
  %v6562 = vmul.f32 %v6561, %v248
  %v6563 = vsub.f32 %v6558, %v6562
  %v6564 = vmul.f32 %v6563, %v6563
  %v6565 = vsel %vm238, %v6564, 0.0
  %6566 = vadd.xlane.f32.xlu0 %v6565
  %v6567 = vpop.xlane.xlu0 %6566
  %v6568 = vmul.f32 %v6567, %v248
  %v6569 = vadd.f32 %v6568, 1e-05
  %v6570 = vrsqrt.pop %v6569
  %v6571 = vmul.f32 %v6570, %v6569
  %v6572 = vmul.f32 %v6571, %v6570
  %v6573 = vmul.f32 0.5, %v6572
  %v6574 = vsub.f32 1.5, %v6573
  %v6575 = vmul.f32 %v6570, %v6574
  %vm6576 = vweird.f32 %v6569
  %vm6577 = vweird.f32 %v6570
  %vm6578 = vmor %vm6576, %vm6577
  %v6579 = vsel %vm6578, %v6570, %v6575
  %v6580 = vmul.f32 %v6563, %v6579
  %v6581 = vmul.f32 %v6580, %v268
  %v6582 = vadd.f32 %v6581, %v270
  %v6584 = vsel %vm238, %v6582, 0
  %6586 = vmatpush.msra.mxu0 0.0
  %6587 = vmatpush.msra.mxu0 0.0
  %6588 = vmatpush.msra.mxu0 0.0
  %6589 = vmatpush.msra.mxu0 0.0
  %6590 = vmatpush.msra.mxu0 0.0
  %6591 = vmatpush.msra.mxu0 0.0
  %6592 = vmatpush.msra.mxu0 0.0
  %6593 = vmatpush.msra.mxu0 0.0
  %6594 = vmatpush.msra.mxu0 0.0
  %6595 = vmatpush.msra.mxu0 0.0
  %6596 = vmatpush.msra.mxu0 0.0
  %6597 = vmatpush.msra.mxu0 0.0
  %6598 = vmatpush.msra.mxu0 %v21
  %6599 = vmatpush.msra.mxu0 %v20
  %6600 = vmatpush.msra.mxu0 %v19
  %6601 = vmatpush.msra.mxu0 %v18
  %6602 = vmatmul.f32.gmra.mxu0 %v6584
  %v6603 = vpop.f32.mrf.mxu0
  %v6604 = vadd.f32 %v272, %v6603
  %6605 = vdwg.mxu0
  %v6606 = vmax.f32 %v6604, 0.0
  %v6608 = vsel %vm238, %v6606, 0
  %6610 = vmatpush.msra.mxu0 0.0
  %6611 = vmatpush.msra.mxu0 0.0
  %6612 = vmatpush.msra.mxu0 0.0
  %6613 = vmatpush.msra.mxu0 0.0
  %6614 = vmatpush.msra.mxu0 0.0
  %6615 = vmatpush.msra.mxu0 0.0
  %6616 = vmatpush.msra.mxu0 0.0
  %6617 = vmatpush.msra.mxu0 0.0
  %6618 = vmatpush.msra.mxu0 0.0
  %6619 = vmatpush.msra.mxu0 0.0
  %6620 = vmatpush.msra.mxu0 0.0
  %6621 = vmatpush.msra.mxu0 0.0
  %6622 = vmatpush.msra.mxu0 %v25
  %6623 = vmatpush.msra.mxu0 %v24
  %6624 = vmatpush.msra.mxu0 %v23
  %6625 = vmatpush.msra.mxu0 %v22
  %6626 = vmatmul.f32.gmra.mxu0 %v6608
  %v6627 = vpop.f32.mrf.mxu0
  %v6628 = vadd.f32 %v297, %v6627
  %6629 = vdwg.mxu0
  %v6630 = vmax.f32 %v6628, 0.0
  %v6632 = vsel %vm238, %v6630, 0
  %6634 = vmatpush.msra.mxu0 0.0
  %6635 = vmatpush.msra.mxu0 0.0
  %6636 = vmatpush.msra.mxu0 0.0
  %6637 = vmatpush.msra.mxu0 0.0
  %6638 = vmatpush.msra.mxu0 0.0
  %6639 = vmatpush.msra.mxu0 0.0
  %6640 = vmatpush.msra.mxu0 0.0
  %6641 = vmatpush.msra.mxu0 0.0
  %6642 = vmatpush.msra.mxu0 0.0
  %6643 = vmatpush.msra.mxu0 0.0
  %6644 = vmatpush.msra.mxu0 0.0
  %6645 = vmatpush.msra.mxu0 0.0
  %6646 = vmatpush.msra.mxu0 %v29
  %6647 = vmatpush.msra.mxu0 %v28
  %6648 = vmatpush.msra.mxu0 %v27
  %6649 = vmatpush.msra.mxu0 %v26
  %6650 = vmatmul.f32.gmra.mxu0 %v6632
  %v6651 = vpop.f32.mrf.mxu0
  %v6652 = vadd.f32 %v322, %v6651
  %6653 = vdwg.mxu0
  %v6655 = vsel %vm238, %v6652, 0
  %6657 = vmatpush.msra.mxu0 0.0
  %6658 = vmatpush.msra.mxu0 0.0
  %6659 = vmatpush.msra.mxu0 0.0
  %6660 = vmatpush.msra.mxu0 0.0
  %6661 = vmatpush.msra.mxu0 0.0
  %6662 = vmatpush.msra.mxu0 0.0
  %6663 = vmatpush.msra.mxu0 0.0
  %6664 = vmatpush.msra.mxu0 0.0
  %6665 = vmatpush.msra.mxu0 0.0
  %6666 = vmatpush.msra.mxu0 0.0
  %6667 = vmatpush.msra.mxu0 0.0
  %6668 = vmatpush.msra.mxu0 0.0
  %6669 = vmatpush.msra.mxu0 %v3567
  %6670 = vmatpush.msra.mxu0 %v3566
  %6671 = vmatpush.msra.mxu0 %v3565
  %6672 = vmatpush.msra.mxu0 %v3564
  %6673 = vmatmul.f32.gmra.mxu0 %v6655
  %v6674 = vpop.f32.mrf.mxu0
  %v6675 = vadd.f32 0.0, %v6674
  %6676 = vdwg.mxu0
  %6678 = vrot.lane.b32.xlu0 %v6675, 64
  %v6679 = vpop.permute.xlu0 %6678
  %v6681 = vsel %vm196, %v3558, %v6679
  %6682 = vst [vmem:[%s4] sm:$0xff] %v6681
  // Predicated region
  $region18: #{forward.1} parent=0 // pred_check
    _
  $region19: #{forward.1} parent=0 // pred_check_branch
    %6684 = sbr.rel (0) target = $region21
  $region20: #{forward.1} parent=0 // pred_region
    _
  $region21: #{forward.1} parent=0 // pred_fallthru
    _
  // Predicated region
  $region22: #{forward.1} parent=0 // pred_check
    _
  $region23: #{forward.1} parent=0 // pred_check_branch
    %6686 = sbr.rel (0) target = $region25
  $region24: #{forward.1} parent=0 // pred_region
    _
  $region25: #{forward.1} parent=0 // pred_fallthru
    _

</llo_original>
